<compile_context>
chip_gen: v7x
topology: tpu7x:2x2x1
jax: 0.10.0
libtpu: 0.0.40
codegen_flags: <defaults>
</compile_context>

<pallas_src>
import jax
import jax.numpy as jnp
from jax import lax
from jax.experimental import pallas as pl
from jax.experimental.pallas import tpu as pltpu

HIDR = 48    # fixed in the PyTorch module (self.hidR = 48)
LANE = 128   # TPU lane width; hidden/channel/output dims are padded to this
BP = 8       # batch rows per block (one f32 sublane tile)


# ---------------------------------------------------------------------------
# Fused kernel: all GRU layers (wavefront-scheduled) + projection.
# ---------------------------------------------------------------------------
def _make_fused_kernel(T, L, P, output_len):
    """Return the fused GRU(+projection) kernel closed over static sizes."""

    def gru_gate(gi, gh, h):
        # lane-aligned gate slices (each gate padded to P=128 lanes)
        r = jax.nn.sigmoid(gi[:, 0:P] + gh[:, 0:P])
        z = jax.nn.sigmoid(gi[:, P:2 * P] + gh[:, P:2 * P])
        n = jnp.tanh(gi[:, 2 * P:3 * P] + r * gh[:, 2 * P:3 * P])
        return n + z * (h - n)                       # == (1-z)*n + z*h

    def kernel(x_ref, wih_ref, whh_ref, bih_ref, bhh_ref,
               wproj_ref, bproj_ref, out_ref, gi0_scr, tail_scr):
        # x_ref    : (1, T*BP, P)   compute-dtype (bf16 on the perf path)
        # wih/whh  : (L, P, 3P)     compute-dtype
        # bih/bhh  : (L, 1, 3P)     f32
        # wproj    : (P, P) f32 ; bproj : (1, P) f32
        # gi0_scr  : (T*BP, 3P) f32 -- layer-0 input-side gates, all timesteps
        # tail_scr : (output_len*BP, P) f32 -- last layer's tail hidden states
        cdt = wih_ref.dtype

        # Layer-0 input-side gates for ALL timesteps in one MXU matmul
        # (no time dependence, off the serial chain); b_ih folded in here.
        gi0_scr[...] = (
            jnp.dot(x_ref[0], wih_ref[0], preferred_element_type=jnp.float32)
            + bih_ref[0]
        )

        # Wavefront: at wave w, layer l processes timestep t = w - l using
        # only carries from the start of the wave -> the L per-wave layer
        # steps are mutually independent and can overlap on MXU/VPU/EUP.
        h = [jnp.zeros((BP, P), jnp.float32) for _ in range(L)]
        for w in range(T + L - 1):                   # static unroll (small T)
            h_prev = list(h)                         # start-of-wave carries
            for l in range(L):
                t = w - l
                if t < 0 or t >= T:
                    continue                         # layer idle this wave
                if l == 0:
                    gi = gi0_scr[pl.ds(t * BP, BP), :]          # aligned tile
                else:
                    # input gates from previous layer's carry (= its output
                    # at time t, produced in the previous wave)
                    gi = (
                        jnp.dot(h_prev[l - 1].astype(cdt), wih_ref[l],
                                preferred_element_type=jnp.float32)
                        + bih_ref[l]
                    )
                gh = (
                    jnp.dot(h_prev[l].astype(cdt), whh_ref[l],
                            preferred_element_type=jnp.float32)
                    + bhh_ref[l]
                )
                h[l] = gru_gate(gi, gh, h_prev[l])

            # stash the last layer's output if it falls in the forecast tail
            t_last = w - (L - 1)
            if t_last >= T - output_len:
                o = t_last - (T - output_len)
                tail_scr[pl.ds(o * BP, BP), :] = h[L - 1]

        # Fused projection on the last output_len timesteps only (f32).
        out_ref[0] = (
            jnp.dot(tail_scr[...], wproj_ref[...],
                    preferred_element_type=jnp.float32)
            + bproj_ref[...]
        ).astype(out_ref.dtype)

    return kernel


# ---------------------------------------------------------------------------
# Full forward, matching BaselineGruModel.forward semantics.
# ---------------------------------------------------------------------------
def baseline_gru_forward(x_enc, packed, output_len, out_dim):
    B, Tin, C = x_enc.shape
    T = Tin + output_len
    P = packed["P"]
    L = packed["wih"].shape[0]
    cdt = packed["wih"].dtype

    nb = (B + BP - 1) // BP          # batch blocks (grid size)
    Bp = nb * BP

    # concat zero "decoder" steps, go time-major, pad batch->8k, channels->P
    x = jnp.concatenate(
        [x_enc, jnp.zeros((B, output_len, C), x_enc.dtype)], axis=1)  # (B,T,C)
    x = jnp.transpose(x, (1, 0, 2))                                   # (T,B,C)
    x = jnp.pad(x, ((0, 0), (0, Bp - B), (0, P - C)))                 # (T,Bp,P)
    x = x.reshape(T, nb, BP, P).transpose(1, 0, 2, 3)                 # (nb,T,8,P)
    x = x.reshape(nb, T * BP, P).astype(cdt)

    kernel = _make_fused_kernel(T, L, P, output_len)
    out = pl.pallas_call(
        kernel,
        out_shape=jax.ShapeDtypeStruct((nb, output_len * BP, P), jnp.float32),
        grid=(nb,),
        in_specs=[
            pl.BlockSpec((1, T * BP, P), lambda b: (b, 0, 0)),
            pl.BlockSpec(packed["wih"].shape, lambda b: (0, 0, 0)),
            pl.BlockSpec(packed["whh"].shape, lambda b: (0, 0, 0)),
            pl.BlockSpec(packed["bih"].shape, lambda b: (0, 0, 0)),
            pl.BlockSpec(packed["bhh"].shape, lambda b: (0, 0, 0)),
            pl.BlockSpec(packed["wproj"].shape, lambda b: (0, 0)),
            pl.BlockSpec(packed["bproj"].shape, lambda b: (0, 0)),
        ],
        out_specs=pl.BlockSpec((1, output_len * BP, P), lambda b: (b, 0, 0)),
        scratch_shapes=[
            pltpu.VMEM((T * BP, 3 * P), jnp.float32),        # gi0_scr
            pltpu.VMEM((output_len * BP, P), jnp.float32),   # tail_scr
        ],
        compiler_params=pltpu.CompilerParams(
            dimension_semantics=("parallel",)),
    )(x, packed["wih"], packed["whh"], packed["bih"], packed["bhh"],
      packed["wproj"], packed["bproj"])

    # (nb, output_len*8, P) -> (B, output_len, out_dim)
    out = out.reshape(nb, output_len, BP, P).transpose(0, 2, 1, 3)
    out = out.reshape(Bp, output_len, P)[:B, :, :out_dim]
    return out


# ---------------------------------------------------------------------------
# Parameter init (PyTorch default U(-1/sqrt(H), 1/sqrt(H))), raw PyTorch layout.
# ---------------------------------------------------------------------------
def init_params(key, hidC, hidR, out_dim, num_layers):
    params = {"gru_layers": []}
    k = 1.0 / jnp.sqrt(jnp.float32(hidR))
    for layer in range(num_layers):
        in_sz = hidC if layer == 0 else hidR
        key, k1, k2, k3, k4 = jax.random.split(key, 5)
        w_ih = jax.random.uniform(k1, (3 * hidR, in_sz), jnp.float32, -k, k)
        w_hh = jax.random.uniform(k2, (3 * hidR, hidR), jnp.float32, -k, k)
        b_ih = jax.random.uniform(k3, (3 * hidR,), jnp.float32, -k, k)
        b_hh = jax.random.uniform(k4, (3 * hidR,), jnp.float32, -k, k)
        params["gru_layers"].append((w_ih, w_hh, b_ih, b_hh))
    key, k5, k6 = jax.random.split(key, 3)
    params["w_proj"] = jax.random.uniform(k5, (out_dim, hidR), jnp.float32, -k, k)
    params["b_proj"] = jax.random.uniform(k6, (out_dim,), jnp.float32, -k, k)
    return params


# ---------------------------------------------------------------------------
# Pack raw params into the padded, gate-lane-aligned, layer-stacked layout.
# GRU matmul weights are stored in `compute_dtype` (bf16 on the perf path);
# biases and the projection stay f32.
# ---------------------------------------------------------------------------
def pack_params(params, hidC, hidR, out_dim, P=LANE, compute_dtype=jnp.bfloat16):
    assert hidC <= P and hidR <= P and out_dim <= P
    L = len(params["gru_layers"])
    H = hidR
    wih = jnp.zeros((L, P, 3 * P), jnp.float32)
    whh = jnp.zeros((L, P, 3 * P), jnp.float32)
    bih = jnp.zeros((L, 1, 3 * P), jnp.float32)
    bhh = jnp.zeros((L, 1, 3 * P), jnp.float32)
    for l, (w_ih, w_hh, b_ih, b_hh) in enumerate(params["gru_layers"]):
        in_sz = w_ih.shape[1]
        for g in range(3):      # PyTorch gate order: r, z, n
            wih = wih.at[l, :in_sz, g * P:g * P + H].set(
                w_ih[g * H:(g + 1) * H, :].T)
            whh = whh.at[l, :H, g * P:g * P + H].set(
                w_hh[g * H:(g + 1) * H, :].T)
            bih = bih.at[l, 0, g * P:g * P + H].set(b_ih[g * H:(g + 1) * H])
            bhh = bhh.at[l, 0, g * P:g * P + H].set(b_hh[g * H:(g + 1) * H])
    wproj = jnp.zeros((P, P), jnp.float32).at[:H, :out_dim].set(
        params["w_proj"].T)
    bproj = jnp.zeros((1, P), jnp.float32).at[0, :out_dim].set(params["b_proj"])
    return {"wih": wih.astype(compute_dtype), "whh": whh.astype(compute_dtype),
            "bih": bih, "bhh": bhh, "wproj": wproj, "bproj": bproj, "P": P}


# ---------------------------------------------------------------------------
# Pure-JAX f32 reference (lax.scan) for correctness check.
# ---------------------------------------------------------------------------
def reference_forward(x_enc, params, output_len, out_dim):
    B, Tin, C = x_enc.shape
    x = jnp.concatenate(
        [x_enc, jnp.zeros((B, output_len, C), x_enc.dtype)], axis=1)
    h_seq = x
    for (w_ih, w_hh, b_ih, b_hh) in params["gru_layers"]:
        H = w_hh.shape[1]
        wih_t, whh_t = w_ih.T, w_hh.T

        def step(h, x_t, wih_t=wih_t, whh_t=whh_t, b_ih=b_ih, b_hh=b_hh, H=H):
            gi = x_t @ wih_t + b_ih
            gh = h @ whh_t + b_hh
            r = jax.nn.sigmoid(gi[:, :H] + gh[:, :H])
            z = jax.nn.sigmoid(gi[:, H:2 * H] + gh[:, H:2 * H])
            n = jnp.tanh(gi[:, 2 * H:] + r * gh[:, 2 * H:])
            h_new = (1.0 - z) * n + z * h
            return h_new, h_new

        h0 = jnp.zeros((B, H), jnp.float32)
        _, ys = lax.scan(step, h0, jnp.transpose(h_seq, (1, 0, 2)))
        h_seq = jnp.transpose(ys, (1, 0, 2))
    fc = h_seq @ params["w_proj"].T + params["b_proj"]
    return fc[:, -output_len:, -out_dim:]


if __name__ == "__main__":
    # settings analogous to the PyTorch module's dict
    settings = {
        "output_length": 4,
        "inputs": list(range(10)),   # hidC = 10
        "targets": ["target0"],      # out_dim = 1
        "dropout": 0.05,
        "lstm_layer": 2,
    }
    output_len = settings["output_length"]
    hidC = len(settings["inputs"])
    out_dim = len(settings["targets"])
    num_layers = settings["lstm_layer"]

    key = jax.random.PRNGKey(0)
    key, pkey, xkey = jax.random.split(key, 3)
    params = init_params(pkey, hidC, HIDR, out_dim, num_layers)

    B, Tin = 2, 8
    x_enc = jax.random.normal(xkey, (B, Tin, hidC), jnp.float32)

    ref = reference_forward(x_enc, params, output_len, out_dim)

    # 1) f32 weights: exact module math -> tight tolerance.
    packed_f32 = pack_params(params, hidC, HIDR, out_dim,
                             compute_dtype=jnp.float32)
    out_f32 = jax.block_until_ready(
        baseline_gru_forward(x_enc, packed_f32, output_len, out_dim))
    assert out_f32.shape == (B, output_len, out_dim), out_f32.shape
    assert jnp.allclose(out_f32, ref, atol=2e-5, rtol=2e-5), (
        "f32 mismatch vs reference: max abs err "
        f"{float(jnp.max(jnp.abs(out_f32 - ref)))}")

    # 2) bf16 MXU operands (perf path): tolerance loosened for bf16 rounding
    #    accumulated over the 12-step recurrence (gates/accumulators stay f32).
    packed_bf16 = pack_params(params, hidC, HIDR, out_dim,
                              compute_dtype=jnp.bfloat16)
    out_bf16 = jax.block_until_ready(
        baseline_gru_forward(x_enc, packed_bf16, output_len, out_dim))
    assert out_bf16.shape == (B, output_len, out_dim), out_bf16.shape
    assert jnp.allclose(out_bf16, ref, atol=5e-2, rtol=5e-2), (
        "bf16 mismatch vs reference: max abs err "
        f"{float(jnp.max(jnp.abs(out_bf16 - ref)))}")

    print("KERNEL_OK")
</pallas_src>

<mosaic_0001>
module attributes {stable_mosaic.version = 11 : i64} {
  func.func @kernel(%arg0: i32, %arg1: memref<1x96x128xf32, #tpu.memory_space<vmem>>, %arg2: memref<2x128x384xf32, #tpu.memory_space<vmem>>, %arg3: memref<2x128x384xf32, #tpu.memory_space<vmem>>, %arg4: memref<2x1x384xf32, #tpu.memory_space<vmem>>, %arg5: memref<2x1x384xf32, #tpu.memory_space<vmem>>, %arg6: memref<128x128xf32, #tpu.memory_space<vmem>>, %arg7: memref<1x128xf32, #tpu.memory_space<vmem>>, %arg8: memref<1x32x128xf32, #tpu.memory_space<vmem>>, %arg9: memref<96x384xf32, #tpu.memory_space<vmem>>, %arg10: memref<32x128xf32, #tpu.memory_space<vmem>>) attributes {dimension_semantics = [#tpu.dimension_semantics<parallel>], iteration_bounds = array<i64: 1>, scalar_prefetch = 0 : i64, scratch_operands = 2 : i64, tpu.core_type = #tpu.core_type<tc>, window_params = [{transform_indices = @transform_0, window_bounds = array<i64: 1, 96, 128>}, {pipeline_mode = #tpu.pipeline_mode<synchronous>, transform_indices = @transform_1, window_bounds = array<i64: 2, 128, 384>}, {pipeline_mode = #tpu.pipeline_mode<synchronous>, transform_indices = @transform_2, window_bounds = array<i64: 2, 128, 384>}, {pipeline_mode = #tpu.pipeline_mode<synchronous>, transform_indices = @transform_3, window_bounds = array<i64: 2, 1, 384>}, {pipeline_mode = #tpu.pipeline_mode<synchronous>, transform_indices = @transform_4, window_bounds = array<i64: 2, 1, 384>}, {pipeline_mode = #tpu.pipeline_mode<synchronous>, transform_indices = @transform_5, window_bounds = array<i64: 128, 128>}, {pipeline_mode = #tpu.pipeline_mode<synchronous>, transform_indices = @transform_6, window_bounds = array<i64: 1, 128>}, {transform_indices = @transform_7, window_bounds = array<i64: 1, 32, 128>}]} {
    %c0 = arith.constant 0 : index
    %c0_0 = arith.constant 0 : index
    %c0_1 = arith.constant 0 : index
    %0 = vector.load %arg1[%c0, %c0_0, %c0_1] : memref<1x96x128xf32, #tpu.memory_space<vmem>>, vector<1x96x128xf32>
    %1 = vector.shape_cast %0 : vector<1x96x128xf32> to vector<96x128xf32>
    %c0_2 = arith.constant 0 : index
    %c0_3 = arith.constant 0 : index
    %c0_4 = arith.constant 0 : index
    %2 = vector.load %arg2[%c0_2, %c0_3, %c0_4] : memref<2x128x384xf32, #tpu.memory_space<vmem>>, vector<1x128x384xf32>
    %3 = vector.shape_cast %2 : vector<1x128x384xf32> to vector<128x384xf32>
    %cst = arith.constant dense<0.000000e+00> : vector<96x384xf32>
    %4 = tpu.matmul %1, %3, %cst {dimension_numbers = #tpu.dot_dimension_numbers<[1], [0], [0], [1], [0, 0, 1, 1], [], []>} : vector<96x128xf32>, vector<128x384xf32>, vector<96x384xf32> -> vector<96x384xf32>
    %c0_5 = arith.constant 0 : index
    %c0_6 = arith.constant 0 : index
    %c0_7 = arith.constant 0 : index
    %5 = vector.load %arg4[%c0_5, %c0_6, %c0_7] : memref<2x1x384xf32, #tpu.memory_space<vmem>>, vector<1x1x384xf32>
    %6 = vector.shape_cast %5 : vector<1x1x384xf32> to vector<1x384xf32>
    %7 = vector.broadcast %6 : vector<1x384xf32> to vector<96x384xf32>
    %8 = arith.addf %4, %7 : vector<96x384xf32>
    %c0_8 = arith.constant 0 : index
    %c0_9 = arith.constant 0 : index
    %9 = vector.load %arg9[%c0_8, %c0_9] : memref<96x384xf32, #tpu.memory_space<vmem>>, vector<96x384xf32>
    tpu.vector_store %arg9[%c0_8, %c0_9], %8 {strides = array<i32>} : memref<96x384xf32, #tpu.memory_space<vmem>>, vector<96x384xf32>,
    %cst_10 = arith.constant 0.000000e+00 : f32
    %10 = vector.broadcast %cst_10 : f32 to vector<8x128xf32>
    %cst_11 = arith.constant 0.000000e+00 : f32
    %11 = vector.broadcast %cst_11 : f32 to vector<8x128xf32>
    %c0_12 = arith.constant 0 : index
    %c0_13 = arith.constant 0 : index
    %12 = vector.load %arg9[%c0_12, %c0_13] : memref<96x384xf32, #tpu.memory_space<vmem>>, vector<8x384xf32>
    %c0_14 = arith.constant 0 : index
    %c0_15 = arith.constant 0 : index
    %c0_16 = arith.constant 0 : index
    %13 = vector.load %arg3[%c0_14, %c0_15, %c0_16] : memref<2x128x384xf32, #tpu.memory_space<vmem>>, vector<1x128x384xf32>
    %14 = vector.shape_cast %13 : vector<1x128x384xf32> to vector<128x384xf32>
    %cst_17 = arith.constant dense<0.000000e+00> : vector<8x384xf32>
    %15 = tpu.matmul %10, %14, %cst_17 {dimension_numbers = #tpu.dot_dimension_numbers<[1], [0], [0], [1], [0, 0, 1, 1], [], []>} : vector<8x128xf32>, vector<128x384xf32>, vector<8x384xf32> -> vector<8x384xf32>
    %c0_18 = arith.constant 0 : index
    %c0_19 = arith.constant 0 : index
    %c0_20 = arith.constant 0 : index
    %16 = vector.load %arg5[%c0_18, %c0_19, %c0_20] : memref<2x1x384xf32, #tpu.memory_space<vmem>>, vector<1x1x384xf32>
    %17 = vector.shape_cast %16 : vector<1x1x384xf32> to vector<1x384xf32>
    %18 = vector.broadcast %17 : vector<1x384xf32> to vector<8x384xf32>
    %19 = arith.addf %15, %18 : vector<8x384xf32>
    %20 = vector.extract_strided_slice %12 {offsets = [0, 0], sizes = [8, 128], strides = [1, 1]} : vector<8x384xf32> to vector<8x128xf32>
    %21 = vector.extract_strided_slice %19 {offsets = [0, 0], sizes = [8, 128], strides = [1, 1]} : vector<8x384xf32> to vector<8x128xf32>
    %22 = arith.addf %20, %21 : vector<8x128xf32>
    %23 = arith.negf %22 : vector<8x128xf32>
    %24 = math.exp %23 : vector<8x128xf32>
    %cst_21 = arith.constant 1.000000e+00 : f32
    %25 = vector.broadcast %cst_21 : f32 to vector<8x128xf32>
    %26 = arith.addf %25, %24 : vector<8x128xf32>
    %27 = arith.divf %25, %26 : vector<8x128xf32>
    %28 = vector.extract_strided_slice %12 {offsets = [0, 128], sizes = [8, 128], strides = [1, 1]} : vector<8x384xf32> to vector<8x128xf32>
    %29 = vector.extract_strided_slice %19 {offsets = [0, 128], sizes = [8, 128], strides = [1, 1]} : vector<8x384xf32> to vector<8x128xf32>
    %30 = arith.addf %28, %29 : vector<8x128xf32>
    %31 = arith.negf %30 : vector<8x128xf32>
    %32 = math.exp %31 : vector<8x128xf32>
    %cst_22 = arith.constant 1.000000e+00 : f32
    %33 = vector.broadcast %cst_22 : f32 to vector<8x128xf32>
    %34 = arith.addf %33, %32 : vector<8x128xf32>
    %35 = arith.divf %33, %34 : vector<8x128xf32>
    %36 = vector.extract_strided_slice %12 {offsets = [0, 256], sizes = [8, 128], strides = [1, 1]} : vector<8x384xf32> to vector<8x128xf32>
    %37 = vector.extract_strided_slice %19 {offsets = [0, 256], sizes = [8, 128], strides = [1, 1]} : vector<8x384xf32> to vector<8x128xf32>
    %38 = arith.mulf %27, %37 : vector<8x128xf32>
    %39 = arith.addf %36, %38 : vector<8x128xf32>
    %40 = math.tanh %39 : vector<8x128xf32>
    %41 = arith.subf %10, %40 : vector<8x128xf32>
    %42 = arith.mulf %35, %41 : vector<8x128xf32>
    %43 = arith.addf %40, %42 : vector<8x128xf32>
    %c8 = arith.constant 8 : index
    %c0_23 = arith.constant 0 : index
    %44 = vector.load %arg9[%c8, %c0_23] : memref<96x384xf32, #tpu.memory_space<vmem>>, vector<8x384xf32>
    %c0_24 = arith.constant 0 : index
    %c0_25 = arith.constant 0 : index
    %c0_26 = arith.constant 0 : index
    %45 = vector.load %arg3[%c0_24, %c0_25, %c0_26] : memref<2x128x384xf32, #tpu.memory_space<vmem>>, vector<1x128x384xf32>
    %46 = vector.shape_cast %45 : vector<1x128x384xf32> to vector<128x384xf32>
    %cst_27 = arith.constant dense<0.000000e+00> : vector<8x384xf32>
    %47 = tpu.matmul %43, %46, %cst_27 {dimension_numbers = #tpu.dot_dimension_numbers<[1], [0], [0], [1], [0, 0, 1, 1], [], []>} : vector<8x128xf32>, vector<128x384xf32>, vector<8x384xf32> -> vector<8x384xf32>
    %c0_28 = arith.constant 0 : index
    %c0_29 = arith.constant 0 : index
    %c0_30 = arith.constant 0 : index
    %48 = vector.load %arg5[%c0_28, %c0_29, %c0_30] : memref<2x1x384xf32, #tpu.memory_space<vmem>>, vector<1x1x384xf32>
    %49 = vector.shape_cast %48 : vector<1x1x384xf32> to vector<1x384xf32>
    %50 = vector.broadcast %49 : vector<1x384xf32> to vector<8x384xf32>
    %51 = arith.addf %47, %50 : vector<8x384xf32>
    %52 = vector.extract_strided_slice %44 {offsets = [0, 0], sizes = [8, 128], strides = [1, 1]} : vector<8x384xf32> to vector<8x128xf32>
    %53 = vector.extract_strided_slice %51 {offsets = [0, 0], sizes = [8, 128], strides = [1, 1]} : vector<8x384xf32> to vector<8x128xf32>
    %54 = arith.addf %52, %53 : vector<8x128xf32>
    %55 = arith.negf %54 : vector<8x128xf32>
    %56 = math.exp %55 : vector<8x128xf32>
    %cst_31 = arith.constant 1.000000e+00 : f32
    %57 = vector.broadcast %cst_31 : f32 to vector<8x128xf32>
    %58 = arith.addf %57, %56 : vector<8x128xf32>
    %59 = arith.divf %57, %58 : vector<8x128xf32>
    %60 = vector.extract_strided_slice %44 {offsets = [0, 128], sizes = [8, 128], strides = [1, 1]} : vector<8x384xf32> to vector<8x128xf32>
    %61 = vector.extract_strided_slice %51 {offsets = [0, 128], sizes = [8, 128], strides = [1, 1]} : vector<8x384xf32> to vector<8x128xf32>
    %62 = arith.addf %60, %61 : vector<8x128xf32>
    %63 = arith.negf %62 : vector<8x128xf32>
    %64 = math.exp %63 : vector<8x128xf32>
    %cst_32 = arith.constant 1.000000e+00 : f32
    %65 = vector.broadcast %cst_32 : f32 to vector<8x128xf32>
    %66 = arith.addf %65, %64 : vector<8x128xf32>
    %67 = arith.divf %65, %66 : vector<8x128xf32>
    %68 = vector.extract_strided_slice %44 {offsets = [0, 256], sizes = [8, 128], strides = [1, 1]} : vector<8x384xf32> to vector<8x128xf32>
    %69 = vector.extract_strided_slice %51 {offsets = [0, 256], sizes = [8, 128], strides = [1, 1]} : vector<8x384xf32> to vector<8x128xf32>
    %70 = arith.mulf %59, %69 : vector<8x128xf32>
    %71 = arith.addf %68, %70 : vector<8x128xf32>
    %72 = math.tanh %71 : vector<8x128xf32>
    %73 = arith.subf %43, %72 : vector<8x128xf32>
    %74 = arith.mulf %67, %73 : vector<8x128xf32>
    %75 = arith.addf %72, %74 : vector<8x128xf32>
    %c1 = arith.constant 1 : index
    %c0_33 = arith.constant 0 : index
    %c0_34 = arith.constant 0 : index
    %76 = vector.load %arg2[%c1, %c0_33, %c0_34] : memref<2x128x384xf32, #tpu.memory_space<vmem>>, vector<1x128x384xf32>
    %77 = vector.shape_cast %76 : vector<1x128x384xf32> to vector<128x384xf32>
    %cst_35 = arith.constant dense<0.000000e+00> : vector<8x384xf32>
    %78 = tpu.matmul %43, %77, %cst_35 {dimension_numbers = #tpu.dot_dimension_numbers<[1], [0], [0], [1], [0, 0, 1, 1], [], []>} : vector<8x128xf32>, vector<128x384xf32>, vector<8x384xf32> -> vector<8x384xf32>
    %c1_36 = arith.constant 1 : index
    %c0_37 = arith.constant 0 : index
    %c0_38 = arith.constant 0 : index
    %79 = vector.load %arg4[%c1_36, %c0_37, %c0_38] : memref<2x1x384xf32, #tpu.memory_space<vmem>>, vector<1x1x384xf32>
    %80 = vector.shape_cast %79 : vector<1x1x384xf32> to vector<1x384xf32>
    %81 = vector.broadcast %80 : vector<1x384xf32> to vector<8x384xf32>
    %82 = arith.addf %78, %81 : vector<8x384xf32>
    %c1_39 = arith.constant 1 : index
    %c0_40 = arith.constant 0 : index
    %c0_41 = arith.constant 0 : index
    %83 = vector.load %arg3[%c1_39, %c0_40, %c0_41] : memref<2x128x384xf32, #tpu.memory_space<vmem>>, vector<1x128x384xf32>
    %84 = vector.shape_cast %83 : vector<1x128x384xf32> to vector<128x384xf32>
    %cst_42 = arith.constant dense<0.000000e+00> : vector<8x384xf32>
    %85 = tpu.matmul %11, %84, %cst_42 {dimension_numbers = #tpu.dot_dimension_numbers<[1], [0], [0], [1], [0, 0, 1, 1], [], []>} : vector<8x128xf32>, vector<128x384xf32>, vector<8x384xf32> -> vector<8x384xf32>
    %c1_43 = arith.constant 1 : index
    %c0_44 = arith.constant 0 : index
    %c0_45 = arith.constant 0 : index
    %86 = vector.load %arg5[%c1_43, %c0_44, %c0_45] : memref<2x1x384xf32, #tpu.memory_space<vmem>>, vector<1x1x384xf32>
    %87 = vector.shape_cast %86 : vector<1x1x384xf32> to vector<1x384xf32>
    %88 = vector.broadcast %87 : vector<1x384xf32> to vector<8x384xf32>
    %89 = arith.addf %85, %88 : vector<8x384xf32>
    %90 = vector.extract_strided_slice %82 {offsets = [0, 0], sizes = [8, 128], strides = [1, 1]} : vector<8x384xf32> to vector<8x128xf32>
    %91 = vector.extract_strided_slice %89 {offsets = [0, 0], sizes = [8, 128], strides = [1, 1]} : vector<8x384xf32> to vector<8x128xf32>
    %92 = arith.addf %90, %91 : vector<8x128xf32>
    %93 = arith.negf %92 : vector<8x128xf32>
    %94 = math.exp %93 : vector<8x128xf32>
    %cst_46 = arith.constant 1.000000e+00 : f32
    %95 = vector.broadcast %cst_46 : f32 to vector<8x128xf32>
    %96 = arith.addf %95, %94 : vector<8x128xf32>
    %97 = arith.divf %95, %96 : vector<8x128xf32>
    %98 = vector.extract_strided_slice %82 {offsets = [0, 128], sizes = [8, 128], strides = [1, 1]} : vector<8x384xf32> to vector<8x128xf32>
    %99 = vector.extract_strided_slice %89 {offsets = [0, 128], sizes = [8, 128], strides = [1, 1]} : vector<8x384xf32> to vector<8x128xf32>
    %100 = arith.addf %98, %99 : vector<8x128xf32>
    %101 = arith.negf %100 : vector<8x128xf32>
    %102 = math.exp %101 : vector<8x128xf32>
    %cst_47 = arith.constant 1.000000e+00 : f32
    %103 = vector.broadcast %cst_47 : f32 to vector<8x128xf32>
    %104 = arith.addf %103, %102 : vector<8x128xf32>
    %105 = arith.divf %103, %104 : vector<8x128xf32>
    %106 = vector.extract_strided_slice %82 {offsets = [0, 256], sizes = [8, 128], strides = [1, 1]} : vector<8x384xf32> to vector<8x128xf32>
    %107 = vector.extract_strided_slice %89 {offsets = [0, 256], sizes = [8, 128], strides = [1, 1]} : vector<8x384xf32> to vector<8x128xf32>
    %108 = arith.mulf %97, %107 : vector<8x128xf32>
    %109 = arith.addf %106, %108 : vector<8x128xf32>
    %110 = math.tanh %109 : vector<8x128xf32>
    %111 = arith.subf %11, %110 : vector<8x128xf32>
    %112 = arith.mulf %105, %111 : vector<8x128xf32>
    %113 = arith.addf %110, %112 : vector<8x128xf32>
    %c16 = arith.constant 16 : index
    %c0_48 = arith.constant 0 : index
    %114 = vector.load %arg9[%c16, %c0_48] : memref<96x384xf32, #tpu.memory_space<vmem>>, vector<8x384xf32>
    %c0_49 = arith.constant 0 : index
    %c0_50 = arith.constant 0 : index
    %c0_51 = arith.constant 0 : index
    %115 = vector.load %arg3[%c0_49, %c0_50, %c0_51] : memref<2x128x384xf32, #tpu.memory_space<vmem>>, vector<1x128x384xf32>
    %116 = vector.shape_cast %115 : vector<1x128x384xf32> to vector<128x384xf32>
    %cst_52 = arith.constant dense<0.000000e+00> : vector<8x384xf32>
    %117 = tpu.matmul %75, %116, %cst_52 {dimension_numbers = #tpu.dot_dimension_numbers<[1], [0], [0], [1], [0, 0, 1, 1], [], []>} : vector<8x128xf32>, vector<128x384xf32>, vector<8x384xf32> -> vector<8x384xf32>
    %c0_53 = arith.constant 0 : index
    %c0_54 = arith.constant 0 : index
    %c0_55 = arith.constant 0 : index
    %118 = vector.load %arg5[%c0_53, %c0_54, %c0_55] : memref<2x1x384xf32, #tpu.memory_space<vmem>>, vector<1x1x384xf32>
    %119 = vector.shape_cast %118 : vector<1x1x384xf32> to vector<1x384xf32>
    %120 = vector.broadcast %119 : vector<1x384xf32> to vector<8x384xf32>
    %121 = arith.addf %117, %120 : vector<8x384xf32>
    %122 = vector.extract_strided_slice %114 {offsets = [0, 0], sizes = [8, 128], strides = [1, 1]} : vector<8x384xf32> to vector<8x128xf32>
    %123 = vector.extract_strided_slice %121 {offsets = [0, 0], sizes = [8, 128], strides = [1, 1]} : vector<8x384xf32> to vector<8x128xf32>
    %124 = arith.addf %122, %123 : vector<8x128xf32>
    %125 = arith.negf %124 : vector<8x128xf32>
    %126 = math.exp %125 : vector<8x128xf32>
    %cst_56 = arith.constant 1.000000e+00 : f32
    %127 = vector.broadcast %cst_56 : f32 to vector<8x128xf32>
    %128 = arith.addf %127, %126 : vector<8x128xf32>
    %129 = arith.divf %127, %128 : vector<8x128xf32>
    %130 = vector.extract_strided_slice %114 {offsets = [0, 128], sizes = [8, 128], strides = [1, 1]} : vector<8x384xf32> to vector<8x128xf32>
    %131 = vector.extract_strided_slice %121 {offsets = [0, 128], sizes = [8, 128], strides = [1, 1]} : vector<8x384xf32> to vector<8x128xf32>
    %132 = arith.addf %130, %131 : vector<8x128xf32>
    %133 = arith.negf %132 : vector<8x128xf32>
    %134 = math.exp %133 : vector<8x128xf32>
    %cst_57 = arith.constant 1.000000e+00 : f32
    %135 = vector.broadcast %cst_57 : f32 to vector<8x128xf32>
    %136 = arith.addf %135, %134 : vector<8x128xf32>
    %137 = arith.divf %135, %136 : vector<8x128xf32>
    %138 = vector.extract_strided_slice %114 {offsets = [0, 256], sizes = [8, 128], strides = [1, 1]} : vector<8x384xf32> to vector<8x128xf32>
    %139 = vector.extract_strided_slice %121 {offsets = [0, 256], sizes = [8, 128], strides = [1, 1]} : vector<8x384xf32> to vector<8x128xf32>
    %140 = arith.mulf %129, %139 : vector<8x128xf32>
    %141 = arith.addf %138, %140 : vector<8x128xf32>
    %142 = math.tanh %141 : vector<8x128xf32>
    %143 = arith.subf %75, %142 : vector<8x128xf32>
    %144 = arith.mulf %137, %143 : vector<8x128xf32>
    %145 = arith.addf %142, %144 : vector<8x128xf32>
    %c1_58 = arith.constant 1 : index
    %c0_59 = arith.constant 0 : index
    %c0_60 = arith.constant 0 : index
    %146 = vector.load %arg2[%c1_58, %c0_59, %c0_60] : memref<2x128x384xf32, #tpu.memory_space<vmem>>, vector<1x128x384xf32>
    %147 = vector.shape_cast %146 : vector<1x128x384xf32> to vector<128x384xf32>
    %cst_61 = arith.constant dense<0.000000e+00> : vector<8x384xf32>
    %148 = tpu.matmul %75, %147, %cst_61 {dimension_numbers = #tpu.dot_dimension_numbers<[1], [0], [0], [1], [0, 0, 1, 1], [], []>} : vector<8x128xf32>, vector<128x384xf32>, vector<8x384xf32> -> vector<8x384xf32>
    %c1_62 = arith.constant 1 : index
    %c0_63 = arith.constant 0 : index
    %c0_64 = arith.constant 0 : index
    %149 = vector.load %arg4[%c1_62, %c0_63, %c0_64] : memref<2x1x384xf32, #tpu.memory_space<vmem>>, vector<1x1x384xf32>
    %150 = vector.shape_cast %149 : vector<1x1x384xf32> to vector<1x384xf32>
    %151 = vector.broadcast %150 : vector<1x384xf32> to vector<8x384xf32>
    %152 = arith.addf %148, %151 : vector<8x384xf32>
    %c1_65 = arith.constant 1 : index
    %c0_66 = arith.constant 0 : index
    %c0_67 = arith.constant 0 : index
    %153 = vector.load %arg3[%c1_65, %c0_66, %c0_67] : memref<2x128x384xf32, #tpu.memory_space<vmem>>, vector<1x128x384xf32>
    %154 = vector.shape_cast %153 : vector<1x128x384xf32> to vector<128x384xf32>
    %cst_68 = arith.constant dense<0.000000e+00> : vector<8x384xf32>
    %155 = tpu.matmul %113, %154, %cst_68 {dimension_numbers = #tpu.dot_dimension_numbers<[1], [0], [0], [1], [0, 0, 1, 1], [], []>} : vector<8x128xf32>, vector<128x384xf32>, vector<8x384xf32> -> vector<8x384xf32>
    %c1_69 = arith.constant 1 : index
    %c0_70 = arith.constant 0 : index
    %c0_71 = arith.constant 0 : index
    %156 = vector.load %arg5[%c1_69, %c0_70, %c0_71] : memref<2x1x384xf32, #tpu.memory_space<vmem>>, vector<1x1x384xf32>
    %157 = vector.shape_cast %156 : vector<1x1x384xf32> to vector<1x384xf32>
    %158 = vector.broadcast %157 : vector<1x384xf32> to vector<8x384xf32>
    %159 = arith.addf %155, %158 : vector<8x384xf32>
    %160 = vector.extract_strided_slice %152 {offsets = [0, 0], sizes = [8, 128], strides = [1, 1]} : vector<8x384xf32> to vector<8x128xf32>
    %161 = vector.extract_strided_slice %159 {offsets = [0, 0], sizes = [8, 128], strides = [1, 1]} : vector<8x384xf32> to vector<8x128xf32>
    %162 = arith.addf %160, %161 : vector<8x128xf32>
    %163 = arith.negf %162 : vector<8x128xf32>
    %164 = math.exp %163 : vector<8x128xf32>
    %cst_72 = arith.constant 1.000000e+00 : f32
    %165 = vector.broadcast %cst_72 : f32 to vector<8x128xf32>
    %166 = arith.addf %165, %164 : vector<8x128xf32>
    %167 = arith.divf %165, %166 : vector<8x128xf32>
    %168 = vector.extract_strided_slice %152 {offsets = [0, 128], sizes = [8, 128], strides = [1, 1]} : vector<8x384xf32> to vector<8x128xf32>
    %169 = vector.extract_strided_slice %159 {offsets = [0, 128], sizes = [8, 128], strides = [1, 1]} : vector<8x384xf32> to vector<8x128xf32>
    %170 = arith.addf %168, %169 : vector<8x128xf32>
    %171 = arith.negf %170 : vector<8x128xf32>
    %172 = math.exp %171 : vector<8x128xf32>
    %cst_73 = arith.constant 1.000000e+00 : f32
    %173 = vector.broadcast %cst_73 : f32 to vector<8x128xf32>
    %174 = arith.addf %173, %172 : vector<8x128xf32>
    %175 = arith.divf %173, %174 : vector<8x128xf32>
    %176 = vector.extract_strided_slice %152 {offsets = [0, 256], sizes = [8, 128], strides = [1, 1]} : vector<8x384xf32> to vector<8x128xf32>
    %177 = vector.extract_strided_slice %159 {offsets = [0, 256], sizes = [8, 128], strides = [1, 1]} : vector<8x384xf32> to vector<8x128xf32>
    %178 = arith.mulf %167, %177 : vector<8x128xf32>
    %179 = arith.addf %176, %178 : vector<8x128xf32>
    %180 = math.tanh %179 : vector<8x128xf32>
    %181 = arith.subf %113, %180 : vector<8x128xf32>
    %182 = arith.mulf %175, %181 : vector<8x128xf32>
    %183 = arith.addf %180, %182 : vector<8x128xf32>
    %c24 = arith.constant 24 : index
    %c0_74 = arith.constant 0 : index
    %184 = vector.load %arg9[%c24, %c0_74] : memref<96x384xf32, #tpu.memory_space<vmem>>, vector<8x384xf32>
    %c0_75 = arith.constant 0 : index
    %c0_76 = arith.constant 0 : index
    %c0_77 = arith.constant 0 : index
    %185 = vector.load %arg3[%c0_75, %c0_76, %c0_77] : memref<2x128x384xf32, #tpu.memory_space<vmem>>, vector<1x128x384xf32>
    %186 = vector.shape_cast %185 : vector<1x128x384xf32> to vector<128x384xf32>
    %cst_78 = arith.constant dense<0.000000e+00> : vector<8x384xf32>
    %187 = tpu.matmul %145, %186, %cst_78 {dimension_numbers = #tpu.dot_dimension_numbers<[1], [0], [0], [1], [0, 0, 1, 1], [], []>} : vector<8x128xf32>, vector<128x384xf32>, vector<8x384xf32> -> vector<8x384xf32>
    %c0_79 = arith.constant 0 : index
    %c0_80 = arith.constant 0 : index
    %c0_81 = arith.constant 0 : index
    %188 = vector.load %arg5[%c0_79, %c0_80, %c0_81] : memref<2x1x384xf32, #tpu.memory_space<vmem>>, vector<1x1x384xf32>
    %189 = vector.shape_cast %188 : vector<1x1x384xf32> to vector<1x384xf32>
    %190 = vector.broadcast %189 : vector<1x384xf32> to vector<8x384xf32>
    %191 = arith.addf %187, %190 : vector<8x384xf32>
    %192 = vector.extract_strided_slice %184 {offsets = [0, 0], sizes = [8, 128], strides = [1, 1]} : vector<8x384xf32> to vector<8x128xf32>
    %193 = vector.extract_strided_slice %191 {offsets = [0, 0], sizes = [8, 128], strides = [1, 1]} : vector<8x384xf32> to vector<8x128xf32>
    %194 = arith.addf %192, %193 : vector<8x128xf32>
    %195 = arith.negf %194 : vector<8x128xf32>
    %196 = math.exp %195 : vector<8x128xf32>
    %cst_82 = arith.constant 1.000000e+00 : f32
    %197 = vector.broadcast %cst_82 : f32 to vector<8x128xf32>
    %198 = arith.addf %197, %196 : vector<8x128xf32>
    %199 = arith.divf %197, %198 : vector<8x128xf32>
    %200 = vector.extract_strided_slice %184 {offsets = [0, 128], sizes = [8, 128], strides = [1, 1]} : vector<8x384xf32> to vector<8x128xf32>
    %201 = vector.extract_strided_slice %191 {offsets = [0, 128], sizes = [8, 128], strides = [1, 1]} : vector<8x384xf32> to vector<8x128xf32>
    %202 = arith.addf %200, %201 : vector<8x128xf32>
    %203 = arith.negf %202 : vector<8x128xf32>
    %204 = math.exp %203 : vector<8x128xf32>
    %cst_83 = arith.constant 1.000000e+00 : f32
    %205 = vector.broadcast %cst_83 : f32 to vector<8x128xf32>
    %206 = arith.addf %205, %204 : vector<8x128xf32>
    %207 = arith.divf %205, %206 : vector<8x128xf32>
    %208 = vector.extract_strided_slice %184 {offsets = [0, 256], sizes = [8, 128], strides = [1, 1]} : vector<8x384xf32> to vector<8x128xf32>
    %209 = vector.extract_strided_slice %191 {offsets = [0, 256], sizes = [8, 128], strides = [1, 1]} : vector<8x384xf32> to vector<8x128xf32>
    %210 = arith.mulf %199, %209 : vector<8x128xf32>
    %211 = arith.addf %208, %210 : vector<8x128xf32>
    %212 = math.tanh %211 : vector<8x128xf32>
    %213 = arith.subf %145, %212 : vector<8x128xf32>
    %214 = arith.mulf %207, %213 : vector<8x128xf32>
    %215 = arith.addf %212, %214 : vector<8x128xf32>
    %c1_84 = arith.constant 1 : index
    %c0_85 = arith.constant 0 : index
    %c0_86 = arith.constant 0 : index
    %216 = vector.load %arg2[%c1_84, %c0_85, %c0_86] : memref<2x128x384xf32, #tpu.memory_space<vmem>>, vector<1x128x384xf32>
    %217 = vector.shape_cast %216 : vector<1x128x384xf32> to vector<128x384xf32>
    %cst_87 = arith.constant dense<0.000000e+00> : vector<8x384xf32>
    %218 = tpu.matmul %145, %217, %cst_87 {dimension_numbers = #tpu.dot_dimension_numbers<[1], [0], [0], [1], [0, 0, 1, 1], [], []>} : vector<8x128xf32>, vector<128x384xf32>, vector<8x384xf32> -> vector<8x384xf32>
    %c1_88 = arith.constant 1 : index
    %c0_89 = arith.constant 0 : index
    %c0_90 = arith.constant 0 : index
    %219 = vector.load %arg4[%c1_88, %c0_89, %c0_90] : memref<2x1x384xf32, #tpu.memory_space<vmem>>, vector<1x1x384xf32>
    %220 = vector.shape_cast %219 : vector<1x1x384xf32> to vector<1x384xf32>
    %221 = vector.broadcast %220 : vector<1x384xf32> to vector<8x384xf32>
    %222 = arith.addf %218, %221 : vector<8x384xf32>
    %c1_91 = arith.constant 1 : index
    %c0_92 = arith.constant 0 : index
    %c0_93 = arith.constant 0 : index
    %223 = vector.load %arg3[%c1_91, %c0_92, %c0_93] : memref<2x128x384xf32, #tpu.memory_space<vmem>>, vector<1x128x384xf32>
    %224 = vector.shape_cast %223 : vector<1x128x384xf32> to vector<128x384xf32>
    %cst_94 = arith.constant dense<0.000000e+00> : vector<8x384xf32>
    %225 = tpu.matmul %183, %224, %cst_94 {dimension_numbers = #tpu.dot_dimension_numbers<[1], [0], [0], [1], [0, 0, 1, 1], [], []>} : vector<8x128xf32>, vector<128x384xf32>, vector<8x384xf32> -> vector<8x384xf32>
    %c1_95 = arith.constant 1 : index
    %c0_96 = arith.constant 0 : index
    %c0_97 = arith.constant 0 : index
    %226 = vector.load %arg5[%c1_95, %c0_96, %c0_97] : memref<2x1x384xf32, #tpu.memory_space<vmem>>, vector<1x1x384xf32>
    %227 = vector.shape_cast %226 : vector<1x1x384xf32> to vector<1x384xf32>
    %228 = vector.broadcast %227 : vector<1x384xf32> to vector<8x384xf32>
    %229 = arith.addf %225, %228 : vector<8x384xf32>
    %230 = vector.extract_strided_slice %222 {offsets = [0, 0], sizes = [8, 128], strides = [1, 1]} : vector<8x384xf32> to vector<8x128xf32>
    %231 = vector.extract_strided_slice %229 {offsets = [0, 0], sizes = [8, 128], strides = [1, 1]} : vector<8x384xf32> to vector<8x128xf32>
    %232 = arith.addf %230, %231 : vector<8x128xf32>
    %233 = arith.negf %232 : vector<8x128xf32>
    %234 = math.exp %233 : vector<8x128xf32>
    %cst_98 = arith.constant 1.000000e+00 : f32
    %235 = vector.broadcast %cst_98 : f32 to vector<8x128xf32>
    %236 = arith.addf %235, %234 : vector<8x128xf32>
    %237 = arith.divf %235, %236 : vector<8x128xf32>
    %238 = vector.extract_strided_slice %222 {offsets = [0, 128], sizes = [8, 128], strides = [1, 1]} : vector<8x384xf32> to vector<8x128xf32>
    %239 = vector.extract_strided_slice %229 {offsets = [0, 128], sizes = [8, 128], strides = [1, 1]} : vector<8x384xf32> to vector<8x128xf32>
    %240 = arith.addf %238, %239 : vector<8x128xf32>
    %241 = arith.negf %240 : vector<8x128xf32>
    %242 = math.exp %241 : vector<8x128xf32>
    %cst_99 = arith.constant 1.000000e+00 : f32
    %243 = vector.broadcast %cst_99 : f32 to vector<8x128xf32>
    %244 = arith.addf %243, %242 : vector<8x128xf32>
    %245 = arith.divf %243, %244 : vector<8x128xf32>
    %246 = vector.extract_strided_slice %222 {offsets = [0, 256], sizes = [8, 128], strides = [1, 1]} : vector<8x384xf32> to vector<8x128xf32>
    %247 = vector.extract_strided_slice %229 {offsets = [0, 256], sizes = [8, 128], strides = [1, 1]} : vector<8x384xf32> to vector<8x128xf32>
    %248 = arith.mulf %237, %247 : vector<8x128xf32>
    %249 = arith.addf %246, %248 : vector<8x128xf32>
    %250 = math.tanh %249 : vector<8x128xf32>
    %251 = arith.subf %183, %250 : vector<8x128xf32>
    %252 = arith.mulf %245, %251 : vector<8x128xf32>
    %253 = arith.addf %250, %252 : vector<8x128xf32>
    %c32 = arith.constant 32 : index
    %c0_100 = arith.constant 0 : index
    %254 = vector.load %arg9[%c32, %c0_100] : memref<96x384xf32, #tpu.memory_space<vmem>>, vector<8x384xf32>
    %c0_101 = arith.constant 0 : index
    %c0_102 = arith.constant 0 : index
    %c0_103 = arith.constant 0 : index
    %255 = vector.load %arg3[%c0_101, %c0_102, %c0_103] : memref<2x128x384xf32, #tpu.memory_space<vmem>>, vector<1x128x384xf32>
    %256 = vector.shape_cast %255 : vector<1x128x384xf32> to vector<128x384xf32>
    %cst_104 = arith.constant dense<0.000000e+00> : vector<8x384xf32>
    %257 = tpu.matmul %215, %256, %cst_104 {dimension_numbers = #tpu.dot_dimension_numbers<[1], [0], [0], [1], [0, 0, 1, 1], [], []>} : vector<8x128xf32>, vector<128x384xf32>, vector<8x384xf32> -> vector<8x384xf32>
    %c0_105 = arith.constant 0 : index
    %c0_106 = arith.constant 0 : index
    %c0_107 = arith.constant 0 : index
    %258 = vector.load %arg5[%c0_105, %c0_106, %c0_107] : memref<2x1x384xf32, #tpu.memory_space<vmem>>, vector<1x1x384xf32>
    %259 = vector.shape_cast %258 : vector<1x1x384xf32> to vector<1x384xf32>
    %260 = vector.broadcast %259 : vector<1x384xf32> to vector<8x384xf32>
    %261 = arith.addf %257, %260 : vector<8x384xf32>
    %262 = vector.extract_strided_slice %254 {offsets = [0, 0], sizes = [8, 128], strides = [1, 1]} : vector<8x384xf32> to vector<8x128xf32>
    %263 = vector.extract_strided_slice %261 {offsets = [0, 0], sizes = [8, 128], strides = [1, 1]} : vector<8x384xf32> to vector<8x128xf32>
    %264 = arith.addf %262, %263 : vector<8x128xf32>
    %265 = arith.negf %264 : vector<8x128xf32>
    %266 = math.exp %265 : vector<8x128xf32>
    %cst_108 = arith.constant 1.000000e+00 : f32
    %267 = vector.broadcast %cst_108 : f32 to vector<8x128xf32>
    %268 = arith.addf %267, %266 : vector<8x128xf32>
    %269 = arith.divf %267, %268 : vector<8x128xf32>
    %270 = vector.extract_strided_slice %254 {offsets = [0, 128], sizes = [8, 128], strides = [1, 1]} : vector<8x384xf32> to vector<8x128xf32>
    %271 = vector.extract_strided_slice %261 {offsets = [0, 128], sizes = [8, 128], strides = [1, 1]} : vector<8x384xf32> to vector<8x128xf32>
    %272 = arith.addf %270, %271 : vector<8x128xf32>
    %273 = arith.negf %272 : vector<8x128xf32>
    %274 = math.exp %273 : vector<8x128xf32>
    %cst_109 = arith.constant 1.000000e+00 : f32
    %275 = vector.broadcast %cst_109 : f32 to vector<8x128xf32>
    %276 = arith.addf %275, %274 : vector<8x128xf32>
    %277 = arith.divf %275, %276 : vector<8x128xf32>
    %278 = vector.extract_strided_slice %254 {offsets = [0, 256], sizes = [8, 128], strides = [1, 1]} : vector<8x384xf32> to vector<8x128xf32>
    %279 = vector.extract_strided_slice %261 {offsets = [0, 256], sizes = [8, 128], strides = [1, 1]} : vector<8x384xf32> to vector<8x128xf32>
    %280 = arith.mulf %269, %279 : vector<8x128xf32>
    %281 = arith.addf %278, %280 : vector<8x128xf32>
    %282 = math.tanh %281 : vector<8x128xf32>
    %283 = arith.subf %215, %282 : vector<8x128xf32>
    %284 = arith.mulf %277, %283 : vector<8x128xf32>
    %285 = arith.addf %282, %284 : vector<8x128xf32>
    %c1_110 = arith.constant 1 : index
    %c0_111 = arith.constant 0 : index
    %c0_112 = arith.constant 0 : index
    %286 = vector.load %arg2[%c1_110, %c0_111, %c0_112] : memref<2x128x384xf32, #tpu.memory_space<vmem>>, vector<1x128x384xf32>
    %287 = vector.shape_cast %286 : vector<1x128x384xf32> to vector<128x384xf32>
    %cst_113 = arith.constant dense<0.000000e+00> : vector<8x384xf32>
    %288 = tpu.matmul %215, %287, %cst_113 {dimension_numbers = #tpu.dot_dimension_numbers<[1], [0], [0], [1], [0, 0, 1, 1], [], []>} : vector<8x128xf32>, vector<128x384xf32>, vector<8x384xf32> -> vector<8x384xf32>
    %c1_114 = arith.constant 1 : index
    %c0_115 = arith.constant 0 : index
    %c0_116 = arith.constant 0 : index
    %289 = vector.load %arg4[%c1_114, %c0_115, %c0_116] : memref<2x1x384xf32, #tpu.memory_space<vmem>>, vector<1x1x384xf32>
    %290 = vector.shape_cast %289 : vector<1x1x384xf32> to vector<1x384xf32>
    %291 = vector.broadcast %290 : vector<1x384xf32> to vector<8x384xf32>
    %292 = arith.addf %288, %291 : vector<8x384xf32>
    %c1_117 = arith.constant 1 : index
    %c0_118 = arith.constant 0 : index
    %c0_119 = arith.constant 0 : index
    %293 = vector.load %arg3[%c1_117, %c0_118, %c0_119] : memref<2x128x384xf32, #tpu.memory_space<vmem>>, vector<1x128x384xf32>
    %294 = vector.shape_cast %293 : vector<1x128x384xf32> to vector<128x384xf32>
    %cst_120 = arith.constant dense<0.000000e+00> : vector<8x384xf32>
    %295 = tpu.matmul %253, %294, %cst_120 {dimension_numbers = #tpu.dot_dimension_numbers<[1], [0], [0], [1], [0, 0, 1, 1], [], []>} : vector<8x128xf32>, vector<128x384xf32>, vector<8x384xf32> -> vector<8x384xf32>
    %c1_121 = arith.constant 1 : index
    %c0_122 = arith.constant 0 : index
    %c0_123 = arith.constant 0 : index
    %296 = vector.load %arg5[%c1_121, %c0_122, %c0_123] : memref<2x1x384xf32, #tpu.memory_space<vmem>>, vector<1x1x384xf32>
    %297 = vector.shape_cast %296 : vector<1x1x384xf32> to vector<1x384xf32>
    %298 = vector.broadcast %297 : vector<1x384xf32> to vector<8x384xf32>
    %299 = arith.addf %295, %298 : vector<8x384xf32>
    %300 = vector.extract_strided_slice %292 {offsets = [0, 0], sizes = [8, 128], strides = [1, 1]} : vector<8x384xf32> to vector<8x128xf32>
    %301 = vector.extract_strided_slice %299 {offsets = [0, 0], sizes = [8, 128], strides = [1, 1]} : vector<8x384xf32> to vector<8x128xf32>
    %302 = arith.addf %300, %301 : vector<8x128xf32>
    %303 = arith.negf %302 : vector<8x128xf32>
    %304 = math.exp %303 : vector<8x128xf32>
    %cst_124 = arith.constant 1.000000e+00 : f32
    %305 = vector.broadcast %cst_124 : f32 to vector<8x128xf32>
    %306 = arith.addf %305, %304 : vector<8x128xf32>
    %307 = arith.divf %305, %306 : vector<8x128xf32>
    %308 = vector.extract_strided_slice %292 {offsets = [0, 128], sizes = [8, 128], strides = [1, 1]} : vector<8x384xf32> to vector<8x128xf32>
    %309 = vector.extract_strided_slice %299 {offsets = [0, 128], sizes = [8, 128], strides = [1, 1]} : vector<8x384xf32> to vector<8x128xf32>
    %310 = arith.addf %308, %309 : vector<8x128xf32>
    %311 = arith.negf %310 : vector<8x128xf32>
    %312 = math.exp %311 : vector<8x128xf32>
    %cst_125 = arith.constant 1.000000e+00 : f32
    %313 = vector.broadcast %cst_125 : f32 to vector<8x128xf32>
    %314 = arith.addf %313, %312 : vector<8x128xf32>
    %315 = arith.divf %313, %314 : vector<8x128xf32>
    %316 = vector.extract_strided_slice %292 {offsets = [0, 256], sizes = [8, 128], strides = [1, 1]} : vector<8x384xf32> to vector<8x128xf32>
    %317 = vector.extract_strided_slice %299 {offsets = [0, 256], sizes = [8, 128], strides = [1, 1]} : vector<8x384xf32> to vector<8x128xf32>
    %318 = arith.mulf %307, %317 : vector<8x128xf32>
    %319 = arith.addf %316, %318 : vector<8x128xf32>
    %320 = math.tanh %319 : vector<8x128xf32>
    %321 = arith.subf %253, %320 : vector<8x128xf32>
    %322 = arith.mulf %315, %321 : vector<8x128xf32>
    %323 = arith.addf %320, %322 : vector<8x128xf32>
    %c40 = arith.constant 40 : index
    %c0_126 = arith.constant 0 : index
    %324 = vector.load %arg9[%c40, %c0_126] : memref<96x384xf32, #tpu.memory_space<vmem>>, vector<8x384xf32>
    %c0_127 = arith.constant 0 : index
    %c0_128 = arith.constant 0 : index
    %c0_129 = arith.constant 0 : index
    %325 = vector.load %arg3[%c0_127, %c0_128, %c0_129] : memref<2x128x384xf32, #tpu.memory_space<vmem>>, vector<1x128x384xf32>
    %326 = vector.shape_cast %325 : vector<1x128x384xf32> to vector<128x384xf32>
    %cst_130 = arith.constant dense<0.000000e+00> : vector<8x384xf32>
    %327 = tpu.matmul %285, %326, %cst_130 {dimension_numbers = #tpu.dot_dimension_numbers<[1], [0], [0], [1], [0, 0, 1, 1], [], []>} : vector<8x128xf32>, vector<128x384xf32>, vector<8x384xf32> -> vector<8x384xf32>
    %c0_131 = arith.constant 0 : index
    %c0_132 = arith.constant 0 : index
    %c0_133 = arith.constant 0 : index
    %328 = vector.load %arg5[%c0_131, %c0_132, %c0_133] : memref<2x1x384xf32, #tpu.memory_space<vmem>>, vector<1x1x384xf32>
    %329 = vector.shape_cast %328 : vector<1x1x384xf32> to vector<1x384xf32>
    %330 = vector.broadcast %329 : vector<1x384xf32> to vector<8x384xf32>
    %331 = arith.addf %327, %330 : vector<8x384xf32>
    %332 = vector.extract_strided_slice %324 {offsets = [0, 0], sizes = [8, 128], strides = [1, 1]} : vector<8x384xf32> to vector<8x128xf32>
    %333 = vector.extract_strided_slice %331 {offsets = [0, 0], sizes = [8, 128], strides = [1, 1]} : vector<8x384xf32> to vector<8x128xf32>
    %334 = arith.addf %332, %333 : vector<8x128xf32>
    %335 = arith.negf %334 : vector<8x128xf32>
    %336 = math.exp %335 : vector<8x128xf32>
    %cst_134 = arith.constant 1.000000e+00 : f32
    %337 = vector.broadcast %cst_134 : f32 to vector<8x128xf32>
    %338 = arith.addf %337, %336 : vector<8x128xf32>
    %339 = arith.divf %337, %338 : vector<8x128xf32>
    %340 = vector.extract_strided_slice %324 {offsets = [0, 128], sizes = [8, 128], strides = [1, 1]} : vector<8x384xf32> to vector<8x128xf32>
    %341 = vector.extract_strided_slice %331 {offsets = [0, 128], sizes = [8, 128], strides = [1, 1]} : vector<8x384xf32> to vector<8x128xf32>
    %342 = arith.addf %340, %341 : vector<8x128xf32>
    %343 = arith.negf %342 : vector<8x128xf32>
    %344 = math.exp %343 : vector<8x128xf32>
    %cst_135 = arith.constant 1.000000e+00 : f32
    %345 = vector.broadcast %cst_135 : f32 to vector<8x128xf32>
    %346 = arith.addf %345, %344 : vector<8x128xf32>
    %347 = arith.divf %345, %346 : vector<8x128xf32>
    %348 = vector.extract_strided_slice %324 {offsets = [0, 256], sizes = [8, 128], strides = [1, 1]} : vector<8x384xf32> to vector<8x128xf32>
    %349 = vector.extract_strided_slice %331 {offsets = [0, 256], sizes = [8, 128], strides = [1, 1]} : vector<8x384xf32> to vector<8x128xf32>
    %350 = arith.mulf %339, %349 : vector<8x128xf32>
    %351 = arith.addf %348, %350 : vector<8x128xf32>
    %352 = math.tanh %351 : vector<8x128xf32>
    %353 = arith.subf %285, %352 : vector<8x128xf32>
    %354 = arith.mulf %347, %353 : vector<8x128xf32>
    %355 = arith.addf %352, %354 : vector<8x128xf32>
    %c1_136 = arith.constant 1 : index
    %c0_137 = arith.constant 0 : index
    %c0_138 = arith.constant 0 : index
    %356 = vector.load %arg2[%c1_136, %c0_137, %c0_138] : memref<2x128x384xf32, #tpu.memory_space<vmem>>, vector<1x128x384xf32>
    %357 = vector.shape_cast %356 : vector<1x128x384xf32> to vector<128x384xf32>
    %cst_139 = arith.constant dense<0.000000e+00> : vector<8x384xf32>
    %358 = tpu.matmul %285, %357, %cst_139 {dimension_numbers = #tpu.dot_dimension_numbers<[1], [0], [0], [1], [0, 0, 1, 1], [], []>} : vector<8x128xf32>, vector<128x384xf32>, vector<8x384xf32> -> vector<8x384xf32>
    %c1_140 = arith.constant 1 : index
    %c0_141 = arith.constant 0 : index
    %c0_142 = arith.constant 0 : index
    %359 = vector.load %arg4[%c1_140, %c0_141, %c0_142] : memref<2x1x384xf32, #tpu.memory_space<vmem>>, vector<1x1x384xf32>
    %360 = vector.shape_cast %359 : vector<1x1x384xf32> to vector<1x384xf32>
    %361 = vector.broadcast %360 : vector<1x384xf32> to vector<8x384xf32>
    %362 = arith.addf %358, %361 : vector<8x384xf32>
    %c1_143 = arith.constant 1 : index
    %c0_144 = arith.constant 0 : index
    %c0_145 = arith.constant 0 : index
    %363 = vector.load %arg3[%c1_143, %c0_144, %c0_145] : memref<2x128x384xf32, #tpu.memory_space<vmem>>, vector<1x128x384xf32>
    %364 = vector.shape_cast %363 : vector<1x128x384xf32> to vector<128x384xf32>
    %cst_146 = arith.constant dense<0.000000e+00> : vector<8x384xf32>
    %365 = tpu.matmul %323, %364, %cst_146 {dimension_numbers = #tpu.dot_dimension_numbers<[1], [0], [0], [1], [0, 0, 1, 1], [], []>} : vector<8x128xf32>, vector<128x384xf32>, vector<8x384xf32> -> vector<8x384xf32>
    %c1_147 = arith.constant 1 : index
    %c0_148 = arith.constant 0 : index
    %c0_149 = arith.constant 0 : index
    %366 = vector.load %arg5[%c1_147, %c0_148, %c0_149] : memref<2x1x384xf32, #tpu.memory_space<vmem>>, vector<1x1x384xf32>
    %367 = vector.shape_cast %366 : vector<1x1x384xf32> to vector<1x384xf32>
    %368 = vector.broadcast %367 : vector<1x384xf32> to vector<8x384xf32>
    %369 = arith.addf %365, %368 : vector<8x384xf32>
    %370 = vector.extract_strided_slice %362 {offsets = [0, 0], sizes = [8, 128], strides = [1, 1]} : vector<8x384xf32> to vector<8x128xf32>
    %371 = vector.extract_strided_slice %369 {offsets = [0, 0], sizes = [8, 128], strides = [1, 1]} : vector<8x384xf32> to vector<8x128xf32>
    %372 = arith.addf %370, %371 : vector<8x128xf32>
    %373 = arith.negf %372 : vector<8x128xf32>
    %374 = math.exp %373 : vector<8x128xf32>
    %cst_150 = arith.constant 1.000000e+00 : f32
    %375 = vector.broadcast %cst_150 : f32 to vector<8x128xf32>
    %376 = arith.addf %375, %374 : vector<8x128xf32>
    %377 = arith.divf %375, %376 : vector<8x128xf32>
    %378 = vector.extract_strided_slice %362 {offsets = [0, 128], sizes = [8, 128], strides = [1, 1]} : vector<8x384xf32> to vector<8x128xf32>
    %379 = vector.extract_strided_slice %369 {offsets = [0, 128], sizes = [8, 128], strides = [1, 1]} : vector<8x384xf32> to vector<8x128xf32>
    %380 = arith.addf %378, %379 : vector<8x128xf32>
    %381 = arith.negf %380 : vector<8x128xf32>
    %382 = math.exp %381 : vector<8x128xf32>
    %cst_151 = arith.constant 1.000000e+00 : f32
    %383 = vector.broadcast %cst_151 : f32 to vector<8x128xf32>
    %384 = arith.addf %383, %382 : vector<8x128xf32>
    %385 = arith.divf %383, %384 : vector<8x128xf32>
    %386 = vector.extract_strided_slice %362 {offsets = [0, 256], sizes = [8, 128], strides = [1, 1]} : vector<8x384xf32> to vector<8x128xf32>
    %387 = vector.extract_strided_slice %369 {offsets = [0, 256], sizes = [8, 128], strides = [1, 1]} : vector<8x384xf32> to vector<8x128xf32>
    %388 = arith.mulf %377, %387 : vector<8x128xf32>
    %389 = arith.addf %386, %388 : vector<8x128xf32>
    %390 = math.tanh %389 : vector<8x128xf32>
    %391 = arith.subf %323, %390 : vector<8x128xf32>
    %392 = arith.mulf %385, %391 : vector<8x128xf32>
    %393 = arith.addf %390, %392 : vector<8x128xf32>
    %c48 = arith.constant 48 : index
    %c0_152 = arith.constant 0 : index
    %394 = vector.load %arg9[%c48, %c0_152] : memref<96x384xf32, #tpu.memory_space<vmem>>, vector<8x384xf32>
    %c0_153 = arith.constant 0 : index
    %c0_154 = arith.constant 0 : index
    %c0_155 = arith.constant 0 : index
    %395 = vector.load %arg3[%c0_153, %c0_154, %c0_155] : memref<2x128x384xf32, #tpu.memory_space<vmem>>, vector<1x128x384xf32>
    %396 = vector.shape_cast %395 : vector<1x128x384xf32> to vector<128x384xf32>
    %cst_156 = arith.constant dense<0.000000e+00> : vector<8x384xf32>
    %397 = tpu.matmul %355, %396, %cst_156 {dimension_numbers = #tpu.dot_dimension_numbers<[1], [0], [0], [1], [0, 0, 1, 1], [], []>} : vector<8x128xf32>, vector<128x384xf32>, vector<8x384xf32> -> vector<8x384xf32>
    %c0_157 = arith.constant 0 : index
    %c0_158 = arith.constant 0 : index
    %c0_159 = arith.constant 0 : index
    %398 = vector.load %arg5[%c0_157, %c0_158, %c0_159] : memref<2x1x384xf32, #tpu.memory_space<vmem>>, vector<1x1x384xf32>
    %399 = vector.shape_cast %398 : vector<1x1x384xf32> to vector<1x384xf32>
    %400 = vector.broadcast %399 : vector<1x384xf32> to vector<8x384xf32>
    %401 = arith.addf %397, %400 : vector<8x384xf32>
    %402 = vector.extract_strided_slice %394 {offsets = [0, 0], sizes = [8, 128], strides = [1, 1]} : vector<8x384xf32> to vector<8x128xf32>
    %403 = vector.extract_strided_slice %401 {offsets = [0, 0], sizes = [8, 128], strides = [1, 1]} : vector<8x384xf32> to vector<8x128xf32>
    %404 = arith.addf %402, %403 : vector<8x128xf32>
    %405 = arith.negf %404 : vector<8x128xf32>
    %406 = math.exp %405 : vector<8x128xf32>
    %cst_160 = arith.constant 1.000000e+00 : f32
    %407 = vector.broadcast %cst_160 : f32 to vector<8x128xf32>
    %408 = arith.addf %407, %406 : vector<8x128xf32>
    %409 = arith.divf %407, %408 : vector<8x128xf32>
    %410 = vector.extract_strided_slice %394 {offsets = [0, 128], sizes = [8, 128], strides = [1, 1]} : vector<8x384xf32> to vector<8x128xf32>
    %411 = vector.extract_strided_slice %401 {offsets = [0, 128], sizes = [8, 128], strides = [1, 1]} : vector<8x384xf32> to vector<8x128xf32>
    %412 = arith.addf %410, %411 : vector<8x128xf32>
    %413 = arith.negf %412 : vector<8x128xf32>
    %414 = math.exp %413 : vector<8x128xf32>
    %cst_161 = arith.constant 1.000000e+00 : f32
    %415 = vector.broadcast %cst_161 : f32 to vector<8x128xf32>
    %416 = arith.addf %415, %414 : vector<8x128xf32>
    %417 = arith.divf %415, %416 : vector<8x128xf32>
    %418 = vector.extract_strided_slice %394 {offsets = [0, 256], sizes = [8, 128], strides = [1, 1]} : vector<8x384xf32> to vector<8x128xf32>
    %419 = vector.extract_strided_slice %401 {offsets = [0, 256], sizes = [8, 128], strides = [1, 1]} : vector<8x384xf32> to vector<8x128xf32>
    %420 = arith.mulf %409, %419 : vector<8x128xf32>
    %421 = arith.addf %418, %420 : vector<8x128xf32>
    %422 = math.tanh %421 : vector<8x128xf32>
    %423 = arith.subf %355, %422 : vector<8x128xf32>
    %424 = arith.mulf %417, %423 : vector<8x128xf32>
    %425 = arith.addf %422, %424 : vector<8x128xf32>
    %c1_162 = arith.constant 1 : index
    %c0_163 = arith.constant 0 : index
    %c0_164 = arith.constant 0 : index
    %426 = vector.load %arg2[%c1_162, %c0_163, %c0_164] : memref<2x128x384xf32, #tpu.memory_space<vmem>>, vector<1x128x384xf32>
    %427 = vector.shape_cast %426 : vector<1x128x384xf32> to vector<128x384xf32>
    %cst_165 = arith.constant dense<0.000000e+00> : vector<8x384xf32>
    %428 = tpu.matmul %355, %427, %cst_165 {dimension_numbers = #tpu.dot_dimension_numbers<[1], [0], [0], [1], [0, 0, 1, 1], [], []>} : vector<8x128xf32>, vector<128x384xf32>, vector<8x384xf32> -> vector<8x384xf32>
    %c1_166 = arith.constant 1 : index
    %c0_167 = arith.constant 0 : index
    %c0_168 = arith.constant 0 : index
    %429 = vector.load %arg4[%c1_166, %c0_167, %c0_168] : memref<2x1x384xf32, #tpu.memory_space<vmem>>, vector<1x1x384xf32>
    %430 = vector.shape_cast %429 : vector<1x1x384xf32> to vector<1x384xf32>
    %431 = vector.broadcast %430 : vector<1x384xf32> to vector<8x384xf32>
    %432 = arith.addf %428, %431 : vector<8x384xf32>
    %c1_169 = arith.constant 1 : index
    %c0_170 = arith.constant 0 : index
    %c0_171 = arith.constant 0 : index
    %433 = vector.load %arg3[%c1_169, %c0_170, %c0_171] : memref<2x128x384xf32, #tpu.memory_space<vmem>>, vector<1x128x384xf32>
    %434 = vector.shape_cast %433 : vector<1x128x384xf32> to vector<128x384xf32>
    %cst_172 = arith.constant dense<0.000000e+00> : vector<8x384xf32>
    %435 = tpu.matmul %393, %434, %cst_172 {dimension_numbers = #tpu.dot_dimension_numbers<[1], [0], [0], [1], [0, 0, 1, 1], [], []>} : vector<8x128xf32>, vector<128x384xf32>, vector<8x384xf32> -> vector<8x384xf32>
    %c1_173 = arith.constant 1 : index
    %c0_174 = arith.constant 0 : index
    %c0_175 = arith.constant 0 : index
    %436 = vector.load %arg5[%c1_173, %c0_174, %c0_175] : memref<2x1x384xf32, #tpu.memory_space<vmem>>, vector<1x1x384xf32>
    %437 = vector.shape_cast %436 : vector<1x1x384xf32> to vector<1x384xf32>
    %438 = vector.broadcast %437 : vector<1x384xf32> to vector<8x384xf32>
    %439 = arith.addf %435, %438 : vector<8x384xf32>
    %440 = vector.extract_strided_slice %432 {offsets = [0, 0], sizes = [8, 128], strides = [1, 1]} : vector<8x384xf32> to vector<8x128xf32>
    %441 = vector.extract_strided_slice %439 {offsets = [0, 0], sizes = [8, 128], strides = [1, 1]} : vector<8x384xf32> to vector<8x128xf32>
    %442 = arith.addf %440, %441 : vector<8x128xf32>
    %443 = arith.negf %442 : vector<8x128xf32>
    %444 = math.exp %443 : vector<8x128xf32>
    %cst_176 = arith.constant 1.000000e+00 : f32
    %445 = vector.broadcast %cst_176 : f32 to vector<8x128xf32>
    %446 = arith.addf %445, %444 : vector<8x128xf32>
    %447 = arith.divf %445, %446 : vector<8x128xf32>
    %448 = vector.extract_strided_slice %432 {offsets = [0, 128], sizes = [8, 128], strides = [1, 1]} : vector<8x384xf32> to vector<8x128xf32>
    %449 = vector.extract_strided_slice %439 {offsets = [0, 128], sizes = [8, 128], strides = [1, 1]} : vector<8x384xf32> to vector<8x128xf32>
    %450 = arith.addf %448, %449 : vector<8x128xf32>
    %451 = arith.negf %450 : vector<8x128xf32>
    %452 = math.exp %451 : vector<8x128xf32>
    %cst_177 = arith.constant 1.000000e+00 : f32
    %453 = vector.broadcast %cst_177 : f32 to vector<8x128xf32>
    %454 = arith.addf %453, %452 : vector<8x128xf32>
    %455 = arith.divf %453, %454 : vector<8x128xf32>
    %456 = vector.extract_strided_slice %432 {offsets = [0, 256], sizes = [8, 128], strides = [1, 1]} : vector<8x384xf32> to vector<8x128xf32>
    %457 = vector.extract_strided_slice %439 {offsets = [0, 256], sizes = [8, 128], strides = [1, 1]} : vector<8x384xf32> to vector<8x128xf32>
    %458 = arith.mulf %447, %457 : vector<8x128xf32>
    %459 = arith.addf %456, %458 : vector<8x128xf32>
    %460 = math.tanh %459 : vector<8x128xf32>
    %461 = arith.subf %393, %460 : vector<8x128xf32>
    %462 = arith.mulf %455, %461 : vector<8x128xf32>
    %463 = arith.addf %460, %462 : vector<8x128xf32>
    %c56 = arith.constant 56 : index
    %c0_178 = arith.constant 0 : index
    %464 = vector.load %arg9[%c56, %c0_178] : memref<96x384xf32, #tpu.memory_space<vmem>>, vector<8x384xf32>
    %c0_179 = arith.constant 0 : index
    %c0_180 = arith.constant 0 : index
    %c0_181 = arith.constant 0 : index
    %465 = vector.load %arg3[%c0_179, %c0_180, %c0_181] : memref<2x128x384xf32, #tpu.memory_space<vmem>>, vector<1x128x384xf32>
    %466 = vector.shape_cast %465 : vector<1x128x384xf32> to vector<128x384xf32>
    %cst_182 = arith.constant dense<0.000000e+00> : vector<8x384xf32>
    %467 = tpu.matmul %425, %466, %cst_182 {dimension_numbers = #tpu.dot_dimension_numbers<[1], [0], [0], [1], [0, 0, 1, 1], [], []>} : vector<8x128xf32>, vector<128x384xf32>, vector<8x384xf32> -> vector<8x384xf32>
    %c0_183 = arith.constant 0 : index
    %c0_184 = arith.constant 0 : index
    %c0_185 = arith.constant 0 : index
    %468 = vector.load %arg5[%c0_183, %c0_184, %c0_185] : memref<2x1x384xf32, #tpu.memory_space<vmem>>, vector<1x1x384xf32>
    %469 = vector.shape_cast %468 : vector<1x1x384xf32> to vector<1x384xf32>
    %470 = vector.broadcast %469 : vector<1x384xf32> to vector<8x384xf32>
    %471 = arith.addf %467, %470 : vector<8x384xf32>
    %472 = vector.extract_strided_slice %464 {offsets = [0, 0], sizes = [8, 128], strides = [1, 1]} : vector<8x384xf32> to vector<8x128xf32>
    %473 = vector.extract_strided_slice %471 {offsets = [0, 0], sizes = [8, 128], strides = [1, 1]} : vector<8x384xf32> to vector<8x128xf32>
    %474 = arith.addf %472, %473 : vector<8x128xf32>
    %475 = arith.negf %474 : vector<8x128xf32>
    %476 = math.exp %475 : vector<8x128xf32>
    %cst_186 = arith.constant 1.000000e+00 : f32
    %477 = vector.broadcast %cst_186 : f32 to vector<8x128xf32>
    %478 = arith.addf %477, %476 : vector<8x128xf32>
    %479 = arith.divf %477, %478 : vector<8x128xf32>
    %480 = vector.extract_strided_slice %464 {offsets = [0, 128], sizes = [8, 128], strides = [1, 1]} : vector<8x384xf32> to vector<8x128xf32>
    %481 = vector.extract_strided_slice %471 {offsets = [0, 128], sizes = [8, 128], strides = [1, 1]} : vector<8x384xf32> to vector<8x128xf32>
    %482 = arith.addf %480, %481 : vector<8x128xf32>
    %483 = arith.negf %482 : vector<8x128xf32>
    %484 = math.exp %483 : vector<8x128xf32>
    %cst_187 = arith.constant 1.000000e+00 : f32
    %485 = vector.broadcast %cst_187 : f32 to vector<8x128xf32>
    %486 = arith.addf %485, %484 : vector<8x128xf32>
    %487 = arith.divf %485, %486 : vector<8x128xf32>
    %488 = vector.extract_strided_slice %464 {offsets = [0, 256], sizes = [8, 128], strides = [1, 1]} : vector<8x384xf32> to vector<8x128xf32>
    %489 = vector.extract_strided_slice %471 {offsets = [0, 256], sizes = [8, 128], strides = [1, 1]} : vector<8x384xf32> to vector<8x128xf32>
    %490 = arith.mulf %479, %489 : vector<8x128xf32>
    %491 = arith.addf %488, %490 : vector<8x128xf32>
    %492 = math.tanh %491 : vector<8x128xf32>
    %493 = arith.subf %425, %492 : vector<8x128xf32>
    %494 = arith.mulf %487, %493 : vector<8x128xf32>
    %495 = arith.addf %492, %494 : vector<8x128xf32>
    %c1_188 = arith.constant 1 : index
    %c0_189 = arith.constant 0 : index
    %c0_190 = arith.constant 0 : index
    %496 = vector.load %arg2[%c1_188, %c0_189, %c0_190] : memref<2x128x384xf32, #tpu.memory_space<vmem>>, vector<1x128x384xf32>
    %497 = vector.shape_cast %496 : vector<1x128x384xf32> to vector<128x384xf32>
    %cst_191 = arith.constant dense<0.000000e+00> : vector<8x384xf32>
    %498 = tpu.matmul %425, %497, %cst_191 {dimension_numbers = #tpu.dot_dimension_numbers<[1], [0], [0], [1], [0, 0, 1, 1], [], []>} : vector<8x128xf32>, vector<128x384xf32>, vector<8x384xf32> -> vector<8x384xf32>
    %c1_192 = arith.constant 1 : index
    %c0_193 = arith.constant 0 : index
    %c0_194 = arith.constant 0 : index
    %499 = vector.load %arg4[%c1_192, %c0_193, %c0_194] : memref<2x1x384xf32, #tpu.memory_space<vmem>>, vector<1x1x384xf32>
    %500 = vector.shape_cast %499 : vector<1x1x384xf32> to vector<1x384xf32>
    %501 = vector.broadcast %500 : vector<1x384xf32> to vector<8x384xf32>
    %502 = arith.addf %498, %501 : vector<8x384xf32>
    %c1_195 = arith.constant 1 : index
    %c0_196 = arith.constant 0 : index
    %c0_197 = arith.constant 0 : index
    %503 = vector.load %arg3[%c1_195, %c0_196, %c0_197] : memref<2x128x384xf32, #tpu.memory_space<vmem>>, vector<1x128x384xf32>
    %504 = vector.shape_cast %503 : vector<1x128x384xf32> to vector<128x384xf32>
    %cst_198 = arith.constant dense<0.000000e+00> : vector<8x384xf32>
    %505 = tpu.matmul %463, %504, %cst_198 {dimension_numbers = #tpu.dot_dimension_numbers<[1], [0], [0], [1], [0, 0, 1, 1], [], []>} : vector<8x128xf32>, vector<128x384xf32>, vector<8x384xf32> -> vector<8x384xf32>
    %c1_199 = arith.constant 1 : index
    %c0_200 = arith.constant 0 : index
    %c0_201 = arith.constant 0 : index
    %506 = vector.load %arg5[%c1_199, %c0_200, %c0_201] : memref<2x1x384xf32, #tpu.memory_space<vmem>>, vector<1x1x384xf32>
    %507 = vector.shape_cast %506 : vector<1x1x384xf32> to vector<1x384xf32>
    %508 = vector.broadcast %507 : vector<1x384xf32> to vector<8x384xf32>
    %509 = arith.addf %505, %508 : vector<8x384xf32>
    %510 = vector.extract_strided_slice %502 {offsets = [0, 0], sizes = [8, 128], strides = [1, 1]} : vector<8x384xf32> to vector<8x128xf32>
    %511 = vector.extract_strided_slice %509 {offsets = [0, 0], sizes = [8, 128], strides = [1, 1]} : vector<8x384xf32> to vector<8x128xf32>
    %512 = arith.addf %510, %511 : vector<8x128xf32>
    %513 = arith.negf %512 : vector<8x128xf32>
    %514 = math.exp %513 : vector<8x128xf32>
    %cst_202 = arith.constant 1.000000e+00 : f32
    %515 = vector.broadcast %cst_202 : f32 to vector<8x128xf32>
    %516 = arith.addf %515, %514 : vector<8x128xf32>
    %517 = arith.divf %515, %516 : vector<8x128xf32>
    %518 = vector.extract_strided_slice %502 {offsets = [0, 128], sizes = [8, 128], strides = [1, 1]} : vector<8x384xf32> to vector<8x128xf32>
    %519 = vector.extract_strided_slice %509 {offsets = [0, 128], sizes = [8, 128], strides = [1, 1]} : vector<8x384xf32> to vector<8x128xf32>
    %520 = arith.addf %518, %519 : vector<8x128xf32>
    %521 = arith.negf %520 : vector<8x128xf32>
    %522 = math.exp %521 : vector<8x128xf32>
    %cst_203 = arith.constant 1.000000e+00 : f32
    %523 = vector.broadcast %cst_203 : f32 to vector<8x128xf32>
    %524 = arith.addf %523, %522 : vector<8x128xf32>
    %525 = arith.divf %523, %524 : vector<8x128xf32>
    %526 = vector.extract_strided_slice %502 {offsets = [0, 256], sizes = [8, 128], strides = [1, 1]} : vector<8x384xf32> to vector<8x128xf32>
    %527 = vector.extract_strided_slice %509 {offsets = [0, 256], sizes = [8, 128], strides = [1, 1]} : vector<8x384xf32> to vector<8x128xf32>
    %528 = arith.mulf %517, %527 : vector<8x128xf32>
    %529 = arith.addf %526, %528 : vector<8x128xf32>
    %530 = math.tanh %529 : vector<8x128xf32>
    %531 = arith.subf %463, %530 : vector<8x128xf32>
    %532 = arith.mulf %525, %531 : vector<8x128xf32>
    %533 = arith.addf %530, %532 : vector<8x128xf32>
    %c64 = arith.constant 64 : index
    %c0_204 = arith.constant 0 : index
    %534 = vector.load %arg9[%c64, %c0_204] : memref<96x384xf32, #tpu.memory_space<vmem>>, vector<8x384xf32>
    %c0_205 = arith.constant 0 : index
    %c0_206 = arith.constant 0 : index
    %c0_207 = arith.constant 0 : index
    %535 = vector.load %arg3[%c0_205, %c0_206, %c0_207] : memref<2x128x384xf32, #tpu.memory_space<vmem>>, vector<1x128x384xf32>
    %536 = vector.shape_cast %535 : vector<1x128x384xf32> to vector<128x384xf32>
    %cst_208 = arith.constant dense<0.000000e+00> : vector<8x384xf32>
    %537 = tpu.matmul %495, %536, %cst_208 {dimension_numbers = #tpu.dot_dimension_numbers<[1], [0], [0], [1], [0, 0, 1, 1], [], []>} : vector<8x128xf32>, vector<128x384xf32>, vector<8x384xf32> -> vector<8x384xf32>
    %c0_209 = arith.constant 0 : index
    %c0_210 = arith.constant 0 : index
    %c0_211 = arith.constant 0 : index
    %538 = vector.load %arg5[%c0_209, %c0_210, %c0_211] : memref<2x1x384xf32, #tpu.memory_space<vmem>>, vector<1x1x384xf32>
    %539 = vector.shape_cast %538 : vector<1x1x384xf32> to vector<1x384xf32>
    %540 = vector.broadcast %539 : vector<1x384xf32> to vector<8x384xf32>
    %541 = arith.addf %537, %540 : vector<8x384xf32>
    %542 = vector.extract_strided_slice %534 {offsets = [0, 0], sizes = [8, 128], strides = [1, 1]} : vector<8x384xf32> to vector<8x128xf32>
    %543 = vector.extract_strided_slice %541 {offsets = [0, 0], sizes = [8, 128], strides = [1, 1]} : vector<8x384xf32> to vector<8x128xf32>
    %544 = arith.addf %542, %543 : vector<8x128xf32>
    %545 = arith.negf %544 : vector<8x128xf32>
    %546 = math.exp %545 : vector<8x128xf32>
    %cst_212 = arith.constant 1.000000e+00 : f32
    %547 = vector.broadcast %cst_212 : f32 to vector<8x128xf32>
    %548 = arith.addf %547, %546 : vector<8x128xf32>
    %549 = arith.divf %547, %548 : vector<8x128xf32>
    %550 = vector.extract_strided_slice %534 {offsets = [0, 128], sizes = [8, 128], strides = [1, 1]} : vector<8x384xf32> to vector<8x128xf32>
    %551 = vector.extract_strided_slice %541 {offsets = [0, 128], sizes = [8, 128], strides = [1, 1]} : vector<8x384xf32> to vector<8x128xf32>
    %552 = arith.addf %550, %551 : vector<8x128xf32>
    %553 = arith.negf %552 : vector<8x128xf32>
    %554 = math.exp %553 : vector<8x128xf32>
    %cst_213 = arith.constant 1.000000e+00 : f32
    %555 = vector.broadcast %cst_213 : f32 to vector<8x128xf32>
    %556 = arith.addf %555, %554 : vector<8x128xf32>
    %557 = arith.divf %555, %556 : vector<8x128xf32>
    %558 = vector.extract_strided_slice %534 {offsets = [0, 256], sizes = [8, 128], strides = [1, 1]} : vector<8x384xf32> to vector<8x128xf32>
    %559 = vector.extract_strided_slice %541 {offsets = [0, 256], sizes = [8, 128], strides = [1, 1]} : vector<8x384xf32> to vector<8x128xf32>
    %560 = arith.mulf %549, %559 : vector<8x128xf32>
    %561 = arith.addf %558, %560 : vector<8x128xf32>
    %562 = math.tanh %561 : vector<8x128xf32>
    %563 = arith.subf %495, %562 : vector<8x128xf32>
    %564 = arith.mulf %557, %563 : vector<8x128xf32>
    %565 = arith.addf %562, %564 : vector<8x128xf32>
    %c1_214 = arith.constant 1 : index
    %c0_215 = arith.constant 0 : index
    %c0_216 = arith.constant 0 : index
    %566 = vector.load %arg2[%c1_214, %c0_215, %c0_216] : memref<2x128x384xf32, #tpu.memory_space<vmem>>, vector<1x128x384xf32>
    %567 = vector.shape_cast %566 : vector<1x128x384xf32> to vector<128x384xf32>
    %cst_217 = arith.constant dense<0.000000e+00> : vector<8x384xf32>
    %568 = tpu.matmul %495, %567, %cst_217 {dimension_numbers = #tpu.dot_dimension_numbers<[1], [0], [0], [1], [0, 0, 1, 1], [], []>} : vector<8x128xf32>, vector<128x384xf32>, vector<8x384xf32> -> vector<8x384xf32>
    %c1_218 = arith.constant 1 : index
    %c0_219 = arith.constant 0 : index
    %c0_220 = arith.constant 0 : index
    %569 = vector.load %arg4[%c1_218, %c0_219, %c0_220] : memref<2x1x384xf32, #tpu.memory_space<vmem>>, vector<1x1x384xf32>
    %570 = vector.shape_cast %569 : vector<1x1x384xf32> to vector<1x384xf32>
    %571 = vector.broadcast %570 : vector<1x384xf32> to vector<8x384xf32>
    %572 = arith.addf %568, %571 : vector<8x384xf32>
    %c1_221 = arith.constant 1 : index
    %c0_222 = arith.constant 0 : index
    %c0_223 = arith.constant 0 : index
    %573 = vector.load %arg3[%c1_221, %c0_222, %c0_223] : memref<2x128x384xf32, #tpu.memory_space<vmem>>, vector<1x128x384xf32>
    %574 = vector.shape_cast %573 : vector<1x128x384xf32> to vector<128x384xf32>
    %cst_224 = arith.constant dense<0.000000e+00> : vector<8x384xf32>
    %575 = tpu.matmul %533, %574, %cst_224 {dimension_numbers = #tpu.dot_dimension_numbers<[1], [0], [0], [1], [0, 0, 1, 1], [], []>} : vector<8x128xf32>, vector<128x384xf32>, vector<8x384xf32> -> vector<8x384xf32>
    %c1_225 = arith.constant 1 : index
    %c0_226 = arith.constant 0 : index
    %c0_227 = arith.constant 0 : index
    %576 = vector.load %arg5[%c1_225, %c0_226, %c0_227] : memref<2x1x384xf32, #tpu.memory_space<vmem>>, vector<1x1x384xf32>
    %577 = vector.shape_cast %576 : vector<1x1x384xf32> to vector<1x384xf32>
    %578 = vector.broadcast %577 : vector<1x384xf32> to vector<8x384xf32>
    %579 = arith.addf %575, %578 : vector<8x384xf32>
    %580 = vector.extract_strided_slice %572 {offsets = [0, 0], sizes = [8, 128], strides = [1, 1]} : vector<8x384xf32> to vector<8x128xf32>
    %581 = vector.extract_strided_slice %579 {offsets = [0, 0], sizes = [8, 128], strides = [1, 1]} : vector<8x384xf32> to vector<8x128xf32>
    %582 = arith.addf %580, %581 : vector<8x128xf32>
    %583 = arith.negf %582 : vector<8x128xf32>
    %584 = math.exp %583 : vector<8x128xf32>
    %cst_228 = arith.constant 1.000000e+00 : f32
    %585 = vector.broadcast %cst_228 : f32 to vector<8x128xf32>
    %586 = arith.addf %585, %584 : vector<8x128xf32>
    %587 = arith.divf %585, %586 : vector<8x128xf32>
    %588 = vector.extract_strided_slice %572 {offsets = [0, 128], sizes = [8, 128], strides = [1, 1]} : vector<8x384xf32> to vector<8x128xf32>
    %589 = vector.extract_strided_slice %579 {offsets = [0, 128], sizes = [8, 128], strides = [1, 1]} : vector<8x384xf32> to vector<8x128xf32>
    %590 = arith.addf %588, %589 : vector<8x128xf32>
    %591 = arith.negf %590 : vector<8x128xf32>
    %592 = math.exp %591 : vector<8x128xf32>
    %cst_229 = arith.constant 1.000000e+00 : f32
    %593 = vector.broadcast %cst_229 : f32 to vector<8x128xf32>
    %594 = arith.addf %593, %592 : vector<8x128xf32>
    %595 = arith.divf %593, %594 : vector<8x128xf32>
    %596 = vector.extract_strided_slice %572 {offsets = [0, 256], sizes = [8, 128], strides = [1, 1]} : vector<8x384xf32> to vector<8x128xf32>
    %597 = vector.extract_strided_slice %579 {offsets = [0, 256], sizes = [8, 128], strides = [1, 1]} : vector<8x384xf32> to vector<8x128xf32>
    %598 = arith.mulf %587, %597 : vector<8x128xf32>
    %599 = arith.addf %596, %598 : vector<8x128xf32>
    %600 = math.tanh %599 : vector<8x128xf32>
    %601 = arith.subf %533, %600 : vector<8x128xf32>
    %602 = arith.mulf %595, %601 : vector<8x128xf32>
    %603 = arith.addf %600, %602 : vector<8x128xf32>
    %c72 = arith.constant 72 : index
    %c0_230 = arith.constant 0 : index
    %604 = vector.load %arg9[%c72, %c0_230] : memref<96x384xf32, #tpu.memory_space<vmem>>, vector<8x384xf32>
    %c0_231 = arith.constant 0 : index
    %c0_232 = arith.constant 0 : index
    %c0_233 = arith.constant 0 : index
    %605 = vector.load %arg3[%c0_231, %c0_232, %c0_233] : memref<2x128x384xf32, #tpu.memory_space<vmem>>, vector<1x128x384xf32>
    %606 = vector.shape_cast %605 : vector<1x128x384xf32> to vector<128x384xf32>
    %cst_234 = arith.constant dense<0.000000e+00> : vector<8x384xf32>
    %607 = tpu.matmul %565, %606, %cst_234 {dimension_numbers = #tpu.dot_dimension_numbers<[1], [0], [0], [1], [0, 0, 1, 1], [], []>} : vector<8x128xf32>, vector<128x384xf32>, vector<8x384xf32> -> vector<8x384xf32>
    %c0_235 = arith.constant 0 : index
    %c0_236 = arith.constant 0 : index
    %c0_237 = arith.constant 0 : index
    %608 = vector.load %arg5[%c0_235, %c0_236, %c0_237] : memref<2x1x384xf32, #tpu.memory_space<vmem>>, vector<1x1x384xf32>
    %609 = vector.shape_cast %608 : vector<1x1x384xf32> to vector<1x384xf32>
    %610 = vector.broadcast %609 : vector<1x384xf32> to vector<8x384xf32>
    %611 = arith.addf %607, %610 : vector<8x384xf32>
    %612 = vector.extract_strided_slice %604 {offsets = [0, 0], sizes = [8, 128], strides = [1, 1]} : vector<8x384xf32> to vector<8x128xf32>
    %613 = vector.extract_strided_slice %611 {offsets = [0, 0], sizes = [8, 128], strides = [1, 1]} : vector<8x384xf32> to vector<8x128xf32>
    %614 = arith.addf %612, %613 : vector<8x128xf32>
    %615 = arith.negf %614 : vector<8x128xf32>
    %616 = math.exp %615 : vector<8x128xf32>
    %cst_238 = arith.constant 1.000000e+00 : f32
    %617 = vector.broadcast %cst_238 : f32 to vector<8x128xf32>
    %618 = arith.addf %617, %616 : vector<8x128xf32>
    %619 = arith.divf %617, %618 : vector<8x128xf32>
    %620 = vector.extract_strided_slice %604 {offsets = [0, 128], sizes = [8, 128], strides = [1, 1]} : vector<8x384xf32> to vector<8x128xf32>
    %621 = vector.extract_strided_slice %611 {offsets = [0, 128], sizes = [8, 128], strides = [1, 1]} : vector<8x384xf32> to vector<8x128xf32>
    %622 = arith.addf %620, %621 : vector<8x128xf32>
    %623 = arith.negf %622 : vector<8x128xf32>
    %624 = math.exp %623 : vector<8x128xf32>
    %cst_239 = arith.constant 1.000000e+00 : f32
    %625 = vector.broadcast %cst_239 : f32 to vector<8x128xf32>
    %626 = arith.addf %625, %624 : vector<8x128xf32>
    %627 = arith.divf %625, %626 : vector<8x128xf32>
    %628 = vector.extract_strided_slice %604 {offsets = [0, 256], sizes = [8, 128], strides = [1, 1]} : vector<8x384xf32> to vector<8x128xf32>
    %629 = vector.extract_strided_slice %611 {offsets = [0, 256], sizes = [8, 128], strides = [1, 1]} : vector<8x384xf32> to vector<8x128xf32>
    %630 = arith.mulf %619, %629 : vector<8x128xf32>
    %631 = arith.addf %628, %630 : vector<8x128xf32>
    %632 = math.tanh %631 : vector<8x128xf32>
    %633 = arith.subf %565, %632 : vector<8x128xf32>
    %634 = arith.mulf %627, %633 : vector<8x128xf32>
    %635 = arith.addf %632, %634 : vector<8x128xf32>
    %c1_240 = arith.constant 1 : index
    %c0_241 = arith.constant 0 : index
    %c0_242 = arith.constant 0 : index
    %636 = vector.load %arg2[%c1_240, %c0_241, %c0_242] : memref<2x128x384xf32, #tpu.memory_space<vmem>>, vector<1x128x384xf32>
    %637 = vector.shape_cast %636 : vector<1x128x384xf32> to vector<128x384xf32>
    %cst_243 = arith.constant dense<0.000000e+00> : vector<8x384xf32>
    %638 = tpu.matmul %565, %637, %cst_243 {dimension_numbers = #tpu.dot_dimension_numbers<[1], [0], [0], [1], [0, 0, 1, 1], [], []>} : vector<8x128xf32>, vector<128x384xf32>, vector<8x384xf32> -> vector<8x384xf32>
    %c1_244 = arith.constant 1 : index
    %c0_245 = arith.constant 0 : index
    %c0_246 = arith.constant 0 : index
    %639 = vector.load %arg4[%c1_244, %c0_245, %c0_246] : memref<2x1x384xf32, #tpu.memory_space<vmem>>, vector<1x1x384xf32>
    %640 = vector.shape_cast %639 : vector<1x1x384xf32> to vector<1x384xf32>
    %641 = vector.broadcast %640 : vector<1x384xf32> to vector<8x384xf32>
    %642 = arith.addf %638, %641 : vector<8x384xf32>
    %c1_247 = arith.constant 1 : index
    %c0_248 = arith.constant 0 : index
    %c0_249 = arith.constant 0 : index
    %643 = vector.load %arg3[%c1_247, %c0_248, %c0_249] : memref<2x128x384xf32, #tpu.memory_space<vmem>>, vector<1x128x384xf32>
    %644 = vector.shape_cast %643 : vector<1x128x384xf32> to vector<128x384xf32>
    %cst_250 = arith.constant dense<0.000000e+00> : vector<8x384xf32>
    %645 = tpu.matmul %603, %644, %cst_250 {dimension_numbers = #tpu.dot_dimension_numbers<[1], [0], [0], [1], [0, 0, 1, 1], [], []>} : vector<8x128xf32>, vector<128x384xf32>, vector<8x384xf32> -> vector<8x384xf32>
    %c1_251 = arith.constant 1 : index
    %c0_252 = arith.constant 0 : index
    %c0_253 = arith.constant 0 : index
    %646 = vector.load %arg5[%c1_251, %c0_252, %c0_253] : memref<2x1x384xf32, #tpu.memory_space<vmem>>, vector<1x1x384xf32>
    %647 = vector.shape_cast %646 : vector<1x1x384xf32> to vector<1x384xf32>
    %648 = vector.broadcast %647 : vector<1x384xf32> to vector<8x384xf32>
    %649 = arith.addf %645, %648 : vector<8x384xf32>
    %650 = vector.extract_strided_slice %642 {offsets = [0, 0], sizes = [8, 128], strides = [1, 1]} : vector<8x384xf32> to vector<8x128xf32>
    %651 = vector.extract_strided_slice %649 {offsets = [0, 0], sizes = [8, 128], strides = [1, 1]} : vector<8x384xf32> to vector<8x128xf32>
    %652 = arith.addf %650, %651 : vector<8x128xf32>
    %653 = arith.negf %652 : vector<8x128xf32>
    %654 = math.exp %653 : vector<8x128xf32>
    %cst_254 = arith.constant 1.000000e+00 : f32
    %655 = vector.broadcast %cst_254 : f32 to vector<8x128xf32>
    %656 = arith.addf %655, %654 : vector<8x128xf32>
    %657 = arith.divf %655, %656 : vector<8x128xf32>
    %658 = vector.extract_strided_slice %642 {offsets = [0, 128], sizes = [8, 128], strides = [1, 1]} : vector<8x384xf32> to vector<8x128xf32>
    %659 = vector.extract_strided_slice %649 {offsets = [0, 128], sizes = [8, 128], strides = [1, 1]} : vector<8x384xf32> to vector<8x128xf32>
    %660 = arith.addf %658, %659 : vector<8x128xf32>
    %661 = arith.negf %660 : vector<8x128xf32>
    %662 = math.exp %661 : vector<8x128xf32>
    %cst_255 = arith.constant 1.000000e+00 : f32
    %663 = vector.broadcast %cst_255 : f32 to vector<8x128xf32>
    %664 = arith.addf %663, %662 : vector<8x128xf32>
    %665 = arith.divf %663, %664 : vector<8x128xf32>
    %666 = vector.extract_strided_slice %642 {offsets = [0, 256], sizes = [8, 128], strides = [1, 1]} : vector<8x384xf32> to vector<8x128xf32>
    %667 = vector.extract_strided_slice %649 {offsets = [0, 256], sizes = [8, 128], strides = [1, 1]} : vector<8x384xf32> to vector<8x128xf32>
    %668 = arith.mulf %657, %667 : vector<8x128xf32>
    %669 = arith.addf %666, %668 : vector<8x128xf32>
    %670 = math.tanh %669 : vector<8x128xf32>
    %671 = arith.subf %603, %670 : vector<8x128xf32>
    %672 = arith.mulf %665, %671 : vector<8x128xf32>
    %673 = arith.addf %670, %672 : vector<8x128xf32>
    %c0_256 = arith.constant 0 : index
    %c0_257 = arith.constant 0 : index
    %674 = vector.load %arg10[%c0_256, %c0_257] : memref<32x128xf32, #tpu.memory_space<vmem>>, vector<8x128xf32>
    tpu.vector_store %arg10[%c0_256, %c0_257], %673 {strides = array<i32>} : memref<32x128xf32, #tpu.memory_space<vmem>>, vector<8x128xf32>,
    %c80 = arith.constant 80 : index
    %c0_258 = arith.constant 0 : index
    %675 = vector.load %arg9[%c80, %c0_258] : memref<96x384xf32, #tpu.memory_space<vmem>>, vector<8x384xf32>
    %c0_259 = arith.constant 0 : index
    %c0_260 = arith.constant 0 : index
    %c0_261 = arith.constant 0 : index
    %676 = vector.load %arg3[%c0_259, %c0_260, %c0_261] : memref<2x128x384xf32, #tpu.memory_space<vmem>>, vector<1x128x384xf32>
    %677 = vector.shape_cast %676 : vector<1x128x384xf32> to vector<128x384xf32>
    %cst_262 = arith.constant dense<0.000000e+00> : vector<8x384xf32>
    %678 = tpu.matmul %635, %677, %cst_262 {dimension_numbers = #tpu.dot_dimension_numbers<[1], [0], [0], [1], [0, 0, 1, 1], [], []>} : vector<8x128xf32>, vector<128x384xf32>, vector<8x384xf32> -> vector<8x384xf32>
    %c0_263 = arith.constant 0 : index
    %c0_264 = arith.constant 0 : index
    %c0_265 = arith.constant 0 : index
    %679 = vector.load %arg5[%c0_263, %c0_264, %c0_265] : memref<2x1x384xf32, #tpu.memory_space<vmem>>, vector<1x1x384xf32>
    %680 = vector.shape_cast %679 : vector<1x1x384xf32> to vector<1x384xf32>
    %681 = vector.broadcast %680 : vector<1x384xf32> to vector<8x384xf32>
    %682 = arith.addf %678, %681 : vector<8x384xf32>
    %683 = vector.extract_strided_slice %675 {offsets = [0, 0], sizes = [8, 128], strides = [1, 1]} : vector<8x384xf32> to vector<8x128xf32>
    %684 = vector.extract_strided_slice %682 {offsets = [0, 0], sizes = [8, 128], strides = [1, 1]} : vector<8x384xf32> to vector<8x128xf32>
    %685 = arith.addf %683, %684 : vector<8x128xf32>
    %686 = arith.negf %685 : vector<8x128xf32>
    %687 = math.exp %686 : vector<8x128xf32>
    %cst_266 = arith.constant 1.000000e+00 : f32
    %688 = vector.broadcast %cst_266 : f32 to vector<8x128xf32>
    %689 = arith.addf %688, %687 : vector<8x128xf32>
    %690 = arith.divf %688, %689 : vector<8x128xf32>
    %691 = vector.extract_strided_slice %675 {offsets = [0, 128], sizes = [8, 128], strides = [1, 1]} : vector<8x384xf32> to vector<8x128xf32>
    %692 = vector.extract_strided_slice %682 {offsets = [0, 128], sizes = [8, 128], strides = [1, 1]} : vector<8x384xf32> to vector<8x128xf32>
    %693 = arith.addf %691, %692 : vector<8x128xf32>
    %694 = arith.negf %693 : vector<8x128xf32>
    %695 = math.exp %694 : vector<8x128xf32>
    %cst_267 = arith.constant 1.000000e+00 : f32
    %696 = vector.broadcast %cst_267 : f32 to vector<8x128xf32>
    %697 = arith.addf %696, %695 : vector<8x128xf32>
    %698 = arith.divf %696, %697 : vector<8x128xf32>
    %699 = vector.extract_strided_slice %675 {offsets = [0, 256], sizes = [8, 128], strides = [1, 1]} : vector<8x384xf32> to vector<8x128xf32>
    %700 = vector.extract_strided_slice %682 {offsets = [0, 256], sizes = [8, 128], strides = [1, 1]} : vector<8x384xf32> to vector<8x128xf32>
    %701 = arith.mulf %690, %700 : vector<8x128xf32>
    %702 = arith.addf %699, %701 : vector<8x128xf32>
    %703 = math.tanh %702 : vector<8x128xf32>
    %704 = arith.subf %635, %703 : vector<8x128xf32>
    %705 = arith.mulf %698, %704 : vector<8x128xf32>
    %706 = arith.addf %703, %705 : vector<8x128xf32>
    %c1_268 = arith.constant 1 : index
    %c0_269 = arith.constant 0 : index
    %c0_270 = arith.constant 0 : index
    %707 = vector.load %arg2[%c1_268, %c0_269, %c0_270] : memref<2x128x384xf32, #tpu.memory_space<vmem>>, vector<1x128x384xf32>
    %708 = vector.shape_cast %707 : vector<1x128x384xf32> to vector<128x384xf32>
    %cst_271 = arith.constant dense<0.000000e+00> : vector<8x384xf32>
    %709 = tpu.matmul %635, %708, %cst_271 {dimension_numbers = #tpu.dot_dimension_numbers<[1], [0], [0], [1], [0, 0, 1, 1], [], []>} : vector<8x128xf32>, vector<128x384xf32>, vector<8x384xf32> -> vector<8x384xf32>
    %c1_272 = arith.constant 1 : index
    %c0_273 = arith.constant 0 : index
    %c0_274 = arith.constant 0 : index
    %710 = vector.load %arg4[%c1_272, %c0_273, %c0_274] : memref<2x1x384xf32, #tpu.memory_space<vmem>>, vector<1x1x384xf32>
    %711 = vector.shape_cast %710 : vector<1x1x384xf32> to vector<1x384xf32>
    %712 = vector.broadcast %711 : vector<1x384xf32> to vector<8x384xf32>
    %713 = arith.addf %709, %712 : vector<8x384xf32>
    %c1_275 = arith.constant 1 : index
    %c0_276 = arith.constant 0 : index
    %c0_277 = arith.constant 0 : index
    %714 = vector.load %arg3[%c1_275, %c0_276, %c0_277] : memref<2x128x384xf32, #tpu.memory_space<vmem>>, vector<1x128x384xf32>
    %715 = vector.shape_cast %714 : vector<1x128x384xf32> to vector<128x384xf32>
    %cst_278 = arith.constant dense<0.000000e+00> : vector<8x384xf32>
    %716 = tpu.matmul %673, %715, %cst_278 {dimension_numbers = #tpu.dot_dimension_numbers<[1], [0], [0], [1], [0, 0, 1, 1], [], []>} : vector<8x128xf32>, vector<128x384xf32>, vector<8x384xf32> -> vector<8x384xf32>
    %c1_279 = arith.constant 1 : index
    %c0_280 = arith.constant 0 : index
    %c0_281 = arith.constant 0 : index
    %717 = vector.load %arg5[%c1_279, %c0_280, %c0_281] : memref<2x1x384xf32, #tpu.memory_space<vmem>>, vector<1x1x384xf32>
    %718 = vector.shape_cast %717 : vector<1x1x384xf32> to vector<1x384xf32>
    %719 = vector.broadcast %718 : vector<1x384xf32> to vector<8x384xf32>
    %720 = arith.addf %716, %719 : vector<8x384xf32>
    %721 = vector.extract_strided_slice %713 {offsets = [0, 0], sizes = [8, 128], strides = [1, 1]} : vector<8x384xf32> to vector<8x128xf32>
    %722 = vector.extract_strided_slice %720 {offsets = [0, 0], sizes = [8, 128], strides = [1, 1]} : vector<8x384xf32> to vector<8x128xf32>
    %723 = arith.addf %721, %722 : vector<8x128xf32>
    %724 = arith.negf %723 : vector<8x128xf32>
    %725 = math.exp %724 : vector<8x128xf32>
    %cst_282 = arith.constant 1.000000e+00 : f32
    %726 = vector.broadcast %cst_282 : f32 to vector<8x128xf32>
    %727 = arith.addf %726, %725 : vector<8x128xf32>
    %728 = arith.divf %726, %727 : vector<8x128xf32>
    %729 = vector.extract_strided_slice %713 {offsets = [0, 128], sizes = [8, 128], strides = [1, 1]} : vector<8x384xf32> to vector<8x128xf32>
    %730 = vector.extract_strided_slice %720 {offsets = [0, 128], sizes = [8, 128], strides = [1, 1]} : vector<8x384xf32> to vector<8x128xf32>
    %731 = arith.addf %729, %730 : vector<8x128xf32>
    %732 = arith.negf %731 : vector<8x128xf32>
    %733 = math.exp %732 : vector<8x128xf32>
    %cst_283 = arith.constant 1.000000e+00 : f32
    %734 = vector.broadcast %cst_283 : f32 to vector<8x128xf32>
    %735 = arith.addf %734, %733 : vector<8x128xf32>
    %736 = arith.divf %734, %735 : vector<8x128xf32>
    %737 = vector.extract_strided_slice %713 {offsets = [0, 256], sizes = [8, 128], strides = [1, 1]} : vector<8x384xf32> to vector<8x128xf32>
    %738 = vector.extract_strided_slice %720 {offsets = [0, 256], sizes = [8, 128], strides = [1, 1]} : vector<8x384xf32> to vector<8x128xf32>
    %739 = arith.mulf %728, %738 : vector<8x128xf32>
    %740 = arith.addf %737, %739 : vector<8x128xf32>
    %741 = math.tanh %740 : vector<8x128xf32>
    %742 = arith.subf %673, %741 : vector<8x128xf32>
    %743 = arith.mulf %736, %742 : vector<8x128xf32>
    %744 = arith.addf %741, %743 : vector<8x128xf32>
    %c8_284 = arith.constant 8 : index
    %c0_285 = arith.constant 0 : index
    %745 = vector.load %arg10[%c8_284, %c0_285] : memref<32x128xf32, #tpu.memory_space<vmem>>, vector<8x128xf32>
    tpu.vector_store %arg10[%c8_284, %c0_285], %744 {strides = array<i32>} : memref<32x128xf32, #tpu.memory_space<vmem>>, vector<8x128xf32>,
    %c88 = arith.constant 88 : index
    %c0_286 = arith.constant 0 : index
    %746 = vector.load %arg9[%c88, %c0_286] : memref<96x384xf32, #tpu.memory_space<vmem>>, vector<8x384xf32>
    %c0_287 = arith.constant 0 : index
    %c0_288 = arith.constant 0 : index
    %c0_289 = arith.constant 0 : index
    %747 = vector.load %arg3[%c0_287, %c0_288, %c0_289] : memref<2x128x384xf32, #tpu.memory_space<vmem>>, vector<1x128x384xf32>
    %748 = vector.shape_cast %747 : vector<1x128x384xf32> to vector<128x384xf32>
    %cst_290 = arith.constant dense<0.000000e+00> : vector<8x384xf32>
    %749 = tpu.matmul %706, %748, %cst_290 {dimension_numbers = #tpu.dot_dimension_numbers<[1], [0], [0], [1], [0, 0, 1, 1], [], []>} : vector<8x128xf32>, vector<128x384xf32>, vector<8x384xf32> -> vector<8x384xf32>
    %c0_291 = arith.constant 0 : index
    %c0_292 = arith.constant 0 : index
    %c0_293 = arith.constant 0 : index
    %750 = vector.load %arg5[%c0_291, %c0_292, %c0_293] : memref<2x1x384xf32, #tpu.memory_space<vmem>>, vector<1x1x384xf32>
    %751 = vector.shape_cast %750 : vector<1x1x384xf32> to vector<1x384xf32>
    %752 = vector.broadcast %751 : vector<1x384xf32> to vector<8x384xf32>
    %753 = arith.addf %749, %752 : vector<8x384xf32>
    %754 = vector.extract_strided_slice %746 {offsets = [0, 0], sizes = [8, 128], strides = [1, 1]} : vector<8x384xf32> to vector<8x128xf32>
    %755 = vector.extract_strided_slice %753 {offsets = [0, 0], sizes = [8, 128], strides = [1, 1]} : vector<8x384xf32> to vector<8x128xf32>
    %756 = arith.addf %754, %755 : vector<8x128xf32>
    %757 = arith.negf %756 : vector<8x128xf32>
    %758 = math.exp %757 : vector<8x128xf32>
    %cst_294 = arith.constant 1.000000e+00 : f32
    %759 = vector.broadcast %cst_294 : f32 to vector<8x128xf32>
    %760 = arith.addf %759, %758 : vector<8x128xf32>
    %761 = arith.divf %759, %760 : vector<8x128xf32>
    %762 = vector.extract_strided_slice %746 {offsets = [0, 128], sizes = [8, 128], strides = [1, 1]} : vector<8x384xf32> to vector<8x128xf32>
    %763 = vector.extract_strided_slice %753 {offsets = [0, 128], sizes = [8, 128], strides = [1, 1]} : vector<8x384xf32> to vector<8x128xf32>
    %764 = arith.addf %762, %763 : vector<8x128xf32>
    %765 = arith.negf %764 : vector<8x128xf32>
    %766 = math.exp %765 : vector<8x128xf32>
    %cst_295 = arith.constant 1.000000e+00 : f32
    %767 = vector.broadcast %cst_295 : f32 to vector<8x128xf32>
    %768 = arith.addf %767, %766 : vector<8x128xf32>
    %769 = arith.divf %767, %768 : vector<8x128xf32>
    %770 = vector.extract_strided_slice %746 {offsets = [0, 256], sizes = [8, 128], strides = [1, 1]} : vector<8x384xf32> to vector<8x128xf32>
    %771 = vector.extract_strided_slice %753 {offsets = [0, 256], sizes = [8, 128], strides = [1, 1]} : vector<8x384xf32> to vector<8x128xf32>
    %772 = arith.mulf %761, %771 : vector<8x128xf32>
    %773 = arith.addf %770, %772 : vector<8x128xf32>
    %774 = math.tanh %773 : vector<8x128xf32>
    %775 = arith.subf %706, %774 : vector<8x128xf32>
    %776 = arith.mulf %769, %775 : vector<8x128xf32>
    %777 = arith.addf %774, %776 : vector<8x128xf32>
    %c1_296 = arith.constant 1 : index
    %c0_297 = arith.constant 0 : index
    %c0_298 = arith.constant 0 : index
    %778 = vector.load %arg2[%c1_296, %c0_297, %c0_298] : memref<2x128x384xf32, #tpu.memory_space<vmem>>, vector<1x128x384xf32>
    %779 = vector.shape_cast %778 : vector<1x128x384xf32> to vector<128x384xf32>
    %cst_299 = arith.constant dense<0.000000e+00> : vector<8x384xf32>
    %780 = tpu.matmul %706, %779, %cst_299 {dimension_numbers = #tpu.dot_dimension_numbers<[1], [0], [0], [1], [0, 0, 1, 1], [], []>} : vector<8x128xf32>, vector<128x384xf32>, vector<8x384xf32> -> vector<8x384xf32>
    %c1_300 = arith.constant 1 : index
    %c0_301 = arith.constant 0 : index
    %c0_302 = arith.constant 0 : index
    %781 = vector.load %arg4[%c1_300, %c0_301, %c0_302] : memref<2x1x384xf32, #tpu.memory_space<vmem>>, vector<1x1x384xf32>
    %782 = vector.shape_cast %781 : vector<1x1x384xf32> to vector<1x384xf32>
    %783 = vector.broadcast %782 : vector<1x384xf32> to vector<8x384xf32>
    %784 = arith.addf %780, %783 : vector<8x384xf32>
    %c1_303 = arith.constant 1 : index
    %c0_304 = arith.constant 0 : index
    %c0_305 = arith.constant 0 : index
    %785 = vector.load %arg3[%c1_303, %c0_304, %c0_305] : memref<2x128x384xf32, #tpu.memory_space<vmem>>, vector<1x128x384xf32>
    %786 = vector.shape_cast %785 : vector<1x128x384xf32> to vector<128x384xf32>
    %cst_306 = arith.constant dense<0.000000e+00> : vector<8x384xf32>
    %787 = tpu.matmul %744, %786, %cst_306 {dimension_numbers = #tpu.dot_dimension_numbers<[1], [0], [0], [1], [0, 0, 1, 1], [], []>} : vector<8x128xf32>, vector<128x384xf32>, vector<8x384xf32> -> vector<8x384xf32>
    %c1_307 = arith.constant 1 : index
    %c0_308 = arith.constant 0 : index
    %c0_309 = arith.constant 0 : index
    %788 = vector.load %arg5[%c1_307, %c0_308, %c0_309] : memref<2x1x384xf32, #tpu.memory_space<vmem>>, vector<1x1x384xf32>
    %789 = vector.shape_cast %788 : vector<1x1x384xf32> to vector<1x384xf32>
    %790 = vector.broadcast %789 : vector<1x384xf32> to vector<8x384xf32>
    %791 = arith.addf %787, %790 : vector<8x384xf32>
    %792 = vector.extract_strided_slice %784 {offsets = [0, 0], sizes = [8, 128], strides = [1, 1]} : vector<8x384xf32> to vector<8x128xf32>
    %793 = vector.extract_strided_slice %791 {offsets = [0, 0], sizes = [8, 128], strides = [1, 1]} : vector<8x384xf32> to vector<8x128xf32>
    %794 = arith.addf %792, %793 : vector<8x128xf32>
    %795 = arith.negf %794 : vector<8x128xf32>
    %796 = math.exp %795 : vector<8x128xf32>
    %cst_310 = arith.constant 1.000000e+00 : f32
    %797 = vector.broadcast %cst_310 : f32 to vector<8x128xf32>
    %798 = arith.addf %797, %796 : vector<8x128xf32>
    %799 = arith.divf %797, %798 : vector<8x128xf32>
    %800 = vector.extract_strided_slice %784 {offsets = [0, 128], sizes = [8, 128], strides = [1, 1]} : vector<8x384xf32> to vector<8x128xf32>
    %801 = vector.extract_strided_slice %791 {offsets = [0, 128], sizes = [8, 128], strides = [1, 1]} : vector<8x384xf32> to vector<8x128xf32>
    %802 = arith.addf %800, %801 : vector<8x128xf32>
    %803 = arith.negf %802 : vector<8x128xf32>
    %804 = math.exp %803 : vector<8x128xf32>
    %cst_311 = arith.constant 1.000000e+00 : f32
    %805 = vector.broadcast %cst_311 : f32 to vector<8x128xf32>
    %806 = arith.addf %805, %804 : vector<8x128xf32>
    %807 = arith.divf %805, %806 : vector<8x128xf32>
    %808 = vector.extract_strided_slice %784 {offsets = [0, 256], sizes = [8, 128], strides = [1, 1]} : vector<8x384xf32> to vector<8x128xf32>
    %809 = vector.extract_strided_slice %791 {offsets = [0, 256], sizes = [8, 128], strides = [1, 1]} : vector<8x384xf32> to vector<8x128xf32>
    %810 = arith.mulf %799, %809 : vector<8x128xf32>
    %811 = arith.addf %808, %810 : vector<8x128xf32>
    %812 = math.tanh %811 : vector<8x128xf32>
    %813 = arith.subf %744, %812 : vector<8x128xf32>
    %814 = arith.mulf %807, %813 : vector<8x128xf32>
    %815 = arith.addf %812, %814 : vector<8x128xf32>
    %c16_312 = arith.constant 16 : index
    %c0_313 = arith.constant 0 : index
    %816 = vector.load %arg10[%c16_312, %c0_313] : memref<32x128xf32, #tpu.memory_space<vmem>>, vector<8x128xf32>
    tpu.vector_store %arg10[%c16_312, %c0_313], %815 {strides = array<i32>} : memref<32x128xf32, #tpu.memory_space<vmem>>, vector<8x128xf32>,
    %c1_314 = arith.constant 1 : index
    %c0_315 = arith.constant 0 : index
    %c0_316 = arith.constant 0 : index
    %817 = vector.load %arg2[%c1_314, %c0_315, %c0_316] : memref<2x128x384xf32, #tpu.memory_space<vmem>>, vector<1x128x384xf32>
    %818 = vector.shape_cast %817 : vector<1x128x384xf32> to vector<128x384xf32>
    %cst_317 = arith.constant dense<0.000000e+00> : vector<8x384xf32>
    %819 = tpu.matmul %777, %818, %cst_317 {dimension_numbers = #tpu.dot_dimension_numbers<[1], [0], [0], [1], [0, 0, 1, 1], [], []>} : vector<8x128xf32>, vector<128x384xf32>, vector<8x384xf32> -> vector<8x384xf32>
    %c1_318 = arith.constant 1 : index
    %c0_319 = arith.constant 0 : index
    %c0_320 = arith.constant 0 : index
    %820 = vector.load %arg4[%c1_318, %c0_319, %c0_320] : memref<2x1x384xf32, #tpu.memory_space<vmem>>, vector<1x1x384xf32>
    %821 = vector.shape_cast %820 : vector<1x1x384xf32> to vector<1x384xf32>
    %822 = vector.broadcast %821 : vector<1x384xf32> to vector<8x384xf32>
    %823 = arith.addf %819, %822 : vector<8x384xf32>
    %c1_321 = arith.constant 1 : index
    %c0_322 = arith.constant 0 : index
    %c0_323 = arith.constant 0 : index
    %824 = vector.load %arg3[%c1_321, %c0_322, %c0_323] : memref<2x128x384xf32, #tpu.memory_space<vmem>>, vector<1x128x384xf32>
    %825 = vector.shape_cast %824 : vector<1x128x384xf32> to vector<128x384xf32>
    %cst_324 = arith.constant dense<0.000000e+00> : vector<8x384xf32>
    %826 = tpu.matmul %815, %825, %cst_324 {dimension_numbers = #tpu.dot_dimension_numbers<[1], [0], [0], [1], [0, 0, 1, 1], [], []>} : vector<8x128xf32>, vector<128x384xf32>, vector<8x384xf32> -> vector<8x384xf32>
    %c1_325 = arith.constant 1 : index
    %c0_326 = arith.constant 0 : index
    %c0_327 = arith.constant 0 : index
    %827 = vector.load %arg5[%c1_325, %c0_326, %c0_327] : memref<2x1x384xf32, #tpu.memory_space<vmem>>, vector<1x1x384xf32>
    %828 = vector.shape_cast %827 : vector<1x1x384xf32> to vector<1x384xf32>
    %829 = vector.broadcast %828 : vector<1x384xf32> to vector<8x384xf32>
    %830 = arith.addf %826, %829 : vector<8x384xf32>
    %831 = vector.extract_strided_slice %823 {offsets = [0, 0], sizes = [8, 128], strides = [1, 1]} : vector<8x384xf32> to vector<8x128xf32>
    %832 = vector.extract_strided_slice %830 {offsets = [0, 0], sizes = [8, 128], strides = [1, 1]} : vector<8x384xf32> to vector<8x128xf32>
    %833 = arith.addf %831, %832 : vector<8x128xf32>
    %834 = arith.negf %833 : vector<8x128xf32>
    %835 = math.exp %834 : vector<8x128xf32>
    %cst_328 = arith.constant 1.000000e+00 : f32
    %836 = vector.broadcast %cst_328 : f32 to vector<8x128xf32>
    %837 = arith.addf %836, %835 : vector<8x128xf32>
    %838 = arith.divf %836, %837 : vector<8x128xf32>
    %839 = vector.extract_strided_slice %823 {offsets = [0, 128], sizes = [8, 128], strides = [1, 1]} : vector<8x384xf32> to vector<8x128xf32>
    %840 = vector.extract_strided_slice %830 {offsets = [0, 128], sizes = [8, 128], strides = [1, 1]} : vector<8x384xf32> to vector<8x128xf32>
    %841 = arith.addf %839, %840 : vector<8x128xf32>
    %842 = arith.negf %841 : vector<8x128xf32>
    %843 = math.exp %842 : vector<8x128xf32>
    %cst_329 = arith.constant 1.000000e+00 : f32
    %844 = vector.broadcast %cst_329 : f32 to vector<8x128xf32>
    %845 = arith.addf %844, %843 : vector<8x128xf32>
    %846 = arith.divf %844, %845 : vector<8x128xf32>
    %847 = vector.extract_strided_slice %823 {offsets = [0, 256], sizes = [8, 128], strides = [1, 1]} : vector<8x384xf32> to vector<8x128xf32>
    %848 = vector.extract_strided_slice %830 {offsets = [0, 256], sizes = [8, 128], strides = [1, 1]} : vector<8x384xf32> to vector<8x128xf32>
    %849 = arith.mulf %838, %848 : vector<8x128xf32>
    %850 = arith.addf %847, %849 : vector<8x128xf32>
    %851 = math.tanh %850 : vector<8x128xf32>
    %852 = arith.subf %815, %851 : vector<8x128xf32>
    %853 = arith.mulf %846, %852 : vector<8x128xf32>
    %854 = arith.addf %851, %853 : vector<8x128xf32>
    %c24_330 = arith.constant 24 : index
    %c0_331 = arith.constant 0 : index
    %855 = vector.load %arg10[%c24_330, %c0_331] : memref<32x128xf32, #tpu.memory_space<vmem>>, vector<8x128xf32>
    tpu.vector_store %arg10[%c24_330, %c0_331], %854 {strides = array<i32>} : memref<32x128xf32, #tpu.memory_space<vmem>>, vector<8x128xf32>,
    %c0_332 = arith.constant 0 : index
    %c0_333 = arith.constant 0 : index
    %856 = vector.load %arg10[%c0_332, %c0_333] : memref<32x128xf32, #tpu.memory_space<vmem>>, vector<32x128xf32>
    %c0_334 = arith.constant 0 : index
    %c0_335 = arith.constant 0 : index
    %857 = vector.load %arg6[%c0_334, %c0_335] : memref<128x128xf32, #tpu.memory_space<vmem>>, vector<128x128xf32>
    %cst_336 = arith.constant dense<0.000000e+00> : vector<32x128xf32>
    %858 = tpu.matmul %856, %857, %cst_336 {dimension_numbers = #tpu.dot_dimension_numbers<[1], [0], [0], [1], [0, 0, 1, 1], [], []>} : vector<32x128xf32>, vector<128x128xf32>, vector<32x128xf32> -> vector<32x128xf32>
    %c0_337 = arith.constant 0 : index
    %c0_338 = arith.constant 0 : index
    %859 = vector.load %arg7[%c0_337, %c0_338] : memref<1x128xf32, #tpu.memory_space<vmem>>, vector<1x128xf32>
    %860 = vector.broadcast %859 : vector<1x128xf32> to vector<32x128xf32>
    %861 = arith.addf %858, %860 : vector<32x128xf32>
    %c0_339 = arith.constant 0 : index
    %c0_340 = arith.constant 0 : index
    %c0_341 = arith.constant 0 : index
    %862 = vector.load %arg8[%c0_339, %c0_340, %c0_341] : memref<1x32x128xf32, #tpu.memory_space<vmem>>, vector<1x32x128xf32>
    %863 = vector.shape_cast %862 : vector<1x32x128xf32> to vector<32x128xf32>
    %864 = vector.shape_cast %861 : vector<32x128xf32> to vector<1x32x128xf32>
    tpu.vector_store %arg8[%c0_339, %c0_340, %c0_341], %864 {strides = array<i32>} : memref<1x32x128xf32, #tpu.memory_space<vmem>>, vector<1x32x128xf32>,
    return
  }
  func.func @transform_0(%arg0: i32) -> (i32, i32, i32) {
    %c0_i32 = arith.constant 0 : i32
    %c0_i32_0 = arith.constant 0 : i32
    %c0_i32_1 = arith.constant 0 : i32
    return %arg0, %c0_i32, %c0_i32_0 : i32, i32, i32
  }
  func.func @transform_1(%arg0: i32) -> (i32, i32, i32) {
    %c0_i32 = arith.constant 0 : i32
    %c0_i32_0 = arith.constant 0 : i32
    %c0_i32_1 = arith.constant 0 : i32
    %c0_i32_2 = arith.constant 0 : i32
    return %c0_i32, %c0_i32_0, %c0_i32_1 : i32, i32, i32
  }
  func.func @transform_2(%arg0: i32) -> (i32, i32, i32) {
    %c0_i32 = arith.constant 0 : i32
    %c0_i32_0 = arith.constant 0 : i32
    %c0_i32_1 = arith.constant 0 : i32
    %c0_i32_2 = arith.constant 0 : i32
    return %c0_i32, %c0_i32_0, %c0_i32_1 : i32, i32, i32
  }
  func.func @transform_3(%arg0: i32) -> (i32, i32, i32) {
    %c0_i32 = arith.constant 0 : i32
    %c0_i32_0 = arith.constant 0 : i32
    %c0_i32_1 = arith.constant 0 : i32
    %c0_i32_2 = arith.constant 0 : i32
    return %c0_i32, %c0_i32_0, %c0_i32_1 : i32, i32, i32
  }
  func.func @transform_4(%arg0: i32) -> (i32, i32, i32) {
    %c0_i32 = arith.constant 0 : i32
    %c0_i32_0 = arith.constant 0 : i32
    %c0_i32_1 = arith.constant 0 : i32
    %c0_i32_2 = arith.constant 0 : i32
    return %c0_i32, %c0_i32_0, %c0_i32_1 : i32, i32, i32
  }
  func.func @transform_5(%arg0: i32) -> (i32, i32) {
    %c0_i32 = arith.constant 0 : i32
    %c0_i32_0 = arith.constant 0 : i32
    %c0_i32_1 = arith.constant 0 : i32
    return %c0_i32, %c0_i32_0 : i32, i32
  }
  func.func @transform_6(%arg0: i32) -> (i32, i32) {
    %c0_i32 = arith.constant 0 : i32
    %c0_i32_0 = arith.constant 0 : i32
    %c0_i32_1 = arith.constant 0 : i32
    return %c0_i32, %c0_i32_0 : i32, i32
  }
  func.func @transform_7(%arg0: i32) -> (i32, i32, i32) {
    %c0_i32 = arith.constant 0 : i32
    %c0_i32_0 = arith.constant 0 : i32
    %c0_i32_1 = arith.constant 0 : i32
    return %arg0, %c0_i32, %c0_i32_0 : i32, i32, i32
  }
}

</mosaic_0001>

<llo_original>
// kernel: tpu_custom_call.1
$region0: #{tpu_custom_call.1}
  #allocation0 [shape = 'u32[]', space=smem, size = 0x4, offset = 0x4, fixed_abs, tag = 'smem constant byte address 0x4 - core index']
  #allocation1 [shape = 'u32[144,128]{1,0:T(1,128)}', space=vmem, size = 0x12000, scoped, tag = 'internal scratch']
  #allocation2 [shape = 'f32[96,384]{1,0:T(8,128)}', space=vmem, size = 0x24000, scoped, tag = 'scratch operand']
  #allocation3 [shape = 'f32[32,128]{1,0:T(8,128)}', space=vmem, size = 0x4000, scoped, tag = 'scratch operand']
  %s0 = inlined_call_operand.hbm [shape: f32[1,96,128], index: 0, kind: input, shape index: {}]
  %s1 = inlined_call_operand.hbm [shape: f32[2,128,384], index: 1, kind: input, shape index: {}]
  %s2 = inlined_call_operand.hbm [shape: f32[2,128,384], index: 2, kind: input, shape index: {}]
  %s3 = inlined_call_operand.vmem [shape: f32[2,1,384], index: 3, kind: input, shape index: {}]
  %s4 = inlined_call_operand.vmem [shape: f32[2,1,384], index: 4, kind: input, shape index: {}]
  %s5 = inlined_call_operand.hbm [shape: f32[128,128], index: 5, kind: input, shape index: {}]
  %s6 = inlined_call_operand.vmem [shape: f32[1,128], index: 6, kind: input, shape index: {}]
  %s7 = inlined_call_operand.hbm [shape: f32[1,32,128], index: 7, kind: output, shape index: {}]
  %s8 = sld [smem:[#allocation0]]
  $region54: #{tpu_custom_call.1} parent=0
    _
  %s10 = ssub.s32 1, %s8
  %s11 = scalar_select 0, %s10, %s8
  $region1: #{tpu_custom_call.1} parent=0
    #allocation4 [shape = 'u8[49152]{0}', space=vmem, size = 0xc000, scoped, tag = 'input window, operand 0, single buffered']
    #allocation5 [shape = 's32[1]{0}', space=sflag, size = 0x4, scoped, tag = 'scoped memory for tpu_custom_call.1']
    #allocation6 [shape = 's32[1]{0}', space=sflag, size = 0x4, scoped, tag = 'scoped memory for tpu_custom_call.1']
    #allocation7 [shape = 'u8[393216]{0}', space=vmem, size = 0x60000, scoped, tag = 'input window, operand 1, single buffered']
    #allocation8 [shape = 's32[1]{0}', space=sflag, size = 0x4, scoped, tag = 'scoped memory for tpu_custom_call.1']
    #allocation9 [shape = 'u8[393216]{0}', space=vmem, size = 0x60000, scoped, tag = 'input window, operand 2, single buffered']
    #allocation10 [shape = 'u8[65536]{0}', space=vmem, size = 0x10000, scoped, tag = 'input window, operand 5, single buffered']
    #allocation11 [shape = 's32[1]{0}', space=sflag, size = 0x4, scoped, tag = 'scoped memory for tpu_custom_call.1']
    #allocation12 [shape = 'u8[16384]{0}', space=vmem, size = 0x4000, scoped, tag = 'output window, operand 0, single buffered']
    %12 = vsyncpa [#allocation5], 0
    %13 = vsyncpa [#allocation8], 0
    %14 = vsyncpa [#allocation11], 0
    %15 = vsyncpa [#allocation6], 0
    // Predicated region
    $region2: #{tpu_custom_call.1} parent=1 // pred_check
      _
    $region3: #{tpu_custom_call.1} parent=1 // pred_check_branch
      %17 = sbr.rel (0) target = $region5
    $region4: #{tpu_custom_call.1} parent=1 // pred_region
      %s19 = ssub.s32 1536, 1536
      %20 = vsyncadd [#allocation5], %s19
      %s21 = sshll.u32 [#allocation4], 4
      %s22 = int_to_ptr.vmem [resolvable:$true] %s21
      %27 = dma.hbm_to_vmem [thread:$0]  %s0, 1536, %s22, [#allocation5], 128, 128, 8
    $region5: #{tpu_custom_call.1} parent=1 // pred_fallthru
      _
    // Predicated region
    $region6: #{tpu_custom_call.1} parent=1 // pred_check
      _
    $region7: #{tpu_custom_call.1} parent=1 // pred_check_branch
      %29 = sbr.rel (0) target = $region9
    $region8: #{tpu_custom_call.1} parent=1 // pred_region
      %s31 = ssub.s32 12288, 12288
      %32 = vsyncadd [#allocation8], %s31
      %s33 = sshll.u32 [#allocation7], 4
      %s34 = int_to_ptr.vmem [resolvable:$true] %s33
      %39 = dma.hbm_to_vmem [thread:$0]  %s1, 12288, %s34, [#allocation8], 384, 384, 24
    $region9: #{tpu_custom_call.1} parent=1 // pred_fallthru
      _
    // Predicated region
    $region10: #{tpu_custom_call.1} parent=1 // pred_check
      _
    $region11: #{tpu_custom_call.1} parent=1 // pred_check_branch
      %41 = sbr.rel (0) target = $region13
    $region12: #{tpu_custom_call.1} parent=1 // pred_region
      %s43 = ssub.s32 12288, 12288
      %44 = vsyncadd [#allocation8], %s43
      %s45 = sshll.u32 [#allocation9], 4
      %s46 = int_to_ptr.vmem [resolvable:$true] %s45
      %51 = dma.hbm_to_vmem [thread:$0]  %s2, 12288, %s46, [#allocation8], 384, 384, 24
    $region13: #{tpu_custom_call.1} parent=1 // pred_fallthru
      _
    // Predicated region
    $region14: #{tpu_custom_call.1} parent=1 // pred_check
      _
    $region15: #{tpu_custom_call.1} parent=1 // pred_check_branch
      %53 = sbr.rel (0) target = $region17
    $region16: #{tpu_custom_call.1} parent=1 // pred_region
      _
    $region17: #{tpu_custom_call.1} parent=1 // pred_fallthru
      _
    // Predicated region
    $region18: #{tpu_custom_call.1} parent=1 // pred_check
      _
    $region19: #{tpu_custom_call.1} parent=1 // pred_check_branch
      %55 = sbr.rel (0) target = $region21
    $region20: #{tpu_custom_call.1} parent=1 // pred_region
      _
    $region21: #{tpu_custom_call.1} parent=1 // pred_fallthru
      _
    // Predicated region
    $region22: #{tpu_custom_call.1} parent=1 // pred_check
      _
    $region23: #{tpu_custom_call.1} parent=1 // pred_check_branch
      %57 = sbr.rel (0) target = $region25
    $region24: #{tpu_custom_call.1} parent=1 // pred_region
      %s59 = ssub.s32 2048, 2048
      %60 = vsyncadd [#allocation11], %s59
      %s61 = sshll.u32 [#allocation10], 4
      %s62 = int_to_ptr.vmem [resolvable:$true] %s61
      %67 = dma.hbm_to_vmem [thread:$0]  %s5, 2048, %s62, [#allocation11], 128, 128, 8
    $region25: #{tpu_custom_call.1} parent=1 // pred_fallthru
      _
    // Predicated region
    $region26: #{tpu_custom_call.1} parent=1 // pred_check
      _
    $region27: #{tpu_custom_call.1} parent=1 // pred_check_branch
      %69 = sbr.rel (0) target = $region29
    $region28: #{tpu_custom_call.1} parent=1 // pred_region
      _
    $region29: #{tpu_custom_call.1} parent=1 // pred_fallthru
      _
    // Predicated region
    $region30: #{tpu_custom_call.1} parent=1 // pred_check
      _
    $region31: #{tpu_custom_call.1} parent=1 // pred_check_branch
      %71 = sbr.rel (0) target = $region33
    $region32: #{tpu_custom_call.1} parent=1 // pred_region
      %72 = dma.done [#allocation5], 1536
    $region33: #{tpu_custom_call.1} parent=1 // pred_fallthru
      _
    // Predicated region
    $region34: #{tpu_custom_call.1} parent=1 // pred_check
      _
    $region35: #{tpu_custom_call.1} parent=1 // pred_check_branch
      %74 = sbr.rel (0) target = $region37
    $region36: #{tpu_custom_call.1} parent=1 // pred_region
      %75 = dma.done [#allocation8], 12288
    $region37: #{tpu_custom_call.1} parent=1 // pred_fallthru
      _
    // Predicated region
    $region38: #{tpu_custom_call.1} parent=1 // pred_check
      _
    $region39: #{tpu_custom_call.1} parent=1 // pred_check_branch
      %77 = sbr.rel (0) target = $region41
    $region40: #{tpu_custom_call.1} parent=1 // pred_region
      %78 = dma.done [#allocation8], 12288
    $region41: #{tpu_custom_call.1} parent=1 // pred_fallthru
      _
    // Predicated region
    $region42: #{tpu_custom_call.1} parent=1 // pred_check
      _
    $region43: #{tpu_custom_call.1} parent=1 // pred_check_branch
      %80 = sbr.rel (0) target = $region45
    $region44: #{tpu_custom_call.1} parent=1 // pred_region
      %81 = dma.done [#allocation11], 2048
    $region45: #{tpu_custom_call.1} parent=1 // pred_fallthru
      _
    %v82 = vld [vmem:[#allocation4] sm:$0xff]
    %v83 = vld [vmem:[#allocation4 + $0x8] sm:$0xff]
    %v84 = vld [vmem:[#allocation4 + $0x10] sm:$0xff]
    %v85 = vld [vmem:[#allocation4 + $0x18] sm:$0xff]
    %v86 = vld [vmem:[#allocation4 + $0x20] sm:$0xff]
    %v87 = vld [vmem:[#allocation4 + $0x28] sm:$0xff]
    %v88 = vld [vmem:[#allocation4 + $0x30] sm:$0xff]
    %v89 = vld [vmem:[#allocation4 + $0x38] sm:$0xff]
    %v90 = vld [vmem:[#allocation4 + $0x40] sm:$0xff]
    %v91 = vld [vmem:[#allocation4 + $0x48] sm:$0xff]
    %v92 = vld [vmem:[#allocation4 + $0x50] sm:$0xff]
    %v93 = vld [vmem:[#allocation4 + $0x58] sm:$0xff]
    %v94 = vld [vmem:[#allocation7] sm:$0xff]
    %v95 = vld [vmem:[#allocation7 + $0x8] sm:$0xff]
    %v96 = vld [vmem:[#allocation7 + $0x10] sm:$0xff]
    %v97 = vld [vmem:[#allocation7 + $0x18] sm:$0xff]
    %v98 = vld [vmem:[#allocation7 + $0x20] sm:$0xff]
    %v99 = vld [vmem:[#allocation7 + $0x28] sm:$0xff]
    %v100 = vld [vmem:[#allocation7 + $0x30] sm:$0xff]
    %v101 = vld [vmem:[#allocation7 + $0x38] sm:$0xff]
    %v102 = vld [vmem:[#allocation7 + $0x40] sm:$0xff]
    %v103 = vld [vmem:[#allocation7 + $0x48] sm:$0xff]
    %v104 = vld [vmem:[#allocation7 + $0x50] sm:$0xff]
    %v105 = vld [vmem:[#allocation7 + $0x58] sm:$0xff]
    %v106 = vld [vmem:[#allocation7 + $0x60] sm:$0xff]
    %v107 = vld [vmem:[#allocation7 + $0x68] sm:$0xff]
    %v108 = vld [vmem:[#allocation7 + $0x70] sm:$0xff]
    %v109 = vld [vmem:[#allocation7 + $0x78] sm:$0xff]
    %v110 = vld [vmem:[#allocation7 + $0x80] sm:$0xff]
    %v111 = vld [vmem:[#allocation7 + $0x88] sm:$0xff]
    %v112 = vld [vmem:[#allocation7 + $0x90] sm:$0xff]
    %v113 = vld [vmem:[#allocation7 + $0x98] sm:$0xff]
    %v114 = vld [vmem:[#allocation7 + $0xa0] sm:$0xff]
    %v115 = vld [vmem:[#allocation7 + $0xa8] sm:$0xff]
    %v116 = vld [vmem:[#allocation7 + $0xb0] sm:$0xff]
    %v117 = vld [vmem:[#allocation7 + $0xb8] sm:$0xff]
    %v118 = vld [vmem:[#allocation7 + $0xc0] sm:$0xff]
    %v119 = vld [vmem:[#allocation7 + $0xc8] sm:$0xff]
    %v120 = vld [vmem:[#allocation7 + $0xd0] sm:$0xff]
    %v121 = vld [vmem:[#allocation7 + $0xd8] sm:$0xff]
    %v122 = vld [vmem:[#allocation7 + $0xe0] sm:$0xff]
    %v123 = vld [vmem:[#allocation7 + $0xe8] sm:$0xff]
    %v124 = vld [vmem:[#allocation7 + $0xf0] sm:$0xff]
    %v125 = vld [vmem:[#allocation7 + $0xf8] sm:$0xff]
    %v126 = vld [vmem:[#allocation7 + $0x100] sm:$0xff]
    %v127 = vld [vmem:[#allocation7 + $0x108] sm:$0xff]
    %v128 = vld [vmem:[#allocation7 + $0x110] sm:$0xff]
    %v129 = vld [vmem:[#allocation7 + $0x118] sm:$0xff]
    %v130 = vld [vmem:[#allocation7 + $0x120] sm:$0xff]
    %v131 = vld [vmem:[#allocation7 + $0x128] sm:$0xff]
    %v132 = vld [vmem:[#allocation7 + $0x130] sm:$0xff]
    %v133 = vld [vmem:[#allocation7 + $0x138] sm:$0xff]
    %v134 = vld [vmem:[#allocation7 + $0x140] sm:$0xff]
    %v135 = vld [vmem:[#allocation7 + $0x148] sm:$0xff]
    %v136 = vld [vmem:[#allocation7 + $0x150] sm:$0xff]
    %v137 = vld [vmem:[#allocation7 + $0x158] sm:$0xff]
    %v138 = vld [vmem:[#allocation7 + $0x160] sm:$0xff]
    %v139 = vld [vmem:[#allocation7 + $0x168] sm:$0xff]
    %v140 = vld [vmem:[#allocation7 + $0x170] sm:$0xff]
    %v141 = vld [vmem:[#allocation7 + $0x178] sm:$0xff]
    %v142 = vld [vmem:[%s3] sm:$0x7]
    %v144 = vlaneseq
    %v145 = vshrl.u32 %v144, 7
    %v146 = vsub.s32 0, %v145
    %v147 = vrot.slane %v142, %v146
    %v148 = vlaneseq
    %v149 = vshrl.u32 %v148, 7
    %v150 = vsub.s32 1, %v149
    %v151 = vrot.slane %v142, %v150
    %v152 = vlaneseq
    %v153 = vshrl.u32 %v152, 7
    %v154 = vsub.s32 2, %v153
    %v155 = vrot.slane %v142, %v154
    %159 = vmatprep.subr.mxu0 %v95
    %160 = vmatpush1.msra.mxu0 %v94
    %161 = vmatprep.subr.mxu0 %v98
    %162 = vmatpush1.msra.mxu0 %v97
    %163 = vmatprep.subr.mxu0 %v101
    %164 = vmatpush1.msra.mxu0 %v100
    %165 = vmatprep.subr.mxu0 %v104
    %166 = vmatpush1.msra.mxu0 %v103
    %167 = vmatprep.subr.mxu0 %v107
    %168 = vmatpush1.msra.mxu0 %v106
    %169 = vmatprep.subr.mxu0 %v110
    %170 = vmatpush1.msra.mxu0 %v109
    %171 = vmatprep.subr.mxu0 %v113
    %172 = vmatpush1.msra.mxu0 %v112
    %173 = vmatprep.subr.mxu0 %v116
    %174 = vmatpush1.msra.mxu0 %v115
    %175 = vmatprep.subr.mxu0 %v119
    %176 = vmatpush1.msra.mxu0 %v118
    %177 = vmatprep.subr.mxu0 %v122
    %178 = vmatpush1.msra.mxu0 %v121
    %179 = vmatprep.subr.mxu0 %v125
    %180 = vmatpush1.msra.mxu0 %v124
    %181 = vmatprep.subr.mxu0 %v128
    %182 = vmatpush1.msra.mxu0 %v127
    %183 = vmatprep.subr.mxu0 %v131
    %184 = vmatpush1.msra.mxu0 %v130
    %185 = vmatprep.subr.mxu0 %v134
    %186 = vmatpush1.msra.mxu0 %v133
    %187 = vmatprep.subr.mxu0 %v137
    %188 = vmatpush1.msra.mxu0 %v136
    %189 = vmatprep.subr.mxu0 %v140
    %190 = vmatpush1.msra.mxu0 %v139
    %191 = vmatprep.subr.mxu0 0.0
    %192 = vmatpush1.msra.mxu0 0.0
    %193 = vmatprep.subr.mxu0 0.0
    %194 = vmatpush1.msra.mxu0 0.0
    %195 = vmatprep.subr.mxu0 0.0
    %196 = vmatpush1.msra.mxu0 0.0
    %197 = vmatprep.subr.mxu0 0.0
    %198 = vmatpush1.msra.mxu0 0.0
    %199 = vmatprep.subr.mxu0 0.0
    %200 = vmatpush1.msra.mxu0 0.0
    %201 = vmatprep.subr.mxu0 0.0
    %202 = vmatpush1.msra.mxu0 0.0
    %203 = vmatprep.subr.mxu0 0.0
    %204 = vmatpush1.msra.mxu0 0.0
    %205 = vmatprep.subr.mxu0 0.0
    %206 = vmatpush1.msra.mxu0 0.0
    %207 = vmatprep.subr.mxu0 0.0
    %208 = vmatpush1.msra.mxu0 0.0
    %209 = vmatprep.subr.mxu0 0.0
    %210 = vmatpush1.msra.mxu0 0.0
    %211 = vmatprep.subr.mxu0 0.0
    %212 = vmatpush1.msra.mxu0 0.0
    %213 = vmatprep.subr.mxu0 0.0
    %214 = vmatpush1.msra.mxu0 0.0
    %215 = vmatprep.subr.mxu0 0.0
    %216 = vmatpush1.msra.mxu0 0.0
    %217 = vmatprep.subr.mxu0 0.0
    %218 = vmatpush1.msra.mxu0 0.0
    %219 = vmatprep.subr.mxu0 0.0
    %220 = vmatpush1.msra.mxu0 0.0
    %221 = vmatprep.subr.mxu0 0.0
    %222 = vmatpush1.msra.mxu0 0.0
    %223 = vmatprep.mubr.f32.mxu0 0.0
    %224 = vmatmul.mubr.f32.gmra.mrb[0].mxu0 %v82
    %v225 = vpop.f32.mrb[0].mxu0
    %v226 = vadd.f32 %v147, %v225
    %v227 = vpop.f32.mrb[0].mxu0
    %v228 = vadd.f32 %v151, %v227
    %229 = vmatprep.mubr.f32.mxu0 0.0
    %230 = vmatmul.mubr.f32.gmra.mrb[0].mxu0 %v83
    %v231 = vpop.f32.mrb[0].mxu0
    %v232 = vadd.f32 %v147, %v231
    %v233 = vpop.f32.mrb[0].mxu0
    %v234 = vadd.f32 %v151, %v233
    %235 = vmatprep.mubr.f32.mxu0 0.0
    %236 = vmatmul.mubr.f32.gmra.mrb[0].mxu0 %v84
    %v237 = vpop.f32.mrb[0].mxu0
    %v238 = vadd.f32 %v147, %v237
    %v239 = vpop.f32.mrb[0].mxu0
    %v240 = vadd.f32 %v151, %v239
    %241 = vmatprep.mubr.f32.mxu0 0.0
    %242 = vmatmul.mubr.f32.gmra.mrb[0].mxu0 %v85
    %v243 = vpop.f32.mrb[0].mxu0
    %v244 = vadd.f32 %v147, %v243
    %v245 = vpop.f32.mrb[0].mxu0
    %v246 = vadd.f32 %v151, %v245
    %247 = vmatprep.mubr.f32.mxu0 0.0
    %248 = vmatmul.mubr.f32.gmra.mrb[0].mxu0 %v86
    %v249 = vpop.f32.mrb[0].mxu0
    %v250 = vadd.f32 %v147, %v249
    %v251 = vpop.f32.mrb[0].mxu0
    %v252 = vadd.f32 %v151, %v251
    %253 = vmatprep.mubr.f32.mxu0 0.0
    %254 = vmatmul.mubr.f32.gmra.mrb[0].mxu0 %v87
    %v255 = vpop.f32.mrb[0].mxu0
    %v256 = vadd.f32 %v147, %v255
    %v257 = vpop.f32.mrb[0].mxu0
    %v258 = vadd.f32 %v151, %v257
    %259 = vmatprep.mubr.f32.mxu0 0.0
    %260 = vmatmul.mubr.f32.gmra.mrb[0].mxu0 %v88
    %v261 = vpop.f32.mrb[0].mxu0
    %v262 = vadd.f32 %v147, %v261
    %v263 = vpop.f32.mrb[0].mxu0
    %v264 = vadd.f32 %v151, %v263
    %265 = vmatprep.mubr.f32.mxu0 0.0
    %266 = vmatmul.mubr.f32.gmra.mrb[0].mxu0 %v89
    %v267 = vpop.f32.mrb[0].mxu0
    %v268 = vadd.f32 %v147, %v267
    %v269 = vpop.f32.mrb[0].mxu0
    %v270 = vadd.f32 %v151, %v269
    %271 = vmatprep.mubr.f32.mxu0 0.0
    %272 = vmatmul.mubr.f32.gmra.mrb[0].mxu0 %v90
    %v273 = vpop.f32.mrb[0].mxu0
    %v274 = vadd.f32 %v147, %v273
    %v275 = vpop.f32.mrb[0].mxu0
    %v276 = vadd.f32 %v151, %v275
    %277 = vmatprep.mubr.f32.mxu0 0.0
    %278 = vmatmul.mubr.f32.gmra.mrb[0].mxu0 %v91
    %v279 = vpop.f32.mrb[0].mxu0
    %v280 = vadd.f32 %v147, %v279
    %v281 = vpop.f32.mrb[0].mxu0
    %v282 = vadd.f32 %v151, %v281
    %283 = vmatprep.mubr.f32.mxu0 0.0
    %284 = vmatmul.mubr.f32.gmra.mrb[0].mxu0 %v92
    %v285 = vpop.f32.mrb[0].mxu0
    %v286 = vadd.f32 %v147, %v285
    %v287 = vpop.f32.mrb[0].mxu0
    %v288 = vadd.f32 %v151, %v287
    %289 = vmatprep.mubr.f32.mxu0 0.0
    %290 = vmatmul.mubr.f32.gmra.mrb[0].mxu0 %v93
    %v291 = vpop.f32.mrb[0].mxu0
    %v292 = vadd.f32 %v147, %v291
    %v293 = vpop.f32.mrb[0].mxu0
    %v294 = vadd.f32 %v151, %v293
    %295 = vdwg.mxu0
    %296 = vmatprep.subr.mxu0 0.0
    %297 = vmatpush1.msra.mxu0 %v96
    %298 = vmatprep.subr.mxu0 0.0
    %299 = vmatpush1.msra.mxu0 %v99
    %300 = vmatprep.subr.mxu0 0.0
    %301 = vmatpush1.msra.mxu0 %v102
    %302 = vmatprep.subr.mxu0 0.0
    %303 = vmatpush1.msra.mxu0 %v105
    %304 = vmatprep.subr.mxu0 0.0
    %305 = vmatpush1.msra.mxu0 %v108
    %306 = vmatprep.subr.mxu0 0.0
    %307 = vmatpush1.msra.mxu0 %v111
    %308 = vmatprep.subr.mxu0 0.0
    %309 = vmatpush1.msra.mxu0 %v114
    %310 = vmatprep.subr.mxu0 0.0
    %311 = vmatpush1.msra.mxu0 %v117
    %312 = vmatprep.subr.mxu0 0.0
    %313 = vmatpush1.msra.mxu0 %v120
    %314 = vmatprep.subr.mxu0 0.0
    %315 = vmatpush1.msra.mxu0 %v123
    %316 = vmatprep.subr.mxu0 0.0
    %317 = vmatpush1.msra.mxu0 %v126
    %318 = vmatprep.subr.mxu0 0.0
    %319 = vmatpush1.msra.mxu0 %v129
    %320 = vmatprep.subr.mxu0 0.0
    %321 = vmatpush1.msra.mxu0 %v132
    %322 = vmatprep.subr.mxu0 0.0
    %323 = vmatpush1.msra.mxu0 %v135
    %324 = vmatprep.subr.mxu0 0.0
    %325 = vmatpush1.msra.mxu0 %v138
    %326 = vmatprep.subr.mxu0 0.0
    %327 = vmatpush1.msra.mxu0 %v141
    %328 = vmatprep.subr.mxu0 0.0
    %329 = vmatpush1.msra.mxu0 0.0
    %330 = vmatprep.subr.mxu0 0.0
    %331 = vmatpush1.msra.mxu0 0.0
    %332 = vmatprep.subr.mxu0 0.0
    %333 = vmatpush1.msra.mxu0 0.0
    %334 = vmatprep.subr.mxu0 0.0
    %335 = vmatpush1.msra.mxu0 0.0
    %336 = vmatprep.subr.mxu0 0.0
    %337 = vmatpush1.msra.mxu0 0.0
    %338 = vmatprep.subr.mxu0 0.0
    %339 = vmatpush1.msra.mxu0 0.0
    %340 = vmatprep.subr.mxu0 0.0
    %341 = vmatpush1.msra.mxu0 0.0
    %342 = vmatprep.subr.mxu0 0.0
    %343 = vmatpush1.msra.mxu0 0.0
    %344 = vmatprep.subr.mxu0 0.0
    %345 = vmatpush1.msra.mxu0 0.0
    %346 = vmatprep.subr.mxu0 0.0
    %347 = vmatpush1.msra.mxu0 0.0
    %348 = vmatprep.subr.mxu0 0.0
    %349 = vmatpush1.msra.mxu0 0.0
    %350 = vmatprep.subr.mxu0 0.0
    %351 = vmatpush1.msra.mxu0 0.0
    %352 = vmatprep.subr.mxu0 0.0
    %353 = vmatpush1.msra.mxu0 0.0
    %354 = vmatprep.subr.mxu0 0.0
    %355 = vmatpush1.msra.mxu0 0.0
    %356 = vmatprep.subr.mxu0 0.0
    %357 = vmatpush1.msra.mxu0 0.0
    %358 = vmatprep.subr.mxu0 0.0
    %359 = vmatpush1.msra.mxu0 0.0
    %360 = vmatprep.mubr.f32.mxu0 0.0
    %361 = vmatmul.mubr.f32.gmra.mrb[0].mxu0 %v82
    %v362 = vpop.f32.mrb[0].mxu0
    %v363 = vadd.f32 %v155, %v362
    %v364 = vpop.f32.mrb[0].mxu0
    %365 = vmatprep.mubr.f32.mxu0 0.0
    %366 = vmatmul.mubr.f32.gmra.mrb[0].mxu0 %v83
    %v367 = vpop.f32.mrb[0].mxu0
    %v368 = vadd.f32 %v155, %v367
    %v369 = vpop.f32.mrb[0].mxu0
    %370 = vmatprep.mubr.f32.mxu0 0.0
    %371 = vmatmul.mubr.f32.gmra.mrb[0].mxu0 %v84
    %v372 = vpop.f32.mrb[0].mxu0
    %v373 = vadd.f32 %v155, %v372
    %v374 = vpop.f32.mrb[0].mxu0
    %375 = vmatprep.mubr.f32.mxu0 0.0
    %376 = vmatmul.mubr.f32.gmra.mrb[0].mxu0 %v85
    %v377 = vpop.f32.mrb[0].mxu0
    %v378 = vadd.f32 %v155, %v377
    %v379 = vpop.f32.mrb[0].mxu0
    %380 = vmatprep.mubr.f32.mxu0 0.0
    %381 = vmatmul.mubr.f32.gmra.mrb[0].mxu0 %v86
    %v382 = vpop.f32.mrb[0].mxu0
    %v383 = vadd.f32 %v155, %v382
    %v384 = vpop.f32.mrb[0].mxu0
    %385 = vmatprep.mubr.f32.mxu0 0.0
    %386 = vmatmul.mubr.f32.gmra.mrb[0].mxu0 %v87
    %v387 = vpop.f32.mrb[0].mxu0
    %v388 = vadd.f32 %v155, %v387
    %v389 = vpop.f32.mrb[0].mxu0
    %390 = vmatprep.mubr.f32.mxu0 0.0
    %391 = vmatmul.mubr.f32.gmra.mrb[0].mxu0 %v88
    %v392 = vpop.f32.mrb[0].mxu0
    %v393 = vadd.f32 %v155, %v392
    %v394 = vpop.f32.mrb[0].mxu0
    %395 = vmatprep.mubr.f32.mxu0 0.0
    %396 = vmatmul.mubr.f32.gmra.mrb[0].mxu0 %v89
    %v397 = vpop.f32.mrb[0].mxu0
    %v398 = vadd.f32 %v155, %v397
    %v399 = vpop.f32.mrb[0].mxu0
    %400 = vmatprep.mubr.f32.mxu0 0.0
    %401 = vmatmul.mubr.f32.gmra.mrb[0].mxu0 %v90
    %v402 = vpop.f32.mrb[0].mxu0
    %v403 = vadd.f32 %v155, %v402
    %v404 = vpop.f32.mrb[0].mxu0
    %405 = vmatprep.mubr.f32.mxu0 0.0
    %406 = vmatmul.mubr.f32.gmra.mrb[0].mxu0 %v91
    %v407 = vpop.f32.mrb[0].mxu0
    %v408 = vadd.f32 %v155, %v407
    %v409 = vpop.f32.mrb[0].mxu0
    %410 = vmatprep.mubr.f32.mxu0 0.0
    %411 = vmatmul.mubr.f32.gmra.mrb[0].mxu0 %v92
    %v412 = vpop.f32.mrb[0].mxu0
    %v413 = vadd.f32 %v155, %v412
    %v414 = vpop.f32.mrb[0].mxu0
    %415 = vmatprep.mubr.f32.mxu0 0.0
    %416 = vmatmul.mubr.f32.gmra.mrb[0].mxu0 %v93
    %v417 = vpop.f32.mrb[0].mxu0
    %v418 = vadd.f32 %v155, %v417
    %v419 = vpop.f32.mrb[0].mxu0
    %420 = vdwg.mxu0
    %421 = vst [vmem:[#allocation2] sm:$0xff] %v226
    %422 = vst [vmem:[#allocation2 + $0x8] sm:$0xff] %v228
    %423 = vst [vmem:[#allocation2 + $0x10] sm:$0xff] %v363
    %424 = vst [vmem:[#allocation2 + $0x18] sm:$0xff] %v232
    %425 = vst [vmem:[#allocation2 + $0x20] sm:$0xff] %v234
    %426 = vst [vmem:[#allocation2 + $0x28] sm:$0xff] %v368
    %427 = vst [vmem:[#allocation2 + $0x30] sm:$0xff] %v238
    %428 = vst [vmem:[#allocation2 + $0x38] sm:$0xff] %v240
    %429 = vst [vmem:[#allocation2 + $0x40] sm:$0xff] %v373
    %430 = vst [vmem:[#allocation2 + $0x48] sm:$0xff] %v244
    %431 = vst [vmem:[#allocation2 + $0x50] sm:$0xff] %v246
    %432 = vst [vmem:[#allocation2 + $0x58] sm:$0xff] %v378
    %433 = vst [vmem:[#allocation2 + $0x60] sm:$0xff] %v250
    %434 = vst [vmem:[#allocation2 + $0x68] sm:$0xff] %v252
    %435 = vst [vmem:[#allocation2 + $0x70] sm:$0xff] %v383
    %436 = vst [vmem:[#allocation2 + $0x78] sm:$0xff] %v256
    %437 = vst [vmem:[#allocation2 + $0x80] sm:$0xff] %v258
    %438 = vst [vmem:[#allocation2 + $0x88] sm:$0xff] %v388
    %439 = vst [vmem:[#allocation2 + $0x90] sm:$0xff] %v262
    %440 = vst [vmem:[#allocation2 + $0x98] sm:$0xff] %v264
    %441 = vst [vmem:[#allocation2 + $0xa0] sm:$0xff] %v393
    %442 = vst [vmem:[#allocation2 + $0xa8] sm:$0xff] %v268
    %443 = vst [vmem:[#allocation2 + $0xb0] sm:$0xff] %v270
    %444 = vst [vmem:[#allocation2 + $0xb8] sm:$0xff] %v398
    %445 = vst [vmem:[#allocation2 + $0xc0] sm:$0xff] %v274
    %446 = vst [vmem:[#allocation2 + $0xc8] sm:$0xff] %v276
    %447 = vst [vmem:[#allocation2 + $0xd0] sm:$0xff] %v403
    %448 = vst [vmem:[#allocation2 + $0xd8] sm:$0xff] %v280
    %449 = vst [vmem:[#allocation2 + $0xe0] sm:$0xff] %v282
    %450 = vst [vmem:[#allocation2 + $0xe8] sm:$0xff] %v408
    %451 = vst [vmem:[#allocation2 + $0xf0] sm:$0xff] %v286
    %452 = vst [vmem:[#allocation2 + $0xf8] sm:$0xff] %v288
    %453 = vst [vmem:[#allocation2 + $0x100] sm:$0xff] %v413
    %454 = vst [vmem:[#allocation2 + $0x108] sm:$0xff] %v292
    %455 = vst [vmem:[#allocation2 + $0x110] sm:$0xff] %v294
    %456 = vst [vmem:[#allocation2 + $0x118] sm:$0xff] %v418
    %v457 = vld [vmem:[#allocation2] sm:$0xff]
    %v458 = vld [vmem:[#allocation2 + $0x8] sm:$0xff]
    %v459 = vld [vmem:[#allocation2 + $0x10] sm:$0xff]
    %v460 = vld [vmem:[#allocation9] sm:$0xff]
    %v461 = vld [vmem:[#allocation9 + $0x8] sm:$0xff]
    %v462 = vld [vmem:[#allocation9 + $0x10] sm:$0xff]
    %v463 = vld [vmem:[#allocation9 + $0x18] sm:$0xff]
    %v464 = vld [vmem:[#allocation9 + $0x20] sm:$0xff]
    %v465 = vld [vmem:[#allocation9 + $0x28] sm:$0xff]
    %v466 = vld [vmem:[#allocation9 + $0x30] sm:$0xff]
    %v467 = vld [vmem:[#allocation9 + $0x38] sm:$0xff]
    %v468 = vld [vmem:[#allocation9 + $0x40] sm:$0xff]
    %v469 = vld [vmem:[#allocation9 + $0x48] sm:$0xff]
    %v470 = vld [vmem:[#allocation9 + $0x50] sm:$0xff]
    %v471 = vld [vmem:[#allocation9 + $0x58] sm:$0xff]
    %v472 = vld [vmem:[#allocation9 + $0x60] sm:$0xff]
    %v473 = vld [vmem:[#allocation9 + $0x68] sm:$0xff]
    %v474 = vld [vmem:[#allocation9 + $0x70] sm:$0xff]
    %v475 = vld [vmem:[#allocation9 + $0x78] sm:$0xff]
    %v476 = vld [vmem:[#allocation9 + $0x80] sm:$0xff]
    %v477 = vld [vmem:[#allocation9 + $0x88] sm:$0xff]
    %v478 = vld [vmem:[#allocation9 + $0x90] sm:$0xff]
    %v479 = vld [vmem:[#allocation9 + $0x98] sm:$0xff]
    %v480 = vld [vmem:[#allocation9 + $0xa0] sm:$0xff]
    %v481 = vld [vmem:[#allocation9 + $0xa8] sm:$0xff]
    %v482 = vld [vmem:[#allocation9 + $0xb0] sm:$0xff]
    %v483 = vld [vmem:[#allocation9 + $0xb8] sm:$0xff]
    %v484 = vld [vmem:[#allocation9 + $0xc0] sm:$0xff]
    %v485 = vld [vmem:[#allocation9 + $0xc8] sm:$0xff]
    %v486 = vld [vmem:[#allocation9 + $0xd0] sm:$0xff]
    %v487 = vld [vmem:[#allocation9 + $0xd8] sm:$0xff]
    %v488 = vld [vmem:[#allocation9 + $0xe0] sm:$0xff]
    %v489 = vld [vmem:[#allocation9 + $0xe8] sm:$0xff]
    %v490 = vld [vmem:[#allocation9 + $0xf0] sm:$0xff]
    %v491 = vld [vmem:[#allocation9 + $0xf8] sm:$0xff]
    %v492 = vld [vmem:[#allocation9 + $0x100] sm:$0xff]
    %v493 = vld [vmem:[#allocation9 + $0x108] sm:$0xff]
    %v494 = vld [vmem:[#allocation9 + $0x110] sm:$0xff]
    %v495 = vld [vmem:[#allocation9 + $0x118] sm:$0xff]
    %v496 = vld [vmem:[#allocation9 + $0x120] sm:$0xff]
    %v497 = vld [vmem:[#allocation9 + $0x128] sm:$0xff]
    %v498 = vld [vmem:[#allocation9 + $0x130] sm:$0xff]
    %v499 = vld [vmem:[#allocation9 + $0x138] sm:$0xff]
    %v500 = vld [vmem:[#allocation9 + $0x140] sm:$0xff]
    %v501 = vld [vmem:[#allocation9 + $0x148] sm:$0xff]
    %v502 = vld [vmem:[#allocation9 + $0x150] sm:$0xff]
    %v503 = vld [vmem:[#allocation9 + $0x158] sm:$0xff]
    %v504 = vld [vmem:[#allocation9 + $0x160] sm:$0xff]
    %v505 = vld [vmem:[#allocation9 + $0x168] sm:$0xff]
    %v506 = vld [vmem:[#allocation9 + $0x170] sm:$0xff]
    %v507 = vld [vmem:[#allocation9 + $0x178] sm:$0xff]
    %v508 = vld [vmem:[%s4] sm:$0x7]
    %v510 = vlaneseq
    %v511 = vshrl.u32 %v510, 7
    %v512 = vsub.s32 0, %v511
    %v513 = vrot.slane %v508, %v512
    %v514 = vlaneseq
    %v515 = vshrl.u32 %v514, 7
    %v516 = vsub.s32 1, %v515
    %v517 = vrot.slane %v508, %v516
    %v518 = vlaneseq
    %v519 = vshrl.u32 %v518, 7
    %v520 = vsub.s32 2, %v519
    %v521 = vrot.slane %v508, %v520
    %525 = vmatprep.subr.mxu0 %v461
    %526 = vmatpush1.msra.mxu0 %v460
    %527 = vmatprep.subr.mxu0 %v464
    %528 = vmatpush1.msra.mxu0 %v463
    %529 = vmatprep.subr.mxu0 %v467
    %530 = vmatpush1.msra.mxu0 %v466
    %531 = vmatprep.subr.mxu0 %v470
    %532 = vmatpush1.msra.mxu0 %v469
    %533 = vmatprep.subr.mxu0 %v473
    %534 = vmatpush1.msra.mxu0 %v472
    %535 = vmatprep.subr.mxu0 %v476
    %536 = vmatpush1.msra.mxu0 %v475
    %537 = vmatprep.subr.mxu0 %v479
    %538 = vmatpush1.msra.mxu0 %v478
    %539 = vmatprep.subr.mxu0 %v482
    %540 = vmatpush1.msra.mxu0 %v481
    %541 = vmatprep.subr.mxu0 %v485
    %542 = vmatpush1.msra.mxu0 %v484
    %543 = vmatprep.subr.mxu0 %v488
    %544 = vmatpush1.msra.mxu0 %v487
    %545 = vmatprep.subr.mxu0 %v491
    %546 = vmatpush1.msra.mxu0 %v490
    %547 = vmatprep.subr.mxu0 %v494
    %548 = vmatpush1.msra.mxu0 %v493
    %549 = vmatprep.subr.mxu0 %v497
    %550 = vmatpush1.msra.mxu0 %v496
    %551 = vmatprep.subr.mxu0 %v500
    %552 = vmatpush1.msra.mxu0 %v499
    %553 = vmatprep.subr.mxu0 %v503
    %554 = vmatpush1.msra.mxu0 %v502
    %555 = vmatprep.subr.mxu0 %v506
    %556 = vmatpush1.msra.mxu0 %v505
    %557 = vmatprep.subr.mxu0 0.0
    %558 = vmatpush1.msra.mxu0 0.0
    %559 = vmatprep.subr.mxu0 0.0
    %560 = vmatpush1.msra.mxu0 0.0
    %561 = vmatprep.subr.mxu0 0.0
    %562 = vmatpush1.msra.mxu0 0.0
    %563 = vmatprep.subr.mxu0 0.0
    %564 = vmatpush1.msra.mxu0 0.0
    %565 = vmatprep.subr.mxu0 0.0
    %566 = vmatpush1.msra.mxu0 0.0
    %567 = vmatprep.subr.mxu0 0.0
    %568 = vmatpush1.msra.mxu0 0.0
    %569 = vmatprep.subr.mxu0 0.0
    %570 = vmatpush1.msra.mxu0 0.0
    %571 = vmatprep.subr.mxu0 0.0
    %572 = vmatpush1.msra.mxu0 0.0
    %573 = vmatprep.subr.mxu0 0.0
    %574 = vmatpush1.msra.mxu0 0.0
    %575 = vmatprep.subr.mxu0 0.0
    %576 = vmatpush1.msra.mxu0 0.0
    %577 = vmatprep.subr.mxu0 0.0
    %578 = vmatpush1.msra.mxu0 0.0
    %579 = vmatprep.subr.mxu0 0.0
    %580 = vmatpush1.msra.mxu0 0.0
    %581 = vmatprep.subr.mxu0 0.0
    %582 = vmatpush1.msra.mxu0 0.0
    %583 = vmatprep.subr.mxu0 0.0
    %584 = vmatpush1.msra.mxu0 0.0
    %585 = vmatprep.subr.mxu0 0.0
    %586 = vmatpush1.msra.mxu0 0.0
    %587 = vmatprep.subr.mxu0 0.0
    %588 = vmatpush1.msra.mxu0 0.0
    %589 = vmatprep.mubr.f32.mxu0 0.0
    %590 = vmatmul.mubr.f32.gmra.mrb[0].mxu0 0.0
    %v591 = vpop.f32.mrb[0].mxu0
    %v592 = vadd.f32 %v513, %v591
    %v593 = vpop.f32.mrb[0].mxu0
    %v594 = vadd.f32 %v517, %v593
    %595 = vdwg.mxu0
    %596 = vmatprep.subr.mxu0 0.0
    %597 = vmatpush1.msra.mxu0 %v462
    %598 = vmatprep.subr.mxu0 0.0
    %599 = vmatpush1.msra.mxu0 %v465
    %600 = vmatprep.subr.mxu0 0.0
    %601 = vmatpush1.msra.mxu0 %v468
    %602 = vmatprep.subr.mxu0 0.0
    %603 = vmatpush1.msra.mxu0 %v471
    %604 = vmatprep.subr.mxu0 0.0
    %605 = vmatpush1.msra.mxu0 %v474
    %606 = vmatprep.subr.mxu0 0.0
    %607 = vmatpush1.msra.mxu0 %v477
    %608 = vmatprep.subr.mxu0 0.0
    %609 = vmatpush1.msra.mxu0 %v480
    %610 = vmatprep.subr.mxu0 0.0
    %611 = vmatpush1.msra.mxu0 %v483
    %612 = vmatprep.subr.mxu0 0.0
    %613 = vmatpush1.msra.mxu0 %v486
    %614 = vmatprep.subr.mxu0 0.0
    %615 = vmatpush1.msra.mxu0 %v489
    %616 = vmatprep.subr.mxu0 0.0
    %617 = vmatpush1.msra.mxu0 %v492
    %618 = vmatprep.subr.mxu0 0.0
    %619 = vmatpush1.msra.mxu0 %v495
    %620 = vmatprep.subr.mxu0 0.0
    %621 = vmatpush1.msra.mxu0 %v498
    %622 = vmatprep.subr.mxu0 0.0
    %623 = vmatpush1.msra.mxu0 %v501
    %624 = vmatprep.subr.mxu0 0.0
    %625 = vmatpush1.msra.mxu0 %v504
    %626 = vmatprep.subr.mxu0 0.0
    %627 = vmatpush1.msra.mxu0 %v507
    %628 = vmatprep.subr.mxu0 0.0
    %629 = vmatpush1.msra.mxu0 0.0
    %630 = vmatprep.subr.mxu0 0.0
    %631 = vmatpush1.msra.mxu0 0.0
    %632 = vmatprep.subr.mxu0 0.0
    %633 = vmatpush1.msra.mxu0 0.0
    %634 = vmatprep.subr.mxu0 0.0
    %635 = vmatpush1.msra.mxu0 0.0
    %636 = vmatprep.subr.mxu0 0.0
    %637 = vmatpush1.msra.mxu0 0.0
    %638 = vmatprep.subr.mxu0 0.0
    %639 = vmatpush1.msra.mxu0 0.0
    %640 = vmatprep.subr.mxu0 0.0
    %641 = vmatpush1.msra.mxu0 0.0
    %642 = vmatprep.subr.mxu0 0.0
    %643 = vmatpush1.msra.mxu0 0.0
    %644 = vmatprep.subr.mxu0 0.0
    %645 = vmatpush1.msra.mxu0 0.0
    %646 = vmatprep.subr.mxu0 0.0
    %647 = vmatpush1.msra.mxu0 0.0
    %648 = vmatprep.subr.mxu0 0.0
    %649 = vmatpush1.msra.mxu0 0.0
    %650 = vmatprep.subr.mxu0 0.0
    %651 = vmatpush1.msra.mxu0 0.0
    %652 = vmatprep.subr.mxu0 0.0
    %653 = vmatpush1.msra.mxu0 0.0
    %654 = vmatprep.subr.mxu0 0.0
    %655 = vmatpush1.msra.mxu0 0.0
    %656 = vmatprep.subr.mxu0 0.0
    %657 = vmatpush1.msra.mxu0 0.0
    %658 = vmatprep.subr.mxu0 0.0
    %659 = vmatpush1.msra.mxu0 0.0
    %660 = vmatprep.mubr.f32.mxu0 0.0
    %661 = vmatmul.mubr.f32.gmra.mrb[0].mxu0 0.0
    %v662 = vpop.f32.mrb[0].mxu0
    %v663 = vadd.f32 %v521, %v662
    %v664 = vpop.f32.mrb[0].mxu0
    %665 = vdwg.mxu0
    %v666 = vadd.f32 %v457, %v592
    %v667 = vxor.u32 %v666, 2147483648
    %v668 = vmul.f32 %v667, 1.442695
    %v669 = vpow.pop %v668
    %v670 = vadd.f32 %v669, 1.0
    %v671 = vrcp.pop %v670
    %v672 = vmul.f32 1.0, %v671
    %v673 = vadd.f32 %v458, %v594
    %v674 = vxor.u32 %v673, 2147483648
    %v675 = vmul.f32 %v674, 1.442695
    %v676 = vpow.pop %v675
    %v677 = vadd.f32 %v676, 1.0
    %v678 = vrcp.pop %v677
    %v679 = vmul.f32 1.0, %v678
    %v680 = vmul.f32 %v672, %v663
    %v681 = vadd.f32 %v459, %v680
    %v682 = vtanh.pop %v681
    %v683 = vsub.f32 0.0, %v682
    %v684 = vmul.f32 %v679, %v683
    %v685 = vadd.f32 %v682, %v684
    %v686 = vld [vmem:[#allocation2 + $0x18] sm:$0xff]
    %v687 = vld [vmem:[#allocation2 + $0x20] sm:$0xff]
    %v688 = vld [vmem:[#allocation2 + $0x28] sm:$0xff]
    %689 = vmatprep.subr.mxu0 %v461
    %690 = vmatpush1.msra.mxu0 %v460
    %691 = vmatprep.subr.mxu0 %v464
    %692 = vmatpush1.msra.mxu0 %v463
    %693 = vmatprep.subr.mxu0 %v467
    %694 = vmatpush1.msra.mxu0 %v466
    %695 = vmatprep.subr.mxu0 %v470
    %696 = vmatpush1.msra.mxu0 %v469
    %697 = vmatprep.subr.mxu0 %v473
    %698 = vmatpush1.msra.mxu0 %v472
    %699 = vmatprep.subr.mxu0 %v476
    %700 = vmatpush1.msra.mxu0 %v475
    %701 = vmatprep.subr.mxu0 %v479
    %702 = vmatpush1.msra.mxu0 %v478
    %703 = vmatprep.subr.mxu0 %v482
    %704 = vmatpush1.msra.mxu0 %v481
    %705 = vmatprep.subr.mxu0 %v485
    %706 = vmatpush1.msra.mxu0 %v484
    %707 = vmatprep.subr.mxu0 %v488
    %708 = vmatpush1.msra.mxu0 %v487
    %709 = vmatprep.subr.mxu0 %v491
    %710 = vmatpush1.msra.mxu0 %v490
    %711 = vmatprep.subr.mxu0 %v494
    %712 = vmatpush1.msra.mxu0 %v493
    %713 = vmatprep.subr.mxu0 %v497
    %714 = vmatpush1.msra.mxu0 %v496
    %715 = vmatprep.subr.mxu0 %v500
    %716 = vmatpush1.msra.mxu0 %v499
    %717 = vmatprep.subr.mxu0 %v503
    %718 = vmatpush1.msra.mxu0 %v502
    %719 = vmatprep.subr.mxu0 %v506
    %720 = vmatpush1.msra.mxu0 %v505
    %721 = vmatprep.subr.mxu0 0.0
    %722 = vmatpush1.msra.mxu0 0.0
    %723 = vmatprep.subr.mxu0 0.0
    %724 = vmatpush1.msra.mxu0 0.0
    %725 = vmatprep.subr.mxu0 0.0
    %726 = vmatpush1.msra.mxu0 0.0
    %727 = vmatprep.subr.mxu0 0.0
    %728 = vmatpush1.msra.mxu0 0.0
    %729 = vmatprep.subr.mxu0 0.0
    %730 = vmatpush1.msra.mxu0 0.0
    %731 = vmatprep.subr.mxu0 0.0
    %732 = vmatpush1.msra.mxu0 0.0
    %733 = vmatprep.subr.mxu0 0.0
    %734 = vmatpush1.msra.mxu0 0.0
    %735 = vmatprep.subr.mxu0 0.0
    %736 = vmatpush1.msra.mxu0 0.0
    %737 = vmatprep.subr.mxu0 0.0
    %738 = vmatpush1.msra.mxu0 0.0
    %739 = vmatprep.subr.mxu0 0.0
    %740 = vmatpush1.msra.mxu0 0.0
    %741 = vmatprep.subr.mxu0 0.0
    %742 = vmatpush1.msra.mxu0 0.0
    %743 = vmatprep.subr.mxu0 0.0
    %744 = vmatpush1.msra.mxu0 0.0
    %745 = vmatprep.subr.mxu0 0.0
    %746 = vmatpush1.msra.mxu0 0.0
    %747 = vmatprep.subr.mxu0 0.0
    %748 = vmatpush1.msra.mxu0 0.0
    %749 = vmatprep.subr.mxu0 0.0
    %750 = vmatpush1.msra.mxu0 0.0
    %751 = vmatprep.subr.mxu0 0.0
    %752 = vmatpush1.msra.mxu0 0.0
    %753 = vmatprep.mubr.f32.mxu0 0.0
    %754 = vmatmul.mubr.f32.gmra.mrb[0].mxu0 %v685
    %v755 = vpop.f32.mrb[0].mxu0
    %v756 = vadd.f32 %v513, %v755
    %v757 = vpop.f32.mrb[0].mxu0
    %v758 = vadd.f32 %v517, %v757
    %759 = vdwg.mxu0
    %760 = vmatprep.subr.mxu0 0.0
    %761 = vmatpush1.msra.mxu0 %v462
    %762 = vmatprep.subr.mxu0 0.0
    %763 = vmatpush1.msra.mxu0 %v465
    %764 = vmatprep.subr.mxu0 0.0
    %765 = vmatpush1.msra.mxu0 %v468
    %766 = vmatprep.subr.mxu0 0.0
    %767 = vmatpush1.msra.mxu0 %v471
    %768 = vmatprep.subr.mxu0 0.0
    %769 = vmatpush1.msra.mxu0 %v474
    %770 = vmatprep.subr.mxu0 0.0
    %771 = vmatpush1.msra.mxu0 %v477
    %772 = vmatprep.subr.mxu0 0.0
    %773 = vmatpush1.msra.mxu0 %v480
    %774 = vmatprep.subr.mxu0 0.0
    %775 = vmatpush1.msra.mxu0 %v483
    %776 = vmatprep.subr.mxu0 0.0
    %777 = vmatpush1.msra.mxu0 %v486
    %778 = vmatprep.subr.mxu0 0.0
    %779 = vmatpush1.msra.mxu0 %v489
    %780 = vmatprep.subr.mxu0 0.0
    %781 = vmatpush1.msra.mxu0 %v492
    %782 = vmatprep.subr.mxu0 0.0
    %783 = vmatpush1.msra.mxu0 %v495
    %784 = vmatprep.subr.mxu0 0.0
    %785 = vmatpush1.msra.mxu0 %v498
    %786 = vmatprep.subr.mxu0 0.0
    %787 = vmatpush1.msra.mxu0 %v501
    %788 = vmatprep.subr.mxu0 0.0
    %789 = vmatpush1.msra.mxu0 %v504
    %790 = vmatprep.subr.mxu0 0.0
    %791 = vmatpush1.msra.mxu0 %v507
    %792 = vmatprep.subr.mxu0 0.0
    %793 = vmatpush1.msra.mxu0 0.0
    %794 = vmatprep.subr.mxu0 0.0
    %795 = vmatpush1.msra.mxu0 0.0
    %796 = vmatprep.subr.mxu0 0.0
    %797 = vmatpush1.msra.mxu0 0.0
    %798 = vmatprep.subr.mxu0 0.0
    %799 = vmatpush1.msra.mxu0 0.0
    %800 = vmatprep.subr.mxu0 0.0
    %801 = vmatpush1.msra.mxu0 0.0
    %802 = vmatprep.subr.mxu0 0.0
    %803 = vmatpush1.msra.mxu0 0.0
    %804 = vmatprep.subr.mxu0 0.0
    %805 = vmatpush1.msra.mxu0 0.0
    %806 = vmatprep.subr.mxu0 0.0
    %807 = vmatpush1.msra.mxu0 0.0
    %808 = vmatprep.subr.mxu0 0.0
    %809 = vmatpush1.msra.mxu0 0.0
    %810 = vmatprep.subr.mxu0 0.0
    %811 = vmatpush1.msra.mxu0 0.0
    %812 = vmatprep.subr.mxu0 0.0
    %813 = vmatpush1.msra.mxu0 0.0
    %814 = vmatprep.subr.mxu0 0.0
    %815 = vmatpush1.msra.mxu0 0.0
    %816 = vmatprep.subr.mxu0 0.0
    %817 = vmatpush1.msra.mxu0 0.0
    %818 = vmatprep.subr.mxu0 0.0
    %819 = vmatpush1.msra.mxu0 0.0
    %820 = vmatprep.subr.mxu0 0.0
    %821 = vmatpush1.msra.mxu0 0.0
    %822 = vmatprep.subr.mxu0 0.0
    %823 = vmatpush1.msra.mxu0 0.0
    %824 = vmatprep.mubr.f32.mxu0 0.0
    %825 = vmatmul.mubr.f32.gmra.mrb[0].mxu0 %v685
    %v826 = vpop.f32.mrb[0].mxu0
    %v827 = vadd.f32 %v521, %v826
    %v828 = vpop.f32.mrb[0].mxu0
    %829 = vdwg.mxu0
    %v830 = vadd.f32 %v686, %v756
    %v831 = vxor.u32 %v830, 2147483648
    %v832 = vmul.f32 %v831, 1.442695
    %v833 = vpow.pop %v832
    %v834 = vadd.f32 %v833, 1.0
    %v835 = vrcp.pop %v834
    %v836 = vmul.f32 1.0, %v835
    %v837 = vadd.f32 %v687, %v758
    %v838 = vxor.u32 %v837, 2147483648
    %v839 = vmul.f32 %v838, 1.442695
    %v840 = vpow.pop %v839
    %v841 = vadd.f32 %v840, 1.0
    %v842 = vrcp.pop %v841
    %v843 = vmul.f32 1.0, %v842
    %v844 = vmul.f32 %v836, %v827
    %v845 = vadd.f32 %v688, %v844
    %v846 = vtanh.pop %v845
    %v847 = vsub.f32 %v685, %v846
    %v848 = vmul.f32 %v843, %v847
    %v849 = vadd.f32 %v846, %v848
    %s850 = scalar_lea.vmem [#allocation7], 384
    %v851 = vld [vmem:[%s850] sm:$0xff]
    %v852 = vld [vmem:[%s850 + $0x8] sm:$0xff]
    %v853 = vld [vmem:[%s850 + $0x10] sm:$0xff]
    %v854 = vld [vmem:[%s850 + $0x18] sm:$0xff]
    %v855 = vld [vmem:[%s850 + $0x20] sm:$0xff]
    %v856 = vld [vmem:[%s850 + $0x28] sm:$0xff]
    %v857 = vld [vmem:[%s850 + $0x30] sm:$0xff]
    %v858 = vld [vmem:[%s850 + $0x38] sm:$0xff]
    %v859 = vld [vmem:[%s850 + $0x40] sm:$0xff]
    %v860 = vld [vmem:[%s850 + $0x48] sm:$0xff]
    %v861 = vld [vmem:[%s850 + $0x50] sm:$0xff]
    %v862 = vld [vmem:[%s850 + $0x58] sm:$0xff]
    %v863 = vld [vmem:[%s850 + $0x60] sm:$0xff]
    %v864 = vld [vmem:[%s850 + $0x68] sm:$0xff]
    %v865 = vld [vmem:[%s850 + $0x70] sm:$0xff]
    %v866 = vld [vmem:[%s850 + $0x78] sm:$0xff]
    %v867 = vld [vmem:[%s850 + $0x80] sm:$0xff]
    %v868 = vld [vmem:[%s850 + $0x88] sm:$0xff]
    %v869 = vld [vmem:[%s850 + $0x90] sm:$0xff]
    %v870 = vld [vmem:[%s850 + $0x98] sm:$0xff]
    %v871 = vld [vmem:[%s850 + $0xa0] sm:$0xff]
    %v872 = vld [vmem:[%s850 + $0xa8] sm:$0xff]
    %v873 = vld [vmem:[%s850 + $0xb0] sm:$0xff]
    %v874 = vld [vmem:[%s850 + $0xb8] sm:$0xff]
    %v875 = vld [vmem:[%s850 + $0xc0] sm:$0xff]
    %v876 = vld [vmem:[%s850 + $0xc8] sm:$0xff]
    %v877 = vld [vmem:[%s850 + $0xd0] sm:$0xff]
    %v878 = vld [vmem:[%s850 + $0xd8] sm:$0xff]
    %v879 = vld [vmem:[%s850 + $0xe0] sm:$0xff]
    %v880 = vld [vmem:[%s850 + $0xe8] sm:$0xff]
    %v881 = vld [vmem:[%s850 + $0xf0] sm:$0xff]
    %v882 = vld [vmem:[%s850 + $0xf8] sm:$0xff]
    %v883 = vld [vmem:[%s850 + $0x100] sm:$0xff]
    %v884 = vld [vmem:[%s850 + $0x108] sm:$0xff]
    %v885 = vld [vmem:[%s850 + $0x110] sm:$0xff]
    %v886 = vld [vmem:[%s850 + $0x118] sm:$0xff]
    %v887 = vld [vmem:[%s850 + $0x120] sm:$0xff]
    %v888 = vld [vmem:[%s850 + $0x128] sm:$0xff]
    %v889 = vld [vmem:[%s850 + $0x130] sm:$0xff]
    %v890 = vld [vmem:[%s850 + $0x138] sm:$0xff]
    %v891 = vld [vmem:[%s850 + $0x140] sm:$0xff]
    %v892 = vld [vmem:[%s850 + $0x148] sm:$0xff]
    %v893 = vld [vmem:[%s850 + $0x150] sm:$0xff]
    %v894 = vld [vmem:[%s850 + $0x158] sm:$0xff]
    %v895 = vld [vmem:[%s850 + $0x160] sm:$0xff]
    %v896 = vld [vmem:[%s850 + $0x168] sm:$0xff]
    %v897 = vld [vmem:[%s850 + $0x170] sm:$0xff]
    %v898 = vld [vmem:[%s850 + $0x178] sm:$0xff]
    %s899 = scalar_lea.vmem %s3, 3
    %v900 = vld [vmem:[%s899] sm:$0x7]
    %v902 = vlaneseq
    %v903 = vshrl.u32 %v902, 7
    %v904 = vsub.s32 0, %v903
    %v905 = vrot.slane %v900, %v904
    %v906 = vlaneseq
    %v907 = vshrl.u32 %v906, 7
    %v908 = vsub.s32 1, %v907
    %v909 = vrot.slane %v900, %v908
    %v910 = vlaneseq
    %v911 = vshrl.u32 %v910, 7
    %v912 = vsub.s32 2, %v911
    %v913 = vrot.slane %v900, %v912
    %917 = vmatprep.subr.mxu0 %v852
    %918 = vmatpush1.msra.mxu0 %v851
    %919 = vmatprep.subr.mxu0 %v855
    %920 = vmatpush1.msra.mxu0 %v854
    %921 = vmatprep.subr.mxu0 %v858
    %922 = vmatpush1.msra.mxu0 %v857
    %923 = vmatprep.subr.mxu0 %v861
    %924 = vmatpush1.msra.mxu0 %v860
    %925 = vmatprep.subr.mxu0 %v864
    %926 = vmatpush1.msra.mxu0 %v863
    %927 = vmatprep.subr.mxu0 %v867
    %928 = vmatpush1.msra.mxu0 %v866
    %929 = vmatprep.subr.mxu0 %v870
    %930 = vmatpush1.msra.mxu0 %v869
    %931 = vmatprep.subr.mxu0 %v873
    %932 = vmatpush1.msra.mxu0 %v872
    %933 = vmatprep.subr.mxu0 %v876
    %934 = vmatpush1.msra.mxu0 %v875
    %935 = vmatprep.subr.mxu0 %v879
    %936 = vmatpush1.msra.mxu0 %v878
    %937 = vmatprep.subr.mxu0 %v882
    %938 = vmatpush1.msra.mxu0 %v881
    %939 = vmatprep.subr.mxu0 %v885
    %940 = vmatpush1.msra.mxu0 %v884
    %941 = vmatprep.subr.mxu0 %v888
    %942 = vmatpush1.msra.mxu0 %v887
    %943 = vmatprep.subr.mxu0 %v891
    %944 = vmatpush1.msra.mxu0 %v890
    %945 = vmatprep.subr.mxu0 %v894
    %946 = vmatpush1.msra.mxu0 %v893
    %947 = vmatprep.subr.mxu0 %v897
    %948 = vmatpush1.msra.mxu0 %v896
    %949 = vmatprep.subr.mxu0 0.0
    %950 = vmatpush1.msra.mxu0 0.0
    %951 = vmatprep.subr.mxu0 0.0
    %952 = vmatpush1.msra.mxu0 0.0
    %953 = vmatprep.subr.mxu0 0.0
    %954 = vmatpush1.msra.mxu0 0.0
    %955 = vmatprep.subr.mxu0 0.0
    %956 = vmatpush1.msra.mxu0 0.0
    %957 = vmatprep.subr.mxu0 0.0
    %958 = vmatpush1.msra.mxu0 0.0
    %959 = vmatprep.subr.mxu0 0.0
    %960 = vmatpush1.msra.mxu0 0.0
    %961 = vmatprep.subr.mxu0 0.0
    %962 = vmatpush1.msra.mxu0 0.0
    %963 = vmatprep.subr.mxu0 0.0
    %964 = vmatpush1.msra.mxu0 0.0
    %965 = vmatprep.subr.mxu0 0.0
    %966 = vmatpush1.msra.mxu0 0.0
    %967 = vmatprep.subr.mxu0 0.0
    %968 = vmatpush1.msra.mxu0 0.0
    %969 = vmatprep.subr.mxu0 0.0
    %970 = vmatpush1.msra.mxu0 0.0
    %971 = vmatprep.subr.mxu0 0.0
    %972 = vmatpush1.msra.mxu0 0.0
    %973 = vmatprep.subr.mxu0 0.0
    %974 = vmatpush1.msra.mxu0 0.0
    %975 = vmatprep.subr.mxu0 0.0
    %976 = vmatpush1.msra.mxu0 0.0
    %977 = vmatprep.subr.mxu0 0.0
    %978 = vmatpush1.msra.mxu0 0.0
    %979 = vmatprep.subr.mxu0 0.0
    %980 = vmatpush1.msra.mxu0 0.0
    %981 = vmatprep.mubr.f32.mxu0 0.0
    %982 = vmatmul.mubr.f32.gmra.mrb[0].mxu0 %v685
    %v983 = vpop.f32.mrb[0].mxu0
    %v984 = vadd.f32 %v905, %v983
    %v985 = vpop.f32.mrb[0].mxu0
    %v986 = vadd.f32 %v909, %v985
    %987 = vdwg.mxu0
    %988 = vmatprep.subr.mxu0 0.0
    %989 = vmatpush1.msra.mxu0 %v853
    %990 = vmatprep.subr.mxu0 0.0
    %991 = vmatpush1.msra.mxu0 %v856
    %992 = vmatprep.subr.mxu0 0.0
    %993 = vmatpush1.msra.mxu0 %v859
    %994 = vmatprep.subr.mxu0 0.0
    %995 = vmatpush1.msra.mxu0 %v862
    %996 = vmatprep.subr.mxu0 0.0
    %997 = vmatpush1.msra.mxu0 %v865
    %998 = vmatprep.subr.mxu0 0.0
    %999 = vmatpush1.msra.mxu0 %v868
    %1000 = vmatprep.subr.mxu0 0.0
    %1001 = vmatpush1.msra.mxu0 %v871
    %1002 = vmatprep.subr.mxu0 0.0
    %1003 = vmatpush1.msra.mxu0 %v874
    %1004 = vmatprep.subr.mxu0 0.0
    %1005 = vmatpush1.msra.mxu0 %v877
    %1006 = vmatprep.subr.mxu0 0.0
    %1007 = vmatpush1.msra.mxu0 %v880
    %1008 = vmatprep.subr.mxu0 0.0
    %1009 = vmatpush1.msra.mxu0 %v883
    %1010 = vmatprep.subr.mxu0 0.0
    %1011 = vmatpush1.msra.mxu0 %v886
    %1012 = vmatprep.subr.mxu0 0.0
    %1013 = vmatpush1.msra.mxu0 %v889
    %1014 = vmatprep.subr.mxu0 0.0
    %1015 = vmatpush1.msra.mxu0 %v892
    %1016 = vmatprep.subr.mxu0 0.0
    %1017 = vmatpush1.msra.mxu0 %v895
    %1018 = vmatprep.subr.mxu0 0.0
    %1019 = vmatpush1.msra.mxu0 %v898
    %1020 = vmatprep.subr.mxu0 0.0
    %1021 = vmatpush1.msra.mxu0 0.0
    %1022 = vmatprep.subr.mxu0 0.0
    %1023 = vmatpush1.msra.mxu0 0.0
    %1024 = vmatprep.subr.mxu0 0.0
    %1025 = vmatpush1.msra.mxu0 0.0
    %1026 = vmatprep.subr.mxu0 0.0
    %1027 = vmatpush1.msra.mxu0 0.0
    %1028 = vmatprep.subr.mxu0 0.0
    %1029 = vmatpush1.msra.mxu0 0.0
    %1030 = vmatprep.subr.mxu0 0.0
    %1031 = vmatpush1.msra.mxu0 0.0
    %1032 = vmatprep.subr.mxu0 0.0
    %1033 = vmatpush1.msra.mxu0 0.0
    %1034 = vmatprep.subr.mxu0 0.0
    %1035 = vmatpush1.msra.mxu0 0.0
    %1036 = vmatprep.subr.mxu0 0.0
    %1037 = vmatpush1.msra.mxu0 0.0
    %1038 = vmatprep.subr.mxu0 0.0
    %1039 = vmatpush1.msra.mxu0 0.0
    %1040 = vmatprep.subr.mxu0 0.0
    %1041 = vmatpush1.msra.mxu0 0.0
    %1042 = vmatprep.subr.mxu0 0.0
    %1043 = vmatpush1.msra.mxu0 0.0
    %1044 = vmatprep.subr.mxu0 0.0
    %1045 = vmatpush1.msra.mxu0 0.0
    %1046 = vmatprep.subr.mxu0 0.0
    %1047 = vmatpush1.msra.mxu0 0.0
    %1048 = vmatprep.subr.mxu0 0.0
    %1049 = vmatpush1.msra.mxu0 0.0
    %1050 = vmatprep.subr.mxu0 0.0
    %1051 = vmatpush1.msra.mxu0 0.0
    %1052 = vmatprep.mubr.f32.mxu0 0.0
    %1053 = vmatmul.mubr.f32.gmra.mrb[0].mxu0 %v685
    %v1054 = vpop.f32.mrb[0].mxu0
    %v1055 = vadd.f32 %v913, %v1054
    %v1056 = vpop.f32.mrb[0].mxu0
    %1057 = vdwg.mxu0
    %s1058 = scalar_lea.vmem [#allocation9], 384
    %v1059 = vld [vmem:[%s1058] sm:$0xff]
    %v1060 = vld [vmem:[%s1058 + $0x8] sm:$0xff]
    %v1061 = vld [vmem:[%s1058 + $0x10] sm:$0xff]
    %v1062 = vld [vmem:[%s1058 + $0x18] sm:$0xff]
    %v1063 = vld [vmem:[%s1058 + $0x20] sm:$0xff]
    %v1064 = vld [vmem:[%s1058 + $0x28] sm:$0xff]
    %v1065 = vld [vmem:[%s1058 + $0x30] sm:$0xff]
    %v1066 = vld [vmem:[%s1058 + $0x38] sm:$0xff]
    %v1067 = vld [vmem:[%s1058 + $0x40] sm:$0xff]
    %v1068 = vld [vmem:[%s1058 + $0x48] sm:$0xff]
    %v1069 = vld [vmem:[%s1058 + $0x50] sm:$0xff]
    %v1070 = vld [vmem:[%s1058 + $0x58] sm:$0xff]
    %v1071 = vld [vmem:[%s1058 + $0x60] sm:$0xff]
    %v1072 = vld [vmem:[%s1058 + $0x68] sm:$0xff]
    %v1073 = vld [vmem:[%s1058 + $0x70] sm:$0xff]
    %v1074 = vld [vmem:[%s1058 + $0x78] sm:$0xff]
    %v1075 = vld [vmem:[%s1058 + $0x80] sm:$0xff]
    %v1076 = vld [vmem:[%s1058 + $0x88] sm:$0xff]
    %v1077 = vld [vmem:[%s1058 + $0x90] sm:$0xff]
    %v1078 = vld [vmem:[%s1058 + $0x98] sm:$0xff]
    %v1079 = vld [vmem:[%s1058 + $0xa0] sm:$0xff]
    %v1080 = vld [vmem:[%s1058 + $0xa8] sm:$0xff]
    %v1081 = vld [vmem:[%s1058 + $0xb0] sm:$0xff]
    %v1082 = vld [vmem:[%s1058 + $0xb8] sm:$0xff]
    %v1083 = vld [vmem:[%s1058 + $0xc0] sm:$0xff]
    %v1084 = vld [vmem:[%s1058 + $0xc8] sm:$0xff]
    %v1085 = vld [vmem:[%s1058 + $0xd0] sm:$0xff]
    %v1086 = vld [vmem:[%s1058 + $0xd8] sm:$0xff]
    %v1087 = vld [vmem:[%s1058 + $0xe0] sm:$0xff]
    %v1088 = vld [vmem:[%s1058 + $0xe8] sm:$0xff]
    %v1089 = vld [vmem:[%s1058 + $0xf0] sm:$0xff]
    %v1090 = vld [vmem:[%s1058 + $0xf8] sm:$0xff]
    %v1091 = vld [vmem:[%s1058 + $0x100] sm:$0xff]
    %v1092 = vld [vmem:[%s1058 + $0x108] sm:$0xff]
    %v1093 = vld [vmem:[%s1058 + $0x110] sm:$0xff]
    %v1094 = vld [vmem:[%s1058 + $0x118] sm:$0xff]
    %v1095 = vld [vmem:[%s1058 + $0x120] sm:$0xff]
    %v1096 = vld [vmem:[%s1058 + $0x128] sm:$0xff]
    %v1097 = vld [vmem:[%s1058 + $0x130] sm:$0xff]
    %v1098 = vld [vmem:[%s1058 + $0x138] sm:$0xff]
    %v1099 = vld [vmem:[%s1058 + $0x140] sm:$0xff]
    %v1100 = vld [vmem:[%s1058 + $0x148] sm:$0xff]
    %v1101 = vld [vmem:[%s1058 + $0x150] sm:$0xff]
    %v1102 = vld [vmem:[%s1058 + $0x158] sm:$0xff]
    %v1103 = vld [vmem:[%s1058 + $0x160] sm:$0xff]
    %v1104 = vld [vmem:[%s1058 + $0x168] sm:$0xff]
    %v1105 = vld [vmem:[%s1058 + $0x170] sm:$0xff]
    %v1106 = vld [vmem:[%s1058 + $0x178] sm:$0xff]
    %s1107 = scalar_lea.vmem %s4, 3
    %v1108 = vld [vmem:[%s1107] sm:$0x7]
    %v1110 = vlaneseq
    %v1111 = vshrl.u32 %v1110, 7
    %v1112 = vsub.s32 0, %v1111
    %v1113 = vrot.slane %v1108, %v1112
    %v1114 = vlaneseq
    %v1115 = vshrl.u32 %v1114, 7
    %v1116 = vsub.s32 1, %v1115
    %v1117 = vrot.slane %v1108, %v1116
    %v1118 = vlaneseq
    %v1119 = vshrl.u32 %v1118, 7
    %v1120 = vsub.s32 2, %v1119
    %v1121 = vrot.slane %v1108, %v1120
    %1125 = vmatprep.subr.mxu0 %v1060
    %1126 = vmatpush1.msra.mxu0 %v1059
    %1127 = vmatprep.subr.mxu0 %v1063
    %1128 = vmatpush1.msra.mxu0 %v1062
    %1129 = vmatprep.subr.mxu0 %v1066
    %1130 = vmatpush1.msra.mxu0 %v1065
    %1131 = vmatprep.subr.mxu0 %v1069
    %1132 = vmatpush1.msra.mxu0 %v1068
    %1133 = vmatprep.subr.mxu0 %v1072
    %1134 = vmatpush1.msra.mxu0 %v1071
    %1135 = vmatprep.subr.mxu0 %v1075
    %1136 = vmatpush1.msra.mxu0 %v1074
    %1137 = vmatprep.subr.mxu0 %v1078
    %1138 = vmatpush1.msra.mxu0 %v1077
    %1139 = vmatprep.subr.mxu0 %v1081
    %1140 = vmatpush1.msra.mxu0 %v1080
    %1141 = vmatprep.subr.mxu0 %v1084
    %1142 = vmatpush1.msra.mxu0 %v1083
    %1143 = vmatprep.subr.mxu0 %v1087
    %1144 = vmatpush1.msra.mxu0 %v1086
    %1145 = vmatprep.subr.mxu0 %v1090
    %1146 = vmatpush1.msra.mxu0 %v1089
    %1147 = vmatprep.subr.mxu0 %v1093
    %1148 = vmatpush1.msra.mxu0 %v1092
    %1149 = vmatprep.subr.mxu0 %v1096
    %1150 = vmatpush1.msra.mxu0 %v1095
    %1151 = vmatprep.subr.mxu0 %v1099
    %1152 = vmatpush1.msra.mxu0 %v1098
    %1153 = vmatprep.subr.mxu0 %v1102
    %1154 = vmatpush1.msra.mxu0 %v1101
    %1155 = vmatprep.subr.mxu0 %v1105
    %1156 = vmatpush1.msra.mxu0 %v1104
    %1157 = vmatprep.subr.mxu0 0.0
    %1158 = vmatpush1.msra.mxu0 0.0
    %1159 = vmatprep.subr.mxu0 0.0
    %1160 = vmatpush1.msra.mxu0 0.0
    %1161 = vmatprep.subr.mxu0 0.0
    %1162 = vmatpush1.msra.mxu0 0.0
    %1163 = vmatprep.subr.mxu0 0.0
    %1164 = vmatpush1.msra.mxu0 0.0
    %1165 = vmatprep.subr.mxu0 0.0
    %1166 = vmatpush1.msra.mxu0 0.0
    %1167 = vmatprep.subr.mxu0 0.0
    %1168 = vmatpush1.msra.mxu0 0.0
    %1169 = vmatprep.subr.mxu0 0.0
    %1170 = vmatpush1.msra.mxu0 0.0
    %1171 = vmatprep.subr.mxu0 0.0
    %1172 = vmatpush1.msra.mxu0 0.0
    %1173 = vmatprep.subr.mxu0 0.0
    %1174 = vmatpush1.msra.mxu0 0.0
    %1175 = vmatprep.subr.mxu0 0.0
    %1176 = vmatpush1.msra.mxu0 0.0
    %1177 = vmatprep.subr.mxu0 0.0
    %1178 = vmatpush1.msra.mxu0 0.0
    %1179 = vmatprep.subr.mxu0 0.0
    %1180 = vmatpush1.msra.mxu0 0.0
    %1181 = vmatprep.subr.mxu0 0.0
    %1182 = vmatpush1.msra.mxu0 0.0
    %1183 = vmatprep.subr.mxu0 0.0
    %1184 = vmatpush1.msra.mxu0 0.0
    %1185 = vmatprep.subr.mxu0 0.0
    %1186 = vmatpush1.msra.mxu0 0.0
    %1187 = vmatprep.subr.mxu0 0.0
    %1188 = vmatpush1.msra.mxu0 0.0
    %1189 = vmatprep.mubr.f32.mxu0 0.0
    %1190 = vmatmul.mubr.f32.gmra.mrb[0].mxu0 0.0
    %v1191 = vpop.f32.mrb[0].mxu0
    %v1192 = vadd.f32 %v1113, %v1191
    %v1193 = vpop.f32.mrb[0].mxu0
    %v1194 = vadd.f32 %v1117, %v1193
    %1195 = vdwg.mxu0
    %1196 = vmatprep.subr.mxu0 0.0
    %1197 = vmatpush1.msra.mxu0 %v1061
    %1198 = vmatprep.subr.mxu0 0.0
    %1199 = vmatpush1.msra.mxu0 %v1064
    %1200 = vmatprep.subr.mxu0 0.0
    %1201 = vmatpush1.msra.mxu0 %v1067
    %1202 = vmatprep.subr.mxu0 0.0
    %1203 = vmatpush1.msra.mxu0 %v1070
    %1204 = vmatprep.subr.mxu0 0.0
    %1205 = vmatpush1.msra.mxu0 %v1073
    %1206 = vmatprep.subr.mxu0 0.0
    %1207 = vmatpush1.msra.mxu0 %v1076
    %1208 = vmatprep.subr.mxu0 0.0
    %1209 = vmatpush1.msra.mxu0 %v1079
    %1210 = vmatprep.subr.mxu0 0.0
    %1211 = vmatpush1.msra.mxu0 %v1082
    %1212 = vmatprep.subr.mxu0 0.0
    %1213 = vmatpush1.msra.mxu0 %v1085
    %1214 = vmatprep.subr.mxu0 0.0
    %1215 = vmatpush1.msra.mxu0 %v1088
    %1216 = vmatprep.subr.mxu0 0.0
    %1217 = vmatpush1.msra.mxu0 %v1091
    %1218 = vmatprep.subr.mxu0 0.0
    %1219 = vmatpush1.msra.mxu0 %v1094
    %1220 = vmatprep.subr.mxu0 0.0
    %1221 = vmatpush1.msra.mxu0 %v1097
    %1222 = vmatprep.subr.mxu0 0.0
    %1223 = vmatpush1.msra.mxu0 %v1100
    %1224 = vmatprep.subr.mxu0 0.0
    %1225 = vmatpush1.msra.mxu0 %v1103
    %1226 = vmatprep.subr.mxu0 0.0
    %1227 = vmatpush1.msra.mxu0 %v1106
    %1228 = vmatprep.subr.mxu0 0.0
    %1229 = vmatpush1.msra.mxu0 0.0
    %1230 = vmatprep.subr.mxu0 0.0
    %1231 = vmatpush1.msra.mxu0 0.0
    %1232 = vmatprep.subr.mxu0 0.0
    %1233 = vmatpush1.msra.mxu0 0.0
    %1234 = vmatprep.subr.mxu0 0.0
    %1235 = vmatpush1.msra.mxu0 0.0
    %1236 = vmatprep.subr.mxu0 0.0
    %1237 = vmatpush1.msra.mxu0 0.0
    %1238 = vmatprep.subr.mxu0 0.0
    %1239 = vmatpush1.msra.mxu0 0.0
    %1240 = vmatprep.subr.mxu0 0.0
    %1241 = vmatpush1.msra.mxu0 0.0
    %1242 = vmatprep.subr.mxu0 0.0
    %1243 = vmatpush1.msra.mxu0 0.0
    %1244 = vmatprep.subr.mxu0 0.0
    %1245 = vmatpush1.msra.mxu0 0.0
    %1246 = vmatprep.subr.mxu0 0.0
    %1247 = vmatpush1.msra.mxu0 0.0
    %1248 = vmatprep.subr.mxu0 0.0
    %1249 = vmatpush1.msra.mxu0 0.0
    %1250 = vmatprep.subr.mxu0 0.0
    %1251 = vmatpush1.msra.mxu0 0.0
    %1252 = vmatprep.subr.mxu0 0.0
    %1253 = vmatpush1.msra.mxu0 0.0
    %1254 = vmatprep.subr.mxu0 0.0
    %1255 = vmatpush1.msra.mxu0 0.0
    %1256 = vmatprep.subr.mxu0 0.0
    %1257 = vmatpush1.msra.mxu0 0.0
    %1258 = vmatprep.subr.mxu0 0.0
    %1259 = vmatpush1.msra.mxu0 0.0
    %1260 = vmatprep.mubr.f32.mxu0 0.0
    %1261 = vmatmul.mubr.f32.gmra.mrb[0].mxu0 0.0
    %v1262 = vpop.f32.mrb[0].mxu0
    %v1263 = vadd.f32 %v1121, %v1262
    %v1264 = vpop.f32.mrb[0].mxu0
    %1265 = vdwg.mxu0
    %v1266 = vadd.f32 %v984, %v1192
    %v1267 = vxor.u32 %v1266, 2147483648
    %v1268 = vmul.f32 %v1267, 1.442695
    %v1269 = vpow.pop %v1268
    %v1270 = vadd.f32 %v1269, 1.0
    %v1271 = vrcp.pop %v1270
    %v1272 = vmul.f32 1.0, %v1271
    %v1273 = vadd.f32 %v986, %v1194
    %v1274 = vxor.u32 %v1273, 2147483648
    %v1275 = vmul.f32 %v1274, 1.442695
    %v1276 = vpow.pop %v1275
    %v1277 = vadd.f32 %v1276, 1.0
    %v1278 = vrcp.pop %v1277
    %v1279 = vmul.f32 1.0, %v1278
    %v1280 = vmul.f32 %v1272, %v1263
    %v1281 = vadd.f32 %v1055, %v1280
    %v1282 = vtanh.pop %v1281
    %v1283 = vsub.f32 0.0, %v1282
    %v1284 = vmul.f32 %v1279, %v1283
    %v1285 = vadd.f32 %v1282, %v1284
    %v1286 = vld [vmem:[#allocation2 + $0x30] sm:$0xff]
    %v1287 = vld [vmem:[#allocation2 + $0x38] sm:$0xff]
    %v1288 = vld [vmem:[#allocation2 + $0x40] sm:$0xff]
    %1289 = vmatprep.subr.mxu0 %v461
    %1290 = vmatpush1.msra.mxu0 %v460
    %1291 = vmatprep.subr.mxu0 %v464
    %1292 = vmatpush1.msra.mxu0 %v463
    %1293 = vmatprep.subr.mxu0 %v467
    %1294 = vmatpush1.msra.mxu0 %v466
    %1295 = vmatprep.subr.mxu0 %v470
    %1296 = vmatpush1.msra.mxu0 %v469
    %1297 = vmatprep.subr.mxu0 %v473
    %1298 = vmatpush1.msra.mxu0 %v472
    %1299 = vmatprep.subr.mxu0 %v476
    %1300 = vmatpush1.msra.mxu0 %v475
    %1301 = vmatprep.subr.mxu0 %v479
    %1302 = vmatpush1.msra.mxu0 %v478
    %1303 = vmatprep.subr.mxu0 %v482
    %1304 = vmatpush1.msra.mxu0 %v481
    %1305 = vmatprep.subr.mxu0 %v485
    %1306 = vmatpush1.msra.mxu0 %v484
    %1307 = vmatprep.subr.mxu0 %v488
    %1308 = vmatpush1.msra.mxu0 %v487
    %1309 = vmatprep.subr.mxu0 %v491
    %1310 = vmatpush1.msra.mxu0 %v490
    %1311 = vmatprep.subr.mxu0 %v494
    %1312 = vmatpush1.msra.mxu0 %v493
    %1313 = vmatprep.subr.mxu0 %v497
    %1314 = vmatpush1.msra.mxu0 %v496
    %1315 = vmatprep.subr.mxu0 %v500
    %1316 = vmatpush1.msra.mxu0 %v499
    %1317 = vmatprep.subr.mxu0 %v503
    %1318 = vmatpush1.msra.mxu0 %v502
    %1319 = vmatprep.subr.mxu0 %v506
    %1320 = vmatpush1.msra.mxu0 %v505
    %1321 = vmatprep.subr.mxu0 0.0
    %1322 = vmatpush1.msra.mxu0 0.0
    %1323 = vmatprep.subr.mxu0 0.0
    %1324 = vmatpush1.msra.mxu0 0.0
    %1325 = vmatprep.subr.mxu0 0.0
    %1326 = vmatpush1.msra.mxu0 0.0
    %1327 = vmatprep.subr.mxu0 0.0
    %1328 = vmatpush1.msra.mxu0 0.0
    %1329 = vmatprep.subr.mxu0 0.0
    %1330 = vmatpush1.msra.mxu0 0.0
    %1331 = vmatprep.subr.mxu0 0.0
    %1332 = vmatpush1.msra.mxu0 0.0
    %1333 = vmatprep.subr.mxu0 0.0
    %1334 = vmatpush1.msra.mxu0 0.0
    %1335 = vmatprep.subr.mxu0 0.0
    %1336 = vmatpush1.msra.mxu0 0.0
    %1337 = vmatprep.subr.mxu0 0.0
    %1338 = vmatpush1.msra.mxu0 0.0
    %1339 = vmatprep.subr.mxu0 0.0
    %1340 = vmatpush1.msra.mxu0 0.0
    %1341 = vmatprep.subr.mxu0 0.0
    %1342 = vmatpush1.msra.mxu0 0.0
    %1343 = vmatprep.subr.mxu0 0.0
    %1344 = vmatpush1.msra.mxu0 0.0
    %1345 = vmatprep.subr.mxu0 0.0
    %1346 = vmatpush1.msra.mxu0 0.0
    %1347 = vmatprep.subr.mxu0 0.0
    %1348 = vmatpush1.msra.mxu0 0.0
    %1349 = vmatprep.subr.mxu0 0.0
    %1350 = vmatpush1.msra.mxu0 0.0
    %1351 = vmatprep.subr.mxu0 0.0
    %1352 = vmatpush1.msra.mxu0 0.0
    %1353 = vmatprep.mubr.f32.mxu0 0.0
    %1354 = vmatmul.mubr.f32.gmra.mrb[0].mxu0 %v849
    %v1355 = vpop.f32.mrb[0].mxu0
    %v1356 = vadd.f32 %v513, %v1355
    %v1357 = vpop.f32.mrb[0].mxu0
    %v1358 = vadd.f32 %v517, %v1357
    %1359 = vdwg.mxu0
    %1360 = vmatprep.subr.mxu0 0.0
    %1361 = vmatpush1.msra.mxu0 %v462
    %1362 = vmatprep.subr.mxu0 0.0
    %1363 = vmatpush1.msra.mxu0 %v465
    %1364 = vmatprep.subr.mxu0 0.0
    %1365 = vmatpush1.msra.mxu0 %v468
    %1366 = vmatprep.subr.mxu0 0.0
    %1367 = vmatpush1.msra.mxu0 %v471
    %1368 = vmatprep.subr.mxu0 0.0
    %1369 = vmatpush1.msra.mxu0 %v474
    %1370 = vmatprep.subr.mxu0 0.0
    %1371 = vmatpush1.msra.mxu0 %v477
    %1372 = vmatprep.subr.mxu0 0.0
    %1373 = vmatpush1.msra.mxu0 %v480
    %1374 = vmatprep.subr.mxu0 0.0
    %1375 = vmatpush1.msra.mxu0 %v483
    %1376 = vmatprep.subr.mxu0 0.0
    %1377 = vmatpush1.msra.mxu0 %v486
    %1378 = vmatprep.subr.mxu0 0.0
    %1379 = vmatpush1.msra.mxu0 %v489
    %1380 = vmatprep.subr.mxu0 0.0
    %1381 = vmatpush1.msra.mxu0 %v492
    %1382 = vmatprep.subr.mxu0 0.0
    %1383 = vmatpush1.msra.mxu0 %v495
    %1384 = vmatprep.subr.mxu0 0.0
    %1385 = vmatpush1.msra.mxu0 %v498
    %1386 = vmatprep.subr.mxu0 0.0
    %1387 = vmatpush1.msra.mxu0 %v501
    %1388 = vmatprep.subr.mxu0 0.0
    %1389 = vmatpush1.msra.mxu0 %v504
    %1390 = vmatprep.subr.mxu0 0.0
    %1391 = vmatpush1.msra.mxu0 %v507
    %1392 = vmatprep.subr.mxu0 0.0
    %1393 = vmatpush1.msra.mxu0 0.0
    %1394 = vmatprep.subr.mxu0 0.0
    %1395 = vmatpush1.msra.mxu0 0.0
    %1396 = vmatprep.subr.mxu0 0.0
    %1397 = vmatpush1.msra.mxu0 0.0
    %1398 = vmatprep.subr.mxu0 0.0
    %1399 = vmatpush1.msra.mxu0 0.0
    %1400 = vmatprep.subr.mxu0 0.0
    %1401 = vmatpush1.msra.mxu0 0.0
    %1402 = vmatprep.subr.mxu0 0.0
    %1403 = vmatpush1.msra.mxu0 0.0
    %1404 = vmatprep.subr.mxu0 0.0
    %1405 = vmatpush1.msra.mxu0 0.0
    %1406 = vmatprep.subr.mxu0 0.0
    %1407 = vmatpush1.msra.mxu0 0.0
    %1408 = vmatprep.subr.mxu0 0.0
    %1409 = vmatpush1.msra.mxu0 0.0
    %1410 = vmatprep.subr.mxu0 0.0
    %1411 = vmatpush1.msra.mxu0 0.0
    %1412 = vmatprep.subr.mxu0 0.0
    %1413 = vmatpush1.msra.mxu0 0.0
    %1414 = vmatprep.subr.mxu0 0.0
    %1415 = vmatpush1.msra.mxu0 0.0
    %1416 = vmatprep.subr.mxu0 0.0
    %1417 = vmatpush1.msra.mxu0 0.0
    %1418 = vmatprep.subr.mxu0 0.0
    %1419 = vmatpush1.msra.mxu0 0.0
    %1420 = vmatprep.subr.mxu0 0.0
    %1421 = vmatpush1.msra.mxu0 0.0
    %1422 = vmatprep.subr.mxu0 0.0
    %1423 = vmatpush1.msra.mxu0 0.0
    %1424 = vmatprep.mubr.f32.mxu0 0.0
    %1425 = vmatmul.mubr.f32.gmra.mrb[0].mxu0 %v849
    %v1426 = vpop.f32.mrb[0].mxu0
    %v1427 = vadd.f32 %v521, %v1426
    %v1428 = vpop.f32.mrb[0].mxu0
    %1429 = vdwg.mxu0
    %v1430 = vadd.f32 %v1286, %v1356
    %v1431 = vxor.u32 %v1430, 2147483648
    %v1432 = vmul.f32 %v1431, 1.442695
    %v1433 = vpow.pop %v1432
    %v1434 = vadd.f32 %v1433, 1.0
    %v1435 = vrcp.pop %v1434
    %v1436 = vmul.f32 1.0, %v1435
    %v1437 = vadd.f32 %v1287, %v1358
    %v1438 = vxor.u32 %v1437, 2147483648
    %v1439 = vmul.f32 %v1438, 1.442695
    %v1440 = vpow.pop %v1439
    %v1441 = vadd.f32 %v1440, 1.0
    %v1442 = vrcp.pop %v1441
    %v1443 = vmul.f32 1.0, %v1442
    %v1444 = vmul.f32 %v1436, %v1427
    %v1445 = vadd.f32 %v1288, %v1444
    %v1446 = vtanh.pop %v1445
    %v1447 = vsub.f32 %v849, %v1446
    %v1448 = vmul.f32 %v1443, %v1447
    %v1449 = vadd.f32 %v1446, %v1448
    %1450 = vmatprep.subr.mxu0 %v852
    %1451 = vmatpush1.msra.mxu0 %v851
    %1452 = vmatprep.subr.mxu0 %v855
    %1453 = vmatpush1.msra.mxu0 %v854
    %1454 = vmatprep.subr.mxu0 %v858
    %1455 = vmatpush1.msra.mxu0 %v857
    %1456 = vmatprep.subr.mxu0 %v861
    %1457 = vmatpush1.msra.mxu0 %v860
    %1458 = vmatprep.subr.mxu0 %v864
    %1459 = vmatpush1.msra.mxu0 %v863
    %1460 = vmatprep.subr.mxu0 %v867
    %1461 = vmatpush1.msra.mxu0 %v866
    %1462 = vmatprep.subr.mxu0 %v870
    %1463 = vmatpush1.msra.mxu0 %v869
    %1464 = vmatprep.subr.mxu0 %v873
    %1465 = vmatpush1.msra.mxu0 %v872
    %1466 = vmatprep.subr.mxu0 %v876
    %1467 = vmatpush1.msra.mxu0 %v875
    %1468 = vmatprep.subr.mxu0 %v879
    %1469 = vmatpush1.msra.mxu0 %v878
    %1470 = vmatprep.subr.mxu0 %v882
    %1471 = vmatpush1.msra.mxu0 %v881
    %1472 = vmatprep.subr.mxu0 %v885
    %1473 = vmatpush1.msra.mxu0 %v884
    %1474 = vmatprep.subr.mxu0 %v888
    %1475 = vmatpush1.msra.mxu0 %v887
    %1476 = vmatprep.subr.mxu0 %v891
    %1477 = vmatpush1.msra.mxu0 %v890
    %1478 = vmatprep.subr.mxu0 %v894
    %1479 = vmatpush1.msra.mxu0 %v893
    %1480 = vmatprep.subr.mxu0 %v897
    %1481 = vmatpush1.msra.mxu0 %v896
    %1482 = vmatprep.subr.mxu0 0.0
    %1483 = vmatpush1.msra.mxu0 0.0
    %1484 = vmatprep.subr.mxu0 0.0
    %1485 = vmatpush1.msra.mxu0 0.0
    %1486 = vmatprep.subr.mxu0 0.0
    %1487 = vmatpush1.msra.mxu0 0.0
    %1488 = vmatprep.subr.mxu0 0.0
    %1489 = vmatpush1.msra.mxu0 0.0
    %1490 = vmatprep.subr.mxu0 0.0
    %1491 = vmatpush1.msra.mxu0 0.0
    %1492 = vmatprep.subr.mxu0 0.0
    %1493 = vmatpush1.msra.mxu0 0.0
    %1494 = vmatprep.subr.mxu0 0.0
    %1495 = vmatpush1.msra.mxu0 0.0
    %1496 = vmatprep.subr.mxu0 0.0
    %1497 = vmatpush1.msra.mxu0 0.0
    %1498 = vmatprep.subr.mxu0 0.0
    %1499 = vmatpush1.msra.mxu0 0.0
    %1500 = vmatprep.subr.mxu0 0.0
    %1501 = vmatpush1.msra.mxu0 0.0
    %1502 = vmatprep.subr.mxu0 0.0
    %1503 = vmatpush1.msra.mxu0 0.0
    %1504 = vmatprep.subr.mxu0 0.0
    %1505 = vmatpush1.msra.mxu0 0.0
    %1506 = vmatprep.subr.mxu0 0.0
    %1507 = vmatpush1.msra.mxu0 0.0
    %1508 = vmatprep.subr.mxu0 0.0
    %1509 = vmatpush1.msra.mxu0 0.0
    %1510 = vmatprep.subr.mxu0 0.0
    %1511 = vmatpush1.msra.mxu0 0.0
    %1512 = vmatprep.subr.mxu0 0.0
    %1513 = vmatpush1.msra.mxu0 0.0
    %1514 = vmatprep.mubr.f32.mxu0 0.0
    %1515 = vmatmul.mubr.f32.gmra.mrb[0].mxu0 %v849
    %v1516 = vpop.f32.mrb[0].mxu0
    %v1517 = vadd.f32 %v905, %v1516
    %v1518 = vpop.f32.mrb[0].mxu0
    %v1519 = vadd.f32 %v909, %v1518
    %1520 = vdwg.mxu0
    %1521 = vmatprep.subr.mxu0 0.0
    %1522 = vmatpush1.msra.mxu0 %v853
    %1523 = vmatprep.subr.mxu0 0.0
    %1524 = vmatpush1.msra.mxu0 %v856
    %1525 = vmatprep.subr.mxu0 0.0
    %1526 = vmatpush1.msra.mxu0 %v859
    %1527 = vmatprep.subr.mxu0 0.0
    %1528 = vmatpush1.msra.mxu0 %v862
    %1529 = vmatprep.subr.mxu0 0.0
    %1530 = vmatpush1.msra.mxu0 %v865
    %1531 = vmatprep.subr.mxu0 0.0
    %1532 = vmatpush1.msra.mxu0 %v868
    %1533 = vmatprep.subr.mxu0 0.0
    %1534 = vmatpush1.msra.mxu0 %v871
    %1535 = vmatprep.subr.mxu0 0.0
    %1536 = vmatpush1.msra.mxu0 %v874
    %1537 = vmatprep.subr.mxu0 0.0
    %1538 = vmatpush1.msra.mxu0 %v877
    %1539 = vmatprep.subr.mxu0 0.0
    %1540 = vmatpush1.msra.mxu0 %v880
    %1541 = vmatprep.subr.mxu0 0.0
    %1542 = vmatpush1.msra.mxu0 %v883
    %1543 = vmatprep.subr.mxu0 0.0
    %1544 = vmatpush1.msra.mxu0 %v886
    %1545 = vmatprep.subr.mxu0 0.0
    %1546 = vmatpush1.msra.mxu0 %v889
    %1547 = vmatprep.subr.mxu0 0.0
    %1548 = vmatpush1.msra.mxu0 %v892
    %1549 = vmatprep.subr.mxu0 0.0
    %1550 = vmatpush1.msra.mxu0 %v895
    %1551 = vmatprep.subr.mxu0 0.0
    %1552 = vmatpush1.msra.mxu0 %v898
    %1553 = vmatprep.subr.mxu0 0.0
    %1554 = vmatpush1.msra.mxu0 0.0
    %1555 = vmatprep.subr.mxu0 0.0
    %1556 = vmatpush1.msra.mxu0 0.0
    %1557 = vmatprep.subr.mxu0 0.0
    %1558 = vmatpush1.msra.mxu0 0.0
    %1559 = vmatprep.subr.mxu0 0.0
    %1560 = vmatpush1.msra.mxu0 0.0
    %1561 = vmatprep.subr.mxu0 0.0
    %1562 = vmatpush1.msra.mxu0 0.0
    %1563 = vmatprep.subr.mxu0 0.0
    %1564 = vmatpush1.msra.mxu0 0.0
    %1565 = vmatprep.subr.mxu0 0.0
    %1566 = vmatpush1.msra.mxu0 0.0
    %1567 = vmatprep.subr.mxu0 0.0
    %1568 = vmatpush1.msra.mxu0 0.0
    %1569 = vmatprep.subr.mxu0 0.0
    %1570 = vmatpush1.msra.mxu0 0.0
    %1571 = vmatprep.subr.mxu0 0.0
    %1572 = vmatpush1.msra.mxu0 0.0
    %1573 = vmatprep.subr.mxu0 0.0
    %1574 = vmatpush1.msra.mxu0 0.0
    %1575 = vmatprep.subr.mxu0 0.0
    %1576 = vmatpush1.msra.mxu0 0.0
    %1577 = vmatprep.subr.mxu0 0.0
    %1578 = vmatpush1.msra.mxu0 0.0
    %1579 = vmatprep.subr.mxu0 0.0
    %1580 = vmatpush1.msra.mxu0 0.0
    %1581 = vmatprep.subr.mxu0 0.0
    %1582 = vmatpush1.msra.mxu0 0.0
    %1583 = vmatprep.subr.mxu0 0.0
    %1584 = vmatpush1.msra.mxu0 0.0
    %1585 = vmatprep.mubr.f32.mxu0 0.0
    %1586 = vmatmul.mubr.f32.gmra.mrb[0].mxu0 %v849
    %v1587 = vpop.f32.mrb[0].mxu0
    %v1588 = vadd.f32 %v913, %v1587
    %v1589 = vpop.f32.mrb[0].mxu0
    %1590 = vdwg.mxu0
    %1591 = vmatprep.subr.mxu0 %v1060
    %1592 = vmatpush1.msra.mxu0 %v1059
    %1593 = vmatprep.subr.mxu0 %v1063
    %1594 = vmatpush1.msra.mxu0 %v1062
    %1595 = vmatprep.subr.mxu0 %v1066
    %1596 = vmatpush1.msra.mxu0 %v1065
    %1597 = vmatprep.subr.mxu0 %v1069
    %1598 = vmatpush1.msra.mxu0 %v1068
    %1599 = vmatprep.subr.mxu0 %v1072
    %1600 = vmatpush1.msra.mxu0 %v1071
    %1601 = vmatprep.subr.mxu0 %v1075
    %1602 = vmatpush1.msra.mxu0 %v1074
    %1603 = vmatprep.subr.mxu0 %v1078
    %1604 = vmatpush1.msra.mxu0 %v1077
    %1605 = vmatprep.subr.mxu0 %v1081
    %1606 = vmatpush1.msra.mxu0 %v1080
    %1607 = vmatprep.subr.mxu0 %v1084
    %1608 = vmatpush1.msra.mxu0 %v1083
    %1609 = vmatprep.subr.mxu0 %v1087
    %1610 = vmatpush1.msra.mxu0 %v1086
    %1611 = vmatprep.subr.mxu0 %v1090
    %1612 = vmatpush1.msra.mxu0 %v1089
    %1613 = vmatprep.subr.mxu0 %v1093
    %1614 = vmatpush1.msra.mxu0 %v1092
    %1615 = vmatprep.subr.mxu0 %v1096
    %1616 = vmatpush1.msra.mxu0 %v1095
    %1617 = vmatprep.subr.mxu0 %v1099
    %1618 = vmatpush1.msra.mxu0 %v1098
    %1619 = vmatprep.subr.mxu0 %v1102
    %1620 = vmatpush1.msra.mxu0 %v1101
    %1621 = vmatprep.subr.mxu0 %v1105
    %1622 = vmatpush1.msra.mxu0 %v1104
    %1623 = vmatprep.subr.mxu0 0.0
    %1624 = vmatpush1.msra.mxu0 0.0
    %1625 = vmatprep.subr.mxu0 0.0
    %1626 = vmatpush1.msra.mxu0 0.0
    %1627 = vmatprep.subr.mxu0 0.0
    %1628 = vmatpush1.msra.mxu0 0.0
    %1629 = vmatprep.subr.mxu0 0.0
    %1630 = vmatpush1.msra.mxu0 0.0
    %1631 = vmatprep.subr.mxu0 0.0
    %1632 = vmatpush1.msra.mxu0 0.0
    %1633 = vmatprep.subr.mxu0 0.0
    %1634 = vmatpush1.msra.mxu0 0.0
    %1635 = vmatprep.subr.mxu0 0.0
    %1636 = vmatpush1.msra.mxu0 0.0
    %1637 = vmatprep.subr.mxu0 0.0
    %1638 = vmatpush1.msra.mxu0 0.0
    %1639 = vmatprep.subr.mxu0 0.0
    %1640 = vmatpush1.msra.mxu0 0.0
    %1641 = vmatprep.subr.mxu0 0.0
    %1642 = vmatpush1.msra.mxu0 0.0
    %1643 = vmatprep.subr.mxu0 0.0
    %1644 = vmatpush1.msra.mxu0 0.0
    %1645 = vmatprep.subr.mxu0 0.0
    %1646 = vmatpush1.msra.mxu0 0.0
    %1647 = vmatprep.subr.mxu0 0.0
    %1648 = vmatpush1.msra.mxu0 0.0
    %1649 = vmatprep.subr.mxu0 0.0
    %1650 = vmatpush1.msra.mxu0 0.0
    %1651 = vmatprep.subr.mxu0 0.0
    %1652 = vmatpush1.msra.mxu0 0.0
    %1653 = vmatprep.subr.mxu0 0.0
    %1654 = vmatpush1.msra.mxu0 0.0
    %1655 = vmatprep.mubr.f32.mxu0 0.0
    %1656 = vmatmul.mubr.f32.gmra.mrb[0].mxu0 %v1285
    %v1657 = vpop.f32.mrb[0].mxu0
    %v1658 = vadd.f32 %v1113, %v1657
    %v1659 = vpop.f32.mrb[0].mxu0
    %v1660 = vadd.f32 %v1117, %v1659
    %1661 = vdwg.mxu0
    %1662 = vmatprep.subr.mxu0 0.0
    %1663 = vmatpush1.msra.mxu0 %v1061
    %1664 = vmatprep.subr.mxu0 0.0
    %1665 = vmatpush1.msra.mxu0 %v1064
    %1666 = vmatprep.subr.mxu0 0.0
    %1667 = vmatpush1.msra.mxu0 %v1067
    %1668 = vmatprep.subr.mxu0 0.0
    %1669 = vmatpush1.msra.mxu0 %v1070
    %1670 = vmatprep.subr.mxu0 0.0
    %1671 = vmatpush1.msra.mxu0 %v1073
    %1672 = vmatprep.subr.mxu0 0.0
    %1673 = vmatpush1.msra.mxu0 %v1076
    %1674 = vmatprep.subr.mxu0 0.0
    %1675 = vmatpush1.msra.mxu0 %v1079
    %1676 = vmatprep.subr.mxu0 0.0
    %1677 = vmatpush1.msra.mxu0 %v1082
    %1678 = vmatprep.subr.mxu0 0.0
    %1679 = vmatpush1.msra.mxu0 %v1085
    %1680 = vmatprep.subr.mxu0 0.0
    %1681 = vmatpush1.msra.mxu0 %v1088
    %1682 = vmatprep.subr.mxu0 0.0
    %1683 = vmatpush1.msra.mxu0 %v1091
    %1684 = vmatprep.subr.mxu0 0.0
    %1685 = vmatpush1.msra.mxu0 %v1094
    %1686 = vmatprep.subr.mxu0 0.0
    %1687 = vmatpush1.msra.mxu0 %v1097
    %1688 = vmatprep.subr.mxu0 0.0
    %1689 = vmatpush1.msra.mxu0 %v1100
    %1690 = vmatprep.subr.mxu0 0.0
    %1691 = vmatpush1.msra.mxu0 %v1103
    %1692 = vmatprep.subr.mxu0 0.0
    %1693 = vmatpush1.msra.mxu0 %v1106
    %1694 = vmatprep.subr.mxu0 0.0
    %1695 = vmatpush1.msra.mxu0 0.0
    %1696 = vmatprep.subr.mxu0 0.0
    %1697 = vmatpush1.msra.mxu0 0.0
    %1698 = vmatprep.subr.mxu0 0.0
    %1699 = vmatpush1.msra.mxu0 0.0
    %1700 = vmatprep.subr.mxu0 0.0
    %1701 = vmatpush1.msra.mxu0 0.0
    %1702 = vmatprep.subr.mxu0 0.0
    %1703 = vmatpush1.msra.mxu0 0.0
    %1704 = vmatprep.subr.mxu0 0.0
    %1705 = vmatpush1.msra.mxu0 0.0
    %1706 = vmatprep.subr.mxu0 0.0
    %1707 = vmatpush1.msra.mxu0 0.0
    %1708 = vmatprep.subr.mxu0 0.0
    %1709 = vmatpush1.msra.mxu0 0.0
    %1710 = vmatprep.subr.mxu0 0.0
    %1711 = vmatpush1.msra.mxu0 0.0
    %1712 = vmatprep.subr.mxu0 0.0
    %1713 = vmatpush1.msra.mxu0 0.0
    %1714 = vmatprep.subr.mxu0 0.0
    %1715 = vmatpush1.msra.mxu0 0.0
    %1716 = vmatprep.subr.mxu0 0.0
    %1717 = vmatpush1.msra.mxu0 0.0
    %1718 = vmatprep.subr.mxu0 0.0
    %1719 = vmatpush1.msra.mxu0 0.0
    %1720 = vmatprep.subr.mxu0 0.0
    %1721 = vmatpush1.msra.mxu0 0.0
    %1722 = vmatprep.subr.mxu0 0.0
    %1723 = vmatpush1.msra.mxu0 0.0
    %1724 = vmatprep.subr.mxu0 0.0
    %1725 = vmatpush1.msra.mxu0 0.0
    %1726 = vmatprep.mubr.f32.mxu0 0.0
    %1727 = vmatmul.mubr.f32.gmra.mrb[0].mxu0 %v1285
    %v1728 = vpop.f32.mrb[0].mxu0
    %v1729 = vadd.f32 %v1121, %v1728
    %v1730 = vpop.f32.mrb[0].mxu0
    %1731 = vdwg.mxu0
    %v1732 = vadd.f32 %v1517, %v1658
    %v1733 = vxor.u32 %v1732, 2147483648
    %v1734 = vmul.f32 %v1733, 1.442695
    %v1735 = vpow.pop %v1734
    %v1736 = vadd.f32 %v1735, 1.0
    %v1737 = vrcp.pop %v1736
    %v1738 = vmul.f32 1.0, %v1737
    %v1739 = vadd.f32 %v1519, %v1660
    %v1740 = vxor.u32 %v1739, 2147483648
    %v1741 = vmul.f32 %v1740, 1.442695
    %v1742 = vpow.pop %v1741
    %v1743 = vadd.f32 %v1742, 1.0
    %v1744 = vrcp.pop %v1743
    %v1745 = vmul.f32 1.0, %v1744
    %v1746 = vmul.f32 %v1738, %v1729
    %v1747 = vadd.f32 %v1588, %v1746
    %v1748 = vtanh.pop %v1747
    %v1749 = vsub.f32 %v1285, %v1748
    %v1750 = vmul.f32 %v1745, %v1749
    %v1751 = vadd.f32 %v1748, %v1750
    %v1752 = vld [vmem:[#allocation2 + $0x48] sm:$0xff]
    %v1753 = vld [vmem:[#allocation2 + $0x50] sm:$0xff]
    %v1754 = vld [vmem:[#allocation2 + $0x58] sm:$0xff]
    %1755 = vmatprep.subr.mxu0 %v461
    %1756 = vmatpush1.msra.mxu0 %v460
    %1757 = vmatprep.subr.mxu0 %v464
    %1758 = vmatpush1.msra.mxu0 %v463
    %1759 = vmatprep.subr.mxu0 %v467
    %1760 = vmatpush1.msra.mxu0 %v466
    %1761 = vmatprep.subr.mxu0 %v470
    %1762 = vmatpush1.msra.mxu0 %v469
    %1763 = vmatprep.subr.mxu0 %v473
    %1764 = vmatpush1.msra.mxu0 %v472
    %1765 = vmatprep.subr.mxu0 %v476
    %1766 = vmatpush1.msra.mxu0 %v475
    %1767 = vmatprep.subr.mxu0 %v479
    %1768 = vmatpush1.msra.mxu0 %v478
    %1769 = vmatprep.subr.mxu0 %v482
    %1770 = vmatpush1.msra.mxu0 %v481
    %1771 = vmatprep.subr.mxu0 %v485
    %1772 = vmatpush1.msra.mxu0 %v484
    %1773 = vmatprep.subr.mxu0 %v488
    %1774 = vmatpush1.msra.mxu0 %v487
    %1775 = vmatprep.subr.mxu0 %v491
    %1776 = vmatpush1.msra.mxu0 %v490
    %1777 = vmatprep.subr.mxu0 %v494
    %1778 = vmatpush1.msra.mxu0 %v493
    %1779 = vmatprep.subr.mxu0 %v497
    %1780 = vmatpush1.msra.mxu0 %v496
    %1781 = vmatprep.subr.mxu0 %v500
    %1782 = vmatpush1.msra.mxu0 %v499
    %1783 = vmatprep.subr.mxu0 %v503
    %1784 = vmatpush1.msra.mxu0 %v502
    %1785 = vmatprep.subr.mxu0 %v506
    %1786 = vmatpush1.msra.mxu0 %v505
    %1787 = vmatprep.subr.mxu0 0.0
    %1788 = vmatpush1.msra.mxu0 0.0
    %1789 = vmatprep.subr.mxu0 0.0
    %1790 = vmatpush1.msra.mxu0 0.0
    %1791 = vmatprep.subr.mxu0 0.0
    %1792 = vmatpush1.msra.mxu0 0.0
    %1793 = vmatprep.subr.mxu0 0.0
    %1794 = vmatpush1.msra.mxu0 0.0
    %1795 = vmatprep.subr.mxu0 0.0
    %1796 = vmatpush1.msra.mxu0 0.0
    %1797 = vmatprep.subr.mxu0 0.0
    %1798 = vmatpush1.msra.mxu0 0.0
    %1799 = vmatprep.subr.mxu0 0.0
    %1800 = vmatpush1.msra.mxu0 0.0
    %1801 = vmatprep.subr.mxu0 0.0
    %1802 = vmatpush1.msra.mxu0 0.0
    %1803 = vmatprep.subr.mxu0 0.0
    %1804 = vmatpush1.msra.mxu0 0.0
    %1805 = vmatprep.subr.mxu0 0.0
    %1806 = vmatpush1.msra.mxu0 0.0
    %1807 = vmatprep.subr.mxu0 0.0
    %1808 = vmatpush1.msra.mxu0 0.0
    %1809 = vmatprep.subr.mxu0 0.0
    %1810 = vmatpush1.msra.mxu0 0.0
    %1811 = vmatprep.subr.mxu0 0.0
    %1812 = vmatpush1.msra.mxu0 0.0
    %1813 = vmatprep.subr.mxu0 0.0
    %1814 = vmatpush1.msra.mxu0 0.0
    %1815 = vmatprep.subr.mxu0 0.0
    %1816 = vmatpush1.msra.mxu0 0.0
    %1817 = vmatprep.subr.mxu0 0.0
    %1818 = vmatpush1.msra.mxu0 0.0
    %1819 = vmatprep.mubr.f32.mxu0 0.0
    %1820 = vmatmul.mubr.f32.gmra.mrb[0].mxu0 %v1449
    %v1821 = vpop.f32.mrb[0].mxu0
    %v1822 = vadd.f32 %v513, %v1821
    %v1823 = vpop.f32.mrb[0].mxu0
    %v1824 = vadd.f32 %v517, %v1823
    %1825 = vdwg.mxu0
    %1826 = vmatprep.subr.mxu0 0.0
    %1827 = vmatpush1.msra.mxu0 %v462
    %1828 = vmatprep.subr.mxu0 0.0
    %1829 = vmatpush1.msra.mxu0 %v465
    %1830 = vmatprep.subr.mxu0 0.0
    %1831 = vmatpush1.msra.mxu0 %v468
    %1832 = vmatprep.subr.mxu0 0.0
    %1833 = vmatpush1.msra.mxu0 %v471
    %1834 = vmatprep.subr.mxu0 0.0
    %1835 = vmatpush1.msra.mxu0 %v474
    %1836 = vmatprep.subr.mxu0 0.0
    %1837 = vmatpush1.msra.mxu0 %v477
    %1838 = vmatprep.subr.mxu0 0.0
    %1839 = vmatpush1.msra.mxu0 %v480
    %1840 = vmatprep.subr.mxu0 0.0
    %1841 = vmatpush1.msra.mxu0 %v483
    %1842 = vmatprep.subr.mxu0 0.0
    %1843 = vmatpush1.msra.mxu0 %v486
    %1844 = vmatprep.subr.mxu0 0.0
    %1845 = vmatpush1.msra.mxu0 %v489
    %1846 = vmatprep.subr.mxu0 0.0
    %1847 = vmatpush1.msra.mxu0 %v492
    %1848 = vmatprep.subr.mxu0 0.0
    %1849 = vmatpush1.msra.mxu0 %v495
    %1850 = vmatprep.subr.mxu0 0.0
    %1851 = vmatpush1.msra.mxu0 %v498
    %1852 = vmatprep.subr.mxu0 0.0
    %1853 = vmatpush1.msra.mxu0 %v501
    %1854 = vmatprep.subr.mxu0 0.0
    %1855 = vmatpush1.msra.mxu0 %v504
    %1856 = vmatprep.subr.mxu0 0.0
    %1857 = vmatpush1.msra.mxu0 %v507
    %1858 = vmatprep.subr.mxu0 0.0
    %1859 = vmatpush1.msra.mxu0 0.0
    %1860 = vmatprep.subr.mxu0 0.0
    %1861 = vmatpush1.msra.mxu0 0.0
    %1862 = vmatprep.subr.mxu0 0.0
    %1863 = vmatpush1.msra.mxu0 0.0
    %1864 = vmatprep.subr.mxu0 0.0
    %1865 = vmatpush1.msra.mxu0 0.0
    %1866 = vmatprep.subr.mxu0 0.0
    %1867 = vmatpush1.msra.mxu0 0.0
    %1868 = vmatprep.subr.mxu0 0.0
    %1869 = vmatpush1.msra.mxu0 0.0
    %1870 = vmatprep.subr.mxu0 0.0
    %1871 = vmatpush1.msra.mxu0 0.0
    %1872 = vmatprep.subr.mxu0 0.0
    %1873 = vmatpush1.msra.mxu0 0.0
    %1874 = vmatprep.subr.mxu0 0.0
    %1875 = vmatpush1.msra.mxu0 0.0
    %1876 = vmatprep.subr.mxu0 0.0
    %1877 = vmatpush1.msra.mxu0 0.0
    %1878 = vmatprep.subr.mxu0 0.0
    %1879 = vmatpush1.msra.mxu0 0.0
    %1880 = vmatprep.subr.mxu0 0.0
    %1881 = vmatpush1.msra.mxu0 0.0
    %1882 = vmatprep.subr.mxu0 0.0
    %1883 = vmatpush1.msra.mxu0 0.0
    %1884 = vmatprep.subr.mxu0 0.0
    %1885 = vmatpush1.msra.mxu0 0.0
    %1886 = vmatprep.subr.mxu0 0.0
    %1887 = vmatpush1.msra.mxu0 0.0
    %1888 = vmatprep.subr.mxu0 0.0
    %1889 = vmatpush1.msra.mxu0 0.0
    %1890 = vmatprep.mubr.f32.mxu0 0.0
    %1891 = vmatmul.mubr.f32.gmra.mrb[0].mxu0 %v1449
    %v1892 = vpop.f32.mrb[0].mxu0
    %v1893 = vadd.f32 %v521, %v1892
    %v1894 = vpop.f32.mrb[0].mxu0
    %1895 = vdwg.mxu0
    %v1896 = vadd.f32 %v1752, %v1822
    %v1897 = vxor.u32 %v1896, 2147483648
    %v1898 = vmul.f32 %v1897, 1.442695
    %v1899 = vpow.pop %v1898
    %v1900 = vadd.f32 %v1899, 1.0
    %v1901 = vrcp.pop %v1900
    %v1902 = vmul.f32 1.0, %v1901
    %v1903 = vadd.f32 %v1753, %v1824
    %v1904 = vxor.u32 %v1903, 2147483648
    %v1905 = vmul.f32 %v1904, 1.442695
    %v1906 = vpow.pop %v1905
    %v1907 = vadd.f32 %v1906, 1.0
    %v1908 = vrcp.pop %v1907
    %v1909 = vmul.f32 1.0, %v1908
    %v1910 = vmul.f32 %v1902, %v1893
    %v1911 = vadd.f32 %v1754, %v1910
    %v1912 = vtanh.pop %v1911
    %v1913 = vsub.f32 %v1449, %v1912
    %v1914 = vmul.f32 %v1909, %v1913
    %v1915 = vadd.f32 %v1912, %v1914
    %1916 = vmatprep.subr.mxu0 %v852
    %1917 = vmatpush1.msra.mxu0 %v851
    %1918 = vmatprep.subr.mxu0 %v855
    %1919 = vmatpush1.msra.mxu0 %v854
    %1920 = vmatprep.subr.mxu0 %v858
    %1921 = vmatpush1.msra.mxu0 %v857
    %1922 = vmatprep.subr.mxu0 %v861
    %1923 = vmatpush1.msra.mxu0 %v860
    %1924 = vmatprep.subr.mxu0 %v864
    %1925 = vmatpush1.msra.mxu0 %v863
    %1926 = vmatprep.subr.mxu0 %v867
    %1927 = vmatpush1.msra.mxu0 %v866
    %1928 = vmatprep.subr.mxu0 %v870
    %1929 = vmatpush1.msra.mxu0 %v869
    %1930 = vmatprep.subr.mxu0 %v873
    %1931 = vmatpush1.msra.mxu0 %v872
    %1932 = vmatprep.subr.mxu0 %v876
    %1933 = vmatpush1.msra.mxu0 %v875
    %1934 = vmatprep.subr.mxu0 %v879
    %1935 = vmatpush1.msra.mxu0 %v878
    %1936 = vmatprep.subr.mxu0 %v882
    %1937 = vmatpush1.msra.mxu0 %v881
    %1938 = vmatprep.subr.mxu0 %v885
    %1939 = vmatpush1.msra.mxu0 %v884
    %1940 = vmatprep.subr.mxu0 %v888
    %1941 = vmatpush1.msra.mxu0 %v887
    %1942 = vmatprep.subr.mxu0 %v891
    %1943 = vmatpush1.msra.mxu0 %v890
    %1944 = vmatprep.subr.mxu0 %v894
    %1945 = vmatpush1.msra.mxu0 %v893
    %1946 = vmatprep.subr.mxu0 %v897
    %1947 = vmatpush1.msra.mxu0 %v896
    %1948 = vmatprep.subr.mxu0 0.0
    %1949 = vmatpush1.msra.mxu0 0.0
    %1950 = vmatprep.subr.mxu0 0.0
    %1951 = vmatpush1.msra.mxu0 0.0
    %1952 = vmatprep.subr.mxu0 0.0
    %1953 = vmatpush1.msra.mxu0 0.0
    %1954 = vmatprep.subr.mxu0 0.0
    %1955 = vmatpush1.msra.mxu0 0.0
    %1956 = vmatprep.subr.mxu0 0.0
    %1957 = vmatpush1.msra.mxu0 0.0
    %1958 = vmatprep.subr.mxu0 0.0
    %1959 = vmatpush1.msra.mxu0 0.0
    %1960 = vmatprep.subr.mxu0 0.0
    %1961 = vmatpush1.msra.mxu0 0.0
    %1962 = vmatprep.subr.mxu0 0.0
    %1963 = vmatpush1.msra.mxu0 0.0
    %1964 = vmatprep.subr.mxu0 0.0
    %1965 = vmatpush1.msra.mxu0 0.0
    %1966 = vmatprep.subr.mxu0 0.0
    %1967 = vmatpush1.msra.mxu0 0.0
    %1968 = vmatprep.subr.mxu0 0.0
    %1969 = vmatpush1.msra.mxu0 0.0
    %1970 = vmatprep.subr.mxu0 0.0
    %1971 = vmatpush1.msra.mxu0 0.0
    %1972 = vmatprep.subr.mxu0 0.0
    %1973 = vmatpush1.msra.mxu0 0.0
    %1974 = vmatprep.subr.mxu0 0.0
    %1975 = vmatpush1.msra.mxu0 0.0
    %1976 = vmatprep.subr.mxu0 0.0
    %1977 = vmatpush1.msra.mxu0 0.0
    %1978 = vmatprep.subr.mxu0 0.0
    %1979 = vmatpush1.msra.mxu0 0.0
    %1980 = vmatprep.mubr.f32.mxu0 0.0
    %1981 = vmatmul.mubr.f32.gmra.mrb[0].mxu0 %v1449
    %v1982 = vpop.f32.mrb[0].mxu0
    %v1983 = vadd.f32 %v905, %v1982
    %v1984 = vpop.f32.mrb[0].mxu0
    %v1985 = vadd.f32 %v909, %v1984
    %1986 = vdwg.mxu0
    %1987 = vmatprep.subr.mxu0 0.0
    %1988 = vmatpush1.msra.mxu0 %v853
    %1989 = vmatprep.subr.mxu0 0.0
    %1990 = vmatpush1.msra.mxu0 %v856
    %1991 = vmatprep.subr.mxu0 0.0
    %1992 = vmatpush1.msra.mxu0 %v859
    %1993 = vmatprep.subr.mxu0 0.0
    %1994 = vmatpush1.msra.mxu0 %v862
    %1995 = vmatprep.subr.mxu0 0.0
    %1996 = vmatpush1.msra.mxu0 %v865
    %1997 = vmatprep.subr.mxu0 0.0
    %1998 = vmatpush1.msra.mxu0 %v868
    %1999 = vmatprep.subr.mxu0 0.0
    %2000 = vmatpush1.msra.mxu0 %v871
    %2001 = vmatprep.subr.mxu0 0.0
    %2002 = vmatpush1.msra.mxu0 %v874
    %2003 = vmatprep.subr.mxu0 0.0
    %2004 = vmatpush1.msra.mxu0 %v877
    %2005 = vmatprep.subr.mxu0 0.0
    %2006 = vmatpush1.msra.mxu0 %v880
    %2007 = vmatprep.subr.mxu0 0.0
    %2008 = vmatpush1.msra.mxu0 %v883
    %2009 = vmatprep.subr.mxu0 0.0
    %2010 = vmatpush1.msra.mxu0 %v886
    %2011 = vmatprep.subr.mxu0 0.0
    %2012 = vmatpush1.msra.mxu0 %v889
    %2013 = vmatprep.subr.mxu0 0.0
    %2014 = vmatpush1.msra.mxu0 %v892
    %2015 = vmatprep.subr.mxu0 0.0
    %2016 = vmatpush1.msra.mxu0 %v895
    %2017 = vmatprep.subr.mxu0 0.0
    %2018 = vmatpush1.msra.mxu0 %v898
    %2019 = vmatprep.subr.mxu0 0.0
    %2020 = vmatpush1.msra.mxu0 0.0
    %2021 = vmatprep.subr.mxu0 0.0
    %2022 = vmatpush1.msra.mxu0 0.0
    %2023 = vmatprep.subr.mxu0 0.0
    %2024 = vmatpush1.msra.mxu0 0.0
    %2025 = vmatprep.subr.mxu0 0.0
    %2026 = vmatpush1.msra.mxu0 0.0
    %2027 = vmatprep.subr.mxu0 0.0
    %2028 = vmatpush1.msra.mxu0 0.0
    %2029 = vmatprep.subr.mxu0 0.0
    %2030 = vmatpush1.msra.mxu0 0.0
    %2031 = vmatprep.subr.mxu0 0.0
    %2032 = vmatpush1.msra.mxu0 0.0
    %2033 = vmatprep.subr.mxu0 0.0
    %2034 = vmatpush1.msra.mxu0 0.0
    %2035 = vmatprep.subr.mxu0 0.0
    %2036 = vmatpush1.msra.mxu0 0.0
    %2037 = vmatprep.subr.mxu0 0.0
    %2038 = vmatpush1.msra.mxu0 0.0
    %2039 = vmatprep.subr.mxu0 0.0
    %2040 = vmatpush1.msra.mxu0 0.0
    %2041 = vmatprep.subr.mxu0 0.0
    %2042 = vmatpush1.msra.mxu0 0.0
    %2043 = vmatprep.subr.mxu0 0.0
    %2044 = vmatpush1.msra.mxu0 0.0
    %2045 = vmatprep.subr.mxu0 0.0
    %2046 = vmatpush1.msra.mxu0 0.0
    %2047 = vmatprep.subr.mxu0 0.0
    %2048 = vmatpush1.msra.mxu0 0.0
    %2049 = vmatprep.subr.mxu0 0.0
    %2050 = vmatpush1.msra.mxu0 0.0
    %2051 = vmatprep.mubr.f32.mxu0 0.0
    %2052 = vmatmul.mubr.f32.gmra.mrb[0].mxu0 %v1449
    %v2053 = vpop.f32.mrb[0].mxu0
    %v2054 = vadd.f32 %v913, %v2053
    %v2055 = vpop.f32.mrb[0].mxu0
    %2056 = vdwg.mxu0
    %2057 = vmatprep.subr.mxu0 %v1060
    %2058 = vmatpush1.msra.mxu0 %v1059
    %2059 = vmatprep.subr.mxu0 %v1063
    %2060 = vmatpush1.msra.mxu0 %v1062
    %2061 = vmatprep.subr.mxu0 %v1066
    %2062 = vmatpush1.msra.mxu0 %v1065
    %2063 = vmatprep.subr.mxu0 %v1069
    %2064 = vmatpush1.msra.mxu0 %v1068
    %2065 = vmatprep.subr.mxu0 %v1072
    %2066 = vmatpush1.msra.mxu0 %v1071
    %2067 = vmatprep.subr.mxu0 %v1075
    %2068 = vmatpush1.msra.mxu0 %v1074
    %2069 = vmatprep.subr.mxu0 %v1078
    %2070 = vmatpush1.msra.mxu0 %v1077
    %2071 = vmatprep.subr.mxu0 %v1081
    %2072 = vmatpush1.msra.mxu0 %v1080
    %2073 = vmatprep.subr.mxu0 %v1084
    %2074 = vmatpush1.msra.mxu0 %v1083
    %2075 = vmatprep.subr.mxu0 %v1087
    %2076 = vmatpush1.msra.mxu0 %v1086
    %2077 = vmatprep.subr.mxu0 %v1090
    %2078 = vmatpush1.msra.mxu0 %v1089
    %2079 = vmatprep.subr.mxu0 %v1093
    %2080 = vmatpush1.msra.mxu0 %v1092
    %2081 = vmatprep.subr.mxu0 %v1096
    %2082 = vmatpush1.msra.mxu0 %v1095
    %2083 = vmatprep.subr.mxu0 %v1099
    %2084 = vmatpush1.msra.mxu0 %v1098
    %2085 = vmatprep.subr.mxu0 %v1102
    %2086 = vmatpush1.msra.mxu0 %v1101
    %2087 = vmatprep.subr.mxu0 %v1105
    %2088 = vmatpush1.msra.mxu0 %v1104
    %2089 = vmatprep.subr.mxu0 0.0
    %2090 = vmatpush1.msra.mxu0 0.0
    %2091 = vmatprep.subr.mxu0 0.0
    %2092 = vmatpush1.msra.mxu0 0.0
    %2093 = vmatprep.subr.mxu0 0.0
    %2094 = vmatpush1.msra.mxu0 0.0
    %2095 = vmatprep.subr.mxu0 0.0
    %2096 = vmatpush1.msra.mxu0 0.0
    %2097 = vmatprep.subr.mxu0 0.0
    %2098 = vmatpush1.msra.mxu0 0.0
    %2099 = vmatprep.subr.mxu0 0.0
    %2100 = vmatpush1.msra.mxu0 0.0
    %2101 = vmatprep.subr.mxu0 0.0
    %2102 = vmatpush1.msra.mxu0 0.0
    %2103 = vmatprep.subr.mxu0 0.0
    %2104 = vmatpush1.msra.mxu0 0.0
    %2105 = vmatprep.subr.mxu0 0.0
    %2106 = vmatpush1.msra.mxu0 0.0
    %2107 = vmatprep.subr.mxu0 0.0
    %2108 = vmatpush1.msra.mxu0 0.0
    %2109 = vmatprep.subr.mxu0 0.0
    %2110 = vmatpush1.msra.mxu0 0.0
    %2111 = vmatprep.subr.mxu0 0.0
    %2112 = vmatpush1.msra.mxu0 0.0
    %2113 = vmatprep.subr.mxu0 0.0
    %2114 = vmatpush1.msra.mxu0 0.0
    %2115 = vmatprep.subr.mxu0 0.0
    %2116 = vmatpush1.msra.mxu0 0.0
    %2117 = vmatprep.subr.mxu0 0.0
    %2118 = vmatpush1.msra.mxu0 0.0
    %2119 = vmatprep.subr.mxu0 0.0
    %2120 = vmatpush1.msra.mxu0 0.0
    %2121 = vmatprep.mubr.f32.mxu0 0.0
    %2122 = vmatmul.mubr.f32.gmra.mrb[0].mxu0 %v1751
    %v2123 = vpop.f32.mrb[0].mxu0
    %v2124 = vadd.f32 %v1113, %v2123
    %v2125 = vpop.f32.mrb[0].mxu0
    %v2126 = vadd.f32 %v1117, %v2125
    %2127 = vdwg.mxu0
    %2128 = vmatprep.subr.mxu0 0.0
    %2129 = vmatpush1.msra.mxu0 %v1061
    %2130 = vmatprep.subr.mxu0 0.0
    %2131 = vmatpush1.msra.mxu0 %v1064
    %2132 = vmatprep.subr.mxu0 0.0
    %2133 = vmatpush1.msra.mxu0 %v1067
    %2134 = vmatprep.subr.mxu0 0.0
    %2135 = vmatpush1.msra.mxu0 %v1070
    %2136 = vmatprep.subr.mxu0 0.0
    %2137 = vmatpush1.msra.mxu0 %v1073
    %2138 = vmatprep.subr.mxu0 0.0
    %2139 = vmatpush1.msra.mxu0 %v1076
    %2140 = vmatprep.subr.mxu0 0.0
    %2141 = vmatpush1.msra.mxu0 %v1079
    %2142 = vmatprep.subr.mxu0 0.0
    %2143 = vmatpush1.msra.mxu0 %v1082
    %2144 = vmatprep.subr.mxu0 0.0
    %2145 = vmatpush1.msra.mxu0 %v1085
    %2146 = vmatprep.subr.mxu0 0.0
    %2147 = vmatpush1.msra.mxu0 %v1088
    %2148 = vmatprep.subr.mxu0 0.0
    %2149 = vmatpush1.msra.mxu0 %v1091
    %2150 = vmatprep.subr.mxu0 0.0
    %2151 = vmatpush1.msra.mxu0 %v1094
    %2152 = vmatprep.subr.mxu0 0.0
    %2153 = vmatpush1.msra.mxu0 %v1097
    %2154 = vmatprep.subr.mxu0 0.0
    %2155 = vmatpush1.msra.mxu0 %v1100
    %2156 = vmatprep.subr.mxu0 0.0
    %2157 = vmatpush1.msra.mxu0 %v1103
    %2158 = vmatprep.subr.mxu0 0.0
    %2159 = vmatpush1.msra.mxu0 %v1106
    %2160 = vmatprep.subr.mxu0 0.0
    %2161 = vmatpush1.msra.mxu0 0.0
    %2162 = vmatprep.subr.mxu0 0.0
    %2163 = vmatpush1.msra.mxu0 0.0
    %2164 = vmatprep.subr.mxu0 0.0
    %2165 = vmatpush1.msra.mxu0 0.0
    %2166 = vmatprep.subr.mxu0 0.0
    %2167 = vmatpush1.msra.mxu0 0.0
    %2168 = vmatprep.subr.mxu0 0.0
    %2169 = vmatpush1.msra.mxu0 0.0
    %2170 = vmatprep.subr.mxu0 0.0
    %2171 = vmatpush1.msra.mxu0 0.0
    %2172 = vmatprep.subr.mxu0 0.0
    %2173 = vmatpush1.msra.mxu0 0.0
    %2174 = vmatprep.subr.mxu0 0.0
    %2175 = vmatpush1.msra.mxu0 0.0
    %2176 = vmatprep.subr.mxu0 0.0
    %2177 = vmatpush1.msra.mxu0 0.0
    %2178 = vmatprep.subr.mxu0 0.0
    %2179 = vmatpush1.msra.mxu0 0.0
    %2180 = vmatprep.subr.mxu0 0.0
    %2181 = vmatpush1.msra.mxu0 0.0
    %2182 = vmatprep.subr.mxu0 0.0
    %2183 = vmatpush1.msra.mxu0 0.0
    %2184 = vmatprep.subr.mxu0 0.0
    %2185 = vmatpush1.msra.mxu0 0.0
    %2186 = vmatprep.subr.mxu0 0.0
    %2187 = vmatpush1.msra.mxu0 0.0
    %2188 = vmatprep.subr.mxu0 0.0
    %2189 = vmatpush1.msra.mxu0 0.0
    %2190 = vmatprep.subr.mxu0 0.0
    %2191 = vmatpush1.msra.mxu0 0.0
    %2192 = vmatprep.mubr.f32.mxu0 0.0
    %2193 = vmatmul.mubr.f32.gmra.mrb[0].mxu0 %v1751
    %v2194 = vpop.f32.mrb[0].mxu0
    %v2195 = vadd.f32 %v1121, %v2194
    %v2196 = vpop.f32.mrb[0].mxu0
    %2197 = vdwg.mxu0
    %v2198 = vadd.f32 %v1983, %v2124
    %v2199 = vxor.u32 %v2198, 2147483648
    %v2200 = vmul.f32 %v2199, 1.442695
    %v2201 = vpow.pop %v2200
    %v2202 = vadd.f32 %v2201, 1.0
    %v2203 = vrcp.pop %v2202
    %v2204 = vmul.f32 1.0, %v2203
    %v2205 = vadd.f32 %v1985, %v2126
    %v2206 = vxor.u32 %v2205, 2147483648
    %v2207 = vmul.f32 %v2206, 1.442695
    %v2208 = vpow.pop %v2207
    %v2209 = vadd.f32 %v2208, 1.0
    %v2210 = vrcp.pop %v2209
    %v2211 = vmul.f32 1.0, %v2210
    %v2212 = vmul.f32 %v2204, %v2195
    %v2213 = vadd.f32 %v2054, %v2212
    %v2214 = vtanh.pop %v2213
    %v2215 = vsub.f32 %v1751, %v2214
    %v2216 = vmul.f32 %v2211, %v2215
    %v2217 = vadd.f32 %v2214, %v2216
    %v2218 = vld [vmem:[#allocation2 + $0x60] sm:$0xff]
    %v2219 = vld [vmem:[#allocation2 + $0x68] sm:$0xff]
    %v2220 = vld [vmem:[#allocation2 + $0x70] sm:$0xff]
    %2221 = vmatprep.subr.mxu0 %v461
    %2222 = vmatpush1.msra.mxu0 %v460
    %2223 = vmatprep.subr.mxu0 %v464
    %2224 = vmatpush1.msra.mxu0 %v463
    %2225 = vmatprep.subr.mxu0 %v467
    %2226 = vmatpush1.msra.mxu0 %v466
    %2227 = vmatprep.subr.mxu0 %v470
    %2228 = vmatpush1.msra.mxu0 %v469
    %2229 = vmatprep.subr.mxu0 %v473
    %2230 = vmatpush1.msra.mxu0 %v472
    %2231 = vmatprep.subr.mxu0 %v476
    %2232 = vmatpush1.msra.mxu0 %v475
    %2233 = vmatprep.subr.mxu0 %v479
    %2234 = vmatpush1.msra.mxu0 %v478
    %2235 = vmatprep.subr.mxu0 %v482
    %2236 = vmatpush1.msra.mxu0 %v481
    %2237 = vmatprep.subr.mxu0 %v485
    %2238 = vmatpush1.msra.mxu0 %v484
    %2239 = vmatprep.subr.mxu0 %v488
    %2240 = vmatpush1.msra.mxu0 %v487
    %2241 = vmatprep.subr.mxu0 %v491
    %2242 = vmatpush1.msra.mxu0 %v490
    %2243 = vmatprep.subr.mxu0 %v494
    %2244 = vmatpush1.msra.mxu0 %v493
    %2245 = vmatprep.subr.mxu0 %v497
    %2246 = vmatpush1.msra.mxu0 %v496
    %2247 = vmatprep.subr.mxu0 %v500
    %2248 = vmatpush1.msra.mxu0 %v499
    %2249 = vmatprep.subr.mxu0 %v503
    %2250 = vmatpush1.msra.mxu0 %v502
    %2251 = vmatprep.subr.mxu0 %v506
    %2252 = vmatpush1.msra.mxu0 %v505
    %2253 = vmatprep.subr.mxu0 0.0
    %2254 = vmatpush1.msra.mxu0 0.0
    %2255 = vmatprep.subr.mxu0 0.0
    %2256 = vmatpush1.msra.mxu0 0.0
    %2257 = vmatprep.subr.mxu0 0.0
    %2258 = vmatpush1.msra.mxu0 0.0
    %2259 = vmatprep.subr.mxu0 0.0
    %2260 = vmatpush1.msra.mxu0 0.0
    %2261 = vmatprep.subr.mxu0 0.0
    %2262 = vmatpush1.msra.mxu0 0.0
    %2263 = vmatprep.subr.mxu0 0.0
    %2264 = vmatpush1.msra.mxu0 0.0
    %2265 = vmatprep.subr.mxu0 0.0
    %2266 = vmatpush1.msra.mxu0 0.0
    %2267 = vmatprep.subr.mxu0 0.0
    %2268 = vmatpush1.msra.mxu0 0.0
    %2269 = vmatprep.subr.mxu0 0.0
    %2270 = vmatpush1.msra.mxu0 0.0
    %2271 = vmatprep.subr.mxu0 0.0
    %2272 = vmatpush1.msra.mxu0 0.0
    %2273 = vmatprep.subr.mxu0 0.0
    %2274 = vmatpush1.msra.mxu0 0.0
    %2275 = vmatprep.subr.mxu0 0.0
    %2276 = vmatpush1.msra.mxu0 0.0
    %2277 = vmatprep.subr.mxu0 0.0
    %2278 = vmatpush1.msra.mxu0 0.0
    %2279 = vmatprep.subr.mxu0 0.0
    %2280 = vmatpush1.msra.mxu0 0.0
    %2281 = vmatprep.subr.mxu0 0.0
    %2282 = vmatpush1.msra.mxu0 0.0
    %2283 = vmatprep.subr.mxu0 0.0
    %2284 = vmatpush1.msra.mxu0 0.0
    %2285 = vmatprep.mubr.f32.mxu0 0.0
    %2286 = vmatmul.mubr.f32.gmra.mrb[0].mxu0 %v1915
    %v2287 = vpop.f32.mrb[0].mxu0
    %v2288 = vadd.f32 %v513, %v2287
    %v2289 = vpop.f32.mrb[0].mxu0
    %v2290 = vadd.f32 %v517, %v2289
    %2291 = vdwg.mxu0
    %2292 = vmatprep.subr.mxu0 0.0
    %2293 = vmatpush1.msra.mxu0 %v462
    %2294 = vmatprep.subr.mxu0 0.0
    %2295 = vmatpush1.msra.mxu0 %v465
    %2296 = vmatprep.subr.mxu0 0.0
    %2297 = vmatpush1.msra.mxu0 %v468
    %2298 = vmatprep.subr.mxu0 0.0
    %2299 = vmatpush1.msra.mxu0 %v471
    %2300 = vmatprep.subr.mxu0 0.0
    %2301 = vmatpush1.msra.mxu0 %v474
    %2302 = vmatprep.subr.mxu0 0.0
    %2303 = vmatpush1.msra.mxu0 %v477
    %2304 = vmatprep.subr.mxu0 0.0
    %2305 = vmatpush1.msra.mxu0 %v480
    %2306 = vmatprep.subr.mxu0 0.0
    %2307 = vmatpush1.msra.mxu0 %v483
    %2308 = vmatprep.subr.mxu0 0.0
    %2309 = vmatpush1.msra.mxu0 %v486
    %2310 = vmatprep.subr.mxu0 0.0
    %2311 = vmatpush1.msra.mxu0 %v489
    %2312 = vmatprep.subr.mxu0 0.0
    %2313 = vmatpush1.msra.mxu0 %v492
    %2314 = vmatprep.subr.mxu0 0.0
    %2315 = vmatpush1.msra.mxu0 %v495
    %2316 = vmatprep.subr.mxu0 0.0
    %2317 = vmatpush1.msra.mxu0 %v498
    %2318 = vmatprep.subr.mxu0 0.0
    %2319 = vmatpush1.msra.mxu0 %v501
    %2320 = vmatprep.subr.mxu0 0.0
    %2321 = vmatpush1.msra.mxu0 %v504
    %2322 = vmatprep.subr.mxu0 0.0
    %2323 = vmatpush1.msra.mxu0 %v507
    %2324 = vmatprep.subr.mxu0 0.0
    %2325 = vmatpush1.msra.mxu0 0.0
    %2326 = vmatprep.subr.mxu0 0.0
    %2327 = vmatpush1.msra.mxu0 0.0
    %2328 = vmatprep.subr.mxu0 0.0
    %2329 = vmatpush1.msra.mxu0 0.0
    %2330 = vmatprep.subr.mxu0 0.0
    %2331 = vmatpush1.msra.mxu0 0.0
    %2332 = vmatprep.subr.mxu0 0.0
    %2333 = vmatpush1.msra.mxu0 0.0
    %2334 = vmatprep.subr.mxu0 0.0
    %2335 = vmatpush1.msra.mxu0 0.0
    %2336 = vmatprep.subr.mxu0 0.0
    %2337 = vmatpush1.msra.mxu0 0.0
    %2338 = vmatprep.subr.mxu0 0.0
    %2339 = vmatpush1.msra.mxu0 0.0
    %2340 = vmatprep.subr.mxu0 0.0
    %2341 = vmatpush1.msra.mxu0 0.0
    %2342 = vmatprep.subr.mxu0 0.0
    %2343 = vmatpush1.msra.mxu0 0.0
    %2344 = vmatprep.subr.mxu0 0.0
    %2345 = vmatpush1.msra.mxu0 0.0
    %2346 = vmatprep.subr.mxu0 0.0
    %2347 = vmatpush1.msra.mxu0 0.0
    %2348 = vmatprep.subr.mxu0 0.0
    %2349 = vmatpush1.msra.mxu0 0.0
    %2350 = vmatprep.subr.mxu0 0.0
    %2351 = vmatpush1.msra.mxu0 0.0
    %2352 = vmatprep.subr.mxu0 0.0
    %2353 = vmatpush1.msra.mxu0 0.0
    %2354 = vmatprep.subr.mxu0 0.0
    %2355 = vmatpush1.msra.mxu0 0.0
    %2356 = vmatprep.mubr.f32.mxu0 0.0
    %2357 = vmatmul.mubr.f32.gmra.mrb[0].mxu0 %v1915
    %v2358 = vpop.f32.mrb[0].mxu0
    %v2359 = vadd.f32 %v521, %v2358
    %v2360 = vpop.f32.mrb[0].mxu0
    %2361 = vdwg.mxu0
    %v2362 = vadd.f32 %v2218, %v2288
    %v2363 = vxor.u32 %v2362, 2147483648
    %v2364 = vmul.f32 %v2363, 1.442695
    %v2365 = vpow.pop %v2364
    %v2366 = vadd.f32 %v2365, 1.0
    %v2367 = vrcp.pop %v2366
    %v2368 = vmul.f32 1.0, %v2367
    %v2369 = vadd.f32 %v2219, %v2290
    %v2370 = vxor.u32 %v2369, 2147483648
    %v2371 = vmul.f32 %v2370, 1.442695
    %v2372 = vpow.pop %v2371
    %v2373 = vadd.f32 %v2372, 1.0
    %v2374 = vrcp.pop %v2373
    %v2375 = vmul.f32 1.0, %v2374
    %v2376 = vmul.f32 %v2368, %v2359
    %v2377 = vadd.f32 %v2220, %v2376
    %v2378 = vtanh.pop %v2377
    %v2379 = vsub.f32 %v1915, %v2378
    %v2380 = vmul.f32 %v2375, %v2379
    %v2381 = vadd.f32 %v2378, %v2380
    %2382 = vmatprep.subr.mxu0 %v852
    %2383 = vmatpush1.msra.mxu0 %v851
    %2384 = vmatprep.subr.mxu0 %v855
    %2385 = vmatpush1.msra.mxu0 %v854
    %2386 = vmatprep.subr.mxu0 %v858
    %2387 = vmatpush1.msra.mxu0 %v857
    %2388 = vmatprep.subr.mxu0 %v861
    %2389 = vmatpush1.msra.mxu0 %v860
    %2390 = vmatprep.subr.mxu0 %v864
    %2391 = vmatpush1.msra.mxu0 %v863
    %2392 = vmatprep.subr.mxu0 %v867
    %2393 = vmatpush1.msra.mxu0 %v866
    %2394 = vmatprep.subr.mxu0 %v870
    %2395 = vmatpush1.msra.mxu0 %v869
    %2396 = vmatprep.subr.mxu0 %v873
    %2397 = vmatpush1.msra.mxu0 %v872
    %2398 = vmatprep.subr.mxu0 %v876
    %2399 = vmatpush1.msra.mxu0 %v875
    %2400 = vmatprep.subr.mxu0 %v879
    %2401 = vmatpush1.msra.mxu0 %v878
    %2402 = vmatprep.subr.mxu0 %v882
    %2403 = vmatpush1.msra.mxu0 %v881
    %2404 = vmatprep.subr.mxu0 %v885
    %2405 = vmatpush1.msra.mxu0 %v884
    %2406 = vmatprep.subr.mxu0 %v888
    %2407 = vmatpush1.msra.mxu0 %v887
    %2408 = vmatprep.subr.mxu0 %v891
    %2409 = vmatpush1.msra.mxu0 %v890
    %2410 = vmatprep.subr.mxu0 %v894
    %2411 = vmatpush1.msra.mxu0 %v893
    %2412 = vmatprep.subr.mxu0 %v897
    %2413 = vmatpush1.msra.mxu0 %v896
    %2414 = vmatprep.subr.mxu0 0.0
    %2415 = vmatpush1.msra.mxu0 0.0
    %2416 = vmatprep.subr.mxu0 0.0
    %2417 = vmatpush1.msra.mxu0 0.0
    %2418 = vmatprep.subr.mxu0 0.0
    %2419 = vmatpush1.msra.mxu0 0.0
    %2420 = vmatprep.subr.mxu0 0.0
    %2421 = vmatpush1.msra.mxu0 0.0
    %2422 = vmatprep.subr.mxu0 0.0
    %2423 = vmatpush1.msra.mxu0 0.0
    %2424 = vmatprep.subr.mxu0 0.0
    %2425 = vmatpush1.msra.mxu0 0.0
    %2426 = vmatprep.subr.mxu0 0.0
    %2427 = vmatpush1.msra.mxu0 0.0
    %2428 = vmatprep.subr.mxu0 0.0
    %2429 = vmatpush1.msra.mxu0 0.0
    %2430 = vmatprep.subr.mxu0 0.0
    %2431 = vmatpush1.msra.mxu0 0.0
    %2432 = vmatprep.subr.mxu0 0.0
    %2433 = vmatpush1.msra.mxu0 0.0
    %2434 = vmatprep.subr.mxu0 0.0
    %2435 = vmatpush1.msra.mxu0 0.0
    %2436 = vmatprep.subr.mxu0 0.0
    %2437 = vmatpush1.msra.mxu0 0.0
    %2438 = vmatprep.subr.mxu0 0.0
    %2439 = vmatpush1.msra.mxu0 0.0
    %2440 = vmatprep.subr.mxu0 0.0
    %2441 = vmatpush1.msra.mxu0 0.0
    %2442 = vmatprep.subr.mxu0 0.0
    %2443 = vmatpush1.msra.mxu0 0.0
    %2444 = vmatprep.subr.mxu0 0.0
    %2445 = vmatpush1.msra.mxu0 0.0
    %2446 = vmatprep.mubr.f32.mxu0 0.0
    %2447 = vmatmul.mubr.f32.gmra.mrb[0].mxu0 %v1915
    %v2448 = vpop.f32.mrb[0].mxu0
    %v2449 = vadd.f32 %v905, %v2448
    %v2450 = vpop.f32.mrb[0].mxu0
    %v2451 = vadd.f32 %v909, %v2450
    %2452 = vdwg.mxu0
    %2453 = vmatprep.subr.mxu0 0.0
    %2454 = vmatpush1.msra.mxu0 %v853
    %2455 = vmatprep.subr.mxu0 0.0
    %2456 = vmatpush1.msra.mxu0 %v856
    %2457 = vmatprep.subr.mxu0 0.0
    %2458 = vmatpush1.msra.mxu0 %v859
    %2459 = vmatprep.subr.mxu0 0.0
    %2460 = vmatpush1.msra.mxu0 %v862
    %2461 = vmatprep.subr.mxu0 0.0
    %2462 = vmatpush1.msra.mxu0 %v865
    %2463 = vmatprep.subr.mxu0 0.0
    %2464 = vmatpush1.msra.mxu0 %v868
    %2465 = vmatprep.subr.mxu0 0.0
    %2466 = vmatpush1.msra.mxu0 %v871
    %2467 = vmatprep.subr.mxu0 0.0
    %2468 = vmatpush1.msra.mxu0 %v874
    %2469 = vmatprep.subr.mxu0 0.0
    %2470 = vmatpush1.msra.mxu0 %v877
    %2471 = vmatprep.subr.mxu0 0.0
    %2472 = vmatpush1.msra.mxu0 %v880
    %2473 = vmatprep.subr.mxu0 0.0
    %2474 = vmatpush1.msra.mxu0 %v883
    %2475 = vmatprep.subr.mxu0 0.0
    %2476 = vmatpush1.msra.mxu0 %v886
    %2477 = vmatprep.subr.mxu0 0.0
    %2478 = vmatpush1.msra.mxu0 %v889
    %2479 = vmatprep.subr.mxu0 0.0
    %2480 = vmatpush1.msra.mxu0 %v892
    %2481 = vmatprep.subr.mxu0 0.0
    %2482 = vmatpush1.msra.mxu0 %v895
    %2483 = vmatprep.subr.mxu0 0.0
    %2484 = vmatpush1.msra.mxu0 %v898
    %2485 = vmatprep.subr.mxu0 0.0
    %2486 = vmatpush1.msra.mxu0 0.0
    %2487 = vmatprep.subr.mxu0 0.0
    %2488 = vmatpush1.msra.mxu0 0.0
    %2489 = vmatprep.subr.mxu0 0.0
    %2490 = vmatpush1.msra.mxu0 0.0
    %2491 = vmatprep.subr.mxu0 0.0
    %2492 = vmatpush1.msra.mxu0 0.0
    %2493 = vmatprep.subr.mxu0 0.0
    %2494 = vmatpush1.msra.mxu0 0.0
    %2495 = vmatprep.subr.mxu0 0.0
    %2496 = vmatpush1.msra.mxu0 0.0
    %2497 = vmatprep.subr.mxu0 0.0
    %2498 = vmatpush1.msra.mxu0 0.0
    %2499 = vmatprep.subr.mxu0 0.0
    %2500 = vmatpush1.msra.mxu0 0.0
    %2501 = vmatprep.subr.mxu0 0.0
    %2502 = vmatpush1.msra.mxu0 0.0
    %2503 = vmatprep.subr.mxu0 0.0
    %2504 = vmatpush1.msra.mxu0 0.0
    %2505 = vmatprep.subr.mxu0 0.0
    %2506 = vmatpush1.msra.mxu0 0.0
    %2507 = vmatprep.subr.mxu0 0.0
    %2508 = vmatpush1.msra.mxu0 0.0
    %2509 = vmatprep.subr.mxu0 0.0
    %2510 = vmatpush1.msra.mxu0 0.0
    %2511 = vmatprep.subr.mxu0 0.0
    %2512 = vmatpush1.msra.mxu0 0.0
    %2513 = vmatprep.subr.mxu0 0.0
    %2514 = vmatpush1.msra.mxu0 0.0
    %2515 = vmatprep.subr.mxu0 0.0
    %2516 = vmatpush1.msra.mxu0 0.0
    %2517 = vmatprep.mubr.f32.mxu0 0.0
    %2518 = vmatmul.mubr.f32.gmra.mrb[0].mxu0 %v1915
    %v2519 = vpop.f32.mrb[0].mxu0
    %v2520 = vadd.f32 %v913, %v2519
    %v2521 = vpop.f32.mrb[0].mxu0
    %2522 = vdwg.mxu0
    %2523 = vmatprep.subr.mxu0 %v1060
    %2524 = vmatpush1.msra.mxu0 %v1059
    %2525 = vmatprep.subr.mxu0 %v1063
    %2526 = vmatpush1.msra.mxu0 %v1062
    %2527 = vmatprep.subr.mxu0 %v1066
    %2528 = vmatpush1.msra.mxu0 %v1065
    %2529 = vmatprep.subr.mxu0 %v1069
    %2530 = vmatpush1.msra.mxu0 %v1068
    %2531 = vmatprep.subr.mxu0 %v1072
    %2532 = vmatpush1.msra.mxu0 %v1071
    %2533 = vmatprep.subr.mxu0 %v1075
    %2534 = vmatpush1.msra.mxu0 %v1074
    %2535 = vmatprep.subr.mxu0 %v1078
    %2536 = vmatpush1.msra.mxu0 %v1077
    %2537 = vmatprep.subr.mxu0 %v1081
    %2538 = vmatpush1.msra.mxu0 %v1080
    %2539 = vmatprep.subr.mxu0 %v1084
    %2540 = vmatpush1.msra.mxu0 %v1083
    %2541 = vmatprep.subr.mxu0 %v1087
    %2542 = vmatpush1.msra.mxu0 %v1086
    %2543 = vmatprep.subr.mxu0 %v1090
    %2544 = vmatpush1.msra.mxu0 %v1089
    %2545 = vmatprep.subr.mxu0 %v1093
    %2546 = vmatpush1.msra.mxu0 %v1092
    %2547 = vmatprep.subr.mxu0 %v1096
    %2548 = vmatpush1.msra.mxu0 %v1095
    %2549 = vmatprep.subr.mxu0 %v1099
    %2550 = vmatpush1.msra.mxu0 %v1098
    %2551 = vmatprep.subr.mxu0 %v1102
    %2552 = vmatpush1.msra.mxu0 %v1101
    %2553 = vmatprep.subr.mxu0 %v1105
    %2554 = vmatpush1.msra.mxu0 %v1104
    %2555 = vmatprep.subr.mxu0 0.0
    %2556 = vmatpush1.msra.mxu0 0.0
    %2557 = vmatprep.subr.mxu0 0.0
    %2558 = vmatpush1.msra.mxu0 0.0
    %2559 = vmatprep.subr.mxu0 0.0
    %2560 = vmatpush1.msra.mxu0 0.0
    %2561 = vmatprep.subr.mxu0 0.0
    %2562 = vmatpush1.msra.mxu0 0.0
    %2563 = vmatprep.subr.mxu0 0.0
    %2564 = vmatpush1.msra.mxu0 0.0
    %2565 = vmatprep.subr.mxu0 0.0
    %2566 = vmatpush1.msra.mxu0 0.0
    %2567 = vmatprep.subr.mxu0 0.0
    %2568 = vmatpush1.msra.mxu0 0.0
    %2569 = vmatprep.subr.mxu0 0.0
    %2570 = vmatpush1.msra.mxu0 0.0
    %2571 = vmatprep.subr.mxu0 0.0
    %2572 = vmatpush1.msra.mxu0 0.0
    %2573 = vmatprep.subr.mxu0 0.0
    %2574 = vmatpush1.msra.mxu0 0.0
    %2575 = vmatprep.subr.mxu0 0.0
    %2576 = vmatpush1.msra.mxu0 0.0
    %2577 = vmatprep.subr.mxu0 0.0
    %2578 = vmatpush1.msra.mxu0 0.0
    %2579 = vmatprep.subr.mxu0 0.0
    %2580 = vmatpush1.msra.mxu0 0.0
    %2581 = vmatprep.subr.mxu0 0.0
    %2582 = vmatpush1.msra.mxu0 0.0
    %2583 = vmatprep.subr.mxu0 0.0
    %2584 = vmatpush1.msra.mxu0 0.0
    %2585 = vmatprep.subr.mxu0 0.0
    %2586 = vmatpush1.msra.mxu0 0.0
    %2587 = vmatprep.mubr.f32.mxu0 0.0
    %2588 = vmatmul.mubr.f32.gmra.mrb[0].mxu0 %v2217
    %v2589 = vpop.f32.mrb[0].mxu0
    %v2590 = vadd.f32 %v1113, %v2589
    %v2591 = vpop.f32.mrb[0].mxu0
    %v2592 = vadd.f32 %v1117, %v2591
    %2593 = vdwg.mxu0
    %2594 = vmatprep.subr.mxu0 0.0
    %2595 = vmatpush1.msra.mxu0 %v1061
    %2596 = vmatprep.subr.mxu0 0.0
    %2597 = vmatpush1.msra.mxu0 %v1064
    %2598 = vmatprep.subr.mxu0 0.0
    %2599 = vmatpush1.msra.mxu0 %v1067
    %2600 = vmatprep.subr.mxu0 0.0
    %2601 = vmatpush1.msra.mxu0 %v1070
    %2602 = vmatprep.subr.mxu0 0.0
    %2603 = vmatpush1.msra.mxu0 %v1073
    %2604 = vmatprep.subr.mxu0 0.0
    %2605 = vmatpush1.msra.mxu0 %v1076
    %2606 = vmatprep.subr.mxu0 0.0
    %2607 = vmatpush1.msra.mxu0 %v1079
    %2608 = vmatprep.subr.mxu0 0.0
    %2609 = vmatpush1.msra.mxu0 %v1082
    %2610 = vmatprep.subr.mxu0 0.0
    %2611 = vmatpush1.msra.mxu0 %v1085
    %2612 = vmatprep.subr.mxu0 0.0
    %2613 = vmatpush1.msra.mxu0 %v1088
    %2614 = vmatprep.subr.mxu0 0.0
    %2615 = vmatpush1.msra.mxu0 %v1091
    %2616 = vmatprep.subr.mxu0 0.0
    %2617 = vmatpush1.msra.mxu0 %v1094
    %2618 = vmatprep.subr.mxu0 0.0
    %2619 = vmatpush1.msra.mxu0 %v1097
    %2620 = vmatprep.subr.mxu0 0.0
    %2621 = vmatpush1.msra.mxu0 %v1100
    %2622 = vmatprep.subr.mxu0 0.0
    %2623 = vmatpush1.msra.mxu0 %v1103
    %2624 = vmatprep.subr.mxu0 0.0
    %2625 = vmatpush1.msra.mxu0 %v1106
    %2626 = vmatprep.subr.mxu0 0.0
    %2627 = vmatpush1.msra.mxu0 0.0
    %2628 = vmatprep.subr.mxu0 0.0
    %2629 = vmatpush1.msra.mxu0 0.0
    %2630 = vmatprep.subr.mxu0 0.0
    %2631 = vmatpush1.msra.mxu0 0.0
    %2632 = vmatprep.subr.mxu0 0.0
    %2633 = vmatpush1.msra.mxu0 0.0
    %2634 = vmatprep.subr.mxu0 0.0
    %2635 = vmatpush1.msra.mxu0 0.0
    %2636 = vmatprep.subr.mxu0 0.0
    %2637 = vmatpush1.msra.mxu0 0.0
    %2638 = vmatprep.subr.mxu0 0.0
    %2639 = vmatpush1.msra.mxu0 0.0
    %2640 = vmatprep.subr.mxu0 0.0
    %2641 = vmatpush1.msra.mxu0 0.0
    %2642 = vmatprep.subr.mxu0 0.0
    %2643 = vmatpush1.msra.mxu0 0.0
    %2644 = vmatprep.subr.mxu0 0.0
    %2645 = vmatpush1.msra.mxu0 0.0
    %2646 = vmatprep.subr.mxu0 0.0
    %2647 = vmatpush1.msra.mxu0 0.0
    %2648 = vmatprep.subr.mxu0 0.0
    %2649 = vmatpush1.msra.mxu0 0.0
    %2650 = vmatprep.subr.mxu0 0.0
    %2651 = vmatpush1.msra.mxu0 0.0
    %2652 = vmatprep.subr.mxu0 0.0
    %2653 = vmatpush1.msra.mxu0 0.0
    %2654 = vmatprep.subr.mxu0 0.0
    %2655 = vmatpush1.msra.mxu0 0.0
    %2656 = vmatprep.subr.mxu0 0.0
    %2657 = vmatpush1.msra.mxu0 0.0
    %2658 = vmatprep.mubr.f32.mxu0 0.0
    %2659 = vmatmul.mubr.f32.gmra.mrb[0].mxu0 %v2217
    %v2660 = vpop.f32.mrb[0].mxu0
    %v2661 = vadd.f32 %v1121, %v2660
    %v2662 = vpop.f32.mrb[0].mxu0
    %2663 = vdwg.mxu0
    %v2664 = vadd.f32 %v2449, %v2590
    %v2665 = vxor.u32 %v2664, 2147483648
    %v2666 = vmul.f32 %v2665, 1.442695
    %v2667 = vpow.pop %v2666
    %v2668 = vadd.f32 %v2667, 1.0
    %v2669 = vrcp.pop %v2668
    %v2670 = vmul.f32 1.0, %v2669
    %v2671 = vadd.f32 %v2451, %v2592
    %v2672 = vxor.u32 %v2671, 2147483648
    %v2673 = vmul.f32 %v2672, 1.442695
    %v2674 = vpow.pop %v2673
    %v2675 = vadd.f32 %v2674, 1.0
    %v2676 = vrcp.pop %v2675
    %v2677 = vmul.f32 1.0, %v2676
    %v2678 = vmul.f32 %v2670, %v2661
    %v2679 = vadd.f32 %v2520, %v2678
    %v2680 = vtanh.pop %v2679
    %v2681 = vsub.f32 %v2217, %v2680
    %v2682 = vmul.f32 %v2677, %v2681
    %v2683 = vadd.f32 %v2680, %v2682
    %v2684 = vld [vmem:[#allocation2 + $0x78] sm:$0xff]
    %v2685 = vld [vmem:[#allocation2 + $0x80] sm:$0xff]
    %v2686 = vld [vmem:[#allocation2 + $0x88] sm:$0xff]
    %2687 = vmatprep.subr.mxu0 %v461
    %2688 = vmatpush1.msra.mxu0 %v460
    %2689 = vmatprep.subr.mxu0 %v464
    %2690 = vmatpush1.msra.mxu0 %v463
    %2691 = vmatprep.subr.mxu0 %v467
    %2692 = vmatpush1.msra.mxu0 %v466
    %2693 = vmatprep.subr.mxu0 %v470
    %2694 = vmatpush1.msra.mxu0 %v469
    %2695 = vmatprep.subr.mxu0 %v473
    %2696 = vmatpush1.msra.mxu0 %v472
    %2697 = vmatprep.subr.mxu0 %v476
    %2698 = vmatpush1.msra.mxu0 %v475
    %2699 = vmatprep.subr.mxu0 %v479
    %2700 = vmatpush1.msra.mxu0 %v478
    %2701 = vmatprep.subr.mxu0 %v482
    %2702 = vmatpush1.msra.mxu0 %v481
    %2703 = vmatprep.subr.mxu0 %v485
    %2704 = vmatpush1.msra.mxu0 %v484
    %2705 = vmatprep.subr.mxu0 %v488
    %2706 = vmatpush1.msra.mxu0 %v487
    %2707 = vmatprep.subr.mxu0 %v491
    %2708 = vmatpush1.msra.mxu0 %v490
    %2709 = vmatprep.subr.mxu0 %v494
    %2710 = vmatpush1.msra.mxu0 %v493
    %2711 = vmatprep.subr.mxu0 %v497
    %2712 = vmatpush1.msra.mxu0 %v496
    %2713 = vmatprep.subr.mxu0 %v500
    %2714 = vmatpush1.msra.mxu0 %v499
    %2715 = vmatprep.subr.mxu0 %v503
    %2716 = vmatpush1.msra.mxu0 %v502
    %2717 = vmatprep.subr.mxu0 %v506
    %2718 = vmatpush1.msra.mxu0 %v505
    %2719 = vmatprep.subr.mxu0 0.0
    %2720 = vmatpush1.msra.mxu0 0.0
    %2721 = vmatprep.subr.mxu0 0.0
    %2722 = vmatpush1.msra.mxu0 0.0
    %2723 = vmatprep.subr.mxu0 0.0
    %2724 = vmatpush1.msra.mxu0 0.0
    %2725 = vmatprep.subr.mxu0 0.0
    %2726 = vmatpush1.msra.mxu0 0.0
    %2727 = vmatprep.subr.mxu0 0.0
    %2728 = vmatpush1.msra.mxu0 0.0
    %2729 = vmatprep.subr.mxu0 0.0
    %2730 = vmatpush1.msra.mxu0 0.0
    %2731 = vmatprep.subr.mxu0 0.0
    %2732 = vmatpush1.msra.mxu0 0.0
    %2733 = vmatprep.subr.mxu0 0.0
    %2734 = vmatpush1.msra.mxu0 0.0
    %2735 = vmatprep.subr.mxu0 0.0
    %2736 = vmatpush1.msra.mxu0 0.0
    %2737 = vmatprep.subr.mxu0 0.0
    %2738 = vmatpush1.msra.mxu0 0.0
    %2739 = vmatprep.subr.mxu0 0.0
    %2740 = vmatpush1.msra.mxu0 0.0
    %2741 = vmatprep.subr.mxu0 0.0
    %2742 = vmatpush1.msra.mxu0 0.0
    %2743 = vmatprep.subr.mxu0 0.0
    %2744 = vmatpush1.msra.mxu0 0.0
    %2745 = vmatprep.subr.mxu0 0.0
    %2746 = vmatpush1.msra.mxu0 0.0
    %2747 = vmatprep.subr.mxu0 0.0
    %2748 = vmatpush1.msra.mxu0 0.0
    %2749 = vmatprep.subr.mxu0 0.0
    %2750 = vmatpush1.msra.mxu0 0.0
    %2751 = vmatprep.mubr.f32.mxu0 0.0
    %2752 = vmatmul.mubr.f32.gmra.mrb[0].mxu0 %v2381
    %v2753 = vpop.f32.mrb[0].mxu0
    %v2754 = vadd.f32 %v513, %v2753
    %v2755 = vpop.f32.mrb[0].mxu0
    %v2756 = vadd.f32 %v517, %v2755
    %2757 = vdwg.mxu0
    %2758 = vmatprep.subr.mxu0 0.0
    %2759 = vmatpush1.msra.mxu0 %v462
    %2760 = vmatprep.subr.mxu0 0.0
    %2761 = vmatpush1.msra.mxu0 %v465
    %2762 = vmatprep.subr.mxu0 0.0
    %2763 = vmatpush1.msra.mxu0 %v468
    %2764 = vmatprep.subr.mxu0 0.0
    %2765 = vmatpush1.msra.mxu0 %v471
    %2766 = vmatprep.subr.mxu0 0.0
    %2767 = vmatpush1.msra.mxu0 %v474
    %2768 = vmatprep.subr.mxu0 0.0
    %2769 = vmatpush1.msra.mxu0 %v477
    %2770 = vmatprep.subr.mxu0 0.0
    %2771 = vmatpush1.msra.mxu0 %v480
    %2772 = vmatprep.subr.mxu0 0.0
    %2773 = vmatpush1.msra.mxu0 %v483
    %2774 = vmatprep.subr.mxu0 0.0
    %2775 = vmatpush1.msra.mxu0 %v486
    %2776 = vmatprep.subr.mxu0 0.0
    %2777 = vmatpush1.msra.mxu0 %v489
    %2778 = vmatprep.subr.mxu0 0.0
    %2779 = vmatpush1.msra.mxu0 %v492
    %2780 = vmatprep.subr.mxu0 0.0
    %2781 = vmatpush1.msra.mxu0 %v495
    %2782 = vmatprep.subr.mxu0 0.0
    %2783 = vmatpush1.msra.mxu0 %v498
    %2784 = vmatprep.subr.mxu0 0.0
    %2785 = vmatpush1.msra.mxu0 %v501
    %2786 = vmatprep.subr.mxu0 0.0
    %2787 = vmatpush1.msra.mxu0 %v504
    %2788 = vmatprep.subr.mxu0 0.0
    %2789 = vmatpush1.msra.mxu0 %v507
    %2790 = vmatprep.subr.mxu0 0.0
    %2791 = vmatpush1.msra.mxu0 0.0
    %2792 = vmatprep.subr.mxu0 0.0
    %2793 = vmatpush1.msra.mxu0 0.0
    %2794 = vmatprep.subr.mxu0 0.0
    %2795 = vmatpush1.msra.mxu0 0.0
    %2796 = vmatprep.subr.mxu0 0.0
    %2797 = vmatpush1.msra.mxu0 0.0
    %2798 = vmatprep.subr.mxu0 0.0
    %2799 = vmatpush1.msra.mxu0 0.0
    %2800 = vmatprep.subr.mxu0 0.0
    %2801 = vmatpush1.msra.mxu0 0.0
    %2802 = vmatprep.subr.mxu0 0.0
    %2803 = vmatpush1.msra.mxu0 0.0
    %2804 = vmatprep.subr.mxu0 0.0
    %2805 = vmatpush1.msra.mxu0 0.0
    %2806 = vmatprep.subr.mxu0 0.0
    %2807 = vmatpush1.msra.mxu0 0.0
    %2808 = vmatprep.subr.mxu0 0.0
    %2809 = vmatpush1.msra.mxu0 0.0
    %2810 = vmatprep.subr.mxu0 0.0
    %2811 = vmatpush1.msra.mxu0 0.0
    %2812 = vmatprep.subr.mxu0 0.0
    %2813 = vmatpush1.msra.mxu0 0.0
    %2814 = vmatprep.subr.mxu0 0.0
    %2815 = vmatpush1.msra.mxu0 0.0
    %2816 = vmatprep.subr.mxu0 0.0
    %2817 = vmatpush1.msra.mxu0 0.0
    %2818 = vmatprep.subr.mxu0 0.0
    %2819 = vmatpush1.msra.mxu0 0.0
    %2820 = vmatprep.subr.mxu0 0.0
    %2821 = vmatpush1.msra.mxu0 0.0
    %2822 = vmatprep.mubr.f32.mxu0 0.0
    %2823 = vmatmul.mubr.f32.gmra.mrb[0].mxu0 %v2381
    %v2824 = vpop.f32.mrb[0].mxu0
    %v2825 = vadd.f32 %v521, %v2824
    %v2826 = vpop.f32.mrb[0].mxu0
    %2827 = vdwg.mxu0
    %v2828 = vadd.f32 %v2684, %v2754
    %v2829 = vxor.u32 %v2828, 2147483648
    %v2830 = vmul.f32 %v2829, 1.442695
    %v2831 = vpow.pop %v2830
    %v2832 = vadd.f32 %v2831, 1.0
    %v2833 = vrcp.pop %v2832
    %v2834 = vmul.f32 1.0, %v2833
    %v2835 = vadd.f32 %v2685, %v2756
    %v2836 = vxor.u32 %v2835, 2147483648
    %v2837 = vmul.f32 %v2836, 1.442695
    %v2838 = vpow.pop %v2837
    %v2839 = vadd.f32 %v2838, 1.0
    %v2840 = vrcp.pop %v2839
    %v2841 = vmul.f32 1.0, %v2840
    %v2842 = vmul.f32 %v2834, %v2825
    %v2843 = vadd.f32 %v2686, %v2842
    %v2844 = vtanh.pop %v2843
    %v2845 = vsub.f32 %v2381, %v2844
    %v2846 = vmul.f32 %v2841, %v2845
    %v2847 = vadd.f32 %v2844, %v2846
    %2848 = vmatprep.subr.mxu0 %v852
    %2849 = vmatpush1.msra.mxu0 %v851
    %2850 = vmatprep.subr.mxu0 %v855
    %2851 = vmatpush1.msra.mxu0 %v854
    %2852 = vmatprep.subr.mxu0 %v858
    %2853 = vmatpush1.msra.mxu0 %v857
    %2854 = vmatprep.subr.mxu0 %v861
    %2855 = vmatpush1.msra.mxu0 %v860
    %2856 = vmatprep.subr.mxu0 %v864
    %2857 = vmatpush1.msra.mxu0 %v863
    %2858 = vmatprep.subr.mxu0 %v867
    %2859 = vmatpush1.msra.mxu0 %v866
    %2860 = vmatprep.subr.mxu0 %v870
    %2861 = vmatpush1.msra.mxu0 %v869
    %2862 = vmatprep.subr.mxu0 %v873
    %2863 = vmatpush1.msra.mxu0 %v872
    %2864 = vmatprep.subr.mxu0 %v876
    %2865 = vmatpush1.msra.mxu0 %v875
    %2866 = vmatprep.subr.mxu0 %v879
    %2867 = vmatpush1.msra.mxu0 %v878
    %2868 = vmatprep.subr.mxu0 %v882
    %2869 = vmatpush1.msra.mxu0 %v881
    %2870 = vmatprep.subr.mxu0 %v885
    %2871 = vmatpush1.msra.mxu0 %v884
    %2872 = vmatprep.subr.mxu0 %v888
    %2873 = vmatpush1.msra.mxu0 %v887
    %2874 = vmatprep.subr.mxu0 %v891
    %2875 = vmatpush1.msra.mxu0 %v890
    %2876 = vmatprep.subr.mxu0 %v894
    %2877 = vmatpush1.msra.mxu0 %v893
    %2878 = vmatprep.subr.mxu0 %v897
    %2879 = vmatpush1.msra.mxu0 %v896
    %2880 = vmatprep.subr.mxu0 0.0
    %2881 = vmatpush1.msra.mxu0 0.0
    %2882 = vmatprep.subr.mxu0 0.0
    %2883 = vmatpush1.msra.mxu0 0.0
    %2884 = vmatprep.subr.mxu0 0.0
    %2885 = vmatpush1.msra.mxu0 0.0
    %2886 = vmatprep.subr.mxu0 0.0
    %2887 = vmatpush1.msra.mxu0 0.0
    %2888 = vmatprep.subr.mxu0 0.0
    %2889 = vmatpush1.msra.mxu0 0.0
    %2890 = vmatprep.subr.mxu0 0.0
    %2891 = vmatpush1.msra.mxu0 0.0
    %2892 = vmatprep.subr.mxu0 0.0
    %2893 = vmatpush1.msra.mxu0 0.0
    %2894 = vmatprep.subr.mxu0 0.0
    %2895 = vmatpush1.msra.mxu0 0.0
    %2896 = vmatprep.subr.mxu0 0.0
    %2897 = vmatpush1.msra.mxu0 0.0
    %2898 = vmatprep.subr.mxu0 0.0
    %2899 = vmatpush1.msra.mxu0 0.0
    %2900 = vmatprep.subr.mxu0 0.0
    %2901 = vmatpush1.msra.mxu0 0.0
    %2902 = vmatprep.subr.mxu0 0.0
    %2903 = vmatpush1.msra.mxu0 0.0
    %2904 = vmatprep.subr.mxu0 0.0
    %2905 = vmatpush1.msra.mxu0 0.0
    %2906 = vmatprep.subr.mxu0 0.0
    %2907 = vmatpush1.msra.mxu0 0.0
    %2908 = vmatprep.subr.mxu0 0.0
    %2909 = vmatpush1.msra.mxu0 0.0
    %2910 = vmatprep.subr.mxu0 0.0
    %2911 = vmatpush1.msra.mxu0 0.0
    %2912 = vmatprep.mubr.f32.mxu0 0.0
    %2913 = vmatmul.mubr.f32.gmra.mrb[0].mxu0 %v2381
    %v2914 = vpop.f32.mrb[0].mxu0
    %v2915 = vadd.f32 %v905, %v2914
    %v2916 = vpop.f32.mrb[0].mxu0
    %v2917 = vadd.f32 %v909, %v2916
    %2918 = vdwg.mxu0
    %2919 = vmatprep.subr.mxu0 0.0
    %2920 = vmatpush1.msra.mxu0 %v853
    %2921 = vmatprep.subr.mxu0 0.0
    %2922 = vmatpush1.msra.mxu0 %v856
    %2923 = vmatprep.subr.mxu0 0.0
    %2924 = vmatpush1.msra.mxu0 %v859
    %2925 = vmatprep.subr.mxu0 0.0
    %2926 = vmatpush1.msra.mxu0 %v862
    %2927 = vmatprep.subr.mxu0 0.0
    %2928 = vmatpush1.msra.mxu0 %v865
    %2929 = vmatprep.subr.mxu0 0.0
    %2930 = vmatpush1.msra.mxu0 %v868
    %2931 = vmatprep.subr.mxu0 0.0
    %2932 = vmatpush1.msra.mxu0 %v871
    %2933 = vmatprep.subr.mxu0 0.0
    %2934 = vmatpush1.msra.mxu0 %v874
    %2935 = vmatprep.subr.mxu0 0.0
    %2936 = vmatpush1.msra.mxu0 %v877
    %2937 = vmatprep.subr.mxu0 0.0
    %2938 = vmatpush1.msra.mxu0 %v880
    %2939 = vmatprep.subr.mxu0 0.0
    %2940 = vmatpush1.msra.mxu0 %v883
    %2941 = vmatprep.subr.mxu0 0.0
    %2942 = vmatpush1.msra.mxu0 %v886
    %2943 = vmatprep.subr.mxu0 0.0
    %2944 = vmatpush1.msra.mxu0 %v889
    %2945 = vmatprep.subr.mxu0 0.0
    %2946 = vmatpush1.msra.mxu0 %v892
    %2947 = vmatprep.subr.mxu0 0.0
    %2948 = vmatpush1.msra.mxu0 %v895
    %2949 = vmatprep.subr.mxu0 0.0
    %2950 = vmatpush1.msra.mxu0 %v898
    %2951 = vmatprep.subr.mxu0 0.0
    %2952 = vmatpush1.msra.mxu0 0.0
    %2953 = vmatprep.subr.mxu0 0.0
    %2954 = vmatpush1.msra.mxu0 0.0
    %2955 = vmatprep.subr.mxu0 0.0
    %2956 = vmatpush1.msra.mxu0 0.0
    %2957 = vmatprep.subr.mxu0 0.0
    %2958 = vmatpush1.msra.mxu0 0.0
    %2959 = vmatprep.subr.mxu0 0.0
    %2960 = vmatpush1.msra.mxu0 0.0
    %2961 = vmatprep.subr.mxu0 0.0
    %2962 = vmatpush1.msra.mxu0 0.0
    %2963 = vmatprep.subr.mxu0 0.0
    %2964 = vmatpush1.msra.mxu0 0.0
    %2965 = vmatprep.subr.mxu0 0.0
    %2966 = vmatpush1.msra.mxu0 0.0
    %2967 = vmatprep.subr.mxu0 0.0
    %2968 = vmatpush1.msra.mxu0 0.0
    %2969 = vmatprep.subr.mxu0 0.0
    %2970 = vmatpush1.msra.mxu0 0.0
    %2971 = vmatprep.subr.mxu0 0.0
    %2972 = vmatpush1.msra.mxu0 0.0
    %2973 = vmatprep.subr.mxu0 0.0
    %2974 = vmatpush1.msra.mxu0 0.0
    %2975 = vmatprep.subr.mxu0 0.0
    %2976 = vmatpush1.msra.mxu0 0.0
    %2977 = vmatprep.subr.mxu0 0.0
    %2978 = vmatpush1.msra.mxu0 0.0
    %2979 = vmatprep.subr.mxu0 0.0
    %2980 = vmatpush1.msra.mxu0 0.0
    %2981 = vmatprep.subr.mxu0 0.0
    %2982 = vmatpush1.msra.mxu0 0.0
    %2983 = vmatprep.mubr.f32.mxu0 0.0
    %2984 = vmatmul.mubr.f32.gmra.mrb[0].mxu0 %v2381
    %v2985 = vpop.f32.mrb[0].mxu0
    %v2986 = vadd.f32 %v913, %v2985
    %v2987 = vpop.f32.mrb[0].mxu0
    %2988 = vdwg.mxu0
    %2989 = vmatprep.subr.mxu0 %v1060
    %2990 = vmatpush1.msra.mxu0 %v1059
    %2991 = vmatprep.subr.mxu0 %v1063
    %2992 = vmatpush1.msra.mxu0 %v1062
    %2993 = vmatprep.subr.mxu0 %v1066
    %2994 = vmatpush1.msra.mxu0 %v1065
    %2995 = vmatprep.subr.mxu0 %v1069
    %2996 = vmatpush1.msra.mxu0 %v1068
    %2997 = vmatprep.subr.mxu0 %v1072
    %2998 = vmatpush1.msra.mxu0 %v1071
    %2999 = vmatprep.subr.mxu0 %v1075
    %3000 = vmatpush1.msra.mxu0 %v1074
    %3001 = vmatprep.subr.mxu0 %v1078
    %3002 = vmatpush1.msra.mxu0 %v1077
    %3003 = vmatprep.subr.mxu0 %v1081
    %3004 = vmatpush1.msra.mxu0 %v1080
    %3005 = vmatprep.subr.mxu0 %v1084
    %3006 = vmatpush1.msra.mxu0 %v1083
    %3007 = vmatprep.subr.mxu0 %v1087
    %3008 = vmatpush1.msra.mxu0 %v1086
    %3009 = vmatprep.subr.mxu0 %v1090
    %3010 = vmatpush1.msra.mxu0 %v1089
    %3011 = vmatprep.subr.mxu0 %v1093
    %3012 = vmatpush1.msra.mxu0 %v1092
    %3013 = vmatprep.subr.mxu0 %v1096
    %3014 = vmatpush1.msra.mxu0 %v1095
    %3015 = vmatprep.subr.mxu0 %v1099
    %3016 = vmatpush1.msra.mxu0 %v1098
    %3017 = vmatprep.subr.mxu0 %v1102
    %3018 = vmatpush1.msra.mxu0 %v1101
    %3019 = vmatprep.subr.mxu0 %v1105
    %3020 = vmatpush1.msra.mxu0 %v1104
    %3021 = vmatprep.subr.mxu0 0.0
    %3022 = vmatpush1.msra.mxu0 0.0
    %3023 = vmatprep.subr.mxu0 0.0
    %3024 = vmatpush1.msra.mxu0 0.0
    %3025 = vmatprep.subr.mxu0 0.0
    %3026 = vmatpush1.msra.mxu0 0.0
    %3027 = vmatprep.subr.mxu0 0.0
    %3028 = vmatpush1.msra.mxu0 0.0
    %3029 = vmatprep.subr.mxu0 0.0
    %3030 = vmatpush1.msra.mxu0 0.0
    %3031 = vmatprep.subr.mxu0 0.0
    %3032 = vmatpush1.msra.mxu0 0.0
    %3033 = vmatprep.subr.mxu0 0.0
    %3034 = vmatpush1.msra.mxu0 0.0
    %3035 = vmatprep.subr.mxu0 0.0
    %3036 = vmatpush1.msra.mxu0 0.0
    %3037 = vmatprep.subr.mxu0 0.0
    %3038 = vmatpush1.msra.mxu0 0.0
    %3039 = vmatprep.subr.mxu0 0.0
    %3040 = vmatpush1.msra.mxu0 0.0
    %3041 = vmatprep.subr.mxu0 0.0
    %3042 = vmatpush1.msra.mxu0 0.0
    %3043 = vmatprep.subr.mxu0 0.0
    %3044 = vmatpush1.msra.mxu0 0.0
    %3045 = vmatprep.subr.mxu0 0.0
    %3046 = vmatpush1.msra.mxu0 0.0
    %3047 = vmatprep.subr.mxu0 0.0
    %3048 = vmatpush1.msra.mxu0 0.0
    %3049 = vmatprep.subr.mxu0 0.0
    %3050 = vmatpush1.msra.mxu0 0.0
    %3051 = vmatprep.subr.mxu0 0.0
    %3052 = vmatpush1.msra.mxu0 0.0
    %3053 = vmatprep.mubr.f32.mxu0 0.0
    %3054 = vmatmul.mubr.f32.gmra.mrb[0].mxu0 %v2683
    %v3055 = vpop.f32.mrb[0].mxu0
    %v3056 = vadd.f32 %v1113, %v3055
    %v3057 = vpop.f32.mrb[0].mxu0
    %v3058 = vadd.f32 %v1117, %v3057
    %3059 = vdwg.mxu0
    %3060 = vmatprep.subr.mxu0 0.0
    %3061 = vmatpush1.msra.mxu0 %v1061
    %3062 = vmatprep.subr.mxu0 0.0
    %3063 = vmatpush1.msra.mxu0 %v1064
    %3064 = vmatprep.subr.mxu0 0.0
    %3065 = vmatpush1.msra.mxu0 %v1067
    %3066 = vmatprep.subr.mxu0 0.0
    %3067 = vmatpush1.msra.mxu0 %v1070
    %3068 = vmatprep.subr.mxu0 0.0
    %3069 = vmatpush1.msra.mxu0 %v1073
    %3070 = vmatprep.subr.mxu0 0.0
    %3071 = vmatpush1.msra.mxu0 %v1076
    %3072 = vmatprep.subr.mxu0 0.0
    %3073 = vmatpush1.msra.mxu0 %v1079
    %3074 = vmatprep.subr.mxu0 0.0
    %3075 = vmatpush1.msra.mxu0 %v1082
    %3076 = vmatprep.subr.mxu0 0.0
    %3077 = vmatpush1.msra.mxu0 %v1085
    %3078 = vmatprep.subr.mxu0 0.0
    %3079 = vmatpush1.msra.mxu0 %v1088
    %3080 = vmatprep.subr.mxu0 0.0
    %3081 = vmatpush1.msra.mxu0 %v1091
    %3082 = vmatprep.subr.mxu0 0.0
    %3083 = vmatpush1.msra.mxu0 %v1094
    %3084 = vmatprep.subr.mxu0 0.0
    %3085 = vmatpush1.msra.mxu0 %v1097
    %3086 = vmatprep.subr.mxu0 0.0
    %3087 = vmatpush1.msra.mxu0 %v1100
    %3088 = vmatprep.subr.mxu0 0.0
    %3089 = vmatpush1.msra.mxu0 %v1103
    %3090 = vmatprep.subr.mxu0 0.0
    %3091 = vmatpush1.msra.mxu0 %v1106
    %3092 = vmatprep.subr.mxu0 0.0
    %3093 = vmatpush1.msra.mxu0 0.0
    %3094 = vmatprep.subr.mxu0 0.0
    %3095 = vmatpush1.msra.mxu0 0.0
    %3096 = vmatprep.subr.mxu0 0.0
    %3097 = vmatpush1.msra.mxu0 0.0
    %3098 = vmatprep.subr.mxu0 0.0
    %3099 = vmatpush1.msra.mxu0 0.0
    %3100 = vmatprep.subr.mxu0 0.0
    %3101 = vmatpush1.msra.mxu0 0.0
    %3102 = vmatprep.subr.mxu0 0.0
    %3103 = vmatpush1.msra.mxu0 0.0
    %3104 = vmatprep.subr.mxu0 0.0
    %3105 = vmatpush1.msra.mxu0 0.0
    %3106 = vmatprep.subr.mxu0 0.0
    %3107 = vmatpush1.msra.mxu0 0.0
    %3108 = vmatprep.subr.mxu0 0.0
    %3109 = vmatpush1.msra.mxu0 0.0
    %3110 = vmatprep.subr.mxu0 0.0
    %3111 = vmatpush1.msra.mxu0 0.0
    %3112 = vmatprep.subr.mxu0 0.0
    %3113 = vmatpush1.msra.mxu0 0.0
    %3114 = vmatprep.subr.mxu0 0.0
    %3115 = vmatpush1.msra.mxu0 0.0
    %3116 = vmatprep.subr.mxu0 0.0
    %3117 = vmatpush1.msra.mxu0 0.0
    %3118 = vmatprep.subr.mxu0 0.0
    %3119 = vmatpush1.msra.mxu0 0.0
    %3120 = vmatprep.subr.mxu0 0.0
    %3121 = vmatpush1.msra.mxu0 0.0
    %3122 = vmatprep.subr.mxu0 0.0
    %3123 = vmatpush1.msra.mxu0 0.0
    %3124 = vmatprep.mubr.f32.mxu0 0.0
    %3125 = vmatmul.mubr.f32.gmra.mrb[0].mxu0 %v2683
    %v3126 = vpop.f32.mrb[0].mxu0
    %v3127 = vadd.f32 %v1121, %v3126
    %v3128 = vpop.f32.mrb[0].mxu0
    %3129 = vdwg.mxu0
    %v3130 = vadd.f32 %v2915, %v3056
    %v3131 = vxor.u32 %v3130, 2147483648
    %v3132 = vmul.f32 %v3131, 1.442695
    %v3133 = vpow.pop %v3132
    %v3134 = vadd.f32 %v3133, 1.0
    %v3135 = vrcp.pop %v3134
    %v3136 = vmul.f32 1.0, %v3135
    %v3137 = vadd.f32 %v2917, %v3058
    %v3138 = vxor.u32 %v3137, 2147483648
    %v3139 = vmul.f32 %v3138, 1.442695
    %v3140 = vpow.pop %v3139
    %v3141 = vadd.f32 %v3140, 1.0
    %v3142 = vrcp.pop %v3141
    %v3143 = vmul.f32 1.0, %v3142
    %v3144 = vmul.f32 %v3136, %v3127
    %v3145 = vadd.f32 %v2986, %v3144
    %v3146 = vtanh.pop %v3145
    %v3147 = vsub.f32 %v2683, %v3146
    %v3148 = vmul.f32 %v3143, %v3147
    %v3149 = vadd.f32 %v3146, %v3148
    %v3150 = vld [vmem:[#allocation2 + $0x90] sm:$0xff]
    %v3151 = vld [vmem:[#allocation2 + $0x98] sm:$0xff]
    %v3152 = vld [vmem:[#allocation2 + $0xa0] sm:$0xff]
    %3153 = vmatprep.subr.mxu0 %v461
    %3154 = vmatpush1.msra.mxu0 %v460
    %3155 = vmatprep.subr.mxu0 %v464
    %3156 = vmatpush1.msra.mxu0 %v463
    %3157 = vmatprep.subr.mxu0 %v467
    %3158 = vmatpush1.msra.mxu0 %v466
    %3159 = vmatprep.subr.mxu0 %v470
    %3160 = vmatpush1.msra.mxu0 %v469
    %3161 = vmatprep.subr.mxu0 %v473
    %3162 = vmatpush1.msra.mxu0 %v472
    %3163 = vmatprep.subr.mxu0 %v476
    %3164 = vmatpush1.msra.mxu0 %v475
    %3165 = vmatprep.subr.mxu0 %v479
    %3166 = vmatpush1.msra.mxu0 %v478
    %3167 = vmatprep.subr.mxu0 %v482
    %3168 = vmatpush1.msra.mxu0 %v481
    %3169 = vmatprep.subr.mxu0 %v485
    %3170 = vmatpush1.msra.mxu0 %v484
    %3171 = vmatprep.subr.mxu0 %v488
    %3172 = vmatpush1.msra.mxu0 %v487
    %3173 = vmatprep.subr.mxu0 %v491
    %3174 = vmatpush1.msra.mxu0 %v490
    %3175 = vmatprep.subr.mxu0 %v494
    %3176 = vmatpush1.msra.mxu0 %v493
    %3177 = vmatprep.subr.mxu0 %v497
    %3178 = vmatpush1.msra.mxu0 %v496
    %3179 = vmatprep.subr.mxu0 %v500
    %3180 = vmatpush1.msra.mxu0 %v499
    %3181 = vmatprep.subr.mxu0 %v503
    %3182 = vmatpush1.msra.mxu0 %v502
    %3183 = vmatprep.subr.mxu0 %v506
    %3184 = vmatpush1.msra.mxu0 %v505
    %3185 = vmatprep.subr.mxu0 0.0
    %3186 = vmatpush1.msra.mxu0 0.0
    %3187 = vmatprep.subr.mxu0 0.0
    %3188 = vmatpush1.msra.mxu0 0.0
    %3189 = vmatprep.subr.mxu0 0.0
    %3190 = vmatpush1.msra.mxu0 0.0
    %3191 = vmatprep.subr.mxu0 0.0
    %3192 = vmatpush1.msra.mxu0 0.0
    %3193 = vmatprep.subr.mxu0 0.0
    %3194 = vmatpush1.msra.mxu0 0.0
    %3195 = vmatprep.subr.mxu0 0.0
    %3196 = vmatpush1.msra.mxu0 0.0
    %3197 = vmatprep.subr.mxu0 0.0
    %3198 = vmatpush1.msra.mxu0 0.0
    %3199 = vmatprep.subr.mxu0 0.0
    %3200 = vmatpush1.msra.mxu0 0.0
    %3201 = vmatprep.subr.mxu0 0.0
    %3202 = vmatpush1.msra.mxu0 0.0
    %3203 = vmatprep.subr.mxu0 0.0
    %3204 = vmatpush1.msra.mxu0 0.0
    %3205 = vmatprep.subr.mxu0 0.0
    %3206 = vmatpush1.msra.mxu0 0.0
    %3207 = vmatprep.subr.mxu0 0.0
    %3208 = vmatpush1.msra.mxu0 0.0
    %3209 = vmatprep.subr.mxu0 0.0
    %3210 = vmatpush1.msra.mxu0 0.0
    %3211 = vmatprep.subr.mxu0 0.0
    %3212 = vmatpush1.msra.mxu0 0.0
    %3213 = vmatprep.subr.mxu0 0.0
    %3214 = vmatpush1.msra.mxu0 0.0
    %3215 = vmatprep.subr.mxu0 0.0
    %3216 = vmatpush1.msra.mxu0 0.0
    %3217 = vmatprep.mubr.f32.mxu0 0.0
    %3218 = vmatmul.mubr.f32.gmra.mrb[0].mxu0 %v2847
    %v3219 = vpop.f32.mrb[0].mxu0
    %v3220 = vadd.f32 %v513, %v3219
    %v3221 = vpop.f32.mrb[0].mxu0
    %v3222 = vadd.f32 %v517, %v3221
    %3223 = vdwg.mxu0
    %3224 = vmatprep.subr.mxu0 0.0
    %3225 = vmatpush1.msra.mxu0 %v462
    %3226 = vmatprep.subr.mxu0 0.0
    %3227 = vmatpush1.msra.mxu0 %v465
    %3228 = vmatprep.subr.mxu0 0.0
    %3229 = vmatpush1.msra.mxu0 %v468
    %3230 = vmatprep.subr.mxu0 0.0
    %3231 = vmatpush1.msra.mxu0 %v471
    %3232 = vmatprep.subr.mxu0 0.0
    %3233 = vmatpush1.msra.mxu0 %v474
    %3234 = vmatprep.subr.mxu0 0.0
    %3235 = vmatpush1.msra.mxu0 %v477
    %3236 = vmatprep.subr.mxu0 0.0
    %3237 = vmatpush1.msra.mxu0 %v480
    %3238 = vmatprep.subr.mxu0 0.0
    %3239 = vmatpush1.msra.mxu0 %v483
    %3240 = vmatprep.subr.mxu0 0.0
    %3241 = vmatpush1.msra.mxu0 %v486
    %3242 = vmatprep.subr.mxu0 0.0
    %3243 = vmatpush1.msra.mxu0 %v489
    %3244 = vmatprep.subr.mxu0 0.0
    %3245 = vmatpush1.msra.mxu0 %v492
    %3246 = vmatprep.subr.mxu0 0.0
    %3247 = vmatpush1.msra.mxu0 %v495
    %3248 = vmatprep.subr.mxu0 0.0
    %3249 = vmatpush1.msra.mxu0 %v498
    %3250 = vmatprep.subr.mxu0 0.0
    %3251 = vmatpush1.msra.mxu0 %v501
    %3252 = vmatprep.subr.mxu0 0.0
    %3253 = vmatpush1.msra.mxu0 %v504
    %3254 = vmatprep.subr.mxu0 0.0
    %3255 = vmatpush1.msra.mxu0 %v507
    %3256 = vmatprep.subr.mxu0 0.0
    %3257 = vmatpush1.msra.mxu0 0.0
    %3258 = vmatprep.subr.mxu0 0.0
    %3259 = vmatpush1.msra.mxu0 0.0
    %3260 = vmatprep.subr.mxu0 0.0
    %3261 = vmatpush1.msra.mxu0 0.0
    %3262 = vmatprep.subr.mxu0 0.0
    %3263 = vmatpush1.msra.mxu0 0.0
    %3264 = vmatprep.subr.mxu0 0.0
    %3265 = vmatpush1.msra.mxu0 0.0
    %3266 = vmatprep.subr.mxu0 0.0
    %3267 = vmatpush1.msra.mxu0 0.0
    %3268 = vmatprep.subr.mxu0 0.0
    %3269 = vmatpush1.msra.mxu0 0.0
    %3270 = vmatprep.subr.mxu0 0.0
    %3271 = vmatpush1.msra.mxu0 0.0
    %3272 = vmatprep.subr.mxu0 0.0
    %3273 = vmatpush1.msra.mxu0 0.0
    %3274 = vmatprep.subr.mxu0 0.0
    %3275 = vmatpush1.msra.mxu0 0.0
    %3276 = vmatprep.subr.mxu0 0.0
    %3277 = vmatpush1.msra.mxu0 0.0
    %3278 = vmatprep.subr.mxu0 0.0
    %3279 = vmatpush1.msra.mxu0 0.0
    %3280 = vmatprep.subr.mxu0 0.0
    %3281 = vmatpush1.msra.mxu0 0.0
    %3282 = vmatprep.subr.mxu0 0.0
    %3283 = vmatpush1.msra.mxu0 0.0
    %3284 = vmatprep.subr.mxu0 0.0
    %3285 = vmatpush1.msra.mxu0 0.0
    %3286 = vmatprep.subr.mxu0 0.0
    %3287 = vmatpush1.msra.mxu0 0.0
    %3288 = vmatprep.mubr.f32.mxu0 0.0
    %3289 = vmatmul.mubr.f32.gmra.mrb[0].mxu0 %v2847
    %v3290 = vpop.f32.mrb[0].mxu0
    %v3291 = vadd.f32 %v521, %v3290
    %v3292 = vpop.f32.mrb[0].mxu0
    %3293 = vdwg.mxu0
    %v3294 = vadd.f32 %v3150, %v3220
    %v3295 = vxor.u32 %v3294, 2147483648
    %v3296 = vmul.f32 %v3295, 1.442695
    %v3297 = vpow.pop %v3296
    %v3298 = vadd.f32 %v3297, 1.0
    %v3299 = vrcp.pop %v3298
    %v3300 = vmul.f32 1.0, %v3299
    %v3301 = vadd.f32 %v3151, %v3222
    %v3302 = vxor.u32 %v3301, 2147483648
    %v3303 = vmul.f32 %v3302, 1.442695
    %v3304 = vpow.pop %v3303
    %v3305 = vadd.f32 %v3304, 1.0
    %v3306 = vrcp.pop %v3305
    %v3307 = vmul.f32 1.0, %v3306
    %v3308 = vmul.f32 %v3300, %v3291
    %v3309 = vadd.f32 %v3152, %v3308
    %v3310 = vtanh.pop %v3309
    %v3311 = vsub.f32 %v2847, %v3310
    %v3312 = vmul.f32 %v3307, %v3311
    %v3313 = vadd.f32 %v3310, %v3312
    %3314 = vmatprep.subr.mxu0 %v852
    %3315 = vmatpush1.msra.mxu0 %v851
    %3316 = vmatprep.subr.mxu0 %v855
    %3317 = vmatpush1.msra.mxu0 %v854
    %3318 = vmatprep.subr.mxu0 %v858
    %3319 = vmatpush1.msra.mxu0 %v857
    %3320 = vmatprep.subr.mxu0 %v861
    %3321 = vmatpush1.msra.mxu0 %v860
    %3322 = vmatprep.subr.mxu0 %v864
    %3323 = vmatpush1.msra.mxu0 %v863
    %3324 = vmatprep.subr.mxu0 %v867
    %3325 = vmatpush1.msra.mxu0 %v866
    %3326 = vmatprep.subr.mxu0 %v870
    %3327 = vmatpush1.msra.mxu0 %v869
    %3328 = vmatprep.subr.mxu0 %v873
    %3329 = vmatpush1.msra.mxu0 %v872
    %3330 = vmatprep.subr.mxu0 %v876
    %3331 = vmatpush1.msra.mxu0 %v875
    %3332 = vmatprep.subr.mxu0 %v879
    %3333 = vmatpush1.msra.mxu0 %v878
    %3334 = vmatprep.subr.mxu0 %v882
    %3335 = vmatpush1.msra.mxu0 %v881
    %3336 = vmatprep.subr.mxu0 %v885
    %3337 = vmatpush1.msra.mxu0 %v884
    %3338 = vmatprep.subr.mxu0 %v888
    %3339 = vmatpush1.msra.mxu0 %v887
    %3340 = vmatprep.subr.mxu0 %v891
    %3341 = vmatpush1.msra.mxu0 %v890
    %3342 = vmatprep.subr.mxu0 %v894
    %3343 = vmatpush1.msra.mxu0 %v893
    %3344 = vmatprep.subr.mxu0 %v897
    %3345 = vmatpush1.msra.mxu0 %v896
    %3346 = vmatprep.subr.mxu0 0.0
    %3347 = vmatpush1.msra.mxu0 0.0
    %3348 = vmatprep.subr.mxu0 0.0
    %3349 = vmatpush1.msra.mxu0 0.0
    %3350 = vmatprep.subr.mxu0 0.0
    %3351 = vmatpush1.msra.mxu0 0.0
    %3352 = vmatprep.subr.mxu0 0.0
    %3353 = vmatpush1.msra.mxu0 0.0
    %3354 = vmatprep.subr.mxu0 0.0
    %3355 = vmatpush1.msra.mxu0 0.0
    %3356 = vmatprep.subr.mxu0 0.0
    %3357 = vmatpush1.msra.mxu0 0.0
    %3358 = vmatprep.subr.mxu0 0.0
    %3359 = vmatpush1.msra.mxu0 0.0
    %3360 = vmatprep.subr.mxu0 0.0
    %3361 = vmatpush1.msra.mxu0 0.0
    %3362 = vmatprep.subr.mxu0 0.0
    %3363 = vmatpush1.msra.mxu0 0.0
    %3364 = vmatprep.subr.mxu0 0.0
    %3365 = vmatpush1.msra.mxu0 0.0
    %3366 = vmatprep.subr.mxu0 0.0
    %3367 = vmatpush1.msra.mxu0 0.0
    %3368 = vmatprep.subr.mxu0 0.0
    %3369 = vmatpush1.msra.mxu0 0.0
    %3370 = vmatprep.subr.mxu0 0.0
    %3371 = vmatpush1.msra.mxu0 0.0
    %3372 = vmatprep.subr.mxu0 0.0
    %3373 = vmatpush1.msra.mxu0 0.0
    %3374 = vmatprep.subr.mxu0 0.0
    %3375 = vmatpush1.msra.mxu0 0.0
    %3376 = vmatprep.subr.mxu0 0.0
    %3377 = vmatpush1.msra.mxu0 0.0
    %3378 = vmatprep.mubr.f32.mxu0 0.0
    %3379 = vmatmul.mubr.f32.gmra.mrb[0].mxu0 %v2847
    %v3380 = vpop.f32.mrb[0].mxu0
    %v3381 = vadd.f32 %v905, %v3380
    %v3382 = vpop.f32.mrb[0].mxu0
    %v3383 = vadd.f32 %v909, %v3382
    %3384 = vdwg.mxu0
    %3385 = vmatprep.subr.mxu0 0.0
    %3386 = vmatpush1.msra.mxu0 %v853
    %3387 = vmatprep.subr.mxu0 0.0
    %3388 = vmatpush1.msra.mxu0 %v856
    %3389 = vmatprep.subr.mxu0 0.0
    %3390 = vmatpush1.msra.mxu0 %v859
    %3391 = vmatprep.subr.mxu0 0.0
    %3392 = vmatpush1.msra.mxu0 %v862
    %3393 = vmatprep.subr.mxu0 0.0
    %3394 = vmatpush1.msra.mxu0 %v865
    %3395 = vmatprep.subr.mxu0 0.0
    %3396 = vmatpush1.msra.mxu0 %v868
    %3397 = vmatprep.subr.mxu0 0.0
    %3398 = vmatpush1.msra.mxu0 %v871
    %3399 = vmatprep.subr.mxu0 0.0
    %3400 = vmatpush1.msra.mxu0 %v874
    %3401 = vmatprep.subr.mxu0 0.0
    %3402 = vmatpush1.msra.mxu0 %v877
    %3403 = vmatprep.subr.mxu0 0.0
    %3404 = vmatpush1.msra.mxu0 %v880
    %3405 = vmatprep.subr.mxu0 0.0
    %3406 = vmatpush1.msra.mxu0 %v883
    %3407 = vmatprep.subr.mxu0 0.0
    %3408 = vmatpush1.msra.mxu0 %v886
    %3409 = vmatprep.subr.mxu0 0.0
    %3410 = vmatpush1.msra.mxu0 %v889
    %3411 = vmatprep.subr.mxu0 0.0
    %3412 = vmatpush1.msra.mxu0 %v892
    %3413 = vmatprep.subr.mxu0 0.0
    %3414 = vmatpush1.msra.mxu0 %v895
    %3415 = vmatprep.subr.mxu0 0.0
    %3416 = vmatpush1.msra.mxu0 %v898
    %3417 = vmatprep.subr.mxu0 0.0
    %3418 = vmatpush1.msra.mxu0 0.0
    %3419 = vmatprep.subr.mxu0 0.0
    %3420 = vmatpush1.msra.mxu0 0.0
    %3421 = vmatprep.subr.mxu0 0.0
    %3422 = vmatpush1.msra.mxu0 0.0
    %3423 = vmatprep.subr.mxu0 0.0
    %3424 = vmatpush1.msra.mxu0 0.0
    %3425 = vmatprep.subr.mxu0 0.0
    %3426 = vmatpush1.msra.mxu0 0.0
    %3427 = vmatprep.subr.mxu0 0.0
    %3428 = vmatpush1.msra.mxu0 0.0
    %3429 = vmatprep.subr.mxu0 0.0
    %3430 = vmatpush1.msra.mxu0 0.0
    %3431 = vmatprep.subr.mxu0 0.0
    %3432 = vmatpush1.msra.mxu0 0.0
    %3433 = vmatprep.subr.mxu0 0.0
    %3434 = vmatpush1.msra.mxu0 0.0
    %3435 = vmatprep.subr.mxu0 0.0
    %3436 = vmatpush1.msra.mxu0 0.0
    %3437 = vmatprep.subr.mxu0 0.0
    %3438 = vmatpush1.msra.mxu0 0.0
    %3439 = vmatprep.subr.mxu0 0.0
    %3440 = vmatpush1.msra.mxu0 0.0
    %3441 = vmatprep.subr.mxu0 0.0
    %3442 = vmatpush1.msra.mxu0 0.0
    %3443 = vmatprep.subr.mxu0 0.0
    %3444 = vmatpush1.msra.mxu0 0.0
    %3445 = vmatprep.subr.mxu0 0.0
    %3446 = vmatpush1.msra.mxu0 0.0
    %3447 = vmatprep.subr.mxu0 0.0
    %3448 = vmatpush1.msra.mxu0 0.0
    %3449 = vmatprep.mubr.f32.mxu0 0.0
    %3450 = vmatmul.mubr.f32.gmra.mrb[0].mxu0 %v2847
    %v3451 = vpop.f32.mrb[0].mxu0
    %v3452 = vadd.f32 %v913, %v3451
    %v3453 = vpop.f32.mrb[0].mxu0
    %3454 = vdwg.mxu0
    %3455 = vmatprep.subr.mxu0 %v1060
    %3456 = vmatpush1.msra.mxu0 %v1059
    %3457 = vmatprep.subr.mxu0 %v1063
    %3458 = vmatpush1.msra.mxu0 %v1062
    %3459 = vmatprep.subr.mxu0 %v1066
    %3460 = vmatpush1.msra.mxu0 %v1065
    %3461 = vmatprep.subr.mxu0 %v1069
    %3462 = vmatpush1.msra.mxu0 %v1068
    %3463 = vmatprep.subr.mxu0 %v1072
    %3464 = vmatpush1.msra.mxu0 %v1071
    %3465 = vmatprep.subr.mxu0 %v1075
    %3466 = vmatpush1.msra.mxu0 %v1074
    %3467 = vmatprep.subr.mxu0 %v1078
    %3468 = vmatpush1.msra.mxu0 %v1077
    %3469 = vmatprep.subr.mxu0 %v1081
    %3470 = vmatpush1.msra.mxu0 %v1080
    %3471 = vmatprep.subr.mxu0 %v1084
    %3472 = vmatpush1.msra.mxu0 %v1083
    %3473 = vmatprep.subr.mxu0 %v1087
    %3474 = vmatpush1.msra.mxu0 %v1086
    %3475 = vmatprep.subr.mxu0 %v1090
    %3476 = vmatpush1.msra.mxu0 %v1089
    %3477 = vmatprep.subr.mxu0 %v1093
    %3478 = vmatpush1.msra.mxu0 %v1092
    %3479 = vmatprep.subr.mxu0 %v1096
    %3480 = vmatpush1.msra.mxu0 %v1095
    %3481 = vmatprep.subr.mxu0 %v1099
    %3482 = vmatpush1.msra.mxu0 %v1098
    %3483 = vmatprep.subr.mxu0 %v1102
    %3484 = vmatpush1.msra.mxu0 %v1101
    %3485 = vmatprep.subr.mxu0 %v1105
    %3486 = vmatpush1.msra.mxu0 %v1104
    %3487 = vmatprep.subr.mxu0 0.0
    %3488 = vmatpush1.msra.mxu0 0.0
    %3489 = vmatprep.subr.mxu0 0.0
    %3490 = vmatpush1.msra.mxu0 0.0
    %3491 = vmatprep.subr.mxu0 0.0
    %3492 = vmatpush1.msra.mxu0 0.0
    %3493 = vmatprep.subr.mxu0 0.0
    %3494 = vmatpush1.msra.mxu0 0.0
    %3495 = vmatprep.subr.mxu0 0.0
    %3496 = vmatpush1.msra.mxu0 0.0
    %3497 = vmatprep.subr.mxu0 0.0
    %3498 = vmatpush1.msra.mxu0 0.0
    %3499 = vmatprep.subr.mxu0 0.0
    %3500 = vmatpush1.msra.mxu0 0.0
    %3501 = vmatprep.subr.mxu0 0.0
    %3502 = vmatpush1.msra.mxu0 0.0
    %3503 = vmatprep.subr.mxu0 0.0
    %3504 = vmatpush1.msra.mxu0 0.0
    %3505 = vmatprep.subr.mxu0 0.0
    %3506 = vmatpush1.msra.mxu0 0.0
    %3507 = vmatprep.subr.mxu0 0.0
    %3508 = vmatpush1.msra.mxu0 0.0
    %3509 = vmatprep.subr.mxu0 0.0
    %3510 = vmatpush1.msra.mxu0 0.0
    %3511 = vmatprep.subr.mxu0 0.0
    %3512 = vmatpush1.msra.mxu0 0.0
    %3513 = vmatprep.subr.mxu0 0.0
    %3514 = vmatpush1.msra.mxu0 0.0
    %3515 = vmatprep.subr.mxu0 0.0
    %3516 = vmatpush1.msra.mxu0 0.0
    %3517 = vmatprep.subr.mxu0 0.0
    %3518 = vmatpush1.msra.mxu0 0.0
    %3519 = vmatprep.mubr.f32.mxu0 0.0
    %3520 = vmatmul.mubr.f32.gmra.mrb[0].mxu0 %v3149
    %v3521 = vpop.f32.mrb[0].mxu0
    %v3522 = vadd.f32 %v1113, %v3521
    %v3523 = vpop.f32.mrb[0].mxu0
    %v3524 = vadd.f32 %v1117, %v3523
    %3525 = vdwg.mxu0
    %3526 = vmatprep.subr.mxu0 0.0
    %3527 = vmatpush1.msra.mxu0 %v1061
    %3528 = vmatprep.subr.mxu0 0.0
    %3529 = vmatpush1.msra.mxu0 %v1064
    %3530 = vmatprep.subr.mxu0 0.0
    %3531 = vmatpush1.msra.mxu0 %v1067
    %3532 = vmatprep.subr.mxu0 0.0
    %3533 = vmatpush1.msra.mxu0 %v1070
    %3534 = vmatprep.subr.mxu0 0.0
    %3535 = vmatpush1.msra.mxu0 %v1073
    %3536 = vmatprep.subr.mxu0 0.0
    %3537 = vmatpush1.msra.mxu0 %v1076
    %3538 = vmatprep.subr.mxu0 0.0
    %3539 = vmatpush1.msra.mxu0 %v1079
    %3540 = vmatprep.subr.mxu0 0.0
    %3541 = vmatpush1.msra.mxu0 %v1082
    %3542 = vmatprep.subr.mxu0 0.0
    %3543 = vmatpush1.msra.mxu0 %v1085
    %3544 = vmatprep.subr.mxu0 0.0
    %3545 = vmatpush1.msra.mxu0 %v1088
    %3546 = vmatprep.subr.mxu0 0.0
    %3547 = vmatpush1.msra.mxu0 %v1091
    %3548 = vmatprep.subr.mxu0 0.0
    %3549 = vmatpush1.msra.mxu0 %v1094
    %3550 = vmatprep.subr.mxu0 0.0
    %3551 = vmatpush1.msra.mxu0 %v1097
    %3552 = vmatprep.subr.mxu0 0.0
    %3553 = vmatpush1.msra.mxu0 %v1100
    %3554 = vmatprep.subr.mxu0 0.0
    %3555 = vmatpush1.msra.mxu0 %v1103
    %3556 = vmatprep.subr.mxu0 0.0
    %3557 = vmatpush1.msra.mxu0 %v1106
    %3558 = vmatprep.subr.mxu0 0.0
    %3559 = vmatpush1.msra.mxu0 0.0
    %3560 = vmatprep.subr.mxu0 0.0
    %3561 = vmatpush1.msra.mxu0 0.0
    %3562 = vmatprep.subr.mxu0 0.0
    %3563 = vmatpush1.msra.mxu0 0.0
    %3564 = vmatprep.subr.mxu0 0.0
    %3565 = vmatpush1.msra.mxu0 0.0
    %3566 = vmatprep.subr.mxu0 0.0
    %3567 = vmatpush1.msra.mxu0 0.0
    %3568 = vmatprep.subr.mxu0 0.0
    %3569 = vmatpush1.msra.mxu0 0.0
    %3570 = vmatprep.subr.mxu0 0.0
    %3571 = vmatpush1.msra.mxu0 0.0
    %3572 = vmatprep.subr.mxu0 0.0
    %3573 = vmatpush1.msra.mxu0 0.0
    %3574 = vmatprep.subr.mxu0 0.0
    %3575 = vmatpush1.msra.mxu0 0.0
    %3576 = vmatprep.subr.mxu0 0.0
    %3577 = vmatpush1.msra.mxu0 0.0
    %3578 = vmatprep.subr.mxu0 0.0
    %3579 = vmatpush1.msra.mxu0 0.0
    %3580 = vmatprep.subr.mxu0 0.0
    %3581 = vmatpush1.msra.mxu0 0.0
    %3582 = vmatprep.subr.mxu0 0.0
    %3583 = vmatpush1.msra.mxu0 0.0
    %3584 = vmatprep.subr.mxu0 0.0
    %3585 = vmatpush1.msra.mxu0 0.0
    %3586 = vmatprep.subr.mxu0 0.0
    %3587 = vmatpush1.msra.mxu0 0.0
    %3588 = vmatprep.subr.mxu0 0.0
    %3589 = vmatpush1.msra.mxu0 0.0
    %3590 = vmatprep.mubr.f32.mxu0 0.0
    %3591 = vmatmul.mubr.f32.gmra.mrb[0].mxu0 %v3149
    %v3592 = vpop.f32.mrb[0].mxu0
    %v3593 = vadd.f32 %v1121, %v3592
    %v3594 = vpop.f32.mrb[0].mxu0
    %3595 = vdwg.mxu0
    %v3596 = vadd.f32 %v3381, %v3522
    %v3597 = vxor.u32 %v3596, 2147483648
    %v3598 = vmul.f32 %v3597, 1.442695
    %v3599 = vpow.pop %v3598
    %v3600 = vadd.f32 %v3599, 1.0
    %v3601 = vrcp.pop %v3600
    %v3602 = vmul.f32 1.0, %v3601
    %v3603 = vadd.f32 %v3383, %v3524
    %v3604 = vxor.u32 %v3603, 2147483648
    %v3605 = vmul.f32 %v3604, 1.442695
    %v3606 = vpow.pop %v3605
    %v3607 = vadd.f32 %v3606, 1.0
    %v3608 = vrcp.pop %v3607
    %v3609 = vmul.f32 1.0, %v3608
    %v3610 = vmul.f32 %v3602, %v3593
    %v3611 = vadd.f32 %v3452, %v3610
    %v3612 = vtanh.pop %v3611
    %v3613 = vsub.f32 %v3149, %v3612
    %v3614 = vmul.f32 %v3609, %v3613
    %v3615 = vadd.f32 %v3612, %v3614
    %v3616 = vld [vmem:[#allocation2 + $0xa8] sm:$0xff]
    %v3617 = vld [vmem:[#allocation2 + $0xb0] sm:$0xff]
    %v3618 = vld [vmem:[#allocation2 + $0xb8] sm:$0xff]
    %3619 = vmatprep.subr.mxu0 %v461
    %3620 = vmatpush1.msra.mxu0 %v460
    %3621 = vmatprep.subr.mxu0 %v464
    %3622 = vmatpush1.msra.mxu0 %v463
    %3623 = vmatprep.subr.mxu0 %v467
    %3624 = vmatpush1.msra.mxu0 %v466
    %3625 = vmatprep.subr.mxu0 %v470
    %3626 = vmatpush1.msra.mxu0 %v469
    %3627 = vmatprep.subr.mxu0 %v473
    %3628 = vmatpush1.msra.mxu0 %v472
    %3629 = vmatprep.subr.mxu0 %v476
    %3630 = vmatpush1.msra.mxu0 %v475
    %3631 = vmatprep.subr.mxu0 %v479
    %3632 = vmatpush1.msra.mxu0 %v478
    %3633 = vmatprep.subr.mxu0 %v482
    %3634 = vmatpush1.msra.mxu0 %v481
    %3635 = vmatprep.subr.mxu0 %v485
    %3636 = vmatpush1.msra.mxu0 %v484
    %3637 = vmatprep.subr.mxu0 %v488
    %3638 = vmatpush1.msra.mxu0 %v487
    %3639 = vmatprep.subr.mxu0 %v491
    %3640 = vmatpush1.msra.mxu0 %v490
    %3641 = vmatprep.subr.mxu0 %v494
    %3642 = vmatpush1.msra.mxu0 %v493
    %3643 = vmatprep.subr.mxu0 %v497
    %3644 = vmatpush1.msra.mxu0 %v496
    %3645 = vmatprep.subr.mxu0 %v500
    %3646 = vmatpush1.msra.mxu0 %v499
    %3647 = vmatprep.subr.mxu0 %v503
    %3648 = vmatpush1.msra.mxu0 %v502
    %3649 = vmatprep.subr.mxu0 %v506
    %3650 = vmatpush1.msra.mxu0 %v505
    %3651 = vmatprep.subr.mxu0 0.0
    %3652 = vmatpush1.msra.mxu0 0.0
    %3653 = vmatprep.subr.mxu0 0.0
    %3654 = vmatpush1.msra.mxu0 0.0
    %3655 = vmatprep.subr.mxu0 0.0
    %3656 = vmatpush1.msra.mxu0 0.0
    %3657 = vmatprep.subr.mxu0 0.0
    %3658 = vmatpush1.msra.mxu0 0.0
    %3659 = vmatprep.subr.mxu0 0.0
    %3660 = vmatpush1.msra.mxu0 0.0
    %3661 = vmatprep.subr.mxu0 0.0
    %3662 = vmatpush1.msra.mxu0 0.0
    %3663 = vmatprep.subr.mxu0 0.0
    %3664 = vmatpush1.msra.mxu0 0.0
    %3665 = vmatprep.subr.mxu0 0.0
    %3666 = vmatpush1.msra.mxu0 0.0
    %3667 = vmatprep.subr.mxu0 0.0
    %3668 = vmatpush1.msra.mxu0 0.0
    %3669 = vmatprep.subr.mxu0 0.0
    %3670 = vmatpush1.msra.mxu0 0.0
    %3671 = vmatprep.subr.mxu0 0.0
    %3672 = vmatpush1.msra.mxu0 0.0
    %3673 = vmatprep.subr.mxu0 0.0
    %3674 = vmatpush1.msra.mxu0 0.0
    %3675 = vmatprep.subr.mxu0 0.0
    %3676 = vmatpush1.msra.mxu0 0.0
    %3677 = vmatprep.subr.mxu0 0.0
    %3678 = vmatpush1.msra.mxu0 0.0
    %3679 = vmatprep.subr.mxu0 0.0
    %3680 = vmatpush1.msra.mxu0 0.0
    %3681 = vmatprep.subr.mxu0 0.0
    %3682 = vmatpush1.msra.mxu0 0.0
    %3683 = vmatprep.mubr.f32.mxu0 0.0
    %3684 = vmatmul.mubr.f32.gmra.mrb[0].mxu0 %v3313
    %v3685 = vpop.f32.mrb[0].mxu0
    %v3686 = vadd.f32 %v513, %v3685
    %v3687 = vpop.f32.mrb[0].mxu0
    %v3688 = vadd.f32 %v517, %v3687
    %3689 = vdwg.mxu0
    %3690 = vmatprep.subr.mxu0 0.0
    %3691 = vmatpush1.msra.mxu0 %v462
    %3692 = vmatprep.subr.mxu0 0.0
    %3693 = vmatpush1.msra.mxu0 %v465
    %3694 = vmatprep.subr.mxu0 0.0
    %3695 = vmatpush1.msra.mxu0 %v468
    %3696 = vmatprep.subr.mxu0 0.0
    %3697 = vmatpush1.msra.mxu0 %v471
    %3698 = vmatprep.subr.mxu0 0.0
    %3699 = vmatpush1.msra.mxu0 %v474
    %3700 = vmatprep.subr.mxu0 0.0
    %3701 = vmatpush1.msra.mxu0 %v477
    %3702 = vmatprep.subr.mxu0 0.0
    %3703 = vmatpush1.msra.mxu0 %v480
    %3704 = vmatprep.subr.mxu0 0.0
    %3705 = vmatpush1.msra.mxu0 %v483
    %3706 = vmatprep.subr.mxu0 0.0
    %3707 = vmatpush1.msra.mxu0 %v486
    %3708 = vmatprep.subr.mxu0 0.0
    %3709 = vmatpush1.msra.mxu0 %v489
    %3710 = vmatprep.subr.mxu0 0.0
    %3711 = vmatpush1.msra.mxu0 %v492
    %3712 = vmatprep.subr.mxu0 0.0
    %3713 = vmatpush1.msra.mxu0 %v495
    %3714 = vmatprep.subr.mxu0 0.0
    %3715 = vmatpush1.msra.mxu0 %v498
    %3716 = vmatprep.subr.mxu0 0.0
    %3717 = vmatpush1.msra.mxu0 %v501
    %3718 = vmatprep.subr.mxu0 0.0
    %3719 = vmatpush1.msra.mxu0 %v504
    %3720 = vmatprep.subr.mxu0 0.0
    %3721 = vmatpush1.msra.mxu0 %v507
    %3722 = vmatprep.subr.mxu0 0.0
    %3723 = vmatpush1.msra.mxu0 0.0
    %3724 = vmatprep.subr.mxu0 0.0
    %3725 = vmatpush1.msra.mxu0 0.0
    %3726 = vmatprep.subr.mxu0 0.0
    %3727 = vmatpush1.msra.mxu0 0.0
    %3728 = vmatprep.subr.mxu0 0.0
    %3729 = vmatpush1.msra.mxu0 0.0
    %3730 = vmatprep.subr.mxu0 0.0
    %3731 = vmatpush1.msra.mxu0 0.0
    %3732 = vmatprep.subr.mxu0 0.0
    %3733 = vmatpush1.msra.mxu0 0.0
    %3734 = vmatprep.subr.mxu0 0.0
    %3735 = vmatpush1.msra.mxu0 0.0
    %3736 = vmatprep.subr.mxu0 0.0
    %3737 = vmatpush1.msra.mxu0 0.0
    %3738 = vmatprep.subr.mxu0 0.0
    %3739 = vmatpush1.msra.mxu0 0.0
    %3740 = vmatprep.subr.mxu0 0.0
    %3741 = vmatpush1.msra.mxu0 0.0
    %3742 = vmatprep.subr.mxu0 0.0
    %3743 = vmatpush1.msra.mxu0 0.0
    %3744 = vmatprep.subr.mxu0 0.0
    %3745 = vmatpush1.msra.mxu0 0.0
    %3746 = vmatprep.subr.mxu0 0.0
    %3747 = vmatpush1.msra.mxu0 0.0
    %3748 = vmatprep.subr.mxu0 0.0
    %3749 = vmatpush1.msra.mxu0 0.0
    %3750 = vmatprep.subr.mxu0 0.0
    %3751 = vmatpush1.msra.mxu0 0.0
    %3752 = vmatprep.subr.mxu0 0.0
    %3753 = vmatpush1.msra.mxu0 0.0
    %3754 = vmatprep.mubr.f32.mxu0 0.0
    %3755 = vmatmul.mubr.f32.gmra.mrb[0].mxu0 %v3313
    %v3756 = vpop.f32.mrb[0].mxu0
    %v3757 = vadd.f32 %v521, %v3756
    %v3758 = vpop.f32.mrb[0].mxu0
    %3759 = vdwg.mxu0
    %v3760 = vadd.f32 %v3616, %v3686
    %v3761 = vxor.u32 %v3760, 2147483648
    %v3762 = vmul.f32 %v3761, 1.442695
    %v3763 = vpow.pop %v3762
    %v3764 = vadd.f32 %v3763, 1.0
    %v3765 = vrcp.pop %v3764
    %v3766 = vmul.f32 1.0, %v3765
    %v3767 = vadd.f32 %v3617, %v3688
    %v3768 = vxor.u32 %v3767, 2147483648
    %v3769 = vmul.f32 %v3768, 1.442695
    %v3770 = vpow.pop %v3769
    %v3771 = vadd.f32 %v3770, 1.0
    %v3772 = vrcp.pop %v3771
    %v3773 = vmul.f32 1.0, %v3772
    %v3774 = vmul.f32 %v3766, %v3757
    %v3775 = vadd.f32 %v3618, %v3774
    %v3776 = vtanh.pop %v3775
    %v3777 = vsub.f32 %v3313, %v3776
    %v3778 = vmul.f32 %v3773, %v3777
    %v3779 = vadd.f32 %v3776, %v3778
    %3780 = vmatprep.subr.mxu0 %v852
    %3781 = vmatpush1.msra.mxu0 %v851
    %3782 = vmatprep.subr.mxu0 %v855
    %3783 = vmatpush1.msra.mxu0 %v854
    %3784 = vmatprep.subr.mxu0 %v858
    %3785 = vmatpush1.msra.mxu0 %v857
    %3786 = vmatprep.subr.mxu0 %v861
    %3787 = vmatpush1.msra.mxu0 %v860
    %3788 = vmatprep.subr.mxu0 %v864
    %3789 = vmatpush1.msra.mxu0 %v863
    %3790 = vmatprep.subr.mxu0 %v867
    %3791 = vmatpush1.msra.mxu0 %v866
    %3792 = vmatprep.subr.mxu0 %v870
    %3793 = vmatpush1.msra.mxu0 %v869
    %3794 = vmatprep.subr.mxu0 %v873
    %3795 = vmatpush1.msra.mxu0 %v872
    %3796 = vmatprep.subr.mxu0 %v876
    %3797 = vmatpush1.msra.mxu0 %v875
    %3798 = vmatprep.subr.mxu0 %v879
    %3799 = vmatpush1.msra.mxu0 %v878
    %3800 = vmatprep.subr.mxu0 %v882
    %3801 = vmatpush1.msra.mxu0 %v881
    %3802 = vmatprep.subr.mxu0 %v885
    %3803 = vmatpush1.msra.mxu0 %v884
    %3804 = vmatprep.subr.mxu0 %v888
    %3805 = vmatpush1.msra.mxu0 %v887
    %3806 = vmatprep.subr.mxu0 %v891
    %3807 = vmatpush1.msra.mxu0 %v890
    %3808 = vmatprep.subr.mxu0 %v894
    %3809 = vmatpush1.msra.mxu0 %v893
    %3810 = vmatprep.subr.mxu0 %v897
    %3811 = vmatpush1.msra.mxu0 %v896
    %3812 = vmatprep.subr.mxu0 0.0
    %3813 = vmatpush1.msra.mxu0 0.0
    %3814 = vmatprep.subr.mxu0 0.0
    %3815 = vmatpush1.msra.mxu0 0.0
    %3816 = vmatprep.subr.mxu0 0.0
    %3817 = vmatpush1.msra.mxu0 0.0
    %3818 = vmatprep.subr.mxu0 0.0
    %3819 = vmatpush1.msra.mxu0 0.0
    %3820 = vmatprep.subr.mxu0 0.0
    %3821 = vmatpush1.msra.mxu0 0.0
    %3822 = vmatprep.subr.mxu0 0.0
    %3823 = vmatpush1.msra.mxu0 0.0
    %3824 = vmatprep.subr.mxu0 0.0
    %3825 = vmatpush1.msra.mxu0 0.0
    %3826 = vmatprep.subr.mxu0 0.0
    %3827 = vmatpush1.msra.mxu0 0.0
    %3828 = vmatprep.subr.mxu0 0.0
    %3829 = vmatpush1.msra.mxu0 0.0
    %3830 = vmatprep.subr.mxu0 0.0
    %3831 = vmatpush1.msra.mxu0 0.0
    %3832 = vmatprep.subr.mxu0 0.0
    %3833 = vmatpush1.msra.mxu0 0.0
    %3834 = vmatprep.subr.mxu0 0.0
    %3835 = vmatpush1.msra.mxu0 0.0
    %3836 = vmatprep.subr.mxu0 0.0
    %3837 = vmatpush1.msra.mxu0 0.0
    %3838 = vmatprep.subr.mxu0 0.0
    %3839 = vmatpush1.msra.mxu0 0.0
    %3840 = vmatprep.subr.mxu0 0.0
    %3841 = vmatpush1.msra.mxu0 0.0
    %3842 = vmatprep.subr.mxu0 0.0
    %3843 = vmatpush1.msra.mxu0 0.0
    %3844 = vmatprep.mubr.f32.mxu0 0.0
    %3845 = vmatmul.mubr.f32.gmra.mrb[0].mxu0 %v3313
    %v3846 = vpop.f32.mrb[0].mxu0
    %v3847 = vadd.f32 %v905, %v3846
    %v3848 = vpop.f32.mrb[0].mxu0
    %v3849 = vadd.f32 %v909, %v3848
    %3850 = vdwg.mxu0
    %3851 = vmatprep.subr.mxu0 0.0
    %3852 = vmatpush1.msra.mxu0 %v853
    %3853 = vmatprep.subr.mxu0 0.0
    %3854 = vmatpush1.msra.mxu0 %v856
    %3855 = vmatprep.subr.mxu0 0.0
    %3856 = vmatpush1.msra.mxu0 %v859
    %3857 = vmatprep.subr.mxu0 0.0
    %3858 = vmatpush1.msra.mxu0 %v862
    %3859 = vmatprep.subr.mxu0 0.0
    %3860 = vmatpush1.msra.mxu0 %v865
    %3861 = vmatprep.subr.mxu0 0.0
    %3862 = vmatpush1.msra.mxu0 %v868
    %3863 = vmatprep.subr.mxu0 0.0
    %3864 = vmatpush1.msra.mxu0 %v871
    %3865 = vmatprep.subr.mxu0 0.0
    %3866 = vmatpush1.msra.mxu0 %v874
    %3867 = vmatprep.subr.mxu0 0.0
    %3868 = vmatpush1.msra.mxu0 %v877
    %3869 = vmatprep.subr.mxu0 0.0
    %3870 = vmatpush1.msra.mxu0 %v880
    %3871 = vmatprep.subr.mxu0 0.0
    %3872 = vmatpush1.msra.mxu0 %v883
    %3873 = vmatprep.subr.mxu0 0.0
    %3874 = vmatpush1.msra.mxu0 %v886
    %3875 = vmatprep.subr.mxu0 0.0
    %3876 = vmatpush1.msra.mxu0 %v889
    %3877 = vmatprep.subr.mxu0 0.0
    %3878 = vmatpush1.msra.mxu0 %v892
    %3879 = vmatprep.subr.mxu0 0.0
    %3880 = vmatpush1.msra.mxu0 %v895
    %3881 = vmatprep.subr.mxu0 0.0
    %3882 = vmatpush1.msra.mxu0 %v898
    %3883 = vmatprep.subr.mxu0 0.0
    %3884 = vmatpush1.msra.mxu0 0.0
    %3885 = vmatprep.subr.mxu0 0.0
    %3886 = vmatpush1.msra.mxu0 0.0
    %3887 = vmatprep.subr.mxu0 0.0
    %3888 = vmatpush1.msra.mxu0 0.0
    %3889 = vmatprep.subr.mxu0 0.0
    %3890 = vmatpush1.msra.mxu0 0.0
    %3891 = vmatprep.subr.mxu0 0.0
    %3892 = vmatpush1.msra.mxu0 0.0
    %3893 = vmatprep.subr.mxu0 0.0
    %3894 = vmatpush1.msra.mxu0 0.0
    %3895 = vmatprep.subr.mxu0 0.0
    %3896 = vmatpush1.msra.mxu0 0.0
    %3897 = vmatprep.subr.mxu0 0.0
    %3898 = vmatpush1.msra.mxu0 0.0
    %3899 = vmatprep.subr.mxu0 0.0
    %3900 = vmatpush1.msra.mxu0 0.0
    %3901 = vmatprep.subr.mxu0 0.0
    %3902 = vmatpush1.msra.mxu0 0.0
    %3903 = vmatprep.subr.mxu0 0.0
    %3904 = vmatpush1.msra.mxu0 0.0
    %3905 = vmatprep.subr.mxu0 0.0
    %3906 = vmatpush1.msra.mxu0 0.0
    %3907 = vmatprep.subr.mxu0 0.0
    %3908 = vmatpush1.msra.mxu0 0.0
    %3909 = vmatprep.subr.mxu0 0.0
    %3910 = vmatpush1.msra.mxu0 0.0
    %3911 = vmatprep.subr.mxu0 0.0
    %3912 = vmatpush1.msra.mxu0 0.0
    %3913 = vmatprep.subr.mxu0 0.0
    %3914 = vmatpush1.msra.mxu0 0.0
    %3915 = vmatprep.mubr.f32.mxu0 0.0
    %3916 = vmatmul.mubr.f32.gmra.mrb[0].mxu0 %v3313
    %v3917 = vpop.f32.mrb[0].mxu0
    %v3918 = vadd.f32 %v913, %v3917
    %v3919 = vpop.f32.mrb[0].mxu0
    %3920 = vdwg.mxu0
    %3921 = vmatprep.subr.mxu0 %v1060
    %3922 = vmatpush1.msra.mxu0 %v1059
    %3923 = vmatprep.subr.mxu0 %v1063
    %3924 = vmatpush1.msra.mxu0 %v1062
    %3925 = vmatprep.subr.mxu0 %v1066
    %3926 = vmatpush1.msra.mxu0 %v1065
    %3927 = vmatprep.subr.mxu0 %v1069
    %3928 = vmatpush1.msra.mxu0 %v1068
    %3929 = vmatprep.subr.mxu0 %v1072
    %3930 = vmatpush1.msra.mxu0 %v1071
    %3931 = vmatprep.subr.mxu0 %v1075
    %3932 = vmatpush1.msra.mxu0 %v1074
    %3933 = vmatprep.subr.mxu0 %v1078
    %3934 = vmatpush1.msra.mxu0 %v1077
    %3935 = vmatprep.subr.mxu0 %v1081
    %3936 = vmatpush1.msra.mxu0 %v1080
    %3937 = vmatprep.subr.mxu0 %v1084
    %3938 = vmatpush1.msra.mxu0 %v1083
    %3939 = vmatprep.subr.mxu0 %v1087
    %3940 = vmatpush1.msra.mxu0 %v1086
    %3941 = vmatprep.subr.mxu0 %v1090
    %3942 = vmatpush1.msra.mxu0 %v1089
    %3943 = vmatprep.subr.mxu0 %v1093
    %3944 = vmatpush1.msra.mxu0 %v1092
    %3945 = vmatprep.subr.mxu0 %v1096
    %3946 = vmatpush1.msra.mxu0 %v1095
    %3947 = vmatprep.subr.mxu0 %v1099
    %3948 = vmatpush1.msra.mxu0 %v1098
    %3949 = vmatprep.subr.mxu0 %v1102
    %3950 = vmatpush1.msra.mxu0 %v1101
    %3951 = vmatprep.subr.mxu0 %v1105
    %3952 = vmatpush1.msra.mxu0 %v1104
    %3953 = vmatprep.subr.mxu0 0.0
    %3954 = vmatpush1.msra.mxu0 0.0
    %3955 = vmatprep.subr.mxu0 0.0
    %3956 = vmatpush1.msra.mxu0 0.0
    %3957 = vmatprep.subr.mxu0 0.0
    %3958 = vmatpush1.msra.mxu0 0.0
    %3959 = vmatprep.subr.mxu0 0.0
    %3960 = vmatpush1.msra.mxu0 0.0
    %3961 = vmatprep.subr.mxu0 0.0
    %3962 = vmatpush1.msra.mxu0 0.0
    %3963 = vmatprep.subr.mxu0 0.0
    %3964 = vmatpush1.msra.mxu0 0.0
    %3965 = vmatprep.subr.mxu0 0.0
    %3966 = vmatpush1.msra.mxu0 0.0
    %3967 = vmatprep.subr.mxu0 0.0
    %3968 = vmatpush1.msra.mxu0 0.0
    %3969 = vmatprep.subr.mxu0 0.0
    %3970 = vmatpush1.msra.mxu0 0.0
    %3971 = vmatprep.subr.mxu0 0.0
    %3972 = vmatpush1.msra.mxu0 0.0
    %3973 = vmatprep.subr.mxu0 0.0
    %3974 = vmatpush1.msra.mxu0 0.0
    %3975 = vmatprep.subr.mxu0 0.0
    %3976 = vmatpush1.msra.mxu0 0.0
    %3977 = vmatprep.subr.mxu0 0.0
    %3978 = vmatpush1.msra.mxu0 0.0
    %3979 = vmatprep.subr.mxu0 0.0
    %3980 = vmatpush1.msra.mxu0 0.0
    %3981 = vmatprep.subr.mxu0 0.0
    %3982 = vmatpush1.msra.mxu0 0.0
    %3983 = vmatprep.subr.mxu0 0.0
    %3984 = vmatpush1.msra.mxu0 0.0
    %3985 = vmatprep.mubr.f32.mxu0 0.0
    %3986 = vmatmul.mubr.f32.gmra.mrb[0].mxu0 %v3615
    %v3987 = vpop.f32.mrb[0].mxu0
    %v3988 = vadd.f32 %v1113, %v3987
    %v3989 = vpop.f32.mrb[0].mxu0
    %v3990 = vadd.f32 %v1117, %v3989
    %3991 = vdwg.mxu0
    %3992 = vmatprep.subr.mxu0 0.0
    %3993 = vmatpush1.msra.mxu0 %v1061
    %3994 = vmatprep.subr.mxu0 0.0
    %3995 = vmatpush1.msra.mxu0 %v1064
    %3996 = vmatprep.subr.mxu0 0.0
    %3997 = vmatpush1.msra.mxu0 %v1067
    %3998 = vmatprep.subr.mxu0 0.0
    %3999 = vmatpush1.msra.mxu0 %v1070
    %4000 = vmatprep.subr.mxu0 0.0
    %4001 = vmatpush1.msra.mxu0 %v1073
    %4002 = vmatprep.subr.mxu0 0.0
    %4003 = vmatpush1.msra.mxu0 %v1076
    %4004 = vmatprep.subr.mxu0 0.0
    %4005 = vmatpush1.msra.mxu0 %v1079
    %4006 = vmatprep.subr.mxu0 0.0
    %4007 = vmatpush1.msra.mxu0 %v1082
    %4008 = vmatprep.subr.mxu0 0.0
    %4009 = vmatpush1.msra.mxu0 %v1085
    %4010 = vmatprep.subr.mxu0 0.0
    %4011 = vmatpush1.msra.mxu0 %v1088
    %4012 = vmatprep.subr.mxu0 0.0
    %4013 = vmatpush1.msra.mxu0 %v1091
    %4014 = vmatprep.subr.mxu0 0.0
    %4015 = vmatpush1.msra.mxu0 %v1094
    %4016 = vmatprep.subr.mxu0 0.0
    %4017 = vmatpush1.msra.mxu0 %v1097
    %4018 = vmatprep.subr.mxu0 0.0
    %4019 = vmatpush1.msra.mxu0 %v1100
    %4020 = vmatprep.subr.mxu0 0.0
    %4021 = vmatpush1.msra.mxu0 %v1103
    %4022 = vmatprep.subr.mxu0 0.0
    %4023 = vmatpush1.msra.mxu0 %v1106
    %4024 = vmatprep.subr.mxu0 0.0
    %4025 = vmatpush1.msra.mxu0 0.0
    %4026 = vmatprep.subr.mxu0 0.0
    %4027 = vmatpush1.msra.mxu0 0.0
    %4028 = vmatprep.subr.mxu0 0.0
    %4029 = vmatpush1.msra.mxu0 0.0
    %4030 = vmatprep.subr.mxu0 0.0
    %4031 = vmatpush1.msra.mxu0 0.0
    %4032 = vmatprep.subr.mxu0 0.0
    %4033 = vmatpush1.msra.mxu0 0.0
    %4034 = vmatprep.subr.mxu0 0.0
    %4035 = vmatpush1.msra.mxu0 0.0
    %4036 = vmatprep.subr.mxu0 0.0
    %4037 = vmatpush1.msra.mxu0 0.0
    %4038 = vmatprep.subr.mxu0 0.0
    %4039 = vmatpush1.msra.mxu0 0.0
    %4040 = vmatprep.subr.mxu0 0.0
    %4041 = vmatpush1.msra.mxu0 0.0
    %4042 = vmatprep.subr.mxu0 0.0
    %4043 = vmatpush1.msra.mxu0 0.0
    %4044 = vmatprep.subr.mxu0 0.0
    %4045 = vmatpush1.msra.mxu0 0.0
    %4046 = vmatprep.subr.mxu0 0.0
    %4047 = vmatpush1.msra.mxu0 0.0
    %4048 = vmatprep.subr.mxu0 0.0
    %4049 = vmatpush1.msra.mxu0 0.0
    %4050 = vmatprep.subr.mxu0 0.0
    %4051 = vmatpush1.msra.mxu0 0.0
    %4052 = vmatprep.subr.mxu0 0.0
    %4053 = vmatpush1.msra.mxu0 0.0
    %4054 = vmatprep.subr.mxu0 0.0
    %4055 = vmatpush1.msra.mxu0 0.0
    %4056 = vmatprep.mubr.f32.mxu0 0.0
    %4057 = vmatmul.mubr.f32.gmra.mrb[0].mxu0 %v3615
    %v4058 = vpop.f32.mrb[0].mxu0
    %v4059 = vadd.f32 %v1121, %v4058
    %v4060 = vpop.f32.mrb[0].mxu0
    %4061 = vdwg.mxu0
    %v4062 = vadd.f32 %v3847, %v3988
    %v4063 = vxor.u32 %v4062, 2147483648
    %v4064 = vmul.f32 %v4063, 1.442695
    %v4065 = vpow.pop %v4064
    %v4066 = vadd.f32 %v4065, 1.0
    %v4067 = vrcp.pop %v4066
    %v4068 = vmul.f32 1.0, %v4067
    %v4069 = vadd.f32 %v3849, %v3990
    %v4070 = vxor.u32 %v4069, 2147483648
    %v4071 = vmul.f32 %v4070, 1.442695
    %v4072 = vpow.pop %v4071
    %v4073 = vadd.f32 %v4072, 1.0
    %v4074 = vrcp.pop %v4073
    %v4075 = vmul.f32 1.0, %v4074
    %v4076 = vmul.f32 %v4068, %v4059
    %v4077 = vadd.f32 %v3918, %v4076
    %v4078 = vtanh.pop %v4077
    %v4079 = vsub.f32 %v3615, %v4078
    %v4080 = vmul.f32 %v4075, %v4079
    %v4081 = vadd.f32 %v4078, %v4080
    %v4082 = vld [vmem:[#allocation2 + $0xc0] sm:$0xff]
    %v4083 = vld [vmem:[#allocation2 + $0xc8] sm:$0xff]
    %v4084 = vld [vmem:[#allocation2 + $0xd0] sm:$0xff]
    %4085 = vmatprep.subr.mxu0 %v461
    %4086 = vmatpush1.msra.mxu0 %v460
    %4087 = vmatprep.subr.mxu0 %v464
    %4088 = vmatpush1.msra.mxu0 %v463
    %4089 = vmatprep.subr.mxu0 %v467
    %4090 = vmatpush1.msra.mxu0 %v466
    %4091 = vmatprep.subr.mxu0 %v470
    %4092 = vmatpush1.msra.mxu0 %v469
    %4093 = vmatprep.subr.mxu0 %v473
    %4094 = vmatpush1.msra.mxu0 %v472
    %4095 = vmatprep.subr.mxu0 %v476
    %4096 = vmatpush1.msra.mxu0 %v475
    %4097 = vmatprep.subr.mxu0 %v479
    %4098 = vmatpush1.msra.mxu0 %v478
    %4099 = vmatprep.subr.mxu0 %v482
    %4100 = vmatpush1.msra.mxu0 %v481
    %4101 = vmatprep.subr.mxu0 %v485
    %4102 = vmatpush1.msra.mxu0 %v484
    %4103 = vmatprep.subr.mxu0 %v488
    %4104 = vmatpush1.msra.mxu0 %v487
    %4105 = vmatprep.subr.mxu0 %v491
    %4106 = vmatpush1.msra.mxu0 %v490
    %4107 = vmatprep.subr.mxu0 %v494
    %4108 = vmatpush1.msra.mxu0 %v493
    %4109 = vmatprep.subr.mxu0 %v497
    %4110 = vmatpush1.msra.mxu0 %v496
    %4111 = vmatprep.subr.mxu0 %v500
    %4112 = vmatpush1.msra.mxu0 %v499
    %4113 = vmatprep.subr.mxu0 %v503
    %4114 = vmatpush1.msra.mxu0 %v502
    %4115 = vmatprep.subr.mxu0 %v506
    %4116 = vmatpush1.msra.mxu0 %v505
    %4117 = vmatprep.subr.mxu0 0.0
    %4118 = vmatpush1.msra.mxu0 0.0
    %4119 = vmatprep.subr.mxu0 0.0
    %4120 = vmatpush1.msra.mxu0 0.0
    %4121 = vmatprep.subr.mxu0 0.0
    %4122 = vmatpush1.msra.mxu0 0.0
    %4123 = vmatprep.subr.mxu0 0.0
    %4124 = vmatpush1.msra.mxu0 0.0
    %4125 = vmatprep.subr.mxu0 0.0
    %4126 = vmatpush1.msra.mxu0 0.0
    %4127 = vmatprep.subr.mxu0 0.0
    %4128 = vmatpush1.msra.mxu0 0.0
    %4129 = vmatprep.subr.mxu0 0.0
    %4130 = vmatpush1.msra.mxu0 0.0
    %4131 = vmatprep.subr.mxu0 0.0
    %4132 = vmatpush1.msra.mxu0 0.0
    %4133 = vmatprep.subr.mxu0 0.0
    %4134 = vmatpush1.msra.mxu0 0.0
    %4135 = vmatprep.subr.mxu0 0.0
    %4136 = vmatpush1.msra.mxu0 0.0
    %4137 = vmatprep.subr.mxu0 0.0
    %4138 = vmatpush1.msra.mxu0 0.0
    %4139 = vmatprep.subr.mxu0 0.0
    %4140 = vmatpush1.msra.mxu0 0.0
    %4141 = vmatprep.subr.mxu0 0.0
    %4142 = vmatpush1.msra.mxu0 0.0
    %4143 = vmatprep.subr.mxu0 0.0
    %4144 = vmatpush1.msra.mxu0 0.0
    %4145 = vmatprep.subr.mxu0 0.0
    %4146 = vmatpush1.msra.mxu0 0.0
    %4147 = vmatprep.subr.mxu0 0.0
    %4148 = vmatpush1.msra.mxu0 0.0
    %4149 = vmatprep.mubr.f32.mxu0 0.0
    %4150 = vmatmul.mubr.f32.gmra.mrb[0].mxu0 %v3779
    %v4151 = vpop.f32.mrb[0].mxu0
    %v4152 = vadd.f32 %v513, %v4151
    %v4153 = vpop.f32.mrb[0].mxu0
    %v4154 = vadd.f32 %v517, %v4153
    %4155 = vdwg.mxu0
    %4156 = vmatprep.subr.mxu0 0.0
    %4157 = vmatpush1.msra.mxu0 %v462
    %4158 = vmatprep.subr.mxu0 0.0
    %4159 = vmatpush1.msra.mxu0 %v465
    %4160 = vmatprep.subr.mxu0 0.0
    %4161 = vmatpush1.msra.mxu0 %v468
    %4162 = vmatprep.subr.mxu0 0.0
    %4163 = vmatpush1.msra.mxu0 %v471
    %4164 = vmatprep.subr.mxu0 0.0
    %4165 = vmatpush1.msra.mxu0 %v474
    %4166 = vmatprep.subr.mxu0 0.0
    %4167 = vmatpush1.msra.mxu0 %v477
    %4168 = vmatprep.subr.mxu0 0.0
    %4169 = vmatpush1.msra.mxu0 %v480
    %4170 = vmatprep.subr.mxu0 0.0
    %4171 = vmatpush1.msra.mxu0 %v483
    %4172 = vmatprep.subr.mxu0 0.0
    %4173 = vmatpush1.msra.mxu0 %v486
    %4174 = vmatprep.subr.mxu0 0.0
    %4175 = vmatpush1.msra.mxu0 %v489
    %4176 = vmatprep.subr.mxu0 0.0
    %4177 = vmatpush1.msra.mxu0 %v492
    %4178 = vmatprep.subr.mxu0 0.0
    %4179 = vmatpush1.msra.mxu0 %v495
    %4180 = vmatprep.subr.mxu0 0.0
    %4181 = vmatpush1.msra.mxu0 %v498
    %4182 = vmatprep.subr.mxu0 0.0
    %4183 = vmatpush1.msra.mxu0 %v501
    %4184 = vmatprep.subr.mxu0 0.0
    %4185 = vmatpush1.msra.mxu0 %v504
    %4186 = vmatprep.subr.mxu0 0.0
    %4187 = vmatpush1.msra.mxu0 %v507
    %4188 = vmatprep.subr.mxu0 0.0
    %4189 = vmatpush1.msra.mxu0 0.0
    %4190 = vmatprep.subr.mxu0 0.0
    %4191 = vmatpush1.msra.mxu0 0.0
    %4192 = vmatprep.subr.mxu0 0.0
    %4193 = vmatpush1.msra.mxu0 0.0
    %4194 = vmatprep.subr.mxu0 0.0
    %4195 = vmatpush1.msra.mxu0 0.0
    %4196 = vmatprep.subr.mxu0 0.0
    %4197 = vmatpush1.msra.mxu0 0.0
    %4198 = vmatprep.subr.mxu0 0.0
    %4199 = vmatpush1.msra.mxu0 0.0
    %4200 = vmatprep.subr.mxu0 0.0
    %4201 = vmatpush1.msra.mxu0 0.0
    %4202 = vmatprep.subr.mxu0 0.0
    %4203 = vmatpush1.msra.mxu0 0.0
    %4204 = vmatprep.subr.mxu0 0.0
    %4205 = vmatpush1.msra.mxu0 0.0
    %4206 = vmatprep.subr.mxu0 0.0
    %4207 = vmatpush1.msra.mxu0 0.0
    %4208 = vmatprep.subr.mxu0 0.0
    %4209 = vmatpush1.msra.mxu0 0.0
    %4210 = vmatprep.subr.mxu0 0.0
    %4211 = vmatpush1.msra.mxu0 0.0
    %4212 = vmatprep.subr.mxu0 0.0
    %4213 = vmatpush1.msra.mxu0 0.0
    %4214 = vmatprep.subr.mxu0 0.0
    %4215 = vmatpush1.msra.mxu0 0.0
    %4216 = vmatprep.subr.mxu0 0.0
    %4217 = vmatpush1.msra.mxu0 0.0
    %4218 = vmatprep.subr.mxu0 0.0
    %4219 = vmatpush1.msra.mxu0 0.0
    %4220 = vmatprep.mubr.f32.mxu0 0.0
    %4221 = vmatmul.mubr.f32.gmra.mrb[0].mxu0 %v3779
    %v4222 = vpop.f32.mrb[0].mxu0
    %v4223 = vadd.f32 %v521, %v4222
    %v4224 = vpop.f32.mrb[0].mxu0
    %4225 = vdwg.mxu0
    %v4226 = vadd.f32 %v4082, %v4152
    %v4227 = vxor.u32 %v4226, 2147483648
    %v4228 = vmul.f32 %v4227, 1.442695
    %v4229 = vpow.pop %v4228
    %v4230 = vadd.f32 %v4229, 1.0
    %v4231 = vrcp.pop %v4230
    %v4232 = vmul.f32 1.0, %v4231
    %v4233 = vadd.f32 %v4083, %v4154
    %v4234 = vxor.u32 %v4233, 2147483648
    %v4235 = vmul.f32 %v4234, 1.442695
    %v4236 = vpow.pop %v4235
    %v4237 = vadd.f32 %v4236, 1.0
    %v4238 = vrcp.pop %v4237
    %v4239 = vmul.f32 1.0, %v4238
    %v4240 = vmul.f32 %v4232, %v4223
    %v4241 = vadd.f32 %v4084, %v4240
    %v4242 = vtanh.pop %v4241
    %v4243 = vsub.f32 %v3779, %v4242
    %v4244 = vmul.f32 %v4239, %v4243
    %v4245 = vadd.f32 %v4242, %v4244
    %4246 = vmatprep.subr.mxu0 %v852
    %4247 = vmatpush1.msra.mxu0 %v851
    %4248 = vmatprep.subr.mxu0 %v855
    %4249 = vmatpush1.msra.mxu0 %v854
    %4250 = vmatprep.subr.mxu0 %v858
    %4251 = vmatpush1.msra.mxu0 %v857
    %4252 = vmatprep.subr.mxu0 %v861
    %4253 = vmatpush1.msra.mxu0 %v860
    %4254 = vmatprep.subr.mxu0 %v864
    %4255 = vmatpush1.msra.mxu0 %v863
    %4256 = vmatprep.subr.mxu0 %v867
    %4257 = vmatpush1.msra.mxu0 %v866
    %4258 = vmatprep.subr.mxu0 %v870
    %4259 = vmatpush1.msra.mxu0 %v869
    %4260 = vmatprep.subr.mxu0 %v873
    %4261 = vmatpush1.msra.mxu0 %v872
    %4262 = vmatprep.subr.mxu0 %v876
    %4263 = vmatpush1.msra.mxu0 %v875
    %4264 = vmatprep.subr.mxu0 %v879
    %4265 = vmatpush1.msra.mxu0 %v878
    %4266 = vmatprep.subr.mxu0 %v882
    %4267 = vmatpush1.msra.mxu0 %v881
    %4268 = vmatprep.subr.mxu0 %v885
    %4269 = vmatpush1.msra.mxu0 %v884
    %4270 = vmatprep.subr.mxu0 %v888
    %4271 = vmatpush1.msra.mxu0 %v887
    %4272 = vmatprep.subr.mxu0 %v891
    %4273 = vmatpush1.msra.mxu0 %v890
    %4274 = vmatprep.subr.mxu0 %v894
    %4275 = vmatpush1.msra.mxu0 %v893
    %4276 = vmatprep.subr.mxu0 %v897
    %4277 = vmatpush1.msra.mxu0 %v896
    %4278 = vmatprep.subr.mxu0 0.0
    %4279 = vmatpush1.msra.mxu0 0.0
    %4280 = vmatprep.subr.mxu0 0.0
    %4281 = vmatpush1.msra.mxu0 0.0
    %4282 = vmatprep.subr.mxu0 0.0
    %4283 = vmatpush1.msra.mxu0 0.0
    %4284 = vmatprep.subr.mxu0 0.0
    %4285 = vmatpush1.msra.mxu0 0.0
    %4286 = vmatprep.subr.mxu0 0.0
    %4287 = vmatpush1.msra.mxu0 0.0
    %4288 = vmatprep.subr.mxu0 0.0
    %4289 = vmatpush1.msra.mxu0 0.0
    %4290 = vmatprep.subr.mxu0 0.0
    %4291 = vmatpush1.msra.mxu0 0.0
    %4292 = vmatprep.subr.mxu0 0.0
    %4293 = vmatpush1.msra.mxu0 0.0
    %4294 = vmatprep.subr.mxu0 0.0
    %4295 = vmatpush1.msra.mxu0 0.0
    %4296 = vmatprep.subr.mxu0 0.0
    %4297 = vmatpush1.msra.mxu0 0.0
    %4298 = vmatprep.subr.mxu0 0.0
    %4299 = vmatpush1.msra.mxu0 0.0
    %4300 = vmatprep.subr.mxu0 0.0
    %4301 = vmatpush1.msra.mxu0 0.0
    %4302 = vmatprep.subr.mxu0 0.0
    %4303 = vmatpush1.msra.mxu0 0.0
    %4304 = vmatprep.subr.mxu0 0.0
    %4305 = vmatpush1.msra.mxu0 0.0
    %4306 = vmatprep.subr.mxu0 0.0
    %4307 = vmatpush1.msra.mxu0 0.0
    %4308 = vmatprep.subr.mxu0 0.0
    %4309 = vmatpush1.msra.mxu0 0.0
    %4310 = vmatprep.mubr.f32.mxu0 0.0
    %4311 = vmatmul.mubr.f32.gmra.mrb[0].mxu0 %v3779
    %v4312 = vpop.f32.mrb[0].mxu0
    %v4313 = vadd.f32 %v905, %v4312
    %v4314 = vpop.f32.mrb[0].mxu0
    %v4315 = vadd.f32 %v909, %v4314
    %4316 = vdwg.mxu0
    %4317 = vmatprep.subr.mxu0 0.0
    %4318 = vmatpush1.msra.mxu0 %v853
    %4319 = vmatprep.subr.mxu0 0.0
    %4320 = vmatpush1.msra.mxu0 %v856
    %4321 = vmatprep.subr.mxu0 0.0
    %4322 = vmatpush1.msra.mxu0 %v859
    %4323 = vmatprep.subr.mxu0 0.0
    %4324 = vmatpush1.msra.mxu0 %v862
    %4325 = vmatprep.subr.mxu0 0.0
    %4326 = vmatpush1.msra.mxu0 %v865
    %4327 = vmatprep.subr.mxu0 0.0
    %4328 = vmatpush1.msra.mxu0 %v868
    %4329 = vmatprep.subr.mxu0 0.0
    %4330 = vmatpush1.msra.mxu0 %v871
    %4331 = vmatprep.subr.mxu0 0.0
    %4332 = vmatpush1.msra.mxu0 %v874
    %4333 = vmatprep.subr.mxu0 0.0
    %4334 = vmatpush1.msra.mxu0 %v877
    %4335 = vmatprep.subr.mxu0 0.0
    %4336 = vmatpush1.msra.mxu0 %v880
    %4337 = vmatprep.subr.mxu0 0.0
    %4338 = vmatpush1.msra.mxu0 %v883
    %4339 = vmatprep.subr.mxu0 0.0
    %4340 = vmatpush1.msra.mxu0 %v886
    %4341 = vmatprep.subr.mxu0 0.0
    %4342 = vmatpush1.msra.mxu0 %v889
    %4343 = vmatprep.subr.mxu0 0.0
    %4344 = vmatpush1.msra.mxu0 %v892
    %4345 = vmatprep.subr.mxu0 0.0
    %4346 = vmatpush1.msra.mxu0 %v895
    %4347 = vmatprep.subr.mxu0 0.0
    %4348 = vmatpush1.msra.mxu0 %v898
    %4349 = vmatprep.subr.mxu0 0.0
    %4350 = vmatpush1.msra.mxu0 0.0
    %4351 = vmatprep.subr.mxu0 0.0
    %4352 = vmatpush1.msra.mxu0 0.0
    %4353 = vmatprep.subr.mxu0 0.0
    %4354 = vmatpush1.msra.mxu0 0.0
    %4355 = vmatprep.subr.mxu0 0.0
    %4356 = vmatpush1.msra.mxu0 0.0
    %4357 = vmatprep.subr.mxu0 0.0
    %4358 = vmatpush1.msra.mxu0 0.0
    %4359 = vmatprep.subr.mxu0 0.0
    %4360 = vmatpush1.msra.mxu0 0.0
    %4361 = vmatprep.subr.mxu0 0.0
    %4362 = vmatpush1.msra.mxu0 0.0
    %4363 = vmatprep.subr.mxu0 0.0
    %4364 = vmatpush1.msra.mxu0 0.0
    %4365 = vmatprep.subr.mxu0 0.0
    %4366 = vmatpush1.msra.mxu0 0.0
    %4367 = vmatprep.subr.mxu0 0.0
    %4368 = vmatpush1.msra.mxu0 0.0
    %4369 = vmatprep.subr.mxu0 0.0
    %4370 = vmatpush1.msra.mxu0 0.0
    %4371 = vmatprep.subr.mxu0 0.0
    %4372 = vmatpush1.msra.mxu0 0.0
    %4373 = vmatprep.subr.mxu0 0.0
    %4374 = vmatpush1.msra.mxu0 0.0
    %4375 = vmatprep.subr.mxu0 0.0
    %4376 = vmatpush1.msra.mxu0 0.0
    %4377 = vmatprep.subr.mxu0 0.0
    %4378 = vmatpush1.msra.mxu0 0.0
    %4379 = vmatprep.subr.mxu0 0.0
    %4380 = vmatpush1.msra.mxu0 0.0
    %4381 = vmatprep.mubr.f32.mxu0 0.0
    %4382 = vmatmul.mubr.f32.gmra.mrb[0].mxu0 %v3779
    %v4383 = vpop.f32.mrb[0].mxu0
    %v4384 = vadd.f32 %v913, %v4383
    %v4385 = vpop.f32.mrb[0].mxu0
    %4386 = vdwg.mxu0
    %4387 = vmatprep.subr.mxu0 %v1060
    %4388 = vmatpush1.msra.mxu0 %v1059
    %4389 = vmatprep.subr.mxu0 %v1063
    %4390 = vmatpush1.msra.mxu0 %v1062
    %4391 = vmatprep.subr.mxu0 %v1066
    %4392 = vmatpush1.msra.mxu0 %v1065
    %4393 = vmatprep.subr.mxu0 %v1069
    %4394 = vmatpush1.msra.mxu0 %v1068
    %4395 = vmatprep.subr.mxu0 %v1072
    %4396 = vmatpush1.msra.mxu0 %v1071
    %4397 = vmatprep.subr.mxu0 %v1075
    %4398 = vmatpush1.msra.mxu0 %v1074
    %4399 = vmatprep.subr.mxu0 %v1078
    %4400 = vmatpush1.msra.mxu0 %v1077
    %4401 = vmatprep.subr.mxu0 %v1081
    %4402 = vmatpush1.msra.mxu0 %v1080
    %4403 = vmatprep.subr.mxu0 %v1084
    %4404 = vmatpush1.msra.mxu0 %v1083
    %4405 = vmatprep.subr.mxu0 %v1087
    %4406 = vmatpush1.msra.mxu0 %v1086
    %4407 = vmatprep.subr.mxu0 %v1090
    %4408 = vmatpush1.msra.mxu0 %v1089
    %4409 = vmatprep.subr.mxu0 %v1093
    %4410 = vmatpush1.msra.mxu0 %v1092
    %4411 = vmatprep.subr.mxu0 %v1096
    %4412 = vmatpush1.msra.mxu0 %v1095
    %4413 = vmatprep.subr.mxu0 %v1099
    %4414 = vmatpush1.msra.mxu0 %v1098
    %4415 = vmatprep.subr.mxu0 %v1102
    %4416 = vmatpush1.msra.mxu0 %v1101
    %4417 = vmatprep.subr.mxu0 %v1105
    %4418 = vmatpush1.msra.mxu0 %v1104
    %4419 = vmatprep.subr.mxu0 0.0
    %4420 = vmatpush1.msra.mxu0 0.0
    %4421 = vmatprep.subr.mxu0 0.0
    %4422 = vmatpush1.msra.mxu0 0.0
    %4423 = vmatprep.subr.mxu0 0.0
    %4424 = vmatpush1.msra.mxu0 0.0
    %4425 = vmatprep.subr.mxu0 0.0
    %4426 = vmatpush1.msra.mxu0 0.0
    %4427 = vmatprep.subr.mxu0 0.0
    %4428 = vmatpush1.msra.mxu0 0.0
    %4429 = vmatprep.subr.mxu0 0.0
    %4430 = vmatpush1.msra.mxu0 0.0
    %4431 = vmatprep.subr.mxu0 0.0
    %4432 = vmatpush1.msra.mxu0 0.0
    %4433 = vmatprep.subr.mxu0 0.0
    %4434 = vmatpush1.msra.mxu0 0.0
    %4435 = vmatprep.subr.mxu0 0.0
    %4436 = vmatpush1.msra.mxu0 0.0
    %4437 = vmatprep.subr.mxu0 0.0
    %4438 = vmatpush1.msra.mxu0 0.0
    %4439 = vmatprep.subr.mxu0 0.0
    %4440 = vmatpush1.msra.mxu0 0.0
    %4441 = vmatprep.subr.mxu0 0.0
    %4442 = vmatpush1.msra.mxu0 0.0
    %4443 = vmatprep.subr.mxu0 0.0
    %4444 = vmatpush1.msra.mxu0 0.0
    %4445 = vmatprep.subr.mxu0 0.0
    %4446 = vmatpush1.msra.mxu0 0.0
    %4447 = vmatprep.subr.mxu0 0.0
    %4448 = vmatpush1.msra.mxu0 0.0
    %4449 = vmatprep.subr.mxu0 0.0
    %4450 = vmatpush1.msra.mxu0 0.0
    %4451 = vmatprep.mubr.f32.mxu0 0.0
    %4452 = vmatmul.mubr.f32.gmra.mrb[0].mxu0 %v4081
    %v4453 = vpop.f32.mrb[0].mxu0
    %v4454 = vadd.f32 %v1113, %v4453
    %v4455 = vpop.f32.mrb[0].mxu0
    %v4456 = vadd.f32 %v1117, %v4455
    %4457 = vdwg.mxu0
    %4458 = vmatprep.subr.mxu0 0.0
    %4459 = vmatpush1.msra.mxu0 %v1061
    %4460 = vmatprep.subr.mxu0 0.0
    %4461 = vmatpush1.msra.mxu0 %v1064
    %4462 = vmatprep.subr.mxu0 0.0
    %4463 = vmatpush1.msra.mxu0 %v1067
    %4464 = vmatprep.subr.mxu0 0.0
    %4465 = vmatpush1.msra.mxu0 %v1070
    %4466 = vmatprep.subr.mxu0 0.0
    %4467 = vmatpush1.msra.mxu0 %v1073
    %4468 = vmatprep.subr.mxu0 0.0
    %4469 = vmatpush1.msra.mxu0 %v1076
    %4470 = vmatprep.subr.mxu0 0.0
    %4471 = vmatpush1.msra.mxu0 %v1079
    %4472 = vmatprep.subr.mxu0 0.0
    %4473 = vmatpush1.msra.mxu0 %v1082
    %4474 = vmatprep.subr.mxu0 0.0
    %4475 = vmatpush1.msra.mxu0 %v1085
    %4476 = vmatprep.subr.mxu0 0.0
    %4477 = vmatpush1.msra.mxu0 %v1088
    %4478 = vmatprep.subr.mxu0 0.0
    %4479 = vmatpush1.msra.mxu0 %v1091
    %4480 = vmatprep.subr.mxu0 0.0
    %4481 = vmatpush1.msra.mxu0 %v1094
    %4482 = vmatprep.subr.mxu0 0.0
    %4483 = vmatpush1.msra.mxu0 %v1097
    %4484 = vmatprep.subr.mxu0 0.0
    %4485 = vmatpush1.msra.mxu0 %v1100
    %4486 = vmatprep.subr.mxu0 0.0
    %4487 = vmatpush1.msra.mxu0 %v1103
    %4488 = vmatprep.subr.mxu0 0.0
    %4489 = vmatpush1.msra.mxu0 %v1106
    %4490 = vmatprep.subr.mxu0 0.0
    %4491 = vmatpush1.msra.mxu0 0.0
    %4492 = vmatprep.subr.mxu0 0.0
    %4493 = vmatpush1.msra.mxu0 0.0
    %4494 = vmatprep.subr.mxu0 0.0
    %4495 = vmatpush1.msra.mxu0 0.0
    %4496 = vmatprep.subr.mxu0 0.0
    %4497 = vmatpush1.msra.mxu0 0.0
    %4498 = vmatprep.subr.mxu0 0.0
    %4499 = vmatpush1.msra.mxu0 0.0
    %4500 = vmatprep.subr.mxu0 0.0
    %4501 = vmatpush1.msra.mxu0 0.0
    %4502 = vmatprep.subr.mxu0 0.0
    %4503 = vmatpush1.msra.mxu0 0.0
    %4504 = vmatprep.subr.mxu0 0.0
    %4505 = vmatpush1.msra.mxu0 0.0
    %4506 = vmatprep.subr.mxu0 0.0
    %4507 = vmatpush1.msra.mxu0 0.0
    %4508 = vmatprep.subr.mxu0 0.0
    %4509 = vmatpush1.msra.mxu0 0.0
    %4510 = vmatprep.subr.mxu0 0.0
    %4511 = vmatpush1.msra.mxu0 0.0
    %4512 = vmatprep.subr.mxu0 0.0
    %4513 = vmatpush1.msra.mxu0 0.0
    %4514 = vmatprep.subr.mxu0 0.0
    %4515 = vmatpush1.msra.mxu0 0.0
    %4516 = vmatprep.subr.mxu0 0.0
    %4517 = vmatpush1.msra.mxu0 0.0
    %4518 = vmatprep.subr.mxu0 0.0
    %4519 = vmatpush1.msra.mxu0 0.0
    %4520 = vmatprep.subr.mxu0 0.0
    %4521 = vmatpush1.msra.mxu0 0.0
    %4522 = vmatprep.mubr.f32.mxu0 0.0
    %4523 = vmatmul.mubr.f32.gmra.mrb[0].mxu0 %v4081
    %v4524 = vpop.f32.mrb[0].mxu0
    %v4525 = vadd.f32 %v1121, %v4524
    %v4526 = vpop.f32.mrb[0].mxu0
    %4527 = vdwg.mxu0
    %v4528 = vadd.f32 %v4313, %v4454
    %v4529 = vxor.u32 %v4528, 2147483648
    %v4530 = vmul.f32 %v4529, 1.442695
    %v4531 = vpow.pop %v4530
    %v4532 = vadd.f32 %v4531, 1.0
    %v4533 = vrcp.pop %v4532
    %v4534 = vmul.f32 1.0, %v4533
    %v4535 = vadd.f32 %v4315, %v4456
    %v4536 = vxor.u32 %v4535, 2147483648
    %v4537 = vmul.f32 %v4536, 1.442695
    %v4538 = vpow.pop %v4537
    %v4539 = vadd.f32 %v4538, 1.0
    %v4540 = vrcp.pop %v4539
    %v4541 = vmul.f32 1.0, %v4540
    %v4542 = vmul.f32 %v4534, %v4525
    %v4543 = vadd.f32 %v4384, %v4542
    %v4544 = vtanh.pop %v4543
    %v4545 = vsub.f32 %v4081, %v4544
    %v4546 = vmul.f32 %v4541, %v4545
    %v4547 = vadd.f32 %v4544, %v4546
    %v4548 = vld [vmem:[#allocation2 + $0xd8] sm:$0xff]
    %v4549 = vld [vmem:[#allocation2 + $0xe0] sm:$0xff]
    %v4550 = vld [vmem:[#allocation2 + $0xe8] sm:$0xff]
    %4551 = vmatprep.subr.mxu0 %v461
    %4552 = vmatpush1.msra.mxu0 %v460
    %4553 = vmatprep.subr.mxu0 %v464
    %4554 = vmatpush1.msra.mxu0 %v463
    %4555 = vmatprep.subr.mxu0 %v467
    %4556 = vmatpush1.msra.mxu0 %v466
    %4557 = vmatprep.subr.mxu0 %v470
    %4558 = vmatpush1.msra.mxu0 %v469
    %4559 = vmatprep.subr.mxu0 %v473
    %4560 = vmatpush1.msra.mxu0 %v472
    %4561 = vmatprep.subr.mxu0 %v476
    %4562 = vmatpush1.msra.mxu0 %v475
    %4563 = vmatprep.subr.mxu0 %v479
    %4564 = vmatpush1.msra.mxu0 %v478
    %4565 = vmatprep.subr.mxu0 %v482
    %4566 = vmatpush1.msra.mxu0 %v481
    %4567 = vmatprep.subr.mxu0 %v485
    %4568 = vmatpush1.msra.mxu0 %v484
    %4569 = vmatprep.subr.mxu0 %v488
    %4570 = vmatpush1.msra.mxu0 %v487
    %4571 = vmatprep.subr.mxu0 %v491
    %4572 = vmatpush1.msra.mxu0 %v490
    %4573 = vmatprep.subr.mxu0 %v494
    %4574 = vmatpush1.msra.mxu0 %v493
    %4575 = vmatprep.subr.mxu0 %v497
    %4576 = vmatpush1.msra.mxu0 %v496
    %4577 = vmatprep.subr.mxu0 %v500
    %4578 = vmatpush1.msra.mxu0 %v499
    %4579 = vmatprep.subr.mxu0 %v503
    %4580 = vmatpush1.msra.mxu0 %v502
    %4581 = vmatprep.subr.mxu0 %v506
    %4582 = vmatpush1.msra.mxu0 %v505
    %4583 = vmatprep.subr.mxu0 0.0
    %4584 = vmatpush1.msra.mxu0 0.0
    %4585 = vmatprep.subr.mxu0 0.0
    %4586 = vmatpush1.msra.mxu0 0.0
    %4587 = vmatprep.subr.mxu0 0.0
    %4588 = vmatpush1.msra.mxu0 0.0
    %4589 = vmatprep.subr.mxu0 0.0
    %4590 = vmatpush1.msra.mxu0 0.0
    %4591 = vmatprep.subr.mxu0 0.0
    %4592 = vmatpush1.msra.mxu0 0.0
    %4593 = vmatprep.subr.mxu0 0.0
    %4594 = vmatpush1.msra.mxu0 0.0
    %4595 = vmatprep.subr.mxu0 0.0
    %4596 = vmatpush1.msra.mxu0 0.0
    %4597 = vmatprep.subr.mxu0 0.0
    %4598 = vmatpush1.msra.mxu0 0.0
    %4599 = vmatprep.subr.mxu0 0.0
    %4600 = vmatpush1.msra.mxu0 0.0
    %4601 = vmatprep.subr.mxu0 0.0
    %4602 = vmatpush1.msra.mxu0 0.0
    %4603 = vmatprep.subr.mxu0 0.0
    %4604 = vmatpush1.msra.mxu0 0.0
    %4605 = vmatprep.subr.mxu0 0.0
    %4606 = vmatpush1.msra.mxu0 0.0
    %4607 = vmatprep.subr.mxu0 0.0
    %4608 = vmatpush1.msra.mxu0 0.0
    %4609 = vmatprep.subr.mxu0 0.0
    %4610 = vmatpush1.msra.mxu0 0.0
    %4611 = vmatprep.subr.mxu0 0.0
    %4612 = vmatpush1.msra.mxu0 0.0
    %4613 = vmatprep.subr.mxu0 0.0
    %4614 = vmatpush1.msra.mxu0 0.0
    %4615 = vmatprep.mubr.f32.mxu0 0.0
    %4616 = vmatmul.mubr.f32.gmra.mrb[0].mxu0 %v4245
    %v4617 = vpop.f32.mrb[0].mxu0
    %v4618 = vadd.f32 %v513, %v4617
    %v4619 = vpop.f32.mrb[0].mxu0
    %v4620 = vadd.f32 %v517, %v4619
    %4621 = vdwg.mxu0
    %4622 = vmatprep.subr.mxu0 0.0
    %4623 = vmatpush1.msra.mxu0 %v462
    %4624 = vmatprep.subr.mxu0 0.0
    %4625 = vmatpush1.msra.mxu0 %v465
    %4626 = vmatprep.subr.mxu0 0.0
    %4627 = vmatpush1.msra.mxu0 %v468
    %4628 = vmatprep.subr.mxu0 0.0
    %4629 = vmatpush1.msra.mxu0 %v471
    %4630 = vmatprep.subr.mxu0 0.0
    %4631 = vmatpush1.msra.mxu0 %v474
    %4632 = vmatprep.subr.mxu0 0.0
    %4633 = vmatpush1.msra.mxu0 %v477
    %4634 = vmatprep.subr.mxu0 0.0
    %4635 = vmatpush1.msra.mxu0 %v480
    %4636 = vmatprep.subr.mxu0 0.0
    %4637 = vmatpush1.msra.mxu0 %v483
    %4638 = vmatprep.subr.mxu0 0.0
    %4639 = vmatpush1.msra.mxu0 %v486
    %4640 = vmatprep.subr.mxu0 0.0
    %4641 = vmatpush1.msra.mxu0 %v489
    %4642 = vmatprep.subr.mxu0 0.0
    %4643 = vmatpush1.msra.mxu0 %v492
    %4644 = vmatprep.subr.mxu0 0.0
    %4645 = vmatpush1.msra.mxu0 %v495
    %4646 = vmatprep.subr.mxu0 0.0
    %4647 = vmatpush1.msra.mxu0 %v498
    %4648 = vmatprep.subr.mxu0 0.0
    %4649 = vmatpush1.msra.mxu0 %v501
    %4650 = vmatprep.subr.mxu0 0.0
    %4651 = vmatpush1.msra.mxu0 %v504
    %4652 = vmatprep.subr.mxu0 0.0
    %4653 = vmatpush1.msra.mxu0 %v507
    %4654 = vmatprep.subr.mxu0 0.0
    %4655 = vmatpush1.msra.mxu0 0.0
    %4656 = vmatprep.subr.mxu0 0.0
    %4657 = vmatpush1.msra.mxu0 0.0
    %4658 = vmatprep.subr.mxu0 0.0
    %4659 = vmatpush1.msra.mxu0 0.0
    %4660 = vmatprep.subr.mxu0 0.0
    %4661 = vmatpush1.msra.mxu0 0.0
    %4662 = vmatprep.subr.mxu0 0.0
    %4663 = vmatpush1.msra.mxu0 0.0
    %4664 = vmatprep.subr.mxu0 0.0
    %4665 = vmatpush1.msra.mxu0 0.0
    %4666 = vmatprep.subr.mxu0 0.0
    %4667 = vmatpush1.msra.mxu0 0.0
    %4668 = vmatprep.subr.mxu0 0.0
    %4669 = vmatpush1.msra.mxu0 0.0
    %4670 = vmatprep.subr.mxu0 0.0
    %4671 = vmatpush1.msra.mxu0 0.0
    %4672 = vmatprep.subr.mxu0 0.0
    %4673 = vmatpush1.msra.mxu0 0.0
    %4674 = vmatprep.subr.mxu0 0.0
    %4675 = vmatpush1.msra.mxu0 0.0
    %4676 = vmatprep.subr.mxu0 0.0
    %4677 = vmatpush1.msra.mxu0 0.0
    %4678 = vmatprep.subr.mxu0 0.0
    %4679 = vmatpush1.msra.mxu0 0.0
    %4680 = vmatprep.subr.mxu0 0.0
    %4681 = vmatpush1.msra.mxu0 0.0
    %4682 = vmatprep.subr.mxu0 0.0
    %4683 = vmatpush1.msra.mxu0 0.0
    %4684 = vmatprep.subr.mxu0 0.0
    %4685 = vmatpush1.msra.mxu0 0.0
    %4686 = vmatprep.mubr.f32.mxu0 0.0
    %4687 = vmatmul.mubr.f32.gmra.mrb[0].mxu0 %v4245
    %v4688 = vpop.f32.mrb[0].mxu0
    %v4689 = vadd.f32 %v521, %v4688
    %v4690 = vpop.f32.mrb[0].mxu0
    %4691 = vdwg.mxu0
    %v4692 = vadd.f32 %v4548, %v4618
    %v4693 = vxor.u32 %v4692, 2147483648
    %v4694 = vmul.f32 %v4693, 1.442695
    %v4695 = vpow.pop %v4694
    %v4696 = vadd.f32 %v4695, 1.0
    %v4697 = vrcp.pop %v4696
    %v4698 = vmul.f32 1.0, %v4697
    %v4699 = vadd.f32 %v4549, %v4620
    %v4700 = vxor.u32 %v4699, 2147483648
    %v4701 = vmul.f32 %v4700, 1.442695
    %v4702 = vpow.pop %v4701
    %v4703 = vadd.f32 %v4702, 1.0
    %v4704 = vrcp.pop %v4703
    %v4705 = vmul.f32 1.0, %v4704
    %v4706 = vmul.f32 %v4698, %v4689
    %v4707 = vadd.f32 %v4550, %v4706
    %v4708 = vtanh.pop %v4707
    %v4709 = vsub.f32 %v4245, %v4708
    %v4710 = vmul.f32 %v4705, %v4709
    %v4711 = vadd.f32 %v4708, %v4710
    %4712 = vmatprep.subr.mxu0 %v852
    %4713 = vmatpush1.msra.mxu0 %v851
    %4714 = vmatprep.subr.mxu0 %v855
    %4715 = vmatpush1.msra.mxu0 %v854
    %4716 = vmatprep.subr.mxu0 %v858
    %4717 = vmatpush1.msra.mxu0 %v857
    %4718 = vmatprep.subr.mxu0 %v861
    %4719 = vmatpush1.msra.mxu0 %v860
    %4720 = vmatprep.subr.mxu0 %v864
    %4721 = vmatpush1.msra.mxu0 %v863
    %4722 = vmatprep.subr.mxu0 %v867
    %4723 = vmatpush1.msra.mxu0 %v866
    %4724 = vmatprep.subr.mxu0 %v870
    %4725 = vmatpush1.msra.mxu0 %v869
    %4726 = vmatprep.subr.mxu0 %v873
    %4727 = vmatpush1.msra.mxu0 %v872
    %4728 = vmatprep.subr.mxu0 %v876
    %4729 = vmatpush1.msra.mxu0 %v875
    %4730 = vmatprep.subr.mxu0 %v879
    %4731 = vmatpush1.msra.mxu0 %v878
    %4732 = vmatprep.subr.mxu0 %v882
    %4733 = vmatpush1.msra.mxu0 %v881
    %4734 = vmatprep.subr.mxu0 %v885
    %4735 = vmatpush1.msra.mxu0 %v884
    %4736 = vmatprep.subr.mxu0 %v888
    %4737 = vmatpush1.msra.mxu0 %v887
    %4738 = vmatprep.subr.mxu0 %v891
    %4739 = vmatpush1.msra.mxu0 %v890
    %4740 = vmatprep.subr.mxu0 %v894
    %4741 = vmatpush1.msra.mxu0 %v893
    %4742 = vmatprep.subr.mxu0 %v897
    %4743 = vmatpush1.msra.mxu0 %v896
    %4744 = vmatprep.subr.mxu0 0.0
    %4745 = vmatpush1.msra.mxu0 0.0
    %4746 = vmatprep.subr.mxu0 0.0
    %4747 = vmatpush1.msra.mxu0 0.0
    %4748 = vmatprep.subr.mxu0 0.0
    %4749 = vmatpush1.msra.mxu0 0.0
    %4750 = vmatprep.subr.mxu0 0.0
    %4751 = vmatpush1.msra.mxu0 0.0
    %4752 = vmatprep.subr.mxu0 0.0
    %4753 = vmatpush1.msra.mxu0 0.0
    %4754 = vmatprep.subr.mxu0 0.0
    %4755 = vmatpush1.msra.mxu0 0.0
    %4756 = vmatprep.subr.mxu0 0.0
    %4757 = vmatpush1.msra.mxu0 0.0
    %4758 = vmatprep.subr.mxu0 0.0
    %4759 = vmatpush1.msra.mxu0 0.0
    %4760 = vmatprep.subr.mxu0 0.0
    %4761 = vmatpush1.msra.mxu0 0.0
    %4762 = vmatprep.subr.mxu0 0.0
    %4763 = vmatpush1.msra.mxu0 0.0
    %4764 = vmatprep.subr.mxu0 0.0
    %4765 = vmatpush1.msra.mxu0 0.0
    %4766 = vmatprep.subr.mxu0 0.0
    %4767 = vmatpush1.msra.mxu0 0.0
    %4768 = vmatprep.subr.mxu0 0.0
    %4769 = vmatpush1.msra.mxu0 0.0
    %4770 = vmatprep.subr.mxu0 0.0
    %4771 = vmatpush1.msra.mxu0 0.0
    %4772 = vmatprep.subr.mxu0 0.0
    %4773 = vmatpush1.msra.mxu0 0.0
    %4774 = vmatprep.subr.mxu0 0.0
    %4775 = vmatpush1.msra.mxu0 0.0
    %4776 = vmatprep.mubr.f32.mxu0 0.0
    %4777 = vmatmul.mubr.f32.gmra.mrb[0].mxu0 %v4245
    %v4778 = vpop.f32.mrb[0].mxu0
    %v4779 = vadd.f32 %v905, %v4778
    %v4780 = vpop.f32.mrb[0].mxu0
    %v4781 = vadd.f32 %v909, %v4780
    %4782 = vdwg.mxu0
    %4783 = vmatprep.subr.mxu0 0.0
    %4784 = vmatpush1.msra.mxu0 %v853
    %4785 = vmatprep.subr.mxu0 0.0
    %4786 = vmatpush1.msra.mxu0 %v856
    %4787 = vmatprep.subr.mxu0 0.0
    %4788 = vmatpush1.msra.mxu0 %v859
    %4789 = vmatprep.subr.mxu0 0.0
    %4790 = vmatpush1.msra.mxu0 %v862
    %4791 = vmatprep.subr.mxu0 0.0
    %4792 = vmatpush1.msra.mxu0 %v865
    %4793 = vmatprep.subr.mxu0 0.0
    %4794 = vmatpush1.msra.mxu0 %v868
    %4795 = vmatprep.subr.mxu0 0.0
    %4796 = vmatpush1.msra.mxu0 %v871
    %4797 = vmatprep.subr.mxu0 0.0
    %4798 = vmatpush1.msra.mxu0 %v874
    %4799 = vmatprep.subr.mxu0 0.0
    %4800 = vmatpush1.msra.mxu0 %v877
    %4801 = vmatprep.subr.mxu0 0.0
    %4802 = vmatpush1.msra.mxu0 %v880
    %4803 = vmatprep.subr.mxu0 0.0
    %4804 = vmatpush1.msra.mxu0 %v883
    %4805 = vmatprep.subr.mxu0 0.0
    %4806 = vmatpush1.msra.mxu0 %v886
    %4807 = vmatprep.subr.mxu0 0.0
    %4808 = vmatpush1.msra.mxu0 %v889
    %4809 = vmatprep.subr.mxu0 0.0
    %4810 = vmatpush1.msra.mxu0 %v892
    %4811 = vmatprep.subr.mxu0 0.0
    %4812 = vmatpush1.msra.mxu0 %v895
    %4813 = vmatprep.subr.mxu0 0.0
    %4814 = vmatpush1.msra.mxu0 %v898
    %4815 = vmatprep.subr.mxu0 0.0
    %4816 = vmatpush1.msra.mxu0 0.0
    %4817 = vmatprep.subr.mxu0 0.0
    %4818 = vmatpush1.msra.mxu0 0.0
    %4819 = vmatprep.subr.mxu0 0.0
    %4820 = vmatpush1.msra.mxu0 0.0
    %4821 = vmatprep.subr.mxu0 0.0
    %4822 = vmatpush1.msra.mxu0 0.0
    %4823 = vmatprep.subr.mxu0 0.0
    %4824 = vmatpush1.msra.mxu0 0.0
    %4825 = vmatprep.subr.mxu0 0.0
    %4826 = vmatpush1.msra.mxu0 0.0
    %4827 = vmatprep.subr.mxu0 0.0
    %4828 = vmatpush1.msra.mxu0 0.0
    %4829 = vmatprep.subr.mxu0 0.0
    %4830 = vmatpush1.msra.mxu0 0.0
    %4831 = vmatprep.subr.mxu0 0.0
    %4832 = vmatpush1.msra.mxu0 0.0
    %4833 = vmatprep.subr.mxu0 0.0
    %4834 = vmatpush1.msra.mxu0 0.0
    %4835 = vmatprep.subr.mxu0 0.0
    %4836 = vmatpush1.msra.mxu0 0.0
    %4837 = vmatprep.subr.mxu0 0.0
    %4838 = vmatpush1.msra.mxu0 0.0
    %4839 = vmatprep.subr.mxu0 0.0
    %4840 = vmatpush1.msra.mxu0 0.0
    %4841 = vmatprep.subr.mxu0 0.0
    %4842 = vmatpush1.msra.mxu0 0.0
    %4843 = vmatprep.subr.mxu0 0.0
    %4844 = vmatpush1.msra.mxu0 0.0
    %4845 = vmatprep.subr.mxu0 0.0
    %4846 = vmatpush1.msra.mxu0 0.0
    %4847 = vmatprep.mubr.f32.mxu0 0.0
    %4848 = vmatmul.mubr.f32.gmra.mrb[0].mxu0 %v4245
    %v4849 = vpop.f32.mrb[0].mxu0
    %v4850 = vadd.f32 %v913, %v4849
    %v4851 = vpop.f32.mrb[0].mxu0
    %4852 = vdwg.mxu0
    %4853 = vmatprep.subr.mxu0 %v1060
    %4854 = vmatpush1.msra.mxu0 %v1059
    %4855 = vmatprep.subr.mxu0 %v1063
    %4856 = vmatpush1.msra.mxu0 %v1062
    %4857 = vmatprep.subr.mxu0 %v1066
    %4858 = vmatpush1.msra.mxu0 %v1065
    %4859 = vmatprep.subr.mxu0 %v1069
    %4860 = vmatpush1.msra.mxu0 %v1068
    %4861 = vmatprep.subr.mxu0 %v1072
    %4862 = vmatpush1.msra.mxu0 %v1071
    %4863 = vmatprep.subr.mxu0 %v1075
    %4864 = vmatpush1.msra.mxu0 %v1074
    %4865 = vmatprep.subr.mxu0 %v1078
    %4866 = vmatpush1.msra.mxu0 %v1077
    %4867 = vmatprep.subr.mxu0 %v1081
    %4868 = vmatpush1.msra.mxu0 %v1080
    %4869 = vmatprep.subr.mxu0 %v1084
    %4870 = vmatpush1.msra.mxu0 %v1083
    %4871 = vmatprep.subr.mxu0 %v1087
    %4872 = vmatpush1.msra.mxu0 %v1086
    %4873 = vmatprep.subr.mxu0 %v1090
    %4874 = vmatpush1.msra.mxu0 %v1089
    %4875 = vmatprep.subr.mxu0 %v1093
    %4876 = vmatpush1.msra.mxu0 %v1092
    %4877 = vmatprep.subr.mxu0 %v1096
    %4878 = vmatpush1.msra.mxu0 %v1095
    %4879 = vmatprep.subr.mxu0 %v1099
    %4880 = vmatpush1.msra.mxu0 %v1098
    %4881 = vmatprep.subr.mxu0 %v1102
    %4882 = vmatpush1.msra.mxu0 %v1101
    %4883 = vmatprep.subr.mxu0 %v1105
    %4884 = vmatpush1.msra.mxu0 %v1104
    %4885 = vmatprep.subr.mxu0 0.0
    %4886 = vmatpush1.msra.mxu0 0.0
    %4887 = vmatprep.subr.mxu0 0.0
    %4888 = vmatpush1.msra.mxu0 0.0
    %4889 = vmatprep.subr.mxu0 0.0
    %4890 = vmatpush1.msra.mxu0 0.0
    %4891 = vmatprep.subr.mxu0 0.0
    %4892 = vmatpush1.msra.mxu0 0.0
    %4893 = vmatprep.subr.mxu0 0.0
    %4894 = vmatpush1.msra.mxu0 0.0
    %4895 = vmatprep.subr.mxu0 0.0
    %4896 = vmatpush1.msra.mxu0 0.0
    %4897 = vmatprep.subr.mxu0 0.0
    %4898 = vmatpush1.msra.mxu0 0.0
    %4899 = vmatprep.subr.mxu0 0.0
    %4900 = vmatpush1.msra.mxu0 0.0
    %4901 = vmatprep.subr.mxu0 0.0
    %4902 = vmatpush1.msra.mxu0 0.0
    %4903 = vmatprep.subr.mxu0 0.0
    %4904 = vmatpush1.msra.mxu0 0.0
    %4905 = vmatprep.subr.mxu0 0.0
    %4906 = vmatpush1.msra.mxu0 0.0
    %4907 = vmatprep.subr.mxu0 0.0
    %4908 = vmatpush1.msra.mxu0 0.0
    %4909 = vmatprep.subr.mxu0 0.0
    %4910 = vmatpush1.msra.mxu0 0.0
    %4911 = vmatprep.subr.mxu0 0.0
    %4912 = vmatpush1.msra.mxu0 0.0
    %4913 = vmatprep.subr.mxu0 0.0
    %4914 = vmatpush1.msra.mxu0 0.0
    %4915 = vmatprep.subr.mxu0 0.0
    %4916 = vmatpush1.msra.mxu0 0.0
    %4917 = vmatprep.mubr.f32.mxu0 0.0
    %4918 = vmatmul.mubr.f32.gmra.mrb[0].mxu0 %v4547
    %v4919 = vpop.f32.mrb[0].mxu0
    %v4920 = vadd.f32 %v1113, %v4919
    %v4921 = vpop.f32.mrb[0].mxu0
    %v4922 = vadd.f32 %v1117, %v4921
    %4923 = vdwg.mxu0
    %4924 = vmatprep.subr.mxu0 0.0
    %4925 = vmatpush1.msra.mxu0 %v1061
    %4926 = vmatprep.subr.mxu0 0.0
    %4927 = vmatpush1.msra.mxu0 %v1064
    %4928 = vmatprep.subr.mxu0 0.0
    %4929 = vmatpush1.msra.mxu0 %v1067
    %4930 = vmatprep.subr.mxu0 0.0
    %4931 = vmatpush1.msra.mxu0 %v1070
    %4932 = vmatprep.subr.mxu0 0.0
    %4933 = vmatpush1.msra.mxu0 %v1073
    %4934 = vmatprep.subr.mxu0 0.0
    %4935 = vmatpush1.msra.mxu0 %v1076
    %4936 = vmatprep.subr.mxu0 0.0
    %4937 = vmatpush1.msra.mxu0 %v1079
    %4938 = vmatprep.subr.mxu0 0.0
    %4939 = vmatpush1.msra.mxu0 %v1082
    %4940 = vmatprep.subr.mxu0 0.0
    %4941 = vmatpush1.msra.mxu0 %v1085
    %4942 = vmatprep.subr.mxu0 0.0
    %4943 = vmatpush1.msra.mxu0 %v1088
    %4944 = vmatprep.subr.mxu0 0.0
    %4945 = vmatpush1.msra.mxu0 %v1091
    %4946 = vmatprep.subr.mxu0 0.0
    %4947 = vmatpush1.msra.mxu0 %v1094
    %4948 = vmatprep.subr.mxu0 0.0
    %4949 = vmatpush1.msra.mxu0 %v1097
    %4950 = vmatprep.subr.mxu0 0.0
    %4951 = vmatpush1.msra.mxu0 %v1100
    %4952 = vmatprep.subr.mxu0 0.0
    %4953 = vmatpush1.msra.mxu0 %v1103
    %4954 = vmatprep.subr.mxu0 0.0
    %4955 = vmatpush1.msra.mxu0 %v1106
    %4956 = vmatprep.subr.mxu0 0.0
    %4957 = vmatpush1.msra.mxu0 0.0
    %4958 = vmatprep.subr.mxu0 0.0
    %4959 = vmatpush1.msra.mxu0 0.0
    %4960 = vmatprep.subr.mxu0 0.0
    %4961 = vmatpush1.msra.mxu0 0.0
    %4962 = vmatprep.subr.mxu0 0.0
    %4963 = vmatpush1.msra.mxu0 0.0
    %4964 = vmatprep.subr.mxu0 0.0
    %4965 = vmatpush1.msra.mxu0 0.0
    %4966 = vmatprep.subr.mxu0 0.0
    %4967 = vmatpush1.msra.mxu0 0.0
    %4968 = vmatprep.subr.mxu0 0.0
    %4969 = vmatpush1.msra.mxu0 0.0
    %4970 = vmatprep.subr.mxu0 0.0
    %4971 = vmatpush1.msra.mxu0 0.0
    %4972 = vmatprep.subr.mxu0 0.0
    %4973 = vmatpush1.msra.mxu0 0.0
    %4974 = vmatprep.subr.mxu0 0.0
    %4975 = vmatpush1.msra.mxu0 0.0
    %4976 = vmatprep.subr.mxu0 0.0
    %4977 = vmatpush1.msra.mxu0 0.0
    %4978 = vmatprep.subr.mxu0 0.0
    %4979 = vmatpush1.msra.mxu0 0.0
    %4980 = vmatprep.subr.mxu0 0.0
    %4981 = vmatpush1.msra.mxu0 0.0
    %4982 = vmatprep.subr.mxu0 0.0
    %4983 = vmatpush1.msra.mxu0 0.0
    %4984 = vmatprep.subr.mxu0 0.0
    %4985 = vmatpush1.msra.mxu0 0.0
    %4986 = vmatprep.subr.mxu0 0.0
    %4987 = vmatpush1.msra.mxu0 0.0
    %4988 = vmatprep.mubr.f32.mxu0 0.0
    %4989 = vmatmul.mubr.f32.gmra.mrb[0].mxu0 %v4547
    %v4990 = vpop.f32.mrb[0].mxu0
    %v4991 = vadd.f32 %v1121, %v4990
    %v4992 = vpop.f32.mrb[0].mxu0
    %4993 = vdwg.mxu0
    %v4994 = vadd.f32 %v4779, %v4920
    %v4995 = vxor.u32 %v4994, 2147483648
    %v4996 = vmul.f32 %v4995, 1.442695
    %v4997 = vpow.pop %v4996
    %v4998 = vadd.f32 %v4997, 1.0
    %v4999 = vrcp.pop %v4998
    %v5000 = vmul.f32 1.0, %v4999
    %v5001 = vadd.f32 %v4781, %v4922
    %v5002 = vxor.u32 %v5001, 2147483648
    %v5003 = vmul.f32 %v5002, 1.442695
    %v5004 = vpow.pop %v5003
    %v5005 = vadd.f32 %v5004, 1.0
    %v5006 = vrcp.pop %v5005
    %v5007 = vmul.f32 1.0, %v5006
    %v5008 = vmul.f32 %v5000, %v4991
    %v5009 = vadd.f32 %v4850, %v5008
    %v5010 = vtanh.pop %v5009
    %v5011 = vsub.f32 %v4547, %v5010
    %v5012 = vmul.f32 %v5007, %v5011
    %v5013 = vadd.f32 %v5010, %v5012
    %5014 = vst [vmem:[#allocation3] sm:$0xff] %v5013
    %v5015 = vld [vmem:[#allocation2 + $0xf0] sm:$0xff]
    %v5016 = vld [vmem:[#allocation2 + $0xf8] sm:$0xff]
    %v5017 = vld [vmem:[#allocation2 + $0x100] sm:$0xff]
    %v5018 = vld [vmem:[#allocation9] sm:$0xff]
    %v5019 = vld [vmem:[#allocation9 + $0x8] sm:$0xff]
    %v5020 = vld [vmem:[#allocation9 + $0x10] sm:$0xff]
    %v5021 = vld [vmem:[#allocation9 + $0x18] sm:$0xff]
    %v5022 = vld [vmem:[#allocation9 + $0x20] sm:$0xff]
    %v5023 = vld [vmem:[#allocation9 + $0x28] sm:$0xff]
    %v5024 = vld [vmem:[#allocation9 + $0x30] sm:$0xff]
    %v5025 = vld [vmem:[#allocation9 + $0x38] sm:$0xff]
    %v5026 = vld [vmem:[#allocation9 + $0x40] sm:$0xff]
    %v5027 = vld [vmem:[#allocation9 + $0x48] sm:$0xff]
    %v5028 = vld [vmem:[#allocation9 + $0x50] sm:$0xff]
    %v5029 = vld [vmem:[#allocation9 + $0x58] sm:$0xff]
    %v5030 = vld [vmem:[#allocation9 + $0x60] sm:$0xff]
    %v5031 = vld [vmem:[#allocation9 + $0x68] sm:$0xff]
    %v5032 = vld [vmem:[#allocation9 + $0x70] sm:$0xff]
    %v5033 = vld [vmem:[#allocation9 + $0x78] sm:$0xff]
    %v5034 = vld [vmem:[#allocation9 + $0x80] sm:$0xff]
    %v5035 = vld [vmem:[#allocation9 + $0x88] sm:$0xff]
    %v5036 = vld [vmem:[#allocation9 + $0x90] sm:$0xff]
    %v5037 = vld [vmem:[#allocation9 + $0x98] sm:$0xff]
    %v5038 = vld [vmem:[#allocation9 + $0xa0] sm:$0xff]
    %v5039 = vld [vmem:[#allocation9 + $0xa8] sm:$0xff]
    %v5040 = vld [vmem:[#allocation9 + $0xb0] sm:$0xff]
    %v5041 = vld [vmem:[#allocation9 + $0xb8] sm:$0xff]
    %v5042 = vld [vmem:[#allocation9 + $0xc0] sm:$0xff]
    %v5043 = vld [vmem:[#allocation9 + $0xc8] sm:$0xff]
    %v5044 = vld [vmem:[#allocation9 + $0xd0] sm:$0xff]
    %v5045 = vld [vmem:[#allocation9 + $0xd8] sm:$0xff]
    %v5046 = vld [vmem:[#allocation9 + $0xe0] sm:$0xff]
    %v5047 = vld [vmem:[#allocation9 + $0xe8] sm:$0xff]
    %v5048 = vld [vmem:[#allocation9 + $0xf0] sm:$0xff]
    %v5049 = vld [vmem:[#allocation9 + $0xf8] sm:$0xff]
    %v5050 = vld [vmem:[#allocation9 + $0x100] sm:$0xff]
    %v5051 = vld [vmem:[#allocation9 + $0x108] sm:$0xff]
    %v5052 = vld [vmem:[#allocation9 + $0x110] sm:$0xff]
    %v5053 = vld [vmem:[#allocation9 + $0x118] sm:$0xff]
    %v5054 = vld [vmem:[#allocation9 + $0x120] sm:$0xff]
    %v5055 = vld [vmem:[#allocation9 + $0x128] sm:$0xff]
    %v5056 = vld [vmem:[#allocation9 + $0x130] sm:$0xff]
    %v5057 = vld [vmem:[#allocation9 + $0x138] sm:$0xff]
    %v5058 = vld [vmem:[#allocation9 + $0x140] sm:$0xff]
    %v5059 = vld [vmem:[#allocation9 + $0x148] sm:$0xff]
    %v5060 = vld [vmem:[#allocation9 + $0x150] sm:$0xff]
    %v5061 = vld [vmem:[#allocation9 + $0x158] sm:$0xff]
    %v5062 = vld [vmem:[#allocation9 + $0x160] sm:$0xff]
    %v5063 = vld [vmem:[#allocation9 + $0x168] sm:$0xff]
    %v5064 = vld [vmem:[#allocation9 + $0x170] sm:$0xff]
    %v5065 = vld [vmem:[#allocation9 + $0x178] sm:$0xff]
    %v5066 = vld [vmem:[%s4] sm:$0x7]
    %v5068 = vlaneseq
    %v5069 = vshrl.u32 %v5068, 7
    %v5070 = vsub.s32 0, %v5069
    %v5071 = vrot.slane %v5066, %v5070
    %v5072 = vlaneseq
    %v5073 = vshrl.u32 %v5072, 7
    %v5074 = vsub.s32 1, %v5073
    %v5075 = vrot.slane %v5066, %v5074
    %v5076 = vlaneseq
    %v5077 = vshrl.u32 %v5076, 7
    %v5078 = vsub.s32 2, %v5077
    %v5079 = vrot.slane %v5066, %v5078
    %5083 = vmatprep.subr.mxu0 %v5019
    %5084 = vmatpush1.msra.mxu0 %v5018
    %5085 = vmatprep.subr.mxu0 %v5022
    %5086 = vmatpush1.msra.mxu0 %v5021
    %5087 = vmatprep.subr.mxu0 %v5025
    %5088 = vmatpush1.msra.mxu0 %v5024
    %5089 = vmatprep.subr.mxu0 %v5028
    %5090 = vmatpush1.msra.mxu0 %v5027
    %5091 = vmatprep.subr.mxu0 %v5031
    %5092 = vmatpush1.msra.mxu0 %v5030
    %5093 = vmatprep.subr.mxu0 %v5034
    %5094 = vmatpush1.msra.mxu0 %v5033
    %5095 = vmatprep.subr.mxu0 %v5037
    %5096 = vmatpush1.msra.mxu0 %v5036
    %5097 = vmatprep.subr.mxu0 %v5040
    %5098 = vmatpush1.msra.mxu0 %v5039
    %5099 = vmatprep.subr.mxu0 %v5043
    %5100 = vmatpush1.msra.mxu0 %v5042
    %5101 = vmatprep.subr.mxu0 %v5046
    %5102 = vmatpush1.msra.mxu0 %v5045
    %5103 = vmatprep.subr.mxu0 %v5049
    %5104 = vmatpush1.msra.mxu0 %v5048
    %5105 = vmatprep.subr.mxu0 %v5052
    %5106 = vmatpush1.msra.mxu0 %v5051
    %5107 = vmatprep.subr.mxu0 %v5055
    %5108 = vmatpush1.msra.mxu0 %v5054
    %5109 = vmatprep.subr.mxu0 %v5058
    %5110 = vmatpush1.msra.mxu0 %v5057
    %5111 = vmatprep.subr.mxu0 %v5061
    %5112 = vmatpush1.msra.mxu0 %v5060
    %5113 = vmatprep.subr.mxu0 %v5064
    %5114 = vmatpush1.msra.mxu0 %v5063
    %5115 = vmatprep.subr.mxu0 0.0
    %5116 = vmatpush1.msra.mxu0 0.0
    %5117 = vmatprep.subr.mxu0 0.0
    %5118 = vmatpush1.msra.mxu0 0.0
    %5119 = vmatprep.subr.mxu0 0.0
    %5120 = vmatpush1.msra.mxu0 0.0
    %5121 = vmatprep.subr.mxu0 0.0
    %5122 = vmatpush1.msra.mxu0 0.0
    %5123 = vmatprep.subr.mxu0 0.0
    %5124 = vmatpush1.msra.mxu0 0.0
    %5125 = vmatprep.subr.mxu0 0.0
    %5126 = vmatpush1.msra.mxu0 0.0
    %5127 = vmatprep.subr.mxu0 0.0
    %5128 = vmatpush1.msra.mxu0 0.0
    %5129 = vmatprep.subr.mxu0 0.0
    %5130 = vmatpush1.msra.mxu0 0.0
    %5131 = vmatprep.subr.mxu0 0.0
    %5132 = vmatpush1.msra.mxu0 0.0
    %5133 = vmatprep.subr.mxu0 0.0
    %5134 = vmatpush1.msra.mxu0 0.0
    %5135 = vmatprep.subr.mxu0 0.0
    %5136 = vmatpush1.msra.mxu0 0.0
    %5137 = vmatprep.subr.mxu0 0.0
    %5138 = vmatpush1.msra.mxu0 0.0
    %5139 = vmatprep.subr.mxu0 0.0
    %5140 = vmatpush1.msra.mxu0 0.0
    %5141 = vmatprep.subr.mxu0 0.0
    %5142 = vmatpush1.msra.mxu0 0.0
    %5143 = vmatprep.subr.mxu0 0.0
    %5144 = vmatpush1.msra.mxu0 0.0
    %5145 = vmatprep.subr.mxu0 0.0
    %5146 = vmatpush1.msra.mxu0 0.0
    %5147 = vmatprep.mubr.f32.mxu0 0.0
    %5148 = vmatmul.mubr.f32.gmra.mrb[0].mxu0 %v4711
    %v5149 = vpop.f32.mrb[0].mxu0
    %v5150 = vadd.f32 %v5071, %v5149
    %v5151 = vpop.f32.mrb[0].mxu0
    %v5152 = vadd.f32 %v5075, %v5151
    %5153 = vdwg.mxu0
    %5154 = vmatprep.subr.mxu0 0.0
    %5155 = vmatpush1.msra.mxu0 %v5020
    %5156 = vmatprep.subr.mxu0 0.0
    %5157 = vmatpush1.msra.mxu0 %v5023
    %5158 = vmatprep.subr.mxu0 0.0
    %5159 = vmatpush1.msra.mxu0 %v5026
    %5160 = vmatprep.subr.mxu0 0.0
    %5161 = vmatpush1.msra.mxu0 %v5029
    %5162 = vmatprep.subr.mxu0 0.0
    %5163 = vmatpush1.msra.mxu0 %v5032
    %5164 = vmatprep.subr.mxu0 0.0
    %5165 = vmatpush1.msra.mxu0 %v5035
    %5166 = vmatprep.subr.mxu0 0.0
    %5167 = vmatpush1.msra.mxu0 %v5038
    %5168 = vmatprep.subr.mxu0 0.0
    %5169 = vmatpush1.msra.mxu0 %v5041
    %5170 = vmatprep.subr.mxu0 0.0
    %5171 = vmatpush1.msra.mxu0 %v5044
    %5172 = vmatprep.subr.mxu0 0.0
    %5173 = vmatpush1.msra.mxu0 %v5047
    %5174 = vmatprep.subr.mxu0 0.0
    %5175 = vmatpush1.msra.mxu0 %v5050
    %5176 = vmatprep.subr.mxu0 0.0
    %5177 = vmatpush1.msra.mxu0 %v5053
    %5178 = vmatprep.subr.mxu0 0.0
    %5179 = vmatpush1.msra.mxu0 %v5056
    %5180 = vmatprep.subr.mxu0 0.0
    %5181 = vmatpush1.msra.mxu0 %v5059
    %5182 = vmatprep.subr.mxu0 0.0
    %5183 = vmatpush1.msra.mxu0 %v5062
    %5184 = vmatprep.subr.mxu0 0.0
    %5185 = vmatpush1.msra.mxu0 %v5065
    %5186 = vmatprep.subr.mxu0 0.0
    %5187 = vmatpush1.msra.mxu0 0.0
    %5188 = vmatprep.subr.mxu0 0.0
    %5189 = vmatpush1.msra.mxu0 0.0
    %5190 = vmatprep.subr.mxu0 0.0
    %5191 = vmatpush1.msra.mxu0 0.0
    %5192 = vmatprep.subr.mxu0 0.0
    %5193 = vmatpush1.msra.mxu0 0.0
    %5194 = vmatprep.subr.mxu0 0.0
    %5195 = vmatpush1.msra.mxu0 0.0
    %5196 = vmatprep.subr.mxu0 0.0
    %5197 = vmatpush1.msra.mxu0 0.0
    %5198 = vmatprep.subr.mxu0 0.0
    %5199 = vmatpush1.msra.mxu0 0.0
    %5200 = vmatprep.subr.mxu0 0.0
    %5201 = vmatpush1.msra.mxu0 0.0
    %5202 = vmatprep.subr.mxu0 0.0
    %5203 = vmatpush1.msra.mxu0 0.0
    %5204 = vmatprep.subr.mxu0 0.0
    %5205 = vmatpush1.msra.mxu0 0.0
    %5206 = vmatprep.subr.mxu0 0.0
    %5207 = vmatpush1.msra.mxu0 0.0
    %5208 = vmatprep.subr.mxu0 0.0
    %5209 = vmatpush1.msra.mxu0 0.0
    %5210 = vmatprep.subr.mxu0 0.0
    %5211 = vmatpush1.msra.mxu0 0.0
    %5212 = vmatprep.subr.mxu0 0.0
    %5213 = vmatpush1.msra.mxu0 0.0
    %5214 = vmatprep.subr.mxu0 0.0
    %5215 = vmatpush1.msra.mxu0 0.0
    %5216 = vmatprep.subr.mxu0 0.0
    %5217 = vmatpush1.msra.mxu0 0.0
    %5218 = vmatprep.mubr.f32.mxu0 0.0
    %5219 = vmatmul.mubr.f32.gmra.mrb[0].mxu0 %v4711
    %v5220 = vpop.f32.mrb[0].mxu0
    %v5221 = vadd.f32 %v5079, %v5220
    %v5222 = vpop.f32.mrb[0].mxu0
    %5223 = vdwg.mxu0
    %v5224 = vadd.f32 %v5015, %v5150
    %v5225 = vxor.u32 %v5224, 2147483648
    %v5226 = vmul.f32 %v5225, 1.442695
    %v5227 = vpow.pop %v5226
    %v5228 = vadd.f32 %v5227, 1.0
    %v5229 = vrcp.pop %v5228
    %v5230 = vmul.f32 1.0, %v5229
    %v5231 = vadd.f32 %v5016, %v5152
    %v5232 = vxor.u32 %v5231, 2147483648
    %v5233 = vmul.f32 %v5232, 1.442695
    %v5234 = vpow.pop %v5233
    %v5235 = vadd.f32 %v5234, 1.0
    %v5236 = vrcp.pop %v5235
    %v5237 = vmul.f32 1.0, %v5236
    %v5238 = vmul.f32 %v5230, %v5221
    %v5239 = vadd.f32 %v5017, %v5238
    %v5240 = vtanh.pop %v5239
    %v5241 = vsub.f32 %v4711, %v5240
    %v5242 = vmul.f32 %v5237, %v5241
    %v5243 = vadd.f32 %v5240, %v5242
    %v5244 = vld [vmem:[%s850] sm:$0xff]
    %v5245 = vld [vmem:[%s850 + $0x8] sm:$0xff]
    %v5246 = vld [vmem:[%s850 + $0x10] sm:$0xff]
    %v5247 = vld [vmem:[%s850 + $0x18] sm:$0xff]
    %v5248 = vld [vmem:[%s850 + $0x20] sm:$0xff]
    %v5249 = vld [vmem:[%s850 + $0x28] sm:$0xff]
    %v5250 = vld [vmem:[%s850 + $0x30] sm:$0xff]
    %v5251 = vld [vmem:[%s850 + $0x38] sm:$0xff]
    %v5252 = vld [vmem:[%s850 + $0x40] sm:$0xff]
    %v5253 = vld [vmem:[%s850 + $0x48] sm:$0xff]
    %v5254 = vld [vmem:[%s850 + $0x50] sm:$0xff]
    %v5255 = vld [vmem:[%s850 + $0x58] sm:$0xff]
    %v5256 = vld [vmem:[%s850 + $0x60] sm:$0xff]
    %v5257 = vld [vmem:[%s850 + $0x68] sm:$0xff]
    %v5258 = vld [vmem:[%s850 + $0x70] sm:$0xff]
    %v5259 = vld [vmem:[%s850 + $0x78] sm:$0xff]
    %v5260 = vld [vmem:[%s850 + $0x80] sm:$0xff]
    %v5261 = vld [vmem:[%s850 + $0x88] sm:$0xff]
    %v5262 = vld [vmem:[%s850 + $0x90] sm:$0xff]
    %v5263 = vld [vmem:[%s850 + $0x98] sm:$0xff]
    %v5264 = vld [vmem:[%s850 + $0xa0] sm:$0xff]
    %v5265 = vld [vmem:[%s850 + $0xa8] sm:$0xff]
    %v5266 = vld [vmem:[%s850 + $0xb0] sm:$0xff]
    %v5267 = vld [vmem:[%s850 + $0xb8] sm:$0xff]
    %v5268 = vld [vmem:[%s850 + $0xc0] sm:$0xff]
    %v5269 = vld [vmem:[%s850 + $0xc8] sm:$0xff]
    %v5270 = vld [vmem:[%s850 + $0xd0] sm:$0xff]
    %v5271 = vld [vmem:[%s850 + $0xd8] sm:$0xff]
    %v5272 = vld [vmem:[%s850 + $0xe0] sm:$0xff]
    %v5273 = vld [vmem:[%s850 + $0xe8] sm:$0xff]
    %v5274 = vld [vmem:[%s850 + $0xf0] sm:$0xff]
    %v5275 = vld [vmem:[%s850 + $0xf8] sm:$0xff]
    %v5276 = vld [vmem:[%s850 + $0x100] sm:$0xff]
    %v5277 = vld [vmem:[%s850 + $0x108] sm:$0xff]
    %v5278 = vld [vmem:[%s850 + $0x110] sm:$0xff]
    %v5279 = vld [vmem:[%s850 + $0x118] sm:$0xff]
    %v5280 = vld [vmem:[%s850 + $0x120] sm:$0xff]
    %v5281 = vld [vmem:[%s850 + $0x128] sm:$0xff]
    %v5282 = vld [vmem:[%s850 + $0x130] sm:$0xff]
    %v5283 = vld [vmem:[%s850 + $0x138] sm:$0xff]
    %v5284 = vld [vmem:[%s850 + $0x140] sm:$0xff]
    %v5285 = vld [vmem:[%s850 + $0x148] sm:$0xff]
    %v5286 = vld [vmem:[%s850 + $0x150] sm:$0xff]
    %v5287 = vld [vmem:[%s850 + $0x158] sm:$0xff]
    %v5288 = vld [vmem:[%s850 + $0x160] sm:$0xff]
    %v5289 = vld [vmem:[%s850 + $0x168] sm:$0xff]
    %v5290 = vld [vmem:[%s850 + $0x170] sm:$0xff]
    %v5291 = vld [vmem:[%s850 + $0x178] sm:$0xff]
    %v5292 = vld [vmem:[%s899] sm:$0x7]
    %v5294 = vlaneseq
    %v5295 = vshrl.u32 %v5294, 7
    %v5296 = vsub.s32 0, %v5295
    %v5297 = vrot.slane %v5292, %v5296
    %v5298 = vlaneseq
    %v5299 = vshrl.u32 %v5298, 7
    %v5300 = vsub.s32 1, %v5299
    %v5301 = vrot.slane %v5292, %v5300
    %v5302 = vlaneseq
    %v5303 = vshrl.u32 %v5302, 7
    %v5304 = vsub.s32 2, %v5303
    %v5305 = vrot.slane %v5292, %v5304
    %5309 = vmatprep.subr.mxu0 %v5245
    %5310 = vmatpush1.msra.mxu0 %v5244
    %5311 = vmatprep.subr.mxu0 %v5248
    %5312 = vmatpush1.msra.mxu0 %v5247
    %5313 = vmatprep.subr.mxu0 %v5251
    %5314 = vmatpush1.msra.mxu0 %v5250
    %5315 = vmatprep.subr.mxu0 %v5254
    %5316 = vmatpush1.msra.mxu0 %v5253
    %5317 = vmatprep.subr.mxu0 %v5257
    %5318 = vmatpush1.msra.mxu0 %v5256
    %5319 = vmatprep.subr.mxu0 %v5260
    %5320 = vmatpush1.msra.mxu0 %v5259
    %5321 = vmatprep.subr.mxu0 %v5263
    %5322 = vmatpush1.msra.mxu0 %v5262
    %5323 = vmatprep.subr.mxu0 %v5266
    %5324 = vmatpush1.msra.mxu0 %v5265
    %5325 = vmatprep.subr.mxu0 %v5269
    %5326 = vmatpush1.msra.mxu0 %v5268
    %5327 = vmatprep.subr.mxu0 %v5272
    %5328 = vmatpush1.msra.mxu0 %v5271
    %5329 = vmatprep.subr.mxu0 %v5275
    %5330 = vmatpush1.msra.mxu0 %v5274
    %5331 = vmatprep.subr.mxu0 %v5278
    %5332 = vmatpush1.msra.mxu0 %v5277
    %5333 = vmatprep.subr.mxu0 %v5281
    %5334 = vmatpush1.msra.mxu0 %v5280
    %5335 = vmatprep.subr.mxu0 %v5284
    %5336 = vmatpush1.msra.mxu0 %v5283
    %5337 = vmatprep.subr.mxu0 %v5287
    %5338 = vmatpush1.msra.mxu0 %v5286
    %5339 = vmatprep.subr.mxu0 %v5290
    %5340 = vmatpush1.msra.mxu0 %v5289
    %5341 = vmatprep.subr.mxu0 0.0
    %5342 = vmatpush1.msra.mxu0 0.0
    %5343 = vmatprep.subr.mxu0 0.0
    %5344 = vmatpush1.msra.mxu0 0.0
    %5345 = vmatprep.subr.mxu0 0.0
    %5346 = vmatpush1.msra.mxu0 0.0
    %5347 = vmatprep.subr.mxu0 0.0
    %5348 = vmatpush1.msra.mxu0 0.0
    %5349 = vmatprep.subr.mxu0 0.0
    %5350 = vmatpush1.msra.mxu0 0.0
    %5351 = vmatprep.subr.mxu0 0.0
    %5352 = vmatpush1.msra.mxu0 0.0
    %5353 = vmatprep.subr.mxu0 0.0
    %5354 = vmatpush1.msra.mxu0 0.0
    %5355 = vmatprep.subr.mxu0 0.0
    %5356 = vmatpush1.msra.mxu0 0.0
    %5357 = vmatprep.subr.mxu0 0.0
    %5358 = vmatpush1.msra.mxu0 0.0
    %5359 = vmatprep.subr.mxu0 0.0
    %5360 = vmatpush1.msra.mxu0 0.0
    %5361 = vmatprep.subr.mxu0 0.0
    %5362 = vmatpush1.msra.mxu0 0.0
    %5363 = vmatprep.subr.mxu0 0.0
    %5364 = vmatpush1.msra.mxu0 0.0
    %5365 = vmatprep.subr.mxu0 0.0
    %5366 = vmatpush1.msra.mxu0 0.0
    %5367 = vmatprep.subr.mxu0 0.0
    %5368 = vmatpush1.msra.mxu0 0.0
    %5369 = vmatprep.subr.mxu0 0.0
    %5370 = vmatpush1.msra.mxu0 0.0
    %5371 = vmatprep.subr.mxu0 0.0
    %5372 = vmatpush1.msra.mxu0 0.0
    %5373 = vmatprep.mubr.f32.mxu0 0.0
    %5374 = vmatmul.mubr.f32.gmra.mrb[0].mxu0 %v4711
    %v5375 = vpop.f32.mrb[0].mxu0
    %v5376 = vadd.f32 %v5297, %v5375
    %v5377 = vpop.f32.mrb[0].mxu0
    %v5378 = vadd.f32 %v5301, %v5377
    %5379 = vdwg.mxu0
    %5380 = vmatprep.subr.mxu0 0.0
    %5381 = vmatpush1.msra.mxu0 %v5246
    %5382 = vmatprep.subr.mxu0 0.0
    %5383 = vmatpush1.msra.mxu0 %v5249
    %5384 = vmatprep.subr.mxu0 0.0
    %5385 = vmatpush1.msra.mxu0 %v5252
    %5386 = vmatprep.subr.mxu0 0.0
    %5387 = vmatpush1.msra.mxu0 %v5255
    %5388 = vmatprep.subr.mxu0 0.0
    %5389 = vmatpush1.msra.mxu0 %v5258
    %5390 = vmatprep.subr.mxu0 0.0
    %5391 = vmatpush1.msra.mxu0 %v5261
    %5392 = vmatprep.subr.mxu0 0.0
    %5393 = vmatpush1.msra.mxu0 %v5264
    %5394 = vmatprep.subr.mxu0 0.0
    %5395 = vmatpush1.msra.mxu0 %v5267
    %5396 = vmatprep.subr.mxu0 0.0
    %5397 = vmatpush1.msra.mxu0 %v5270
    %5398 = vmatprep.subr.mxu0 0.0
    %5399 = vmatpush1.msra.mxu0 %v5273
    %5400 = vmatprep.subr.mxu0 0.0
    %5401 = vmatpush1.msra.mxu0 %v5276
    %5402 = vmatprep.subr.mxu0 0.0
    %5403 = vmatpush1.msra.mxu0 %v5279
    %5404 = vmatprep.subr.mxu0 0.0
    %5405 = vmatpush1.msra.mxu0 %v5282
    %5406 = vmatprep.subr.mxu0 0.0
    %5407 = vmatpush1.msra.mxu0 %v5285
    %5408 = vmatprep.subr.mxu0 0.0
    %5409 = vmatpush1.msra.mxu0 %v5288
    %5410 = vmatprep.subr.mxu0 0.0
    %5411 = vmatpush1.msra.mxu0 %v5291
    %5412 = vmatprep.subr.mxu0 0.0
    %5413 = vmatpush1.msra.mxu0 0.0
    %5414 = vmatprep.subr.mxu0 0.0
    %5415 = vmatpush1.msra.mxu0 0.0
    %5416 = vmatprep.subr.mxu0 0.0
    %5417 = vmatpush1.msra.mxu0 0.0
    %5418 = vmatprep.subr.mxu0 0.0
    %5419 = vmatpush1.msra.mxu0 0.0
    %5420 = vmatprep.subr.mxu0 0.0
    %5421 = vmatpush1.msra.mxu0 0.0
    %5422 = vmatprep.subr.mxu0 0.0
    %5423 = vmatpush1.msra.mxu0 0.0
    %5424 = vmatprep.subr.mxu0 0.0
    %5425 = vmatpush1.msra.mxu0 0.0
    %5426 = vmatprep.subr.mxu0 0.0
    %5427 = vmatpush1.msra.mxu0 0.0
    %5428 = vmatprep.subr.mxu0 0.0
    %5429 = vmatpush1.msra.mxu0 0.0
    %5430 = vmatprep.subr.mxu0 0.0
    %5431 = vmatpush1.msra.mxu0 0.0
    %5432 = vmatprep.subr.mxu0 0.0
    %5433 = vmatpush1.msra.mxu0 0.0
    %5434 = vmatprep.subr.mxu0 0.0
    %5435 = vmatpush1.msra.mxu0 0.0
    %5436 = vmatprep.subr.mxu0 0.0
    %5437 = vmatpush1.msra.mxu0 0.0
    %5438 = vmatprep.subr.mxu0 0.0
    %5439 = vmatpush1.msra.mxu0 0.0
    %5440 = vmatprep.subr.mxu0 0.0
    %5441 = vmatpush1.msra.mxu0 0.0
    %5442 = vmatprep.subr.mxu0 0.0
    %5443 = vmatpush1.msra.mxu0 0.0
    %5444 = vmatprep.mubr.f32.mxu0 0.0
    %5445 = vmatmul.mubr.f32.gmra.mrb[0].mxu0 %v4711
    %v5446 = vpop.f32.mrb[0].mxu0
    %v5447 = vadd.f32 %v5305, %v5446
    %v5448 = vpop.f32.mrb[0].mxu0
    %5449 = vdwg.mxu0
    %v5450 = vld [vmem:[%s1058] sm:$0xff]
    %v5451 = vld [vmem:[%s1058 + $0x8] sm:$0xff]
    %v5452 = vld [vmem:[%s1058 + $0x10] sm:$0xff]
    %v5453 = vld [vmem:[%s1058 + $0x18] sm:$0xff]
    %v5454 = vld [vmem:[%s1058 + $0x20] sm:$0xff]
    %v5455 = vld [vmem:[%s1058 + $0x28] sm:$0xff]
    %v5456 = vld [vmem:[%s1058 + $0x30] sm:$0xff]
    %v5457 = vld [vmem:[%s1058 + $0x38] sm:$0xff]
    %v5458 = vld [vmem:[%s1058 + $0x40] sm:$0xff]
    %v5459 = vld [vmem:[%s1058 + $0x48] sm:$0xff]
    %v5460 = vld [vmem:[%s1058 + $0x50] sm:$0xff]
    %v5461 = vld [vmem:[%s1058 + $0x58] sm:$0xff]
    %v5462 = vld [vmem:[%s1058 + $0x60] sm:$0xff]
    %v5463 = vld [vmem:[%s1058 + $0x68] sm:$0xff]
    %v5464 = vld [vmem:[%s1058 + $0x70] sm:$0xff]
    %v5465 = vld [vmem:[%s1058 + $0x78] sm:$0xff]
    %v5466 = vld [vmem:[%s1058 + $0x80] sm:$0xff]
    %v5467 = vld [vmem:[%s1058 + $0x88] sm:$0xff]
    %v5468 = vld [vmem:[%s1058 + $0x90] sm:$0xff]
    %v5469 = vld [vmem:[%s1058 + $0x98] sm:$0xff]
    %v5470 = vld [vmem:[%s1058 + $0xa0] sm:$0xff]
    %v5471 = vld [vmem:[%s1058 + $0xa8] sm:$0xff]
    %v5472 = vld [vmem:[%s1058 + $0xb0] sm:$0xff]
    %v5473 = vld [vmem:[%s1058 + $0xb8] sm:$0xff]
    %v5474 = vld [vmem:[%s1058 + $0xc0] sm:$0xff]
    %v5475 = vld [vmem:[%s1058 + $0xc8] sm:$0xff]
    %v5476 = vld [vmem:[%s1058 + $0xd0] sm:$0xff]
    %v5477 = vld [vmem:[%s1058 + $0xd8] sm:$0xff]
    %v5478 = vld [vmem:[%s1058 + $0xe0] sm:$0xff]
    %v5479 = vld [vmem:[%s1058 + $0xe8] sm:$0xff]
    %v5480 = vld [vmem:[%s1058 + $0xf0] sm:$0xff]
    %v5481 = vld [vmem:[%s1058 + $0xf8] sm:$0xff]
    %v5482 = vld [vmem:[%s1058 + $0x100] sm:$0xff]
    %v5483 = vld [vmem:[%s1058 + $0x108] sm:$0xff]
    %v5484 = vld [vmem:[%s1058 + $0x110] sm:$0xff]
    %v5485 = vld [vmem:[%s1058 + $0x118] sm:$0xff]
    %v5486 = vld [vmem:[%s1058 + $0x120] sm:$0xff]
    %v5487 = vld [vmem:[%s1058 + $0x128] sm:$0xff]
    %v5488 = vld [vmem:[%s1058 + $0x130] sm:$0xff]
    %v5489 = vld [vmem:[%s1058 + $0x138] sm:$0xff]
    %v5490 = vld [vmem:[%s1058 + $0x140] sm:$0xff]
    %v5491 = vld [vmem:[%s1058 + $0x148] sm:$0xff]
    %v5492 = vld [vmem:[%s1058 + $0x150] sm:$0xff]
    %v5493 = vld [vmem:[%s1058 + $0x158] sm:$0xff]
    %v5494 = vld [vmem:[%s1058 + $0x160] sm:$0xff]
    %v5495 = vld [vmem:[%s1058 + $0x168] sm:$0xff]
    %v5496 = vld [vmem:[%s1058 + $0x170] sm:$0xff]
    %v5497 = vld [vmem:[%s1058 + $0x178] sm:$0xff]
    %v5498 = vld [vmem:[%s1107] sm:$0x7]
    %v5500 = vlaneseq
    %v5501 = vshrl.u32 %v5500, 7
    %v5502 = vsub.s32 0, %v5501
    %v5503 = vrot.slane %v5498, %v5502
    %v5504 = vlaneseq
    %v5505 = vshrl.u32 %v5504, 7
    %v5506 = vsub.s32 1, %v5505
    %v5507 = vrot.slane %v5498, %v5506
    %v5508 = vlaneseq
    %v5509 = vshrl.u32 %v5508, 7
    %v5510 = vsub.s32 2, %v5509
    %v5511 = vrot.slane %v5498, %v5510
    %5515 = vmatprep.subr.mxu0 %v5451
    %5516 = vmatpush1.msra.mxu0 %v5450
    %5517 = vmatprep.subr.mxu0 %v5454
    %5518 = vmatpush1.msra.mxu0 %v5453
    %5519 = vmatprep.subr.mxu0 %v5457
    %5520 = vmatpush1.msra.mxu0 %v5456
    %5521 = vmatprep.subr.mxu0 %v5460
    %5522 = vmatpush1.msra.mxu0 %v5459
    %5523 = vmatprep.subr.mxu0 %v5463
    %5524 = vmatpush1.msra.mxu0 %v5462
    %5525 = vmatprep.subr.mxu0 %v5466
    %5526 = vmatpush1.msra.mxu0 %v5465
    %5527 = vmatprep.subr.mxu0 %v5469
    %5528 = vmatpush1.msra.mxu0 %v5468
    %5529 = vmatprep.subr.mxu0 %v5472
    %5530 = vmatpush1.msra.mxu0 %v5471
    %5531 = vmatprep.subr.mxu0 %v5475
    %5532 = vmatpush1.msra.mxu0 %v5474
    %5533 = vmatprep.subr.mxu0 %v5478
    %5534 = vmatpush1.msra.mxu0 %v5477
    %5535 = vmatprep.subr.mxu0 %v5481
    %5536 = vmatpush1.msra.mxu0 %v5480
    %5537 = vmatprep.subr.mxu0 %v5484
    %5538 = vmatpush1.msra.mxu0 %v5483
    %5539 = vmatprep.subr.mxu0 %v5487
    %5540 = vmatpush1.msra.mxu0 %v5486
    %5541 = vmatprep.subr.mxu0 %v5490
    %5542 = vmatpush1.msra.mxu0 %v5489
    %5543 = vmatprep.subr.mxu0 %v5493
    %5544 = vmatpush1.msra.mxu0 %v5492
    %5545 = vmatprep.subr.mxu0 %v5496
    %5546 = vmatpush1.msra.mxu0 %v5495
    %5547 = vmatprep.subr.mxu0 0.0
    %5548 = vmatpush1.msra.mxu0 0.0
    %5549 = vmatprep.subr.mxu0 0.0
    %5550 = vmatpush1.msra.mxu0 0.0
    %5551 = vmatprep.subr.mxu0 0.0
    %5552 = vmatpush1.msra.mxu0 0.0
    %5553 = vmatprep.subr.mxu0 0.0
    %5554 = vmatpush1.msra.mxu0 0.0
    %5555 = vmatprep.subr.mxu0 0.0
    %5556 = vmatpush1.msra.mxu0 0.0
    %5557 = vmatprep.subr.mxu0 0.0
    %5558 = vmatpush1.msra.mxu0 0.0
    %5559 = vmatprep.subr.mxu0 0.0
    %5560 = vmatpush1.msra.mxu0 0.0
    %5561 = vmatprep.subr.mxu0 0.0
    %5562 = vmatpush1.msra.mxu0 0.0
    %5563 = vmatprep.subr.mxu0 0.0
    %5564 = vmatpush1.msra.mxu0 0.0
    %5565 = vmatprep.subr.mxu0 0.0
    %5566 = vmatpush1.msra.mxu0 0.0
    %5567 = vmatprep.subr.mxu0 0.0
    %5568 = vmatpush1.msra.mxu0 0.0
    %5569 = vmatprep.subr.mxu0 0.0
    %5570 = vmatpush1.msra.mxu0 0.0
    %5571 = vmatprep.subr.mxu0 0.0
    %5572 = vmatpush1.msra.mxu0 0.0
    %5573 = vmatprep.subr.mxu0 0.0
    %5574 = vmatpush1.msra.mxu0 0.0
    %5575 = vmatprep.subr.mxu0 0.0
    %5576 = vmatpush1.msra.mxu0 0.0
    %5577 = vmatprep.subr.mxu0 0.0
    %5578 = vmatpush1.msra.mxu0 0.0
    %5579 = vmatprep.mubr.f32.mxu0 0.0
    %5580 = vmatmul.mubr.f32.gmra.mrb[0].mxu0 %v5013
    %v5581 = vpop.f32.mrb[0].mxu0
    %v5582 = vadd.f32 %v5503, %v5581
    %v5583 = vpop.f32.mrb[0].mxu0
    %v5584 = vadd.f32 %v5507, %v5583
    %5585 = vdwg.mxu0
    %5586 = vmatprep.subr.mxu0 0.0
    %5587 = vmatpush1.msra.mxu0 %v5452
    %5588 = vmatprep.subr.mxu0 0.0
    %5589 = vmatpush1.msra.mxu0 %v5455
    %5590 = vmatprep.subr.mxu0 0.0
    %5591 = vmatpush1.msra.mxu0 %v5458
    %5592 = vmatprep.subr.mxu0 0.0
    %5593 = vmatpush1.msra.mxu0 %v5461
    %5594 = vmatprep.subr.mxu0 0.0
    %5595 = vmatpush1.msra.mxu0 %v5464
    %5596 = vmatprep.subr.mxu0 0.0
    %5597 = vmatpush1.msra.mxu0 %v5467
    %5598 = vmatprep.subr.mxu0 0.0
    %5599 = vmatpush1.msra.mxu0 %v5470
    %5600 = vmatprep.subr.mxu0 0.0
    %5601 = vmatpush1.msra.mxu0 %v5473
    %5602 = vmatprep.subr.mxu0 0.0
    %5603 = vmatpush1.msra.mxu0 %v5476
    %5604 = vmatprep.subr.mxu0 0.0
    %5605 = vmatpush1.msra.mxu0 %v5479
    %5606 = vmatprep.subr.mxu0 0.0
    %5607 = vmatpush1.msra.mxu0 %v5482
    %5608 = vmatprep.subr.mxu0 0.0
    %5609 = vmatpush1.msra.mxu0 %v5485
    %5610 = vmatprep.subr.mxu0 0.0
    %5611 = vmatpush1.msra.mxu0 %v5488
    %5612 = vmatprep.subr.mxu0 0.0
    %5613 = vmatpush1.msra.mxu0 %v5491
    %5614 = vmatprep.subr.mxu0 0.0
    %5615 = vmatpush1.msra.mxu0 %v5494
    %5616 = vmatprep.subr.mxu0 0.0
    %5617 = vmatpush1.msra.mxu0 %v5497
    %5618 = vmatprep.subr.mxu0 0.0
    %5619 = vmatpush1.msra.mxu0 0.0
    %5620 = vmatprep.subr.mxu0 0.0
    %5621 = vmatpush1.msra.mxu0 0.0
    %5622 = vmatprep.subr.mxu0 0.0
    %5623 = vmatpush1.msra.mxu0 0.0
    %5624 = vmatprep.subr.mxu0 0.0
    %5625 = vmatpush1.msra.mxu0 0.0
    %5626 = vmatprep.subr.mxu0 0.0
    %5627 = vmatpush1.msra.mxu0 0.0
    %5628 = vmatprep.subr.mxu0 0.0
    %5629 = vmatpush1.msra.mxu0 0.0
    %5630 = vmatprep.subr.mxu0 0.0
    %5631 = vmatpush1.msra.mxu0 0.0
    %5632 = vmatprep.subr.mxu0 0.0
    %5633 = vmatpush1.msra.mxu0 0.0
    %5634 = vmatprep.subr.mxu0 0.0
    %5635 = vmatpush1.msra.mxu0 0.0
    %5636 = vmatprep.subr.mxu0 0.0
    %5637 = vmatpush1.msra.mxu0 0.0
    %5638 = vmatprep.subr.mxu0 0.0
    %5639 = vmatpush1.msra.mxu0 0.0
    %5640 = vmatprep.subr.mxu0 0.0
    %5641 = vmatpush1.msra.mxu0 0.0
    %5642 = vmatprep.subr.mxu0 0.0
    %5643 = vmatpush1.msra.mxu0 0.0
    %5644 = vmatprep.subr.mxu0 0.0
    %5645 = vmatpush1.msra.mxu0 0.0
    %5646 = vmatprep.subr.mxu0 0.0
    %5647 = vmatpush1.msra.mxu0 0.0
    %5648 = vmatprep.subr.mxu0 0.0
    %5649 = vmatpush1.msra.mxu0 0.0
    %5650 = vmatprep.mubr.f32.mxu0 0.0
    %5651 = vmatmul.mubr.f32.gmra.mrb[0].mxu0 %v5013
    %v5652 = vpop.f32.mrb[0].mxu0
    %v5653 = vadd.f32 %v5511, %v5652
    %v5654 = vpop.f32.mrb[0].mxu0
    %5655 = vdwg.mxu0
    %v5656 = vadd.f32 %v5376, %v5582
    %v5657 = vxor.u32 %v5656, 2147483648
    %v5658 = vmul.f32 %v5657, 1.442695
    %v5659 = vpow.pop %v5658
    %v5660 = vadd.f32 %v5659, 1.0
    %v5661 = vrcp.pop %v5660
    %v5662 = vmul.f32 1.0, %v5661
    %v5663 = vadd.f32 %v5378, %v5584
    %v5664 = vxor.u32 %v5663, 2147483648
    %v5665 = vmul.f32 %v5664, 1.442695
    %v5666 = vpow.pop %v5665
    %v5667 = vadd.f32 %v5666, 1.0
    %v5668 = vrcp.pop %v5667
    %v5669 = vmul.f32 1.0, %v5668
    %v5670 = vmul.f32 %v5662, %v5653
    %v5671 = vadd.f32 %v5447, %v5670
    %v5672 = vtanh.pop %v5671
    %v5673 = vsub.f32 %v5013, %v5672
    %v5674 = vmul.f32 %v5669, %v5673
    %v5675 = vadd.f32 %v5672, %v5674
    %5676 = vst [vmem:[#allocation3 + $0x8] sm:$0xff] %v5675
    %v5677 = vld [vmem:[#allocation2 + $0x108] sm:$0xff]
    %v5678 = vld [vmem:[#allocation2 + $0x110] sm:$0xff]
    %v5679 = vld [vmem:[#allocation2 + $0x118] sm:$0xff]
    %v5680 = vld [vmem:[#allocation9] sm:$0xff]
    %v5681 = vld [vmem:[#allocation9 + $0x8] sm:$0xff]
    %v5682 = vld [vmem:[#allocation9 + $0x10] sm:$0xff]
    %v5683 = vld [vmem:[#allocation9 + $0x18] sm:$0xff]
    %v5684 = vld [vmem:[#allocation9 + $0x20] sm:$0xff]
    %v5685 = vld [vmem:[#allocation9 + $0x28] sm:$0xff]
    %v5686 = vld [vmem:[#allocation9 + $0x30] sm:$0xff]
    %v5687 = vld [vmem:[#allocation9 + $0x38] sm:$0xff]
    %v5688 = vld [vmem:[#allocation9 + $0x40] sm:$0xff]
    %v5689 = vld [vmem:[#allocation9 + $0x48] sm:$0xff]
    %v5690 = vld [vmem:[#allocation9 + $0x50] sm:$0xff]
    %v5691 = vld [vmem:[#allocation9 + $0x58] sm:$0xff]
    %v5692 = vld [vmem:[#allocation9 + $0x60] sm:$0xff]
    %v5693 = vld [vmem:[#allocation9 + $0x68] sm:$0xff]
    %v5694 = vld [vmem:[#allocation9 + $0x70] sm:$0xff]
    %v5695 = vld [vmem:[#allocation9 + $0x78] sm:$0xff]
    %v5696 = vld [vmem:[#allocation9 + $0x80] sm:$0xff]
    %v5697 = vld [vmem:[#allocation9 + $0x88] sm:$0xff]
    %v5698 = vld [vmem:[#allocation9 + $0x90] sm:$0xff]
    %v5699 = vld [vmem:[#allocation9 + $0x98] sm:$0xff]
    %v5700 = vld [vmem:[#allocation9 + $0xa0] sm:$0xff]
    %v5701 = vld [vmem:[#allocation9 + $0xa8] sm:$0xff]
    %v5702 = vld [vmem:[#allocation9 + $0xb0] sm:$0xff]
    %v5703 = vld [vmem:[#allocation9 + $0xb8] sm:$0xff]
    %v5704 = vld [vmem:[#allocation9 + $0xc0] sm:$0xff]
    %v5705 = vld [vmem:[#allocation9 + $0xc8] sm:$0xff]
    %v5706 = vld [vmem:[#allocation9 + $0xd0] sm:$0xff]
    %v5707 = vld [vmem:[#allocation9 + $0xd8] sm:$0xff]
    %v5708 = vld [vmem:[#allocation9 + $0xe0] sm:$0xff]
    %v5709 = vld [vmem:[#allocation9 + $0xe8] sm:$0xff]
    %v5710 = vld [vmem:[#allocation9 + $0xf0] sm:$0xff]
    %v5711 = vld [vmem:[#allocation9 + $0xf8] sm:$0xff]
    %v5712 = vld [vmem:[#allocation9 + $0x100] sm:$0xff]
    %v5713 = vld [vmem:[#allocation9 + $0x108] sm:$0xff]
    %v5714 = vld [vmem:[#allocation9 + $0x110] sm:$0xff]
    %v5715 = vld [vmem:[#allocation9 + $0x118] sm:$0xff]
    %v5716 = vld [vmem:[#allocation9 + $0x120] sm:$0xff]
    %v5717 = vld [vmem:[#allocation9 + $0x128] sm:$0xff]
    %v5718 = vld [vmem:[#allocation9 + $0x130] sm:$0xff]
    %v5719 = vld [vmem:[#allocation9 + $0x138] sm:$0xff]
    %v5720 = vld [vmem:[#allocation9 + $0x140] sm:$0xff]
    %v5721 = vld [vmem:[#allocation9 + $0x148] sm:$0xff]
    %v5722 = vld [vmem:[#allocation9 + $0x150] sm:$0xff]
    %v5723 = vld [vmem:[#allocation9 + $0x158] sm:$0xff]
    %v5724 = vld [vmem:[#allocation9 + $0x160] sm:$0xff]
    %v5725 = vld [vmem:[#allocation9 + $0x168] sm:$0xff]
    %v5726 = vld [vmem:[#allocation9 + $0x170] sm:$0xff]
    %v5727 = vld [vmem:[#allocation9 + $0x178] sm:$0xff]
    %v5728 = vld [vmem:[%s4] sm:$0x7]
    %v5730 = vlaneseq
    %v5731 = vshrl.u32 %v5730, 7
    %v5732 = vsub.s32 0, %v5731
    %v5733 = vrot.slane %v5728, %v5732
    %v5734 = vlaneseq
    %v5735 = vshrl.u32 %v5734, 7
    %v5736 = vsub.s32 1, %v5735
    %v5737 = vrot.slane %v5728, %v5736
    %v5738 = vlaneseq
    %v5739 = vshrl.u32 %v5738, 7
    %v5740 = vsub.s32 2, %v5739
    %v5741 = vrot.slane %v5728, %v5740
    %5745 = vmatprep.subr.mxu0 %v5681
    %5746 = vmatpush1.msra.mxu0 %v5680
    %5747 = vmatprep.subr.mxu0 %v5684
    %5748 = vmatpush1.msra.mxu0 %v5683
    %5749 = vmatprep.subr.mxu0 %v5687
    %5750 = vmatpush1.msra.mxu0 %v5686
    %5751 = vmatprep.subr.mxu0 %v5690
    %5752 = vmatpush1.msra.mxu0 %v5689
    %5753 = vmatprep.subr.mxu0 %v5693
    %5754 = vmatpush1.msra.mxu0 %v5692
    %5755 = vmatprep.subr.mxu0 %v5696
    %5756 = vmatpush1.msra.mxu0 %v5695
    %5757 = vmatprep.subr.mxu0 %v5699
    %5758 = vmatpush1.msra.mxu0 %v5698
    %5759 = vmatprep.subr.mxu0 %v5702
    %5760 = vmatpush1.msra.mxu0 %v5701
    %5761 = vmatprep.subr.mxu0 %v5705
    %5762 = vmatpush1.msra.mxu0 %v5704
    %5763 = vmatprep.subr.mxu0 %v5708
    %5764 = vmatpush1.msra.mxu0 %v5707
    %5765 = vmatprep.subr.mxu0 %v5711
    %5766 = vmatpush1.msra.mxu0 %v5710
    %5767 = vmatprep.subr.mxu0 %v5714
    %5768 = vmatpush1.msra.mxu0 %v5713
    %5769 = vmatprep.subr.mxu0 %v5717
    %5770 = vmatpush1.msra.mxu0 %v5716
    %5771 = vmatprep.subr.mxu0 %v5720
    %5772 = vmatpush1.msra.mxu0 %v5719
    %5773 = vmatprep.subr.mxu0 %v5723
    %5774 = vmatpush1.msra.mxu0 %v5722
    %5775 = vmatprep.subr.mxu0 %v5726
    %5776 = vmatpush1.msra.mxu0 %v5725
    %5777 = vmatprep.subr.mxu0 0.0
    %5778 = vmatpush1.msra.mxu0 0.0
    %5779 = vmatprep.subr.mxu0 0.0
    %5780 = vmatpush1.msra.mxu0 0.0
    %5781 = vmatprep.subr.mxu0 0.0
    %5782 = vmatpush1.msra.mxu0 0.0
    %5783 = vmatprep.subr.mxu0 0.0
    %5784 = vmatpush1.msra.mxu0 0.0
    %5785 = vmatprep.subr.mxu0 0.0
    %5786 = vmatpush1.msra.mxu0 0.0
    %5787 = vmatprep.subr.mxu0 0.0
    %5788 = vmatpush1.msra.mxu0 0.0
    %5789 = vmatprep.subr.mxu0 0.0
    %5790 = vmatpush1.msra.mxu0 0.0
    %5791 = vmatprep.subr.mxu0 0.0
    %5792 = vmatpush1.msra.mxu0 0.0
    %5793 = vmatprep.subr.mxu0 0.0
    %5794 = vmatpush1.msra.mxu0 0.0
    %5795 = vmatprep.subr.mxu0 0.0
    %5796 = vmatpush1.msra.mxu0 0.0
    %5797 = vmatprep.subr.mxu0 0.0
    %5798 = vmatpush1.msra.mxu0 0.0
    %5799 = vmatprep.subr.mxu0 0.0
    %5800 = vmatpush1.msra.mxu0 0.0
    %5801 = vmatprep.subr.mxu0 0.0
    %5802 = vmatpush1.msra.mxu0 0.0
    %5803 = vmatprep.subr.mxu0 0.0
    %5804 = vmatpush1.msra.mxu0 0.0
    %5805 = vmatprep.subr.mxu0 0.0
    %5806 = vmatpush1.msra.mxu0 0.0
    %5807 = vmatprep.subr.mxu0 0.0
    %5808 = vmatpush1.msra.mxu0 0.0
    %5809 = vmatprep.mubr.f32.mxu0 0.0
    %5810 = vmatmul.mubr.f32.gmra.mrb[0].mxu0 %v5243
    %v5811 = vpop.f32.mrb[0].mxu0
    %v5812 = vadd.f32 %v5733, %v5811
    %v5813 = vpop.f32.mrb[0].mxu0
    %v5814 = vadd.f32 %v5737, %v5813
    %5815 = vdwg.mxu0
    %5816 = vmatprep.subr.mxu0 0.0
    %5817 = vmatpush1.msra.mxu0 %v5682
    %5818 = vmatprep.subr.mxu0 0.0
    %5819 = vmatpush1.msra.mxu0 %v5685
    %5820 = vmatprep.subr.mxu0 0.0
    %5821 = vmatpush1.msra.mxu0 %v5688
    %5822 = vmatprep.subr.mxu0 0.0
    %5823 = vmatpush1.msra.mxu0 %v5691
    %5824 = vmatprep.subr.mxu0 0.0
    %5825 = vmatpush1.msra.mxu0 %v5694
    %5826 = vmatprep.subr.mxu0 0.0
    %5827 = vmatpush1.msra.mxu0 %v5697
    %5828 = vmatprep.subr.mxu0 0.0
    %5829 = vmatpush1.msra.mxu0 %v5700
    %5830 = vmatprep.subr.mxu0 0.0
    %5831 = vmatpush1.msra.mxu0 %v5703
    %5832 = vmatprep.subr.mxu0 0.0
    %5833 = vmatpush1.msra.mxu0 %v5706
    %5834 = vmatprep.subr.mxu0 0.0
    %5835 = vmatpush1.msra.mxu0 %v5709
    %5836 = vmatprep.subr.mxu0 0.0
    %5837 = vmatpush1.msra.mxu0 %v5712
    %5838 = vmatprep.subr.mxu0 0.0
    %5839 = vmatpush1.msra.mxu0 %v5715
    %5840 = vmatprep.subr.mxu0 0.0
    %5841 = vmatpush1.msra.mxu0 %v5718
    %5842 = vmatprep.subr.mxu0 0.0
    %5843 = vmatpush1.msra.mxu0 %v5721
    %5844 = vmatprep.subr.mxu0 0.0
    %5845 = vmatpush1.msra.mxu0 %v5724
    %5846 = vmatprep.subr.mxu0 0.0
    %5847 = vmatpush1.msra.mxu0 %v5727
    %5848 = vmatprep.subr.mxu0 0.0
    %5849 = vmatpush1.msra.mxu0 0.0
    %5850 = vmatprep.subr.mxu0 0.0
    %5851 = vmatpush1.msra.mxu0 0.0
    %5852 = vmatprep.subr.mxu0 0.0
    %5853 = vmatpush1.msra.mxu0 0.0
    %5854 = vmatprep.subr.mxu0 0.0
    %5855 = vmatpush1.msra.mxu0 0.0
    %5856 = vmatprep.subr.mxu0 0.0
    %5857 = vmatpush1.msra.mxu0 0.0
    %5858 = vmatprep.subr.mxu0 0.0
    %5859 = vmatpush1.msra.mxu0 0.0
    %5860 = vmatprep.subr.mxu0 0.0
    %5861 = vmatpush1.msra.mxu0 0.0
    %5862 = vmatprep.subr.mxu0 0.0
    %5863 = vmatpush1.msra.mxu0 0.0
    %5864 = vmatprep.subr.mxu0 0.0
    %5865 = vmatpush1.msra.mxu0 0.0
    %5866 = vmatprep.subr.mxu0 0.0
    %5867 = vmatpush1.msra.mxu0 0.0
    %5868 = vmatprep.subr.mxu0 0.0
    %5869 = vmatpush1.msra.mxu0 0.0
    %5870 = vmatprep.subr.mxu0 0.0
    %5871 = vmatpush1.msra.mxu0 0.0
    %5872 = vmatprep.subr.mxu0 0.0
    %5873 = vmatpush1.msra.mxu0 0.0
    %5874 = vmatprep.subr.mxu0 0.0
    %5875 = vmatpush1.msra.mxu0 0.0
    %5876 = vmatprep.subr.mxu0 0.0
    %5877 = vmatpush1.msra.mxu0 0.0
    %5878 = vmatprep.subr.mxu0 0.0
    %5879 = vmatpush1.msra.mxu0 0.0
    %5880 = vmatprep.mubr.f32.mxu0 0.0
    %5881 = vmatmul.mubr.f32.gmra.mrb[0].mxu0 %v5243
    %v5882 = vpop.f32.mrb[0].mxu0
    %v5883 = vadd.f32 %v5741, %v5882
    %v5884 = vpop.f32.mrb[0].mxu0
    %5885 = vdwg.mxu0
    %v5886 = vadd.f32 %v5677, %v5812
    %v5887 = vxor.u32 %v5886, 2147483648
    %v5888 = vmul.f32 %v5887, 1.442695
    %v5889 = vpow.pop %v5888
    %v5890 = vadd.f32 %v5889, 1.0
    %v5891 = vrcp.pop %v5890
    %v5892 = vmul.f32 1.0, %v5891
    %v5893 = vadd.f32 %v5678, %v5814
    %v5894 = vxor.u32 %v5893, 2147483648
    %v5895 = vmul.f32 %v5894, 1.442695
    %v5896 = vpow.pop %v5895
    %v5897 = vadd.f32 %v5896, 1.0
    %v5898 = vrcp.pop %v5897
    %v5899 = vmul.f32 1.0, %v5898
    %v5900 = vmul.f32 %v5892, %v5883
    %v5901 = vadd.f32 %v5679, %v5900
    %v5902 = vtanh.pop %v5901
    %v5903 = vsub.f32 %v5243, %v5902
    %v5904 = vmul.f32 %v5899, %v5903
    %v5905 = vadd.f32 %v5902, %v5904
    %v5906 = vld [vmem:[%s850] sm:$0xff]
    %v5907 = vld [vmem:[%s850 + $0x8] sm:$0xff]
    %v5908 = vld [vmem:[%s850 + $0x10] sm:$0xff]
    %v5909 = vld [vmem:[%s850 + $0x18] sm:$0xff]
    %v5910 = vld [vmem:[%s850 + $0x20] sm:$0xff]
    %v5911 = vld [vmem:[%s850 + $0x28] sm:$0xff]
    %v5912 = vld [vmem:[%s850 + $0x30] sm:$0xff]
    %v5913 = vld [vmem:[%s850 + $0x38] sm:$0xff]
    %v5914 = vld [vmem:[%s850 + $0x40] sm:$0xff]
    %v5915 = vld [vmem:[%s850 + $0x48] sm:$0xff]
    %v5916 = vld [vmem:[%s850 + $0x50] sm:$0xff]
    %v5917 = vld [vmem:[%s850 + $0x58] sm:$0xff]
    %v5918 = vld [vmem:[%s850 + $0x60] sm:$0xff]
    %v5919 = vld [vmem:[%s850 + $0x68] sm:$0xff]
    %v5920 = vld [vmem:[%s850 + $0x70] sm:$0xff]
    %v5921 = vld [vmem:[%s850 + $0x78] sm:$0xff]
    %v5922 = vld [vmem:[%s850 + $0x80] sm:$0xff]
    %v5923 = vld [vmem:[%s850 + $0x88] sm:$0xff]
    %v5924 = vld [vmem:[%s850 + $0x90] sm:$0xff]
    %v5925 = vld [vmem:[%s850 + $0x98] sm:$0xff]
    %v5926 = vld [vmem:[%s850 + $0xa0] sm:$0xff]
    %v5927 = vld [vmem:[%s850 + $0xa8] sm:$0xff]
    %v5928 = vld [vmem:[%s850 + $0xb0] sm:$0xff]
    %v5929 = vld [vmem:[%s850 + $0xb8] sm:$0xff]
    %v5930 = vld [vmem:[%s850 + $0xc0] sm:$0xff]
    %v5931 = vld [vmem:[%s850 + $0xc8] sm:$0xff]
    %v5932 = vld [vmem:[%s850 + $0xd0] sm:$0xff]
    %v5933 = vld [vmem:[%s850 + $0xd8] sm:$0xff]
    %v5934 = vld [vmem:[%s850 + $0xe0] sm:$0xff]
    %v5935 = vld [vmem:[%s850 + $0xe8] sm:$0xff]
    %v5936 = vld [vmem:[%s850 + $0xf0] sm:$0xff]
    %v5937 = vld [vmem:[%s850 + $0xf8] sm:$0xff]
    %v5938 = vld [vmem:[%s850 + $0x100] sm:$0xff]
    %v5939 = vld [vmem:[%s850 + $0x108] sm:$0xff]
    %v5940 = vld [vmem:[%s850 + $0x110] sm:$0xff]
    %v5941 = vld [vmem:[%s850 + $0x118] sm:$0xff]
    %v5942 = vld [vmem:[%s850 + $0x120] sm:$0xff]
    %v5943 = vld [vmem:[%s850 + $0x128] sm:$0xff]
    %v5944 = vld [vmem:[%s850 + $0x130] sm:$0xff]
    %v5945 = vld [vmem:[%s850 + $0x138] sm:$0xff]
    %v5946 = vld [vmem:[%s850 + $0x140] sm:$0xff]
    %v5947 = vld [vmem:[%s850 + $0x148] sm:$0xff]
    %v5948 = vld [vmem:[%s850 + $0x150] sm:$0xff]
    %v5949 = vld [vmem:[%s850 + $0x158] sm:$0xff]
    %v5950 = vld [vmem:[%s850 + $0x160] sm:$0xff]
    %v5951 = vld [vmem:[%s850 + $0x168] sm:$0xff]
    %v5952 = vld [vmem:[%s850 + $0x170] sm:$0xff]
    %v5953 = vld [vmem:[%s850 + $0x178] sm:$0xff]
    %v5954 = vld [vmem:[%s899] sm:$0x7]
    %v5956 = vlaneseq
    %v5957 = vshrl.u32 %v5956, 7
    %v5958 = vsub.s32 0, %v5957
    %v5959 = vrot.slane %v5954, %v5958
    %v5960 = vlaneseq
    %v5961 = vshrl.u32 %v5960, 7
    %v5962 = vsub.s32 1, %v5961
    %v5963 = vrot.slane %v5954, %v5962
    %v5964 = vlaneseq
    %v5965 = vshrl.u32 %v5964, 7
    %v5966 = vsub.s32 2, %v5965
    %v5967 = vrot.slane %v5954, %v5966
    %5971 = vmatprep.subr.mxu0 %v5907
    %5972 = vmatpush1.msra.mxu0 %v5906
    %5973 = vmatprep.subr.mxu0 %v5910
    %5974 = vmatpush1.msra.mxu0 %v5909
    %5975 = vmatprep.subr.mxu0 %v5913
    %5976 = vmatpush1.msra.mxu0 %v5912
    %5977 = vmatprep.subr.mxu0 %v5916
    %5978 = vmatpush1.msra.mxu0 %v5915
    %5979 = vmatprep.subr.mxu0 %v5919
    %5980 = vmatpush1.msra.mxu0 %v5918
    %5981 = vmatprep.subr.mxu0 %v5922
    %5982 = vmatpush1.msra.mxu0 %v5921
    %5983 = vmatprep.subr.mxu0 %v5925
    %5984 = vmatpush1.msra.mxu0 %v5924
    %5985 = vmatprep.subr.mxu0 %v5928
    %5986 = vmatpush1.msra.mxu0 %v5927
    %5987 = vmatprep.subr.mxu0 %v5931
    %5988 = vmatpush1.msra.mxu0 %v5930
    %5989 = vmatprep.subr.mxu0 %v5934
    %5990 = vmatpush1.msra.mxu0 %v5933
    %5991 = vmatprep.subr.mxu0 %v5937
    %5992 = vmatpush1.msra.mxu0 %v5936
    %5993 = vmatprep.subr.mxu0 %v5940
    %5994 = vmatpush1.msra.mxu0 %v5939
    %5995 = vmatprep.subr.mxu0 %v5943
    %5996 = vmatpush1.msra.mxu0 %v5942
    %5997 = vmatprep.subr.mxu0 %v5946
    %5998 = vmatpush1.msra.mxu0 %v5945
    %5999 = vmatprep.subr.mxu0 %v5949
    %6000 = vmatpush1.msra.mxu0 %v5948
    %6001 = vmatprep.subr.mxu0 %v5952
    %6002 = vmatpush1.msra.mxu0 %v5951
    %6003 = vmatprep.subr.mxu0 0.0
    %6004 = vmatpush1.msra.mxu0 0.0
    %6005 = vmatprep.subr.mxu0 0.0
    %6006 = vmatpush1.msra.mxu0 0.0
    %6007 = vmatprep.subr.mxu0 0.0
    %6008 = vmatpush1.msra.mxu0 0.0
    %6009 = vmatprep.subr.mxu0 0.0
    %6010 = vmatpush1.msra.mxu0 0.0
    %6011 = vmatprep.subr.mxu0 0.0
    %6012 = vmatpush1.msra.mxu0 0.0
    %6013 = vmatprep.subr.mxu0 0.0
    %6014 = vmatpush1.msra.mxu0 0.0
    %6015 = vmatprep.subr.mxu0 0.0
    %6016 = vmatpush1.msra.mxu0 0.0
    %6017 = vmatprep.subr.mxu0 0.0
    %6018 = vmatpush1.msra.mxu0 0.0
    %6019 = vmatprep.subr.mxu0 0.0
    %6020 = vmatpush1.msra.mxu0 0.0
    %6021 = vmatprep.subr.mxu0 0.0
    %6022 = vmatpush1.msra.mxu0 0.0
    %6023 = vmatprep.subr.mxu0 0.0
    %6024 = vmatpush1.msra.mxu0 0.0
    %6025 = vmatprep.subr.mxu0 0.0
    %6026 = vmatpush1.msra.mxu0 0.0
    %6027 = vmatprep.subr.mxu0 0.0
    %6028 = vmatpush1.msra.mxu0 0.0
    %6029 = vmatprep.subr.mxu0 0.0
    %6030 = vmatpush1.msra.mxu0 0.0
    %6031 = vmatprep.subr.mxu0 0.0
    %6032 = vmatpush1.msra.mxu0 0.0
    %6033 = vmatprep.subr.mxu0 0.0
    %6034 = vmatpush1.msra.mxu0 0.0
    %6035 = vmatprep.mubr.f32.mxu0 0.0
    %6036 = vmatmul.mubr.f32.gmra.mrb[0].mxu0 %v5243
    %v6037 = vpop.f32.mrb[0].mxu0
    %v6038 = vadd.f32 %v5959, %v6037
    %v6039 = vpop.f32.mrb[0].mxu0
    %v6040 = vadd.f32 %v5963, %v6039
    %6041 = vdwg.mxu0
    %6042 = vmatprep.subr.mxu0 0.0
    %6043 = vmatpush1.msra.mxu0 %v5908
    %6044 = vmatprep.subr.mxu0 0.0
    %6045 = vmatpush1.msra.mxu0 %v5911
    %6046 = vmatprep.subr.mxu0 0.0
    %6047 = vmatpush1.msra.mxu0 %v5914
    %6048 = vmatprep.subr.mxu0 0.0
    %6049 = vmatpush1.msra.mxu0 %v5917
    %6050 = vmatprep.subr.mxu0 0.0
    %6051 = vmatpush1.msra.mxu0 %v5920
    %6052 = vmatprep.subr.mxu0 0.0
    %6053 = vmatpush1.msra.mxu0 %v5923
    %6054 = vmatprep.subr.mxu0 0.0
    %6055 = vmatpush1.msra.mxu0 %v5926
    %6056 = vmatprep.subr.mxu0 0.0
    %6057 = vmatpush1.msra.mxu0 %v5929
    %6058 = vmatprep.subr.mxu0 0.0
    %6059 = vmatpush1.msra.mxu0 %v5932
    %6060 = vmatprep.subr.mxu0 0.0
    %6061 = vmatpush1.msra.mxu0 %v5935
    %6062 = vmatprep.subr.mxu0 0.0
    %6063 = vmatpush1.msra.mxu0 %v5938
    %6064 = vmatprep.subr.mxu0 0.0
    %6065 = vmatpush1.msra.mxu0 %v5941
    %6066 = vmatprep.subr.mxu0 0.0
    %6067 = vmatpush1.msra.mxu0 %v5944
    %6068 = vmatprep.subr.mxu0 0.0
    %6069 = vmatpush1.msra.mxu0 %v5947
    %6070 = vmatprep.subr.mxu0 0.0
    %6071 = vmatpush1.msra.mxu0 %v5950
    %6072 = vmatprep.subr.mxu0 0.0
    %6073 = vmatpush1.msra.mxu0 %v5953
    %6074 = vmatprep.subr.mxu0 0.0
    %6075 = vmatpush1.msra.mxu0 0.0
    %6076 = vmatprep.subr.mxu0 0.0
    %6077 = vmatpush1.msra.mxu0 0.0
    %6078 = vmatprep.subr.mxu0 0.0
    %6079 = vmatpush1.msra.mxu0 0.0
    %6080 = vmatprep.subr.mxu0 0.0
    %6081 = vmatpush1.msra.mxu0 0.0
    %6082 = vmatprep.subr.mxu0 0.0
    %6083 = vmatpush1.msra.mxu0 0.0
    %6084 = vmatprep.subr.mxu0 0.0
    %6085 = vmatpush1.msra.mxu0 0.0
    %6086 = vmatprep.subr.mxu0 0.0
    %6087 = vmatpush1.msra.mxu0 0.0
    %6088 = vmatprep.subr.mxu0 0.0
    %6089 = vmatpush1.msra.mxu0 0.0
    %6090 = vmatprep.subr.mxu0 0.0
    %6091 = vmatpush1.msra.mxu0 0.0
    %6092 = vmatprep.subr.mxu0 0.0
    %6093 = vmatpush1.msra.mxu0 0.0
    %6094 = vmatprep.subr.mxu0 0.0
    %6095 = vmatpush1.msra.mxu0 0.0
    %6096 = vmatprep.subr.mxu0 0.0
    %6097 = vmatpush1.msra.mxu0 0.0
    %6098 = vmatprep.subr.mxu0 0.0
    %6099 = vmatpush1.msra.mxu0 0.0
    %6100 = vmatprep.subr.mxu0 0.0
    %6101 = vmatpush1.msra.mxu0 0.0
    %6102 = vmatprep.subr.mxu0 0.0
    %6103 = vmatpush1.msra.mxu0 0.0
    %6104 = vmatprep.subr.mxu0 0.0
    %6105 = vmatpush1.msra.mxu0 0.0
    %6106 = vmatprep.mubr.f32.mxu0 0.0
    %6107 = vmatmul.mubr.f32.gmra.mrb[0].mxu0 %v5243
    %v6108 = vpop.f32.mrb[0].mxu0
    %v6109 = vadd.f32 %v5967, %v6108
    %v6110 = vpop.f32.mrb[0].mxu0
    %6111 = vdwg.mxu0
    %v6112 = vld [vmem:[%s1058] sm:$0xff]
    %v6113 = vld [vmem:[%s1058 + $0x8] sm:$0xff]
    %v6114 = vld [vmem:[%s1058 + $0x10] sm:$0xff]
    %v6115 = vld [vmem:[%s1058 + $0x18] sm:$0xff]
    %v6116 = vld [vmem:[%s1058 + $0x20] sm:$0xff]
    %v6117 = vld [vmem:[%s1058 + $0x28] sm:$0xff]
    %v6118 = vld [vmem:[%s1058 + $0x30] sm:$0xff]
    %v6119 = vld [vmem:[%s1058 + $0x38] sm:$0xff]
    %v6120 = vld [vmem:[%s1058 + $0x40] sm:$0xff]
    %v6121 = vld [vmem:[%s1058 + $0x48] sm:$0xff]
    %v6122 = vld [vmem:[%s1058 + $0x50] sm:$0xff]
    %v6123 = vld [vmem:[%s1058 + $0x58] sm:$0xff]
    %v6124 = vld [vmem:[%s1058 + $0x60] sm:$0xff]
    %v6125 = vld [vmem:[%s1058 + $0x68] sm:$0xff]
    %v6126 = vld [vmem:[%s1058 + $0x70] sm:$0xff]
    %v6127 = vld [vmem:[%s1058 + $0x78] sm:$0xff]
    %v6128 = vld [vmem:[%s1058 + $0x80] sm:$0xff]
    %v6129 = vld [vmem:[%s1058 + $0x88] sm:$0xff]
    %v6130 = vld [vmem:[%s1058 + $0x90] sm:$0xff]
    %v6131 = vld [vmem:[%s1058 + $0x98] sm:$0xff]
    %v6132 = vld [vmem:[%s1058 + $0xa0] sm:$0xff]
    %v6133 = vld [vmem:[%s1058 + $0xa8] sm:$0xff]
    %v6134 = vld [vmem:[%s1058 + $0xb0] sm:$0xff]
    %v6135 = vld [vmem:[%s1058 + $0xb8] sm:$0xff]
    %v6136 = vld [vmem:[%s1058 + $0xc0] sm:$0xff]
    %v6137 = vld [vmem:[%s1058 + $0xc8] sm:$0xff]
    %v6138 = vld [vmem:[%s1058 + $0xd0] sm:$0xff]
    %v6139 = vld [vmem:[%s1058 + $0xd8] sm:$0xff]
    %v6140 = vld [vmem:[%s1058 + $0xe0] sm:$0xff]
    %v6141 = vld [vmem:[%s1058 + $0xe8] sm:$0xff]
    %v6142 = vld [vmem:[%s1058 + $0xf0] sm:$0xff]
    %v6143 = vld [vmem:[%s1058 + $0xf8] sm:$0xff]
    %v6144 = vld [vmem:[%s1058 + $0x100] sm:$0xff]
    %v6145 = vld [vmem:[%s1058 + $0x108] sm:$0xff]
    %v6146 = vld [vmem:[%s1058 + $0x110] sm:$0xff]
    %v6147 = vld [vmem:[%s1058 + $0x118] sm:$0xff]
    %v6148 = vld [vmem:[%s1058 + $0x120] sm:$0xff]
    %v6149 = vld [vmem:[%s1058 + $0x128] sm:$0xff]
    %v6150 = vld [vmem:[%s1058 + $0x130] sm:$0xff]
    %v6151 = vld [vmem:[%s1058 + $0x138] sm:$0xff]
    %v6152 = vld [vmem:[%s1058 + $0x140] sm:$0xff]
    %v6153 = vld [vmem:[%s1058 + $0x148] sm:$0xff]
    %v6154 = vld [vmem:[%s1058 + $0x150] sm:$0xff]
    %v6155 = vld [vmem:[%s1058 + $0x158] sm:$0xff]
    %v6156 = vld [vmem:[%s1058 + $0x160] sm:$0xff]
    %v6157 = vld [vmem:[%s1058 + $0x168] sm:$0xff]
    %v6158 = vld [vmem:[%s1058 + $0x170] sm:$0xff]
    %v6159 = vld [vmem:[%s1058 + $0x178] sm:$0xff]
    %v6160 = vld [vmem:[%s1107] sm:$0x7]
    %v6162 = vlaneseq
    %v6163 = vshrl.u32 %v6162, 7
    %v6164 = vsub.s32 0, %v6163
    %v6165 = vrot.slane %v6160, %v6164
    %v6166 = vlaneseq
    %v6167 = vshrl.u32 %v6166, 7
    %v6168 = vsub.s32 1, %v6167
    %v6169 = vrot.slane %v6160, %v6168
    %v6170 = vlaneseq
    %v6171 = vshrl.u32 %v6170, 7
    %v6172 = vsub.s32 2, %v6171
    %v6173 = vrot.slane %v6160, %v6172
    %6177 = vmatprep.subr.mxu0 %v6113
    %6178 = vmatpush1.msra.mxu0 %v6112
    %6179 = vmatprep.subr.mxu0 %v6116
    %6180 = vmatpush1.msra.mxu0 %v6115
    %6181 = vmatprep.subr.mxu0 %v6119
    %6182 = vmatpush1.msra.mxu0 %v6118
    %6183 = vmatprep.subr.mxu0 %v6122
    %6184 = vmatpush1.msra.mxu0 %v6121
    %6185 = vmatprep.subr.mxu0 %v6125
    %6186 = vmatpush1.msra.mxu0 %v6124
    %6187 = vmatprep.subr.mxu0 %v6128
    %6188 = vmatpush1.msra.mxu0 %v6127
    %6189 = vmatprep.subr.mxu0 %v6131
    %6190 = vmatpush1.msra.mxu0 %v6130
    %6191 = vmatprep.subr.mxu0 %v6134
    %6192 = vmatpush1.msra.mxu0 %v6133
    %6193 = vmatprep.subr.mxu0 %v6137
    %6194 = vmatpush1.msra.mxu0 %v6136
    %6195 = vmatprep.subr.mxu0 %v6140
    %6196 = vmatpush1.msra.mxu0 %v6139
    %6197 = vmatprep.subr.mxu0 %v6143
    %6198 = vmatpush1.msra.mxu0 %v6142
    %6199 = vmatprep.subr.mxu0 %v6146
    %6200 = vmatpush1.msra.mxu0 %v6145
    %6201 = vmatprep.subr.mxu0 %v6149
    %6202 = vmatpush1.msra.mxu0 %v6148
    %6203 = vmatprep.subr.mxu0 %v6152
    %6204 = vmatpush1.msra.mxu0 %v6151
    %6205 = vmatprep.subr.mxu0 %v6155
    %6206 = vmatpush1.msra.mxu0 %v6154
    %6207 = vmatprep.subr.mxu0 %v6158
    %6208 = vmatpush1.msra.mxu0 %v6157
    %6209 = vmatprep.subr.mxu0 0.0
    %6210 = vmatpush1.msra.mxu0 0.0
    %6211 = vmatprep.subr.mxu0 0.0
    %6212 = vmatpush1.msra.mxu0 0.0
    %6213 = vmatprep.subr.mxu0 0.0
    %6214 = vmatpush1.msra.mxu0 0.0
    %6215 = vmatprep.subr.mxu0 0.0
    %6216 = vmatpush1.msra.mxu0 0.0
    %6217 = vmatprep.subr.mxu0 0.0
    %6218 = vmatpush1.msra.mxu0 0.0
    %6219 = vmatprep.subr.mxu0 0.0
    %6220 = vmatpush1.msra.mxu0 0.0
    %6221 = vmatprep.subr.mxu0 0.0
    %6222 = vmatpush1.msra.mxu0 0.0
    %6223 = vmatprep.subr.mxu0 0.0
    %6224 = vmatpush1.msra.mxu0 0.0
    %6225 = vmatprep.subr.mxu0 0.0
    %6226 = vmatpush1.msra.mxu0 0.0
    %6227 = vmatprep.subr.mxu0 0.0
    %6228 = vmatpush1.msra.mxu0 0.0
    %6229 = vmatprep.subr.mxu0 0.0
    %6230 = vmatpush1.msra.mxu0 0.0
    %6231 = vmatprep.subr.mxu0 0.0
    %6232 = vmatpush1.msra.mxu0 0.0
    %6233 = vmatprep.subr.mxu0 0.0
    %6234 = vmatpush1.msra.mxu0 0.0
    %6235 = vmatprep.subr.mxu0 0.0
    %6236 = vmatpush1.msra.mxu0 0.0
    %6237 = vmatprep.subr.mxu0 0.0
    %6238 = vmatpush1.msra.mxu0 0.0
    %6239 = vmatprep.subr.mxu0 0.0
    %6240 = vmatpush1.msra.mxu0 0.0
    %6241 = vmatprep.mubr.f32.mxu0 0.0
    %6242 = vmatmul.mubr.f32.gmra.mrb[0].mxu0 %v5675
    %v6243 = vpop.f32.mrb[0].mxu0
    %v6244 = vadd.f32 %v6165, %v6243
    %v6245 = vpop.f32.mrb[0].mxu0
    %v6246 = vadd.f32 %v6169, %v6245
    %6247 = vdwg.mxu0
    %6248 = vmatprep.subr.mxu0 0.0
    %6249 = vmatpush1.msra.mxu0 %v6114
    %6250 = vmatprep.subr.mxu0 0.0
    %6251 = vmatpush1.msra.mxu0 %v6117
    %6252 = vmatprep.subr.mxu0 0.0
    %6253 = vmatpush1.msra.mxu0 %v6120
    %6254 = vmatprep.subr.mxu0 0.0
    %6255 = vmatpush1.msra.mxu0 %v6123
    %6256 = vmatprep.subr.mxu0 0.0
    %6257 = vmatpush1.msra.mxu0 %v6126
    %6258 = vmatprep.subr.mxu0 0.0
    %6259 = vmatpush1.msra.mxu0 %v6129
    %6260 = vmatprep.subr.mxu0 0.0
    %6261 = vmatpush1.msra.mxu0 %v6132
    %6262 = vmatprep.subr.mxu0 0.0
    %6263 = vmatpush1.msra.mxu0 %v6135
    %6264 = vmatprep.subr.mxu0 0.0
    %6265 = vmatpush1.msra.mxu0 %v6138
    %6266 = vmatprep.subr.mxu0 0.0
    %6267 = vmatpush1.msra.mxu0 %v6141
    %6268 = vmatprep.subr.mxu0 0.0
    %6269 = vmatpush1.msra.mxu0 %v6144
    %6270 = vmatprep.subr.mxu0 0.0
    %6271 = vmatpush1.msra.mxu0 %v6147
    %6272 = vmatprep.subr.mxu0 0.0
    %6273 = vmatpush1.msra.mxu0 %v6150
    %6274 = vmatprep.subr.mxu0 0.0
    %6275 = vmatpush1.msra.mxu0 %v6153
    %6276 = vmatprep.subr.mxu0 0.0
    %6277 = vmatpush1.msra.mxu0 %v6156
    %6278 = vmatprep.subr.mxu0 0.0
    %6279 = vmatpush1.msra.mxu0 %v6159
    %6280 = vmatprep.subr.mxu0 0.0
    %6281 = vmatpush1.msra.mxu0 0.0
    %6282 = vmatprep.subr.mxu0 0.0
    %6283 = vmatpush1.msra.mxu0 0.0
    %6284 = vmatprep.subr.mxu0 0.0
    %6285 = vmatpush1.msra.mxu0 0.0
    %6286 = vmatprep.subr.mxu0 0.0
    %6287 = vmatpush1.msra.mxu0 0.0
    %6288 = vmatprep.subr.mxu0 0.0
    %6289 = vmatpush1.msra.mxu0 0.0
    %6290 = vmatprep.subr.mxu0 0.0
    %6291 = vmatpush1.msra.mxu0 0.0
    %6292 = vmatprep.subr.mxu0 0.0
    %6293 = vmatpush1.msra.mxu0 0.0
    %6294 = vmatprep.subr.mxu0 0.0
    %6295 = vmatpush1.msra.mxu0 0.0
    %6296 = vmatprep.subr.mxu0 0.0
    %6297 = vmatpush1.msra.mxu0 0.0
    %6298 = vmatprep.subr.mxu0 0.0
    %6299 = vmatpush1.msra.mxu0 0.0
    %6300 = vmatprep.subr.mxu0 0.0
    %6301 = vmatpush1.msra.mxu0 0.0
    %6302 = vmatprep.subr.mxu0 0.0
    %6303 = vmatpush1.msra.mxu0 0.0
    %6304 = vmatprep.subr.mxu0 0.0
    %6305 = vmatpush1.msra.mxu0 0.0
    %6306 = vmatprep.subr.mxu0 0.0
    %6307 = vmatpush1.msra.mxu0 0.0
    %6308 = vmatprep.subr.mxu0 0.0
    %6309 = vmatpush1.msra.mxu0 0.0
    %6310 = vmatprep.subr.mxu0 0.0
    %6311 = vmatpush1.msra.mxu0 0.0
    %6312 = vmatprep.mubr.f32.mxu0 0.0
    %6313 = vmatmul.mubr.f32.gmra.mrb[0].mxu0 %v5675
    %v6314 = vpop.f32.mrb[0].mxu0
    %v6315 = vadd.f32 %v6173, %v6314
    %v6316 = vpop.f32.mrb[0].mxu0
    %6317 = vdwg.mxu0
    %v6318 = vadd.f32 %v6038, %v6244
    %v6319 = vxor.u32 %v6318, 2147483648
    %v6320 = vmul.f32 %v6319, 1.442695
    %v6321 = vpow.pop %v6320
    %v6322 = vadd.f32 %v6321, 1.0
    %v6323 = vrcp.pop %v6322
    %v6324 = vmul.f32 1.0, %v6323
    %v6325 = vadd.f32 %v6040, %v6246
    %v6326 = vxor.u32 %v6325, 2147483648
    %v6327 = vmul.f32 %v6326, 1.442695
    %v6328 = vpow.pop %v6327
    %v6329 = vadd.f32 %v6328, 1.0
    %v6330 = vrcp.pop %v6329
    %v6331 = vmul.f32 1.0, %v6330
    %v6332 = vmul.f32 %v6324, %v6315
    %v6333 = vadd.f32 %v6109, %v6332
    %v6334 = vtanh.pop %v6333
    %v6335 = vsub.f32 %v5675, %v6334
    %v6336 = vmul.f32 %v6331, %v6335
    %v6337 = vadd.f32 %v6334, %v6336
    %6338 = vst [vmem:[#allocation3 + $0x10] sm:$0xff] %v6337
    %v6339 = vld [vmem:[%s850] sm:$0xff]
    %v6340 = vld [vmem:[%s850 + $0x8] sm:$0xff]
    %v6341 = vld [vmem:[%s850 + $0x10] sm:$0xff]
    %v6342 = vld [vmem:[%s850 + $0x18] sm:$0xff]
    %v6343 = vld [vmem:[%s850 + $0x20] sm:$0xff]
    %v6344 = vld [vmem:[%s850 + $0x28] sm:$0xff]
    %v6345 = vld [vmem:[%s850 + $0x30] sm:$0xff]
    %v6346 = vld [vmem:[%s850 + $0x38] sm:$0xff]
    %v6347 = vld [vmem:[%s850 + $0x40] sm:$0xff]
    %v6348 = vld [vmem:[%s850 + $0x48] sm:$0xff]
    %v6349 = vld [vmem:[%s850 + $0x50] sm:$0xff]
    %v6350 = vld [vmem:[%s850 + $0x58] sm:$0xff]
    %v6351 = vld [vmem:[%s850 + $0x60] sm:$0xff]
    %v6352 = vld [vmem:[%s850 + $0x68] sm:$0xff]
    %v6353 = vld [vmem:[%s850 + $0x70] sm:$0xff]
    %v6354 = vld [vmem:[%s850 + $0x78] sm:$0xff]
    %v6355 = vld [vmem:[%s850 + $0x80] sm:$0xff]
    %v6356 = vld [vmem:[%s850 + $0x88] sm:$0xff]
    %v6357 = vld [vmem:[%s850 + $0x90] sm:$0xff]
    %v6358 = vld [vmem:[%s850 + $0x98] sm:$0xff]
    %v6359 = vld [vmem:[%s850 + $0xa0] sm:$0xff]
    %v6360 = vld [vmem:[%s850 + $0xa8] sm:$0xff]
    %v6361 = vld [vmem:[%s850 + $0xb0] sm:$0xff]
    %v6362 = vld [vmem:[%s850 + $0xb8] sm:$0xff]
    %v6363 = vld [vmem:[%s850 + $0xc0] sm:$0xff]
    %v6364 = vld [vmem:[%s850 + $0xc8] sm:$0xff]
    %v6365 = vld [vmem:[%s850 + $0xd0] sm:$0xff]
    %v6366 = vld [vmem:[%s850 + $0xd8] sm:$0xff]
    %v6367 = vld [vmem:[%s850 + $0xe0] sm:$0xff]
    %v6368 = vld [vmem:[%s850 + $0xe8] sm:$0xff]
    %v6369 = vld [vmem:[%s850 + $0xf0] sm:$0xff]
    %v6370 = vld [vmem:[%s850 + $0xf8] sm:$0xff]
    %v6371 = vld [vmem:[%s850 + $0x100] sm:$0xff]
    %v6372 = vld [vmem:[%s850 + $0x108] sm:$0xff]
    %v6373 = vld [vmem:[%s850 + $0x110] sm:$0xff]
    %v6374 = vld [vmem:[%s850 + $0x118] sm:$0xff]
    %v6375 = vld [vmem:[%s850 + $0x120] sm:$0xff]
    %v6376 = vld [vmem:[%s850 + $0x128] sm:$0xff]
    %v6377 = vld [vmem:[%s850 + $0x130] sm:$0xff]
    %v6378 = vld [vmem:[%s850 + $0x138] sm:$0xff]
    %v6379 = vld [vmem:[%s850 + $0x140] sm:$0xff]
    %v6380 = vld [vmem:[%s850 + $0x148] sm:$0xff]
    %v6381 = vld [vmem:[%s850 + $0x150] sm:$0xff]
    %v6382 = vld [vmem:[%s850 + $0x158] sm:$0xff]
    %v6383 = vld [vmem:[%s850 + $0x160] sm:$0xff]
    %v6384 = vld [vmem:[%s850 + $0x168] sm:$0xff]
    %v6385 = vld [vmem:[%s850 + $0x170] sm:$0xff]
    %v6386 = vld [vmem:[%s850 + $0x178] sm:$0xff]
    %v6387 = vld [vmem:[%s899] sm:$0x7]
    %v6389 = vlaneseq
    %v6390 = vshrl.u32 %v6389, 7
    %v6391 = vsub.s32 0, %v6390
    %v6392 = vrot.slane %v6387, %v6391
    %v6393 = vlaneseq
    %v6394 = vshrl.u32 %v6393, 7
    %v6395 = vsub.s32 1, %v6394
    %v6396 = vrot.slane %v6387, %v6395
    %v6397 = vlaneseq
    %v6398 = vshrl.u32 %v6397, 7
    %v6399 = vsub.s32 2, %v6398
    %v6400 = vrot.slane %v6387, %v6399
    %6404 = vmatprep.subr.mxu0 %v6340
    %6405 = vmatpush1.msra.mxu0 %v6339
    %6406 = vmatprep.subr.mxu0 %v6343
    %6407 = vmatpush1.msra.mxu0 %v6342
    %6408 = vmatprep.subr.mxu0 %v6346
    %6409 = vmatpush1.msra.mxu0 %v6345
    %6410 = vmatprep.subr.mxu0 %v6349
    %6411 = vmatpush1.msra.mxu0 %v6348
    %6412 = vmatprep.subr.mxu0 %v6352
    %6413 = vmatpush1.msra.mxu0 %v6351
    %6414 = vmatprep.subr.mxu0 %v6355
    %6415 = vmatpush1.msra.mxu0 %v6354
    %6416 = vmatprep.subr.mxu0 %v6358
    %6417 = vmatpush1.msra.mxu0 %v6357
    %6418 = vmatprep.subr.mxu0 %v6361
    %6419 = vmatpush1.msra.mxu0 %v6360
    %6420 = vmatprep.subr.mxu0 %v6364
    %6421 = vmatpush1.msra.mxu0 %v6363
    %6422 = vmatprep.subr.mxu0 %v6367
    %6423 = vmatpush1.msra.mxu0 %v6366
    %6424 = vmatprep.subr.mxu0 %v6370
    %6425 = vmatpush1.msra.mxu0 %v6369
    %6426 = vmatprep.subr.mxu0 %v6373
    %6427 = vmatpush1.msra.mxu0 %v6372
    %6428 = vmatprep.subr.mxu0 %v6376
    %6429 = vmatpush1.msra.mxu0 %v6375
    %6430 = vmatprep.subr.mxu0 %v6379
    %6431 = vmatpush1.msra.mxu0 %v6378
    %6432 = vmatprep.subr.mxu0 %v6382
    %6433 = vmatpush1.msra.mxu0 %v6381
    %6434 = vmatprep.subr.mxu0 %v6385
    %6435 = vmatpush1.msra.mxu0 %v6384
    %6436 = vmatprep.subr.mxu0 0.0
    %6437 = vmatpush1.msra.mxu0 0.0
    %6438 = vmatprep.subr.mxu0 0.0
    %6439 = vmatpush1.msra.mxu0 0.0
    %6440 = vmatprep.subr.mxu0 0.0
    %6441 = vmatpush1.msra.mxu0 0.0
    %6442 = vmatprep.subr.mxu0 0.0
    %6443 = vmatpush1.msra.mxu0 0.0
    %6444 = vmatprep.subr.mxu0 0.0
    %6445 = vmatpush1.msra.mxu0 0.0
    %6446 = vmatprep.subr.mxu0 0.0
    %6447 = vmatpush1.msra.mxu0 0.0
    %6448 = vmatprep.subr.mxu0 0.0
    %6449 = vmatpush1.msra.mxu0 0.0
    %6450 = vmatprep.subr.mxu0 0.0
    %6451 = vmatpush1.msra.mxu0 0.0
    %6452 = vmatprep.subr.mxu0 0.0
    %6453 = vmatpush1.msra.mxu0 0.0
    %6454 = vmatprep.subr.mxu0 0.0
    %6455 = vmatpush1.msra.mxu0 0.0
    %6456 = vmatprep.subr.mxu0 0.0
    %6457 = vmatpush1.msra.mxu0 0.0
    %6458 = vmatprep.subr.mxu0 0.0
    %6459 = vmatpush1.msra.mxu0 0.0
    %6460 = vmatprep.subr.mxu0 0.0
    %6461 = vmatpush1.msra.mxu0 0.0
    %6462 = vmatprep.subr.mxu0 0.0
    %6463 = vmatpush1.msra.mxu0 0.0
    %6464 = vmatprep.subr.mxu0 0.0
    %6465 = vmatpush1.msra.mxu0 0.0
    %6466 = vmatprep.subr.mxu0 0.0
    %6467 = vmatpush1.msra.mxu0 0.0
    %6468 = vmatprep.mubr.f32.mxu0 0.0
    %6469 = vmatmul.mubr.f32.gmra.mrb[0].mxu0 %v5905
    %v6470 = vpop.f32.mrb[0].mxu0
    %v6471 = vadd.f32 %v6392, %v6470
    %v6472 = vpop.f32.mrb[0].mxu0
    %v6473 = vadd.f32 %v6396, %v6472
    %6474 = vdwg.mxu0
    %6475 = vmatprep.subr.mxu0 0.0
    %6476 = vmatpush1.msra.mxu0 %v6341
    %6477 = vmatprep.subr.mxu0 0.0
    %6478 = vmatpush1.msra.mxu0 %v6344
    %6479 = vmatprep.subr.mxu0 0.0
    %6480 = vmatpush1.msra.mxu0 %v6347
    %6481 = vmatprep.subr.mxu0 0.0
    %6482 = vmatpush1.msra.mxu0 %v6350
    %6483 = vmatprep.subr.mxu0 0.0
    %6484 = vmatpush1.msra.mxu0 %v6353
    %6485 = vmatprep.subr.mxu0 0.0
    %6486 = vmatpush1.msra.mxu0 %v6356
    %6487 = vmatprep.subr.mxu0 0.0
    %6488 = vmatpush1.msra.mxu0 %v6359
    %6489 = vmatprep.subr.mxu0 0.0
    %6490 = vmatpush1.msra.mxu0 %v6362
    %6491 = vmatprep.subr.mxu0 0.0
    %6492 = vmatpush1.msra.mxu0 %v6365
    %6493 = vmatprep.subr.mxu0 0.0
    %6494 = vmatpush1.msra.mxu0 %v6368
    %6495 = vmatprep.subr.mxu0 0.0
    %6496 = vmatpush1.msra.mxu0 %v6371
    %6497 = vmatprep.subr.mxu0 0.0
    %6498 = vmatpush1.msra.mxu0 %v6374
    %6499 = vmatprep.subr.mxu0 0.0
    %6500 = vmatpush1.msra.mxu0 %v6377
    %6501 = vmatprep.subr.mxu0 0.0
    %6502 = vmatpush1.msra.mxu0 %v6380
    %6503 = vmatprep.subr.mxu0 0.0
    %6504 = vmatpush1.msra.mxu0 %v6383
    %6505 = vmatprep.subr.mxu0 0.0
    %6506 = vmatpush1.msra.mxu0 %v6386
    %6507 = vmatprep.subr.mxu0 0.0
    %6508 = vmatpush1.msra.mxu0 0.0
    %6509 = vmatprep.subr.mxu0 0.0
    %6510 = vmatpush1.msra.mxu0 0.0
    %6511 = vmatprep.subr.mxu0 0.0
    %6512 = vmatpush1.msra.mxu0 0.0
    %6513 = vmatprep.subr.mxu0 0.0
    %6514 = vmatpush1.msra.mxu0 0.0
    %6515 = vmatprep.subr.mxu0 0.0
    %6516 = vmatpush1.msra.mxu0 0.0
    %6517 = vmatprep.subr.mxu0 0.0
    %6518 = vmatpush1.msra.mxu0 0.0
    %6519 = vmatprep.subr.mxu0 0.0
    %6520 = vmatpush1.msra.mxu0 0.0
    %6521 = vmatprep.subr.mxu0 0.0
    %6522 = vmatpush1.msra.mxu0 0.0
    %6523 = vmatprep.subr.mxu0 0.0
    %6524 = vmatpush1.msra.mxu0 0.0
    %6525 = vmatprep.subr.mxu0 0.0
    %6526 = vmatpush1.msra.mxu0 0.0
    %6527 = vmatprep.subr.mxu0 0.0
    %6528 = vmatpush1.msra.mxu0 0.0
    %6529 = vmatprep.subr.mxu0 0.0
    %6530 = vmatpush1.msra.mxu0 0.0
    %6531 = vmatprep.subr.mxu0 0.0
    %6532 = vmatpush1.msra.mxu0 0.0
    %6533 = vmatprep.subr.mxu0 0.0
    %6534 = vmatpush1.msra.mxu0 0.0
    %6535 = vmatprep.subr.mxu0 0.0
    %6536 = vmatpush1.msra.mxu0 0.0
    %6537 = vmatprep.subr.mxu0 0.0
    %6538 = vmatpush1.msra.mxu0 0.0
    %6539 = vmatprep.mubr.f32.mxu0 0.0
    %6540 = vmatmul.mubr.f32.gmra.mrb[0].mxu0 %v5905
    %v6541 = vpop.f32.mrb[0].mxu0
    %v6542 = vadd.f32 %v6400, %v6541
    %v6543 = vpop.f32.mrb[0].mxu0
    %6544 = vdwg.mxu0
    %v6545 = vld [vmem:[%s1058] sm:$0xff]
    %v6546 = vld [vmem:[%s1058 + $0x8] sm:$0xff]
    %v6547 = vld [vmem:[%s1058 + $0x10] sm:$0xff]
    %v6548 = vld [vmem:[%s1058 + $0x18] sm:$0xff]
    %v6549 = vld [vmem:[%s1058 + $0x20] sm:$0xff]
    %v6550 = vld [vmem:[%s1058 + $0x28] sm:$0xff]
    %v6551 = vld [vmem:[%s1058 + $0x30] sm:$0xff]
    %v6552 = vld [vmem:[%s1058 + $0x38] sm:$0xff]
    %v6553 = vld [vmem:[%s1058 + $0x40] sm:$0xff]
    %v6554 = vld [vmem:[%s1058 + $0x48] sm:$0xff]
    %v6555 = vld [vmem:[%s1058 + $0x50] sm:$0xff]
    %v6556 = vld [vmem:[%s1058 + $0x58] sm:$0xff]
    %v6557 = vld [vmem:[%s1058 + $0x60] sm:$0xff]
    %v6558 = vld [vmem:[%s1058 + $0x68] sm:$0xff]
    %v6559 = vld [vmem:[%s1058 + $0x70] sm:$0xff]
    %v6560 = vld [vmem:[%s1058 + $0x78] sm:$0xff]
    %v6561 = vld [vmem:[%s1058 + $0x80] sm:$0xff]
    %v6562 = vld [vmem:[%s1058 + $0x88] sm:$0xff]
    %v6563 = vld [vmem:[%s1058 + $0x90] sm:$0xff]
    %v6564 = vld [vmem:[%s1058 + $0x98] sm:$0xff]
    %v6565 = vld [vmem:[%s1058 + $0xa0] sm:$0xff]
    %v6566 = vld [vmem:[%s1058 + $0xa8] sm:$0xff]
    %v6567 = vld [vmem:[%s1058 + $0xb0] sm:$0xff]
    %v6568 = vld [vmem:[%s1058 + $0xb8] sm:$0xff]
    %v6569 = vld [vmem:[%s1058 + $0xc0] sm:$0xff]
    %v6570 = vld [vmem:[%s1058 + $0xc8] sm:$0xff]
    %v6571 = vld [vmem:[%s1058 + $0xd0] sm:$0xff]
    %v6572 = vld [vmem:[%s1058 + $0xd8] sm:$0xff]
    %v6573 = vld [vmem:[%s1058 + $0xe0] sm:$0xff]
    %v6574 = vld [vmem:[%s1058 + $0xe8] sm:$0xff]
    %v6575 = vld [vmem:[%s1058 + $0xf0] sm:$0xff]
    %v6576 = vld [vmem:[%s1058 + $0xf8] sm:$0xff]
    %v6577 = vld [vmem:[%s1058 + $0x100] sm:$0xff]
    %v6578 = vld [vmem:[%s1058 + $0x108] sm:$0xff]
    %v6579 = vld [vmem:[%s1058 + $0x110] sm:$0xff]
    %v6580 = vld [vmem:[%s1058 + $0x118] sm:$0xff]
    %v6581 = vld [vmem:[%s1058 + $0x120] sm:$0xff]
    %v6582 = vld [vmem:[%s1058 + $0x128] sm:$0xff]
    %v6583 = vld [vmem:[%s1058 + $0x130] sm:$0xff]
    %v6584 = vld [vmem:[%s1058 + $0x138] sm:$0xff]
    %v6585 = vld [vmem:[%s1058 + $0x140] sm:$0xff]
    %v6586 = vld [vmem:[%s1058 + $0x148] sm:$0xff]
    %v6587 = vld [vmem:[%s1058 + $0x150] sm:$0xff]
    %v6588 = vld [vmem:[%s1058 + $0x158] sm:$0xff]
    %v6589 = vld [vmem:[%s1058 + $0x160] sm:$0xff]
    %v6590 = vld [vmem:[%s1058 + $0x168] sm:$0xff]
    %v6591 = vld [vmem:[%s1058 + $0x170] sm:$0xff]
    %v6592 = vld [vmem:[%s1058 + $0x178] sm:$0xff]
    %v6593 = vld [vmem:[%s1107] sm:$0x7]
    %v6595 = vlaneseq
    %v6596 = vshrl.u32 %v6595, 7
    %v6597 = vsub.s32 0, %v6596
    %v6598 = vrot.slane %v6593, %v6597
    %v6599 = vlaneseq
    %v6600 = vshrl.u32 %v6599, 7
    %v6601 = vsub.s32 1, %v6600
    %v6602 = vrot.slane %v6593, %v6601
    %v6603 = vlaneseq
    %v6604 = vshrl.u32 %v6603, 7
    %v6605 = vsub.s32 2, %v6604
    %v6606 = vrot.slane %v6593, %v6605
    %6610 = vmatprep.subr.mxu0 %v6546
    %6611 = vmatpush1.msra.mxu0 %v6545
    %6612 = vmatprep.subr.mxu0 %v6549
    %6613 = vmatpush1.msra.mxu0 %v6548
    %6614 = vmatprep.subr.mxu0 %v6552
    %6615 = vmatpush1.msra.mxu0 %v6551
    %6616 = vmatprep.subr.mxu0 %v6555
    %6617 = vmatpush1.msra.mxu0 %v6554
    %6618 = vmatprep.subr.mxu0 %v6558
    %6619 = vmatpush1.msra.mxu0 %v6557
    %6620 = vmatprep.subr.mxu0 %v6561
    %6621 = vmatpush1.msra.mxu0 %v6560
    %6622 = vmatprep.subr.mxu0 %v6564
    %6623 = vmatpush1.msra.mxu0 %v6563
    %6624 = vmatprep.subr.mxu0 %v6567
    %6625 = vmatpush1.msra.mxu0 %v6566
    %6626 = vmatprep.subr.mxu0 %v6570
    %6627 = vmatpush1.msra.mxu0 %v6569
    %6628 = vmatprep.subr.mxu0 %v6573
    %6629 = vmatpush1.msra.mxu0 %v6572
    %6630 = vmatprep.subr.mxu0 %v6576
    %6631 = vmatpush1.msra.mxu0 %v6575
    %6632 = vmatprep.subr.mxu0 %v6579
    %6633 = vmatpush1.msra.mxu0 %v6578
    %6634 = vmatprep.subr.mxu0 %v6582
    %6635 = vmatpush1.msra.mxu0 %v6581
    %6636 = vmatprep.subr.mxu0 %v6585
    %6637 = vmatpush1.msra.mxu0 %v6584
    %6638 = vmatprep.subr.mxu0 %v6588
    %6639 = vmatpush1.msra.mxu0 %v6587
    %6640 = vmatprep.subr.mxu0 %v6591
    %6641 = vmatpush1.msra.mxu0 %v6590
    %6642 = vmatprep.subr.mxu0 0.0
    %6643 = vmatpush1.msra.mxu0 0.0
    %6644 = vmatprep.subr.mxu0 0.0
    %6645 = vmatpush1.msra.mxu0 0.0
    %6646 = vmatprep.subr.mxu0 0.0
    %6647 = vmatpush1.msra.mxu0 0.0
    %6648 = vmatprep.subr.mxu0 0.0
    %6649 = vmatpush1.msra.mxu0 0.0
    %6650 = vmatprep.subr.mxu0 0.0
    %6651 = vmatpush1.msra.mxu0 0.0
    %6652 = vmatprep.subr.mxu0 0.0
    %6653 = vmatpush1.msra.mxu0 0.0
    %6654 = vmatprep.subr.mxu0 0.0
    %6655 = vmatpush1.msra.mxu0 0.0
    %6656 = vmatprep.subr.mxu0 0.0
    %6657 = vmatpush1.msra.mxu0 0.0
    %6658 = vmatprep.subr.mxu0 0.0
    %6659 = vmatpush1.msra.mxu0 0.0
    %6660 = vmatprep.subr.mxu0 0.0
    %6661 = vmatpush1.msra.mxu0 0.0
    %6662 = vmatprep.subr.mxu0 0.0
    %6663 = vmatpush1.msra.mxu0 0.0
    %6664 = vmatprep.subr.mxu0 0.0
    %6665 = vmatpush1.msra.mxu0 0.0
    %6666 = vmatprep.subr.mxu0 0.0
    %6667 = vmatpush1.msra.mxu0 0.0
    %6668 = vmatprep.subr.mxu0 0.0
    %6669 = vmatpush1.msra.mxu0 0.0
    %6670 = vmatprep.subr.mxu0 0.0
    %6671 = vmatpush1.msra.mxu0 0.0
    %6672 = vmatprep.subr.mxu0 0.0
    %6673 = vmatpush1.msra.mxu0 0.0
    %6674 = vmatprep.mubr.f32.mxu0 0.0
    %6675 = vmatmul.mubr.f32.gmra.mrb[0].mxu0 %v6337
    %v6676 = vpop.f32.mrb[0].mxu0
    %v6677 = vadd.f32 %v6598, %v6676
    %v6678 = vpop.f32.mrb[0].mxu0
    %v6679 = vadd.f32 %v6602, %v6678
    %6680 = vdwg.mxu0
    %6681 = vmatprep.subr.mxu0 0.0
    %6682 = vmatpush1.msra.mxu0 %v6547
    %6683 = vmatprep.subr.mxu0 0.0
    %6684 = vmatpush1.msra.mxu0 %v6550
    %6685 = vmatprep.subr.mxu0 0.0
    %6686 = vmatpush1.msra.mxu0 %v6553
    %6687 = vmatprep.subr.mxu0 0.0
    %6688 = vmatpush1.msra.mxu0 %v6556
    %6689 = vmatprep.subr.mxu0 0.0
    %6690 = vmatpush1.msra.mxu0 %v6559
    %6691 = vmatprep.subr.mxu0 0.0
    %6692 = vmatpush1.msra.mxu0 %v6562
    %6693 = vmatprep.subr.mxu0 0.0
    %6694 = vmatpush1.msra.mxu0 %v6565
    %6695 = vmatprep.subr.mxu0 0.0
    %6696 = vmatpush1.msra.mxu0 %v6568
    %6697 = vmatprep.subr.mxu0 0.0
    %6698 = vmatpush1.msra.mxu0 %v6571
    %6699 = vmatprep.subr.mxu0 0.0
    %6700 = vmatpush1.msra.mxu0 %v6574
    %6701 = vmatprep.subr.mxu0 0.0
    %6702 = vmatpush1.msra.mxu0 %v6577
    %6703 = vmatprep.subr.mxu0 0.0
    %6704 = vmatpush1.msra.mxu0 %v6580
    %6705 = vmatprep.subr.mxu0 0.0
    %6706 = vmatpush1.msra.mxu0 %v6583
    %6707 = vmatprep.subr.mxu0 0.0
    %6708 = vmatpush1.msra.mxu0 %v6586
    %6709 = vmatprep.subr.mxu0 0.0
    %6710 = vmatpush1.msra.mxu0 %v6589
    %6711 = vmatprep.subr.mxu0 0.0
    %6712 = vmatpush1.msra.mxu0 %v6592
    %6713 = vmatprep.subr.mxu0 0.0
    %6714 = vmatpush1.msra.mxu0 0.0
    %6715 = vmatprep.subr.mxu0 0.0
    %6716 = vmatpush1.msra.mxu0 0.0
    %6717 = vmatprep.subr.mxu0 0.0
    %6718 = vmatpush1.msra.mxu0 0.0
    %6719 = vmatprep.subr.mxu0 0.0
    %6720 = vmatpush1.msra.mxu0 0.0
    %6721 = vmatprep.subr.mxu0 0.0
    %6722 = vmatpush1.msra.mxu0 0.0
    %6723 = vmatprep.subr.mxu0 0.0
    %6724 = vmatpush1.msra.mxu0 0.0
    %6725 = vmatprep.subr.mxu0 0.0
    %6726 = vmatpush1.msra.mxu0 0.0
    %6727 = vmatprep.subr.mxu0 0.0
    %6728 = vmatpush1.msra.mxu0 0.0
    %6729 = vmatprep.subr.mxu0 0.0
    %6730 = vmatpush1.msra.mxu0 0.0
    %6731 = vmatprep.subr.mxu0 0.0
    %6732 = vmatpush1.msra.mxu0 0.0
    %6733 = vmatprep.subr.mxu0 0.0
    %6734 = vmatpush1.msra.mxu0 0.0
    %6735 = vmatprep.subr.mxu0 0.0
    %6736 = vmatpush1.msra.mxu0 0.0
    %6737 = vmatprep.subr.mxu0 0.0
    %6738 = vmatpush1.msra.mxu0 0.0
    %6739 = vmatprep.subr.mxu0 0.0
    %6740 = vmatpush1.msra.mxu0 0.0
    %6741 = vmatprep.subr.mxu0 0.0
    %6742 = vmatpush1.msra.mxu0 0.0
    %6743 = vmatprep.subr.mxu0 0.0
    %6744 = vmatpush1.msra.mxu0 0.0
    %6745 = vmatprep.mubr.f32.mxu0 0.0
    %6746 = vmatmul.mubr.f32.gmra.mrb[0].mxu0 %v6337
    %v6747 = vpop.f32.mrb[0].mxu0
    %v6748 = vadd.f32 %v6606, %v6747
    %v6749 = vpop.f32.mrb[0].mxu0
    %6750 = vdwg.mxu0
    %v6751 = vadd.f32 %v6471, %v6677
    %v6752 = vxor.u32 %v6751, 2147483648
    %v6753 = vmul.f32 %v6752, 1.442695
    %v6754 = vpow.pop %v6753
    %v6755 = vadd.f32 %v6754, 1.0
    %v6756 = vrcp.pop %v6755
    %v6757 = vmul.f32 1.0, %v6756
    %v6758 = vadd.f32 %v6473, %v6679
    %v6759 = vxor.u32 %v6758, 2147483648
    %v6760 = vmul.f32 %v6759, 1.442695
    %v6761 = vpow.pop %v6760
    %v6762 = vadd.f32 %v6761, 1.0
    %v6763 = vrcp.pop %v6762
    %v6764 = vmul.f32 1.0, %v6763
    %v6765 = vmul.f32 %v6757, %v6748
    %v6766 = vadd.f32 %v6542, %v6765
    %v6767 = vtanh.pop %v6766
    %v6768 = vsub.f32 %v6337, %v6767
    %v6769 = vmul.f32 %v6764, %v6768
    %v6770 = vadd.f32 %v6767, %v6769
    %6771 = vst [vmem:[#allocation3 + $0x18] sm:$0xff] %v6770
    %v6772 = vld [vmem:[#allocation3] sm:$0xff]
    %v6773 = vld [vmem:[#allocation3 + $0x8] sm:$0xff]
    %v6774 = vld [vmem:[#allocation3 + $0x10] sm:$0xff]
    %v6775 = vld [vmem:[#allocation3 + $0x18] sm:$0xff]
    %v6776 = vld [vmem:[#allocation10] sm:$0xff]
    %v6777 = vld [vmem:[#allocation10 + $0x8] sm:$0xff]
    %v6778 = vld [vmem:[#allocation10 + $0x10] sm:$0xff]
    %v6779 = vld [vmem:[#allocation10 + $0x18] sm:$0xff]
    %v6780 = vld [vmem:[#allocation10 + $0x20] sm:$0xff]
    %v6781 = vld [vmem:[#allocation10 + $0x28] sm:$0xff]
    %v6782 = vld [vmem:[#allocation10 + $0x30] sm:$0xff]
    %v6783 = vld [vmem:[#allocation10 + $0x38] sm:$0xff]
    %v6784 = vld [vmem:[#allocation10 + $0x40] sm:$0xff]
    %v6785 = vld [vmem:[#allocation10 + $0x48] sm:$0xff]
    %v6786 = vld [vmem:[#allocation10 + $0x50] sm:$0xff]
    %v6787 = vld [vmem:[#allocation10 + $0x58] sm:$0xff]
    %v6788 = vld [vmem:[#allocation10 + $0x60] sm:$0xff]
    %v6789 = vld [vmem:[#allocation10 + $0x68] sm:$0xff]
    %v6790 = vld [vmem:[#allocation10 + $0x70] sm:$0xff]
    %v6791 = vld [vmem:[#allocation10 + $0x78] sm:$0xff]
    %v6792 = vld [vmem:[%s6] sm:$0x1]
    %v6794 = vlaneseq
    %v6795 = vshrl.u32 %v6794, 7
    %v6796 = vsub.s32 0, %v6795
    %v6797 = vrot.slane %v6792, %v6796
    %6799 = vmatprep.subr.mxu0 0.0
    %6800 = vmatpush1.msra.mxu0 %v6776
    %6801 = vmatprep.subr.mxu0 0.0
    %6802 = vmatpush1.msra.mxu0 %v6777
    %6803 = vmatprep.subr.mxu0 0.0
    %6804 = vmatpush1.msra.mxu0 %v6778
    %6805 = vmatprep.subr.mxu0 0.0
    %6806 = vmatpush1.msra.mxu0 %v6779
    %6807 = vmatprep.subr.mxu0 0.0
    %6808 = vmatpush1.msra.mxu0 %v6780
    %6809 = vmatprep.subr.mxu0 0.0
    %6810 = vmatpush1.msra.mxu0 %v6781
    %6811 = vmatprep.subr.mxu0 0.0
    %6812 = vmatpush1.msra.mxu0 %v6782
    %6813 = vmatprep.subr.mxu0 0.0
    %6814 = vmatpush1.msra.mxu0 %v6783
    %6815 = vmatprep.subr.mxu0 0.0
    %6816 = vmatpush1.msra.mxu0 %v6784
    %6817 = vmatprep.subr.mxu0 0.0
    %6818 = vmatpush1.msra.mxu0 %v6785
    %6819 = vmatprep.subr.mxu0 0.0
    %6820 = vmatpush1.msra.mxu0 %v6786
    %6821 = vmatprep.subr.mxu0 0.0
    %6822 = vmatpush1.msra.mxu0 %v6787
    %6823 = vmatprep.subr.mxu0 0.0
    %6824 = vmatpush1.msra.mxu0 %v6788
    %6825 = vmatprep.subr.mxu0 0.0
    %6826 = vmatpush1.msra.mxu0 %v6789
    %6827 = vmatprep.subr.mxu0 0.0
    %6828 = vmatpush1.msra.mxu0 %v6790
    %6829 = vmatprep.subr.mxu0 0.0
    %6830 = vmatpush1.msra.mxu0 %v6791
    %6831 = vmatprep.subr.mxu0 0.0
    %6832 = vmatpush1.msra.mxu0 0.0
    %6833 = vmatprep.subr.mxu0 0.0
    %6834 = vmatpush1.msra.mxu0 0.0
    %6835 = vmatprep.subr.mxu0 0.0
    %6836 = vmatpush1.msra.mxu0 0.0
    %6837 = vmatprep.subr.mxu0 0.0
    %6838 = vmatpush1.msra.mxu0 0.0
    %6839 = vmatprep.subr.mxu0 0.0
    %6840 = vmatpush1.msra.mxu0 0.0
    %6841 = vmatprep.subr.mxu0 0.0
    %6842 = vmatpush1.msra.mxu0 0.0
    %6843 = vmatprep.subr.mxu0 0.0
    %6844 = vmatpush1.msra.mxu0 0.0
    %6845 = vmatprep.subr.mxu0 0.0
    %6846 = vmatpush1.msra.mxu0 0.0
    %6847 = vmatprep.subr.mxu0 0.0
    %6848 = vmatpush1.msra.mxu0 0.0
    %6849 = vmatprep.subr.mxu0 0.0
    %6850 = vmatpush1.msra.mxu0 0.0
    %6851 = vmatprep.subr.mxu0 0.0
    %6852 = vmatpush1.msra.mxu0 0.0
    %6853 = vmatprep.subr.mxu0 0.0
    %6854 = vmatpush1.msra.mxu0 0.0
    %6855 = vmatprep.subr.mxu0 0.0
    %6856 = vmatpush1.msra.mxu0 0.0
    %6857 = vmatprep.subr.mxu0 0.0
    %6858 = vmatpush1.msra.mxu0 0.0
    %6859 = vmatprep.subr.mxu0 0.0
    %6860 = vmatpush1.msra.mxu0 0.0
    %6861 = vmatprep.subr.mxu0 0.0
    %6862 = vmatpush1.msra.mxu0 0.0
    %6863 = vmatprep.mubr.f32.mxu0 0.0
    %6864 = vmatmul.mubr.f32.gmra.mrb[0].mxu0 %v6772
    %v6865 = vpop.f32.mrb[0].mxu0
    %v6866 = vadd.f32 %v6797, %v6865
    %v6867 = vpop.f32.mrb[0].mxu0
    %6868 = vmatprep.mubr.f32.mxu0 0.0
    %6869 = vmatmul.mubr.f32.gmra.mrb[0].mxu0 %v6773
    %v6870 = vpop.f32.mrb[0].mxu0
    %v6871 = vadd.f32 %v6797, %v6870
    %v6872 = vpop.f32.mrb[0].mxu0
    %6873 = vmatprep.mubr.f32.mxu0 0.0
    %6874 = vmatmul.mubr.f32.gmra.mrb[0].mxu0 %v6774
    %v6875 = vpop.f32.mrb[0].mxu0
    %v6876 = vadd.f32 %v6797, %v6875
    %v6877 = vpop.f32.mrb[0].mxu0
    %6878 = vmatprep.mubr.f32.mxu0 0.0
    %6879 = vmatmul.mubr.f32.gmra.mrb[0].mxu0 %v6775
    %v6880 = vpop.f32.mrb[0].mxu0
    %v6881 = vadd.f32 %v6797, %v6880
    %v6882 = vpop.f32.mrb[0].mxu0
    %6883 = vdwg.mxu0
    %6884 = vst [vmem:[#allocation12] sm:$0xff] %v6866
    %6885 = vst [vmem:[#allocation12 + $0x8] sm:$0xff] %v6871
    %6886 = vst [vmem:[#allocation12 + $0x10] sm:$0xff] %v6876
    %6887 = vst [vmem:[#allocation12 + $0x18] sm:$0xff] %v6881
    // Predicated region
    $region46: #{tpu_custom_call.1} parent=1 // pred_check
      _
    $region47: #{tpu_custom_call.1} parent=1 // pred_check_branch
      %6889 = sbr.rel (0) target = $region49
    $region48: #{tpu_custom_call.1} parent=1 // pred_region
      %s6891 = ssub.s32 512, 512
      %6892 = vsyncadd [#allocation6], %s6891
      %s6893 = sshll.u32 [#allocation12], 4
      %s6894 = int_to_ptr.vmem [resolvable:$true] %s6893
      %6899 = dma.vmem_to_hbm [thread:$0]  %s6894, 512, %s7, [#allocation6], 128, 128, 8
    $region49: #{tpu_custom_call.1} parent=1 // pred_fallthru
      _
    // Predicated region
    $region50: #{tpu_custom_call.1} parent=1 // pred_check
      _
    $region51: #{tpu_custom_call.1} parent=1 // pred_check_branch
      %6901 = sbr.rel (0) target = $region53
    $region52: #{tpu_custom_call.1} parent=1 // pred_region
      %6902 = dma.done [#allocation6], 512
    $region53: #{tpu_custom_call.1} parent=1 // pred_fallthru
      _
    %6903 = vsyncpa [#allocation5], 1
    %6904 = vsyncpa [#allocation8], 1
    %6905 = vsyncpa [#allocation11], 1
    %6906 = vsyncpa [#allocation6], 1

</llo_original>
